<compile_context>
chip_gen: v7x
topology: tpu7x:2x2x1
jax: 0.10.0
libtpu: 0.0.40
codegen_flags: <defaults>
</compile_context>

<pallas_src>
import math

import jax
import jax.numpy as jnp
from jax import lax
from jax.experimental import pallas as pl
from jax.experimental.pallas import tpu as pltpu

# ----------------------- synthetic model config -----------------------
B = 2                    # batch
C_IN = 6                 # use_suppl=True -> 6-channel input image
IMG = 16                 # image H = W
PATCH = 8                # ViT patch size -> (16/8)^2 = 4 patches
N_PATCH = (IMG // PATCH) ** 2
WIN = PATCH + 2          # 10x10 halo window feeding the fused conv∘patch-embed matmul
PATCH_DIM = C_IN * WIN * WIN            # 600
D_MODEL = 64             # d_model (ViT embed dim == decoder dim, as in the module)
D_FF_VIT = 4 * D_MODEL   # timm ViT MLP ratio 4
D_FF_DEC = 128           # d_model_forward (decoder FFN)
D_LABEL = 20             # vocabulary size of layout tokens
LOGIT_PAD = 128          # lane-dense logits slab (sliced to D_LABEL in the wrapper)
T_SEQ = 8                # target sequence length
N_ENC_LAYERS = 2         # num_encoder_layers (ViT blocks kept)
N_DEC_LAYERS = 2         # num_decoder_layers
VIT_HEADS = 4
DEC_HEADS = 8            # nn.TransformerDecoderLayer default num_heads=8

NEG_INF = -1e30          # finite "-inf": fully-masked rows give uniform attn, never NaN

WEIGHT_ORDER = (
    "patch_w", "patch_b", "pos_embed",
    "vit_ln_w", "vit_ln_b", "vit_qkv_w", "vit_qkv_b", "vit_out_w", "vit_out_b",
    "vit_fc1_w", "vit_fc1_b", "vit_fc2_w", "vit_fc2_b",
    "lte_w1", "lte_b1", "lte_ln_w", "lte_ln_b", "lte_w2", "lte_b2",
    "dec_ln_w", "dec_ln_b",
    "sa_qkv_w", "sa_qkv_b", "sa_out_w", "sa_out_b",
    "ca_qkv_w", "ca_qkv_b", "ca_out_w", "ca_out_b",
    "ff1_w", "ff1_b", "ff2_w", "ff2_b",
    "head_ln_w", "head_ln_b", "head_w",
)


# ======================= in-kernel helpers (traced inside the kernel) =======================

def _mm(a, w):
    """MXU matmul: activation cast to bf16, weight already bf16, f32 accumulation."""
    return jnp.dot(a.astype(jnp.bfloat16), w, preferred_element_type=jnp.float32)


def _ln(x, g, b, eps):
    """LayerNorm over the last axis with f32 statistics."""
    mu = jnp.mean(x, axis=-1, keepdims=True)
    xc = x - mu
    var = jnp.mean(xc * xc, axis=-1, keepdims=True)
    return xc * lax.rsqrt(var + eps) * g + b


def _mha(h_q, h_kv, qkv_w_ref, qkv_b_ref, out_w_ref, out_b_ref, l, mask_exp, heads):
    """Multi-head attention without a per-head loop and without in-kernel transposes.

    h_q:  (Tq, D) f32      (layer-normed query input)
    h_kv: (Tk, D) f32      (key/value input; == h_q for self-attention)
    qkv_w_ref: (L, 3, D, D) bf16   per-slot projection weights (W.T layout)
    qkv_b_ref: (L, 3, 1, D) f32
    out_w_ref: (L, D, D)    bf16   out_proj.weight.T
    out_b_ref: (L, 1, D)    f32
    mask_exp:  (Tq, heads*Tk) additive f32 (head-major expanded) or None.

    Head handling uses a block-diagonal expansion: expanded key index i = h*Tk + k.
    `rep` (built from iota) replicates every key row once per head via a tiny MXU
    matmul; `sel` zeroes the d_model columns that do not belong to row i's head, so a
    single full-width matmul yields all heads' scores / context at once.
    """
    t_k, d = h_kv.shape
    dh = d // heads
    rows = heads * t_k
    assert t_k & (t_k - 1) == 0 and dh & (dh - 1) == 0  # shift/and tricks need powers of 2
    scale = 1.0 / math.sqrt(dh)

    q = _mm(h_q, qkv_w_ref[l, 0]) + qkv_b_ref[l, 0]           # (Tq, D) f32
    k = _mm(h_kv, qkv_w_ref[l, 1]) + qkv_b_ref[l, 1]          # (Tk, D)
    v = _mm(h_kv, qkv_w_ref[l, 2]) + qkv_b_ref[l, 2]

    i_rep = lax.broadcasted_iota(jnp.int32, (rows, t_k), 0) & (t_k - 1)
    j_rep = lax.broadcasted_iota(jnp.int32, (rows, t_k), 1)
    rep = jnp.where(i_rep == j_rep, 1.0, 0.0).astype(jnp.bfloat16)          # (rows, Tk)
    r_head = lax.broadcasted_iota(jnp.int32, (rows, d), 0) >> int(math.log2(t_k))
    c_head = lax.broadcasted_iota(jnp.int32, (rows, d), 1) >> int(math.log2(dh))
    sel = jnp.where(r_head == c_head, 1.0, 0.0)                              # (rows, D) f32

    k_exp = (jnp.dot(rep, k.astype(jnp.bfloat16), preferred_element_type=jnp.float32)
             * sel).astype(jnp.bfloat16)                                     # (rows, D)
    v_exp = (jnp.dot(rep, v.astype(jnp.bfloat16), preferred_element_type=jnp.float32)
             * sel).astype(jnp.bfloat16)

    s = lax.dot_general(q.astype(jnp.bfloat16), k_exp,
                        (((1,), (1,)), ((), ())),
                        preferred_element_type=jnp.float32) * scale          # (Tq, rows)
    if mask_exp is not None:
        s = s + mask_exp
    # Global row max is constant within every head block -> per-head softmax invariant.
    s = s - jnp.max(s, axis=-1, keepdims=True)
    p = jnp.exp(s)
    p16 = p.astype(jnp.bfloat16)
    denom = jnp.dot(p16, sel.astype(jnp.bfloat16),
                    preferred_element_type=jnp.float32)                      # (Tq, D)
    ctx = jnp.dot(p16, v_exp, preferred_element_type=jnp.float32)            # (Tq, D)
    ctx = ctx * pl.reciprocal(denom, approx=True)
    return _mm(ctx, out_w_ref[l]) + out_b_ref[l]


# =========================== the fused whole-forward kernel ===========================

def _forward_kernel(
        patches_ref, y0_ref, pad_ref,
        patch_w_ref, patch_b_ref, pos_ref,
        vit_ln_w_ref, vit_ln_b_ref, vit_qkv_w_ref, vit_qkv_b_ref,
        vit_out_w_ref, vit_out_b_ref, vit_fc1_w_ref, vit_fc1_b_ref,
        vit_fc2_w_ref, vit_fc2_b_ref,
        lte_w1_ref, lte_b1_ref, lte_ln_w_ref, lte_ln_b_ref, lte_w2_ref, lte_b2_ref,
        dec_ln_w_ref, dec_ln_b_ref,
        sa_qkv_w_ref, sa_qkv_b_ref, sa_out_w_ref, sa_out_b_ref,
        ca_qkv_w_ref, ca_qkv_b_ref, ca_out_w_ref, ca_out_b_ref,
        ff1_w_ref, ff1_b_ref, ff2_w_ref, ff2_b_ref,
        head_ln_w_ref, head_ln_b_ref, head_w_ref,
        out_ref):
    # ---- encoder: fused (origin_suppl_fusion conv ∘ ViT patch-embed) + pos_embed[:,1:] ----
    x = _mm(patches_ref[0], patch_w_ref[...]) + patch_b_ref[...] + pos_ref[...]   # (N_PATCH, D)

    # ---- ViT blocks (pre-norm, eps=1e-6) ----
    for l in range(N_ENC_LAYERS):
        h = _ln(x, vit_ln_w_ref[l, 0], vit_ln_b_ref[l, 0], 1e-6)
        x = x + _mha(h, h, vit_qkv_w_ref, vit_qkv_b_ref, vit_out_w_ref, vit_out_b_ref,
                     l, None, VIT_HEADS)
        h = _ln(x, vit_ln_w_ref[l, 1], vit_ln_b_ref[l, 1], 1e-6)
        # TODO(synk): exact erf-GELU approximated with tanh-GELU for Mosaic-safe lowering.
        f = jax.nn.gelu(_mm(h, vit_fc1_w_ref[l]) + vit_fc1_b_ref[l], approximate=True)
        x = x + _mm(f, vit_fc2_w_ref[l]) + vit_fc2_b_ref[l]

    # ---- layout_token_encoder: Linear -> LayerNorm -> GELU -> Linear ----
    m = _mm(x, lte_w1_ref[...]) + lte_b1_ref[...]
    m = jax.nn.gelu(_ln(m, lte_ln_w_ref[...], lte_ln_b_ref[...], 1e-5), approximate=True)
    memory = _mm(m, lte_w2_ref[...]) + lte_b2_ref[...]                            # (N_PATCH, D)

    # ---- decoder (norm_first TransformerDecoderLayer, relu FFN) ----
    y = y0_ref[0]                                                                  # (T, D)
    # causal mask built in-kernel (head-major expanded columns i = h*T + k);
    # key-padding part arrives pre-tiled as an additive (1, H*T) row.
    q_pos = lax.broadcasted_iota(jnp.int32, (T_SEQ, DEC_HEADS * T_SEQ), 0)
    k_pos = lax.broadcasted_iota(jnp.int32, (T_SEQ, DEC_HEADS * T_SEQ), 1) & (T_SEQ - 1)
    self_mask = jnp.where(k_pos > q_pos, NEG_INF, 0.0) + pad_ref[0]                # (T, H*T)
    for l in range(N_DEC_LAYERS):
        h = _ln(y, dec_ln_w_ref[l, 0], dec_ln_b_ref[l, 0], 1e-5)
        y = y + _mha(h, h, sa_qkv_w_ref, sa_qkv_b_ref, sa_out_w_ref, sa_out_b_ref,
                     l, self_mask, DEC_HEADS)
        h = _ln(y, dec_ln_w_ref[l, 1], dec_ln_b_ref[l, 1], 1e-5)
        y = y + _mha(h, memory, ca_qkv_w_ref, ca_qkv_b_ref, ca_out_w_ref, ca_out_b_ref,
                     l, None, DEC_HEADS)
        h = _ln(y, dec_ln_w_ref[l, 2], dec_ln_b_ref[l, 2], 1e-5)
        f = jnp.maximum(_mm(h, ff1_w_ref[l]) + ff1_b_ref[l], 0.0)
        y = y + _mm(f, ff2_w_ref[l]) + ff2_b_ref[l]

    # ---- head: LayerNorm -> Linear(d_model, d_label, bias=False), lane-dense 128 logits ----
    h = _ln(y, head_ln_w_ref[...], head_ln_b_ref[...], 1e-5)
    out_ref[0] = _mm(h, head_w_ref[...])                                           # (T, 128)


# =========================== Pallas wrapper ===========================

def _bcast_spec(shape):
    nd = len(shape)
    return pl.BlockSpec(tuple(shape), lambda b, _nd=nd: (0,) * _nd)


def _fused_forward(params, patches, y0, pad_exp):
    bn = patches.shape[0]
    assert y0.shape[1] == T_SEQ
    weights = [params[name] for name in WEIGHT_ORDER]
    in_specs = ([pl.BlockSpec((1, N_PATCH, PATCH_DIM), lambda b: (b, 0, 0)),
                 pl.BlockSpec((1, T_SEQ, D_MODEL), lambda b: (b, 0, 0)),
                 pl.BlockSpec((1, 1, DEC_HEADS * T_SEQ), lambda b: (b, 0, 0))]
                + [_bcast_spec(w.shape) for w in weights])
    return pl.pallas_call(
        _forward_kernel,
        grid=(bn,),
        in_specs=in_specs,
        out_specs=pl.BlockSpec((1, T_SEQ, LOGIT_PAD), lambda b: (b, 0, 0)),
        out_shape=jax.ShapeDtypeStruct((bn, T_SEQ, LOGIT_PAD), jnp.float32),
        compiler_params=pltpu.CompilerParams(dimension_semantics=("parallel",)),
    )(patches, y0, pad_exp, *weights)


def generator_forward(params, image, tgt, tgt_key_padding_mask):
    bn = image.shape[0]
    # im2col of 10x10 halo windows (layout glue only; the fused kernel owns the matmul).
    xp = jnp.pad(image, ((0, 0), (0, 0), (1, 1), (1, 1)))
    g = IMG // PATCH
    cols = [xp[:, :, gy * PATCH:gy * PATCH + WIN, gx * PATCH:gx * PATCH + WIN]
            for gy in range(g) for gx in range(g)]
    patches = jnp.stack(cols, axis=1).reshape(bn, N_PATCH, PATCH_DIM)
    # decoder token embedding + precomputed sinusoidal positional encoding.
    y0 = params["embed"][tgt] + params["pos_enc"][None, :, :]                     # (B, T, D)
    # additive key-padding mask, pre-tiled head-major to (B, 1, H*T).
    pad_add = jnp.where(tgt_key_padding_mask, NEG_INF, 0.0).astype(jnp.float32)
    pad_exp = jnp.tile(pad_add[:, None, :], (1, 1, DEC_HEADS))
    logits = _fused_forward(params, patches, y0, pad_exp)                         # (B, T, 128)
    return logits[:, :, :D_LABEL]


# =========================== parameter init ===========================

def _sinusoidal_pe(t, d):
    # TODO(synk): PositionalEncode('1D') source not given; standard additive sinusoidal PE assumed.
    pos = jnp.arange(t, dtype=jnp.float32)[:, None]
    div = jnp.exp(jnp.arange(0, d, 2, dtype=jnp.float32) * (-math.log(10000.0) / d))
    pe = jnp.zeros((t, d), jnp.float32)
    pe = pe.at[:, 0::2].set(jnp.sin(pos * div))
    pe = pe.at[:, 1::2].set(jnp.cos(pos * div))
    return pe


def _combine_patch_weights(key):
    """Fold Conv2d(6,3,3,'same') + stride-8 patch conv into one (600 -> D) matmul weight."""
    k1, k2, k3, k4 = jax.random.split(key, 4)
    wf = jax.random.normal(k1, (3, C_IN, 3, 3), jnp.float32) * 0.1      # (Cout, Cin, kh, kw)
    bf = jax.random.normal(k2, (3,), jnp.float32) * 0.02
    wp = jax.random.normal(k3, (D_MODEL, 3, PATCH, PATCH), jnp.float32) * 0.02
    bp = jax.random.normal(k4, (D_MODEL,), jnp.float32) * 0.02
    wc = jnp.zeros((C_IN, WIN, WIN, D_MODEL), jnp.float32)
    for dy in range(3):
        for dx in range(3):
            blk = jnp.einsum('oi,dopq->ipqd', wf[:, :, dy, dx], wp)     # (Cin, P, P, D)
            wc = wc.at[:, dy:dy + PATCH, dx:dx + PATCH, :].add(blk)
    bc = bp + jnp.einsum('dopq,o->d', wp, bf)
    return wc.reshape(PATCH_DIM, D_MODEL), bc.reshape(1, D_MODEL)


def init_params(key):
    keys = iter(jax.random.split(key, 64))
    nxt = lambda: next(keys)

    def nrm(shape, std=0.02, dtype=jnp.float32):
        return (jax.random.normal(nxt(), shape, jnp.float32) * std).astype(dtype)

    d = D_MODEL
    le, ld = N_ENC_LAYERS, N_DEC_LAYERS
    patch_w, patch_b = _combine_patch_weights(nxt())
    head_w = jnp.pad(nrm((d, D_LABEL)), ((0, 0), (0, LOGIT_PAD - D_LABEL)))
    return {
        # fused conv∘patch-embed (matmul-ready, bf16 for the MXU)
        "patch_w": patch_w.astype(jnp.bfloat16), "patch_b": patch_b,
        # pos_embed[:, 1:, :]; the cls row is never used because cls is dropped right away.
        "pos_embed": nrm((N_PATCH, d)),
        # ViT blocks (weights stacked along a leading layer axis)
        "vit_ln_w": jnp.ones((le, 2, 1, d), jnp.float32),
        "vit_ln_b": jnp.zeros((le, 2, 1, d), jnp.float32),
        "vit_qkv_w": nrm((le, 3, d, d), dtype=jnp.bfloat16),
        "vit_qkv_b": jnp.zeros((le, 3, 1, d), jnp.float32),
        "vit_out_w": nrm((le, d, d), dtype=jnp.bfloat16),
        "vit_out_b": jnp.zeros((le, 1, d), jnp.float32),
        "vit_fc1_w": nrm((le, d, D_FF_VIT), dtype=jnp.bfloat16),
        "vit_fc1_b": jnp.zeros((le, 1, D_FF_VIT), jnp.float32),
        "vit_fc2_w": nrm((le, D_FF_VIT, d), dtype=jnp.bfloat16),
        "vit_fc2_b": jnp.zeros((le, 1, d), jnp.float32),
        # layout_token_encoder
        "lte_w1": nrm((d, d), dtype=jnp.bfloat16), "lte_b1": jnp.zeros((1, d), jnp.float32),
        "lte_ln_w": jnp.ones((1, d), jnp.float32), "lte_ln_b": jnp.zeros((1, d), jnp.float32),
        "lte_w2": nrm((d, d), dtype=jnp.bfloat16), "lte_b2": jnp.zeros((1, d), jnp.float32),
        # decoder
        "embed": nrm((D_LABEL, d)),
        "pos_enc": _sinusoidal_pe(T_SEQ, d),
        "dec_ln_w": jnp.ones((ld, 3, 1, d), jnp.float32),
        "dec_ln_b": jnp.zeros((ld, 3, 1, d), jnp.float32),
        "sa_qkv_w": nrm((ld, 3, d, d), dtype=jnp.bfloat16),
        "sa_qkv_b": jnp.zeros((ld, 3, 1, d), jnp.float32),
        "sa_out_w": nrm((ld, d, d), dtype=jnp.bfloat16),
        "sa_out_b": jnp.zeros((ld, 1, d), jnp.float32),
        "ca_qkv_w": nrm((ld, 3, d, d), dtype=jnp.bfloat16),
        "ca_qkv_b": jnp.zeros((ld, 3, 1, d), jnp.float32),
        "ca_out_w": nrm((ld, d, d), dtype=jnp.bfloat16),
        "ca_out_b": jnp.zeros((ld, 1, d), jnp.float32),
        "ff1_w": nrm((ld, d, D_FF_DEC), dtype=jnp.bfloat16),
        "ff1_b": jnp.zeros((ld, 1, D_FF_DEC), jnp.float32),
        "ff2_w": nrm((ld, D_FF_DEC, d), dtype=jnp.bfloat16),
        "ff2_b": jnp.zeros((ld, 1, d), jnp.float32),
        # head (LayerNorm + bias-free Linear), zero-padded to a lane-dense 128-wide slab
        "head_ln_w": jnp.ones((1, d), jnp.float32), "head_ln_b": jnp.zeros((1, d), jnp.float32),
        "head_w": head_w.astype(jnp.bfloat16),
    }


# =========================== main ===========================

if __name__ == "__main__":
    key = jax.random.PRNGKey(0)
    k_params, k_img, k_tgt = jax.random.split(key, 3)
    params = init_params(k_params)

    image = jax.random.normal(k_img, (B, C_IN, IMG, IMG), jnp.float32)
    tgt = jax.random.randint(k_tgt, (B, T_SEQ), 0, D_LABEL)
    valid_mask = jnp.ones((B, T_SEQ), dtype=bool).at[1, T_SEQ - 2:].set(False)
    tgt_key_padding_mask = ~valid_mask   # True = padded key (ignored), like the module

    fwd = jax.jit(generator_forward)
    out = jax.block_until_ready(fwd(params, image, tgt, tgt_key_padding_mask))
    assert out.shape == (B, T_SEQ, D_LABEL), out.shape
    assert bool(jnp.all(jnp.isfinite(out)))
    print("KERNEL_OK")
</pallas_src>

<mosaic_0001>
module attributes {stable_mosaic.version = 11 : i64} {
  func.func @_forward_kernel(%arg0: i32, %arg1: memref<1x4x600xf32, #tpu.memory_space<vmem>>, %arg2: memref<1x8x64xf32, #tpu.memory_space<vmem>>, %arg3: memref<1x1x64xf32, #tpu.memory_space<vmem>>, %arg4: memref<600x64xbf16, #tpu.memory_space<vmem>>, %arg5: memref<1x64xf32, #tpu.memory_space<vmem>>, %arg6: memref<4x64xf32, #tpu.memory_space<vmem>>, %arg7: memref<2x2x1x64xf32, #tpu.memory_space<vmem>>, %arg8: memref<2x2x1x64xf32, #tpu.memory_space<vmem>>, %arg9: memref<2x3x64x64xbf16, #tpu.memory_space<vmem>>, %arg10: memref<2x3x1x64xf32, #tpu.memory_space<vmem>>, %arg11: memref<2x64x64xbf16, #tpu.memory_space<vmem>>, %arg12: memref<2x1x64xf32, #tpu.memory_space<vmem>>, %arg13: memref<2x64x256xbf16, #tpu.memory_space<vmem>>, %arg14: memref<2x1x256xf32, #tpu.memory_space<vmem>>, %arg15: memref<2x256x64xbf16, #tpu.memory_space<vmem>>, %arg16: memref<2x1x64xf32, #tpu.memory_space<vmem>>, %arg17: memref<64x64xbf16, #tpu.memory_space<vmem>>, %arg18: memref<1x64xf32, #tpu.memory_space<vmem>>, %arg19: memref<1x64xf32, #tpu.memory_space<vmem>>, %arg20: memref<1x64xf32, #tpu.memory_space<vmem>>, %arg21: memref<64x64xbf16, #tpu.memory_space<vmem>>, %arg22: memref<1x64xf32, #tpu.memory_space<vmem>>, %arg23: memref<2x3x1x64xf32, #tpu.memory_space<vmem>>, %arg24: memref<2x3x1x64xf32, #tpu.memory_space<vmem>>, %arg25: memref<2x3x64x64xbf16, #tpu.memory_space<vmem>>, %arg26: memref<2x3x1x64xf32, #tpu.memory_space<vmem>>, %arg27: memref<2x64x64xbf16, #tpu.memory_space<vmem>>, %arg28: memref<2x1x64xf32, #tpu.memory_space<vmem>>, %arg29: memref<2x3x64x64xbf16, #tpu.memory_space<vmem>>, %arg30: memref<2x3x1x64xf32, #tpu.memory_space<vmem>>, %arg31: memref<2x64x64xbf16, #tpu.memory_space<vmem>>, %arg32: memref<2x1x64xf32, #tpu.memory_space<vmem>>, %arg33: memref<2x64x128xbf16, #tpu.memory_space<vmem>>, %arg34: memref<2x1x128xf32, #tpu.memory_space<vmem>>, %arg35: memref<2x128x64xbf16, #tpu.memory_space<vmem>>, %arg36: memref<2x1x64xf32, #tpu.memory_space<vmem>>, %arg37: memref<1x64xf32, #tpu.memory_space<vmem>>, %arg38: memref<1x64xf32, #tpu.memory_space<vmem>>, %arg39: memref<64x128xbf16, #tpu.memory_space<vmem>>, %arg40: memref<1x8x128xf32, #tpu.memory_space<vmem>>) attributes {dimension_semantics = [#tpu.dimension_semantics<parallel>], iteration_bounds = array<i64: 2>, scalar_prefetch = 0 : i64, scratch_operands = 0 : i64, tpu.core_type = #tpu.core_type<tc>, window_params = [{transform_indices = @transform_0, window_bounds = array<i64: 1, 4, 600>}, {transform_indices = @transform_1, window_bounds = array<i64: 1, 8, 64>}, {transform_indices = @transform_2, window_bounds = array<i64: 1, 1, 64>}, {pipeline_mode = #tpu.pipeline_mode<synchronous>, transform_indices = @transform_3, window_bounds = array<i64: 600, 64>}, {pipeline_mode = #tpu.pipeline_mode<synchronous>, transform_indices = @transform_4, window_bounds = array<i64: 1, 64>}, {pipeline_mode = #tpu.pipeline_mode<synchronous>, transform_indices = @transform_5, window_bounds = array<i64: 4, 64>}, {pipeline_mode = #tpu.pipeline_mode<synchronous>, transform_indices = @transform_6, window_bounds = array<i64: 2, 2, 1, 64>}, {pipeline_mode = #tpu.pipeline_mode<synchronous>, transform_indices = @transform_7, window_bounds = array<i64: 2, 2, 1, 64>}, {pipeline_mode = #tpu.pipeline_mode<synchronous>, transform_indices = @transform_8, window_bounds = array<i64: 2, 3, 64, 64>}, {pipeline_mode = #tpu.pipeline_mode<synchronous>, transform_indices = @transform_9, window_bounds = array<i64: 2, 3, 1, 64>}, {pipeline_mode = #tpu.pipeline_mode<synchronous>, transform_indices = @transform_10, window_bounds = array<i64: 2, 64, 64>}, {pipeline_mode = #tpu.pipeline_mode<synchronous>, transform_indices = @transform_11, window_bounds = array<i64: 2, 1, 64>}, {pipeline_mode = #tpu.pipeline_mode<synchronous>, transform_indices = @transform_12, window_bounds = array<i64: 2, 64, 256>}, {pipeline_mode = #tpu.pipeline_mode<synchronous>, transform_indices = @transform_13, window_bounds = array<i64: 2, 1, 256>}, {pipeline_mode = #tpu.pipeline_mode<synchronous>, transform_indices = @transform_14, window_bounds = array<i64: 2, 256, 64>}, {pipeline_mode = #tpu.pipeline_mode<synchronous>, transform_indices = @transform_15, window_bounds = array<i64: 2, 1, 64>}, {pipeline_mode = #tpu.pipeline_mode<synchronous>, transform_indices = @transform_16, window_bounds = array<i64: 64, 64>}, {pipeline_mode = #tpu.pipeline_mode<synchronous>, transform_indices = @transform_17, window_bounds = array<i64: 1, 64>}, {pipeline_mode = #tpu.pipeline_mode<synchronous>, transform_indices = @transform_18, window_bounds = array<i64: 1, 64>}, {pipeline_mode = #tpu.pipeline_mode<synchronous>, transform_indices = @transform_19, window_bounds = array<i64: 1, 64>}, {pipeline_mode = #tpu.pipeline_mode<synchronous>, transform_indices = @transform_20, window_bounds = array<i64: 64, 64>}, {pipeline_mode = #tpu.pipeline_mode<synchronous>, transform_indices = @transform_21, window_bounds = array<i64: 1, 64>}, {pipeline_mode = #tpu.pipeline_mode<synchronous>, transform_indices = @transform_22, window_bounds = array<i64: 2, 3, 1, 64>}, {pipeline_mode = #tpu.pipeline_mode<synchronous>, transform_indices = @transform_23, window_bounds = array<i64: 2, 3, 1, 64>}, {pipeline_mode = #tpu.pipeline_mode<synchronous>, transform_indices = @transform_24, window_bounds = array<i64: 2, 3, 64, 64>}, {pipeline_mode = #tpu.pipeline_mode<synchronous>, transform_indices = @transform_25, window_bounds = array<i64: 2, 3, 1, 64>}, {pipeline_mode = #tpu.pipeline_mode<synchronous>, transform_indices = @transform_26, window_bounds = array<i64: 2, 64, 64>}, {pipeline_mode = #tpu.pipeline_mode<synchronous>, transform_indices = @transform_27, window_bounds = array<i64: 2, 1, 64>}, {pipeline_mode = #tpu.pipeline_mode<synchronous>, transform_indices = @transform_28, window_bounds = array<i64: 2, 3, 64, 64>}, {pipeline_mode = #tpu.pipeline_mode<synchronous>, transform_indices = @transform_29, window_bounds = array<i64: 2, 3, 1, 64>}, {pipeline_mode = #tpu.pipeline_mode<synchronous>, transform_indices = @transform_30, window_bounds = array<i64: 2, 64, 64>}, {pipeline_mode = #tpu.pipeline_mode<synchronous>, transform_indices = @transform_31, window_bounds = array<i64: 2, 1, 64>}, {pipeline_mode = #tpu.pipeline_mode<synchronous>, transform_indices = @transform_32, window_bounds = array<i64: 2, 64, 128>}, {pipeline_mode = #tpu.pipeline_mode<synchronous>, transform_indices = @transform_33, window_bounds = array<i64: 2, 1, 128>}, {pipeline_mode = #tpu.pipeline_mode<synchronous>, transform_indices = @transform_34, window_bounds = array<i64: 2, 128, 64>}, {pipeline_mode = #tpu.pipeline_mode<synchronous>, transform_indices = @transform_35, window_bounds = array<i64: 2, 1, 64>}, {pipeline_mode = #tpu.pipeline_mode<synchronous>, transform_indices = @transform_36, window_bounds = array<i64: 1, 64>}, {pipeline_mode = #tpu.pipeline_mode<synchronous>, transform_indices = @transform_37, window_bounds = array<i64: 1, 64>}, {pipeline_mode = #tpu.pipeline_mode<synchronous>, transform_indices = @transform_38, window_bounds = array<i64: 64, 128>}, {transform_indices = @transform_39, window_bounds = array<i64: 1, 8, 128>}]} {
    %c0 = arith.constant 0 : index
    %c0_0 = arith.constant 0 : index
    %c0_1 = arith.constant 0 : index
    %0 = vector.load %arg1[%c0, %c0_0, %c0_1] : memref<1x4x600xf32, #tpu.memory_space<vmem>>, vector<1x4x600xf32>
    %1 = vector.shape_cast %0 : vector<1x4x600xf32> to vector<4x600xf32>
    %c0_2 = arith.constant 0 : index
    %c0_3 = arith.constant 0 : index
    %2 = vector.load %arg4[%c0_2, %c0_3] : memref<600x64xbf16, #tpu.memory_space<vmem>>, vector<600x64xbf16>
    %3 = arith.truncf %1 : vector<4x600xf32> to vector<4x600xbf16>
    %cst = arith.constant dense<0.000000e+00> : vector<4x64xf32>
    %4 = tpu.matmul %3, %2, %cst {dimension_numbers = #tpu.dot_dimension_numbers<[1], [0], [0], [1], [0, 0, 1, 1], [], []>} : vector<4x600xbf16>, vector<600x64xbf16>, vector<4x64xf32> -> vector<4x64xf32>
    %c0_4 = arith.constant 0 : index
    %c0_5 = arith.constant 0 : index
    %5 = vector.load %arg5[%c0_4, %c0_5] : memref<1x64xf32, #tpu.memory_space<vmem>>, vector<1x64xf32>
    %6 = vector.broadcast %5 : vector<1x64xf32> to vector<4x64xf32>
    %7 = arith.addf %4, %6 : vector<4x64xf32>
    %c0_6 = arith.constant 0 : index
    %c0_7 = arith.constant 0 : index
    %8 = vector.load %arg6[%c0_6, %c0_7] : memref<4x64xf32, #tpu.memory_space<vmem>>, vector<4x64xf32>
    %9 = arith.addf %7, %8 : vector<4x64xf32>
    %c0_8 = arith.constant 0 : index
    %c0_9 = arith.constant 0 : index
    %c0_10 = arith.constant 0 : index
    %c0_11 = arith.constant 0 : index
    %10 = vector.load %arg7[%c0_8, %c0_9, %c0_10, %c0_11] : memref<2x2x1x64xf32, #tpu.memory_space<vmem>>, vector<1x1x1x64xf32>
    %11 = vector.shape_cast %10 : vector<1x1x1x64xf32> to vector<1x64xf32>
    %c0_12 = arith.constant 0 : index
    %c0_13 = arith.constant 0 : index
    %c0_14 = arith.constant 0 : index
    %c0_15 = arith.constant 0 : index
    %12 = vector.load %arg8[%c0_12, %c0_13, %c0_14, %c0_15] : memref<2x2x1x64xf32, #tpu.memory_space<vmem>>, vector<1x1x1x64xf32>
    %13 = vector.shape_cast %12 : vector<1x1x1x64xf32> to vector<1x64xf32>
    %cst_16 = arith.constant dense<0.000000e+00> : vector<4xf32>
    %14 = vector.multi_reduction <add>, %9, %cst_16 [1] : vector<4x64xf32> to vector<4xf32>
    %15 = vector.shape_cast %14 : vector<4xf32> to vector<4x1xf32>
    %cst_17 = arith.constant 6.400000e+01 : f32
    %16 = vector.broadcast %cst_17 : f32 to vector<4x1xf32>
    %17 = arith.divf %15, %16 : vector<4x1xf32>
    %18 = vector.broadcast %17 : vector<4x1xf32> to vector<4x64xf32>
    %19 = arith.subf %9, %18 : vector<4x64xf32>
    %20 = arith.mulf %19, %19 : vector<4x64xf32>
    %cst_18 = arith.constant dense<0.000000e+00> : vector<4xf32>
    %21 = vector.multi_reduction <add>, %20, %cst_18 [1] : vector<4x64xf32> to vector<4xf32>
    %22 = vector.shape_cast %21 : vector<4xf32> to vector<4x1xf32>
    %cst_19 = arith.constant 6.400000e+01 : f32
    %23 = vector.broadcast %cst_19 : f32 to vector<4x1xf32>
    %24 = arith.divf %22, %23 : vector<4x1xf32>
    %cst_20 = arith.constant 9.99999997E-7 : f32
    %25 = vector.broadcast %cst_20 : f32 to vector<4x1xf32>
    %26 = arith.addf %24, %25 : vector<4x1xf32>
    %27 = math.rsqrt %26 : vector<4x1xf32>
    %28 = vector.broadcast %27 : vector<4x1xf32> to vector<4x64xf32>
    %29 = arith.mulf %19, %28 : vector<4x64xf32>
    %30 = vector.broadcast %11 : vector<1x64xf32> to vector<4x64xf32>
    %31 = arith.mulf %29, %30 : vector<4x64xf32>
    %32 = vector.broadcast %13 : vector<1x64xf32> to vector<4x64xf32>
    %33 = arith.addf %31, %32 : vector<4x64xf32>
    %c0_21 = arith.constant 0 : index
    %c0_22 = arith.constant 0 : index
    %c0_23 = arith.constant 0 : index
    %c0_24 = arith.constant 0 : index
    %34 = vector.load %arg9[%c0_21, %c0_22, %c0_23, %c0_24] : memref<2x3x64x64xbf16, #tpu.memory_space<vmem>>, vector<1x1x64x64xbf16>
    %35 = vector.shape_cast %34 : vector<1x1x64x64xbf16> to vector<64x64xbf16>
    %36 = arith.truncf %33 : vector<4x64xf32> to vector<4x64xbf16>
    %cst_25 = arith.constant dense<0.000000e+00> : vector<4x64xf32>
    %37 = tpu.matmul %36, %35, %cst_25 {dimension_numbers = #tpu.dot_dimension_numbers<[1], [0], [0], [1], [0, 0, 1, 1], [], []>} : vector<4x64xbf16>, vector<64x64xbf16>, vector<4x64xf32> -> vector<4x64xf32>
    %c0_26 = arith.constant 0 : index
    %c0_27 = arith.constant 0 : index
    %c0_28 = arith.constant 0 : index
    %c0_29 = arith.constant 0 : index
    %38 = vector.load %arg10[%c0_26, %c0_27, %c0_28, %c0_29] : memref<2x3x1x64xf32, #tpu.memory_space<vmem>>, vector<1x1x1x64xf32>
    %39 = vector.shape_cast %38 : vector<1x1x1x64xf32> to vector<1x64xf32>
    %40 = vector.broadcast %39 : vector<1x64xf32> to vector<4x64xf32>
    %41 = arith.addf %37, %40 : vector<4x64xf32>
    %c0_30 = arith.constant 0 : index
    %c1 = arith.constant 1 : index
    %c0_31 = arith.constant 0 : index
    %c0_32 = arith.constant 0 : index
    %42 = vector.load %arg9[%c0_30, %c1, %c0_31, %c0_32] : memref<2x3x64x64xbf16, #tpu.memory_space<vmem>>, vector<1x1x64x64xbf16>
    %43 = vector.shape_cast %42 : vector<1x1x64x64xbf16> to vector<64x64xbf16>
    %44 = arith.truncf %33 : vector<4x64xf32> to vector<4x64xbf16>
    %cst_33 = arith.constant dense<0.000000e+00> : vector<4x64xf32>
    %45 = tpu.matmul %44, %43, %cst_33 {dimension_numbers = #tpu.dot_dimension_numbers<[1], [0], [0], [1], [0, 0, 1, 1], [], []>} : vector<4x64xbf16>, vector<64x64xbf16>, vector<4x64xf32> -> vector<4x64xf32>
    %c0_34 = arith.constant 0 : index
    %c1_35 = arith.constant 1 : index
    %c0_36 = arith.constant 0 : index
    %c0_37 = arith.constant 0 : index
    %46 = vector.load %arg10[%c0_34, %c1_35, %c0_36, %c0_37] : memref<2x3x1x64xf32, #tpu.memory_space<vmem>>, vector<1x1x1x64xf32>
    %47 = vector.shape_cast %46 : vector<1x1x1x64xf32> to vector<1x64xf32>
    %48 = vector.broadcast %47 : vector<1x64xf32> to vector<4x64xf32>
    %49 = arith.addf %45, %48 : vector<4x64xf32>
    %c0_38 = arith.constant 0 : index
    %c2 = arith.constant 2 : index
    %c0_39 = arith.constant 0 : index
    %c0_40 = arith.constant 0 : index
    %50 = vector.load %arg9[%c0_38, %c2, %c0_39, %c0_40] : memref<2x3x64x64xbf16, #tpu.memory_space<vmem>>, vector<1x1x64x64xbf16>
    %51 = vector.shape_cast %50 : vector<1x1x64x64xbf16> to vector<64x64xbf16>
    %52 = arith.truncf %33 : vector<4x64xf32> to vector<4x64xbf16>
    %cst_41 = arith.constant dense<0.000000e+00> : vector<4x64xf32>
    %53 = tpu.matmul %52, %51, %cst_41 {dimension_numbers = #tpu.dot_dimension_numbers<[1], [0], [0], [1], [0, 0, 1, 1], [], []>} : vector<4x64xbf16>, vector<64x64xbf16>, vector<4x64xf32> -> vector<4x64xf32>
    %c0_42 = arith.constant 0 : index
    %c2_43 = arith.constant 2 : index
    %c0_44 = arith.constant 0 : index
    %c0_45 = arith.constant 0 : index
    %54 = vector.load %arg10[%c0_42, %c2_43, %c0_44, %c0_45] : memref<2x3x1x64xf32, #tpu.memory_space<vmem>>, vector<1x1x1x64xf32>
    %55 = vector.shape_cast %54 : vector<1x1x1x64xf32> to vector<1x64xf32>
    %56 = vector.broadcast %55 : vector<1x64xf32> to vector<4x64xf32>
    %57 = arith.addf %53, %56 : vector<4x64xf32>
    %58 = tpu.iota {dimensions = array<i32: 0>} : vector<16x4xi32>
    %c3_i32 = arith.constant 3 : i32
    %59 = vector.broadcast %c3_i32 : i32 to vector<16x4xi32>
    %60 = arith.andi %58, %59 : vector<16x4xi32>
    %61 = tpu.iota {dimensions = array<i32: 1>} : vector<16x4xi32>
    %62 = arith.cmpi eq, %60, %61 : vector<16x4xi32>
    %cst_46 = arith.constant 1.000000e+00 : f32
    %cst_47 = arith.constant 0.000000e+00 : f32
    %63 = vector.broadcast %cst_46 : f32 to vector<16x4xf32>
    %64 = vector.broadcast %cst_47 : f32 to vector<16x4xf32>
    %65 = arith.select %62, %63, %64 : vector<16x4xi1>, vector<16x4xf32>
    %66 = arith.truncf %65 : vector<16x4xf32> to vector<16x4xbf16>
    %67 = tpu.iota {dimensions = array<i32: 0>} : vector<16x64xi32>
    %c2_i32 = arith.constant 2 : i32
    %68 = vector.broadcast %c2_i32 : i32 to vector<16x64xi32>
    %69 = arith.shrsi %67, %68 : vector<16x64xi32>
    %70 = tpu.iota {dimensions = array<i32: 1>} : vector<16x64xi32>
    %c4_i32 = arith.constant 4 : i32
    %71 = vector.broadcast %c4_i32 : i32 to vector<16x64xi32>
    %72 = arith.shrsi %70, %71 : vector<16x64xi32>
    %73 = arith.cmpi eq, %69, %72 : vector<16x64xi32>
    %cst_48 = arith.constant 1.000000e+00 : f32
    %cst_49 = arith.constant 0.000000e+00 : f32
    %74 = vector.broadcast %cst_48 : f32 to vector<16x64xf32>
    %75 = vector.broadcast %cst_49 : f32 to vector<16x64xf32>
    %76 = arith.select %73, %74, %75 : vector<16x64xi1>, vector<16x64xf32>
    %77 = arith.truncf %49 : vector<4x64xf32> to vector<4x64xbf16>
    %cst_50 = arith.constant dense<0.000000e+00> : vector<16x64xf32>
    %78 = tpu.matmul %66, %77, %cst_50 {dimension_numbers = #tpu.dot_dimension_numbers<[1], [0], [0], [1], [0, 0, 1, 1], [], []>} : vector<16x4xbf16>, vector<4x64xbf16>, vector<16x64xf32> -> vector<16x64xf32>
    %79 = arith.mulf %78, %76 : vector<16x64xf32>
    %80 = arith.truncf %79 : vector<16x64xf32> to vector<16x64xbf16>
    %81 = arith.truncf %57 : vector<4x64xf32> to vector<4x64xbf16>
    %cst_51 = arith.constant dense<0.000000e+00> : vector<16x64xf32>
    %82 = tpu.matmul %66, %81, %cst_51 {dimension_numbers = #tpu.dot_dimension_numbers<[1], [0], [0], [1], [0, 0, 1, 1], [], []>} : vector<16x4xbf16>, vector<4x64xbf16>, vector<16x64xf32> -> vector<16x64xf32>
    %83 = arith.mulf %82, %76 : vector<16x64xf32>
    %84 = arith.truncf %83 : vector<16x64xf32> to vector<16x64xbf16>
    %85 = arith.truncf %41 : vector<4x64xf32> to vector<4x64xbf16>
    %cst_52 = arith.constant dense<0.000000e+00> : vector<4x16xf32>
    %86 = tpu.matmul %85, %80, %cst_52 {dimension_numbers = #tpu.dot_dimension_numbers<[1], [1], [0], [0], [0, 0, 1, 0], [], []>} : vector<4x64xbf16>, vector<16x64xbf16>, vector<4x16xf32> -> vector<4x16xf32>
    %cst_53 = arith.constant 2.500000e-01 : f32
    %87 = vector.broadcast %cst_53 : f32 to vector<4x16xf32>
    %88 = arith.mulf %86, %87 : vector<4x16xf32>
    %cst_54 = arith.constant dense<0xFF800000> : vector<4xf32>
    %89 = vector.multi_reduction <maximumf>, %88, %cst_54 [1] : vector<4x16xf32> to vector<4xf32>
    %90 = vector.shape_cast %89 : vector<4xf32> to vector<4x1xf32>
    %91 = vector.broadcast %90 : vector<4x1xf32> to vector<4x16xf32>
    %92 = arith.subf %88, %91 : vector<4x16xf32>
    %93 = math.exp %92 : vector<4x16xf32>
    %94 = arith.truncf %93 : vector<4x16xf32> to vector<4x16xbf16>
    %95 = arith.truncf %76 : vector<16x64xf32> to vector<16x64xbf16>
    %cst_55 = arith.constant dense<0.000000e+00> : vector<4x64xf32>
    %96 = tpu.matmul %94, %95, %cst_55 {dimension_numbers = #tpu.dot_dimension_numbers<[1], [0], [0], [1], [0, 0, 1, 1], [], []>} : vector<4x16xbf16>, vector<16x64xbf16>, vector<4x64xf32> -> vector<4x64xf32>
    %cst_56 = arith.constant dense<0.000000e+00> : vector<4x64xf32>
    %97 = tpu.matmul %94, %84, %cst_56 {dimension_numbers = #tpu.dot_dimension_numbers<[1], [0], [0], [1], [0, 0, 1, 1], [], []>} : vector<4x16xbf16>, vector<16x64xbf16>, vector<4x64xf32> -> vector<4x64xf32>
    %98 = tpu.reciprocal %96 {approx = true} : vector<4x64xf32> -> vector<4x64xf32>
    %99 = arith.mulf %97, %98 : vector<4x64xf32>
    %c0_57 = arith.constant 0 : index
    %c0_58 = arith.constant 0 : index
    %c0_59 = arith.constant 0 : index
    %100 = vector.load %arg11[%c0_57, %c0_58, %c0_59] : memref<2x64x64xbf16, #tpu.memory_space<vmem>>, vector<1x64x64xbf16>
    %101 = vector.shape_cast %100 : vector<1x64x64xbf16> to vector<64x64xbf16>
    %102 = arith.truncf %99 : vector<4x64xf32> to vector<4x64xbf16>
    %cst_60 = arith.constant dense<0.000000e+00> : vector<4x64xf32>
    %103 = tpu.matmul %102, %101, %cst_60 {dimension_numbers = #tpu.dot_dimension_numbers<[1], [0], [0], [1], [0, 0, 1, 1], [], []>} : vector<4x64xbf16>, vector<64x64xbf16>, vector<4x64xf32> -> vector<4x64xf32>
    %c0_61 = arith.constant 0 : index
    %c0_62 = arith.constant 0 : index
    %c0_63 = arith.constant 0 : index
    %104 = vector.load %arg12[%c0_61, %c0_62, %c0_63] : memref<2x1x64xf32, #tpu.memory_space<vmem>>, vector<1x1x64xf32>
    %105 = vector.shape_cast %104 : vector<1x1x64xf32> to vector<1x64xf32>
    %106 = vector.broadcast %105 : vector<1x64xf32> to vector<4x64xf32>
    %107 = arith.addf %103, %106 : vector<4x64xf32>
    %108 = arith.addf %9, %107 : vector<4x64xf32>
    %c0_64 = arith.constant 0 : index
    %c1_65 = arith.constant 1 : index
    %c0_66 = arith.constant 0 : index
    %c0_67 = arith.constant 0 : index
    %109 = vector.load %arg7[%c0_64, %c1_65, %c0_66, %c0_67] : memref<2x2x1x64xf32, #tpu.memory_space<vmem>>, vector<1x1x1x64xf32>
    %110 = vector.shape_cast %109 : vector<1x1x1x64xf32> to vector<1x64xf32>
    %c0_68 = arith.constant 0 : index
    %c1_69 = arith.constant 1 : index
    %c0_70 = arith.constant 0 : index
    %c0_71 = arith.constant 0 : index
    %111 = vector.load %arg8[%c0_68, %c1_69, %c0_70, %c0_71] : memref<2x2x1x64xf32, #tpu.memory_space<vmem>>, vector<1x1x1x64xf32>
    %112 = vector.shape_cast %111 : vector<1x1x1x64xf32> to vector<1x64xf32>
    %cst_72 = arith.constant dense<0.000000e+00> : vector<4xf32>
    %113 = vector.multi_reduction <add>, %108, %cst_72 [1] : vector<4x64xf32> to vector<4xf32>
    %114 = vector.shape_cast %113 : vector<4xf32> to vector<4x1xf32>
    %cst_73 = arith.constant 6.400000e+01 : f32
    %115 = vector.broadcast %cst_73 : f32 to vector<4x1xf32>
    %116 = arith.divf %114, %115 : vector<4x1xf32>
    %117 = vector.broadcast %116 : vector<4x1xf32> to vector<4x64xf32>
    %118 = arith.subf %108, %117 : vector<4x64xf32>
    %119 = arith.mulf %118, %118 : vector<4x64xf32>
    %cst_74 = arith.constant dense<0.000000e+00> : vector<4xf32>
    %120 = vector.multi_reduction <add>, %119, %cst_74 [1] : vector<4x64xf32> to vector<4xf32>
    %121 = vector.shape_cast %120 : vector<4xf32> to vector<4x1xf32>
    %cst_75 = arith.constant 6.400000e+01 : f32
    %122 = vector.broadcast %cst_75 : f32 to vector<4x1xf32>
    %123 = arith.divf %121, %122 : vector<4x1xf32>
    %cst_76 = arith.constant 9.99999997E-7 : f32
    %124 = vector.broadcast %cst_76 : f32 to vector<4x1xf32>
    %125 = arith.addf %123, %124 : vector<4x1xf32>
    %126 = math.rsqrt %125 : vector<4x1xf32>
    %127 = vector.broadcast %126 : vector<4x1xf32> to vector<4x64xf32>
    %128 = arith.mulf %118, %127 : vector<4x64xf32>
    %129 = vector.broadcast %110 : vector<1x64xf32> to vector<4x64xf32>
    %130 = arith.mulf %128, %129 : vector<4x64xf32>
    %131 = vector.broadcast %112 : vector<1x64xf32> to vector<4x64xf32>
    %132 = arith.addf %130, %131 : vector<4x64xf32>
    %c0_77 = arith.constant 0 : index
    %c0_78 = arith.constant 0 : index
    %c0_79 = arith.constant 0 : index
    %133 = vector.load %arg13[%c0_77, %c0_78, %c0_79] : memref<2x64x256xbf16, #tpu.memory_space<vmem>>, vector<1x64x256xbf16>
    %134 = vector.shape_cast %133 : vector<1x64x256xbf16> to vector<64x256xbf16>
    %135 = arith.truncf %132 : vector<4x64xf32> to vector<4x64xbf16>
    %cst_80 = arith.constant dense<0.000000e+00> : vector<4x256xf32>
    %136 = tpu.matmul %135, %134, %cst_80 {dimension_numbers = #tpu.dot_dimension_numbers<[1], [0], [0], [1], [0, 0, 1, 1], [], []>} : vector<4x64xbf16>, vector<64x256xbf16>, vector<4x256xf32> -> vector<4x256xf32>
    %c0_81 = arith.constant 0 : index
    %c0_82 = arith.constant 0 : index
    %c0_83 = arith.constant 0 : index
    %137 = vector.load %arg14[%c0_81, %c0_82, %c0_83] : memref<2x1x256xf32, #tpu.memory_space<vmem>>, vector<1x1x256xf32>
    %138 = vector.shape_cast %137 : vector<1x1x256xf32> to vector<1x256xf32>
    %139 = vector.broadcast %138 : vector<1x256xf32> to vector<4x256xf32>
    %140 = arith.addf %136, %139 : vector<4x256xf32>
    %141 = arith.mulf %140, %140 : vector<4x256xf32>
    %142 = arith.mulf %140, %141 : vector<4x256xf32>
    %cst_84 = arith.constant 4.471500e-02 : f32
    %143 = vector.broadcast %cst_84 : f32 to vector<4x256xf32>
    %144 = arith.mulf %143, %142 : vector<4x256xf32>
    %145 = arith.addf %140, %144 : vector<4x256xf32>
    %cst_85 = arith.constant 0.797884583 : f32
    %146 = vector.broadcast %cst_85 : f32 to vector<4x256xf32>
    %147 = arith.mulf %146, %145 : vector<4x256xf32>
    %148 = math.tanh %147 : vector<4x256xf32>
    %cst_86 = arith.constant 1.000000e+00 : f32
    %149 = vector.broadcast %cst_86 : f32 to vector<4x256xf32>
    %150 = arith.addf %149, %148 : vector<4x256xf32>
    %cst_87 = arith.constant 5.000000e-01 : f32
    %151 = vector.broadcast %cst_87 : f32 to vector<4x256xf32>
    %152 = arith.mulf %151, %150 : vector<4x256xf32>
    %153 = arith.mulf %140, %152 : vector<4x256xf32>
    %c0_88 = arith.constant 0 : index
    %c0_89 = arith.constant 0 : index
    %c0_90 = arith.constant 0 : index
    %154 = vector.load %arg15[%c0_88, %c0_89, %c0_90] : memref<2x256x64xbf16, #tpu.memory_space<vmem>>, vector<1x256x64xbf16>
    %155 = vector.shape_cast %154 : vector<1x256x64xbf16> to vector<256x64xbf16>
    %156 = arith.truncf %153 : vector<4x256xf32> to vector<4x256xbf16>
    %cst_91 = arith.constant dense<0.000000e+00> : vector<4x64xf32>
    %157 = tpu.matmul %156, %155, %cst_91 {dimension_numbers = #tpu.dot_dimension_numbers<[1], [0], [0], [1], [0, 0, 1, 1], [], []>} : vector<4x256xbf16>, vector<256x64xbf16>, vector<4x64xf32> -> vector<4x64xf32>
    %158 = arith.addf %108, %157 : vector<4x64xf32>
    %c0_92 = arith.constant 0 : index
    %c0_93 = arith.constant 0 : index
    %c0_94 = arith.constant 0 : index
    %159 = vector.load %arg16[%c0_92, %c0_93, %c0_94] : memref<2x1x64xf32, #tpu.memory_space<vmem>>, vector<1x1x64xf32>
    %160 = vector.shape_cast %159 : vector<1x1x64xf32> to vector<1x64xf32>
    %161 = vector.broadcast %160 : vector<1x64xf32> to vector<4x64xf32>
    %162 = arith.addf %158, %161 : vector<4x64xf32>
    %c1_95 = arith.constant 1 : index
    %c0_96 = arith.constant 0 : index
    %c0_97 = arith.constant 0 : index
    %c0_98 = arith.constant 0 : index
    %163 = vector.load %arg7[%c1_95, %c0_96, %c0_97, %c0_98] : memref<2x2x1x64xf32, #tpu.memory_space<vmem>>, vector<1x1x1x64xf32>
    %164 = vector.shape_cast %163 : vector<1x1x1x64xf32> to vector<1x64xf32>
    %c1_99 = arith.constant 1 : index
    %c0_100 = arith.constant 0 : index
    %c0_101 = arith.constant 0 : index
    %c0_102 = arith.constant 0 : index
    %165 = vector.load %arg8[%c1_99, %c0_100, %c0_101, %c0_102] : memref<2x2x1x64xf32, #tpu.memory_space<vmem>>, vector<1x1x1x64xf32>
    %166 = vector.shape_cast %165 : vector<1x1x1x64xf32> to vector<1x64xf32>
    %cst_103 = arith.constant dense<0.000000e+00> : vector<4xf32>
    %167 = vector.multi_reduction <add>, %162, %cst_103 [1] : vector<4x64xf32> to vector<4xf32>
    %168 = vector.shape_cast %167 : vector<4xf32> to vector<4x1xf32>
    %cst_104 = arith.constant 6.400000e+01 : f32
    %169 = vector.broadcast %cst_104 : f32 to vector<4x1xf32>
    %170 = arith.divf %168, %169 : vector<4x1xf32>
    %171 = vector.broadcast %170 : vector<4x1xf32> to vector<4x64xf32>
    %172 = arith.subf %162, %171 : vector<4x64xf32>
    %173 = arith.mulf %172, %172 : vector<4x64xf32>
    %cst_105 = arith.constant dense<0.000000e+00> : vector<4xf32>
    %174 = vector.multi_reduction <add>, %173, %cst_105 [1] : vector<4x64xf32> to vector<4xf32>
    %175 = vector.shape_cast %174 : vector<4xf32> to vector<4x1xf32>
    %cst_106 = arith.constant 6.400000e+01 : f32
    %176 = vector.broadcast %cst_106 : f32 to vector<4x1xf32>
    %177 = arith.divf %175, %176 : vector<4x1xf32>
    %cst_107 = arith.constant 9.99999997E-7 : f32
    %178 = vector.broadcast %cst_107 : f32 to vector<4x1xf32>
    %179 = arith.addf %177, %178 : vector<4x1xf32>
    %180 = math.rsqrt %179 : vector<4x1xf32>
    %181 = vector.broadcast %180 : vector<4x1xf32> to vector<4x64xf32>
    %182 = arith.mulf %172, %181 : vector<4x64xf32>
    %183 = vector.broadcast %164 : vector<1x64xf32> to vector<4x64xf32>
    %184 = arith.mulf %182, %183 : vector<4x64xf32>
    %185 = vector.broadcast %166 : vector<1x64xf32> to vector<4x64xf32>
    %186 = arith.addf %184, %185 : vector<4x64xf32>
    %c1_108 = arith.constant 1 : index
    %c0_109 = arith.constant 0 : index
    %c0_110 = arith.constant 0 : index
    %c0_111 = arith.constant 0 : index
    %187 = vector.load %arg9[%c1_108, %c0_109, %c0_110, %c0_111] : memref<2x3x64x64xbf16, #tpu.memory_space<vmem>>, vector<1x1x64x64xbf16>
    %188 = vector.shape_cast %187 : vector<1x1x64x64xbf16> to vector<64x64xbf16>
    %189 = arith.truncf %186 : vector<4x64xf32> to vector<4x64xbf16>
    %cst_112 = arith.constant dense<0.000000e+00> : vector<4x64xf32>
    %190 = tpu.matmul %189, %188, %cst_112 {dimension_numbers = #tpu.dot_dimension_numbers<[1], [0], [0], [1], [0, 0, 1, 1], [], []>} : vector<4x64xbf16>, vector<64x64xbf16>, vector<4x64xf32> -> vector<4x64xf32>
    %c1_113 = arith.constant 1 : index
    %c0_114 = arith.constant 0 : index
    %c0_115 = arith.constant 0 : index
    %c0_116 = arith.constant 0 : index
    %191 = vector.load %arg10[%c1_113, %c0_114, %c0_115, %c0_116] : memref<2x3x1x64xf32, #tpu.memory_space<vmem>>, vector<1x1x1x64xf32>
    %192 = vector.shape_cast %191 : vector<1x1x1x64xf32> to vector<1x64xf32>
    %193 = vector.broadcast %192 : vector<1x64xf32> to vector<4x64xf32>
    %194 = arith.addf %190, %193 : vector<4x64xf32>
    %c1_117 = arith.constant 1 : index
    %c1_118 = arith.constant 1 : index
    %c0_119 = arith.constant 0 : index
    %c0_120 = arith.constant 0 : index
    %195 = vector.load %arg9[%c1_117, %c1_118, %c0_119, %c0_120] : memref<2x3x64x64xbf16, #tpu.memory_space<vmem>>, vector<1x1x64x64xbf16>
    %196 = vector.shape_cast %195 : vector<1x1x64x64xbf16> to vector<64x64xbf16>
    %197 = arith.truncf %186 : vector<4x64xf32> to vector<4x64xbf16>
    %cst_121 = arith.constant dense<0.000000e+00> : vector<4x64xf32>
    %198 = tpu.matmul %197, %196, %cst_121 {dimension_numbers = #tpu.dot_dimension_numbers<[1], [0], [0], [1], [0, 0, 1, 1], [], []>} : vector<4x64xbf16>, vector<64x64xbf16>, vector<4x64xf32> -> vector<4x64xf32>
    %c1_122 = arith.constant 1 : index
    %c1_123 = arith.constant 1 : index
    %c0_124 = arith.constant 0 : index
    %c0_125 = arith.constant 0 : index
    %199 = vector.load %arg10[%c1_122, %c1_123, %c0_124, %c0_125] : memref<2x3x1x64xf32, #tpu.memory_space<vmem>>, vector<1x1x1x64xf32>
    %200 = vector.shape_cast %199 : vector<1x1x1x64xf32> to vector<1x64xf32>
    %201 = vector.broadcast %200 : vector<1x64xf32> to vector<4x64xf32>
    %202 = arith.addf %198, %201 : vector<4x64xf32>
    %c1_126 = arith.constant 1 : index
    %c2_127 = arith.constant 2 : index
    %c0_128 = arith.constant 0 : index
    %c0_129 = arith.constant 0 : index
    %203 = vector.load %arg9[%c1_126, %c2_127, %c0_128, %c0_129] : memref<2x3x64x64xbf16, #tpu.memory_space<vmem>>, vector<1x1x64x64xbf16>
    %204 = vector.shape_cast %203 : vector<1x1x64x64xbf16> to vector<64x64xbf16>
    %205 = arith.truncf %186 : vector<4x64xf32> to vector<4x64xbf16>
    %cst_130 = arith.constant dense<0.000000e+00> : vector<4x64xf32>
    %206 = tpu.matmul %205, %204, %cst_130 {dimension_numbers = #tpu.dot_dimension_numbers<[1], [0], [0], [1], [0, 0, 1, 1], [], []>} : vector<4x64xbf16>, vector<64x64xbf16>, vector<4x64xf32> -> vector<4x64xf32>
    %c1_131 = arith.constant 1 : index
    %c2_132 = arith.constant 2 : index
    %c0_133 = arith.constant 0 : index
    %c0_134 = arith.constant 0 : index
    %207 = vector.load %arg10[%c1_131, %c2_132, %c0_133, %c0_134] : memref<2x3x1x64xf32, #tpu.memory_space<vmem>>, vector<1x1x1x64xf32>
    %208 = vector.shape_cast %207 : vector<1x1x1x64xf32> to vector<1x64xf32>
    %209 = vector.broadcast %208 : vector<1x64xf32> to vector<4x64xf32>
    %210 = arith.addf %206, %209 : vector<4x64xf32>
    %211 = tpu.iota {dimensions = array<i32: 0>} : vector<16x4xi32>
    %c3_i32_135 = arith.constant 3 : i32
    %212 = vector.broadcast %c3_i32_135 : i32 to vector<16x4xi32>
    %213 = arith.andi %211, %212 : vector<16x4xi32>
    %214 = tpu.iota {dimensions = array<i32: 1>} : vector<16x4xi32>
    %215 = arith.cmpi eq, %213, %214 : vector<16x4xi32>
    %cst_136 = arith.constant 1.000000e+00 : f32
    %cst_137 = arith.constant 0.000000e+00 : f32
    %216 = vector.broadcast %cst_136 : f32 to vector<16x4xf32>
    %217 = vector.broadcast %cst_137 : f32 to vector<16x4xf32>
    %218 = arith.select %215, %216, %217 : vector<16x4xi1>, vector<16x4xf32>
    %219 = arith.truncf %218 : vector<16x4xf32> to vector<16x4xbf16>
    %220 = tpu.iota {dimensions = array<i32: 0>} : vector<16x64xi32>
    %c2_i32_138 = arith.constant 2 : i32
    %221 = vector.broadcast %c2_i32_138 : i32 to vector<16x64xi32>
    %222 = arith.shrsi %220, %221 : vector<16x64xi32>
    %223 = tpu.iota {dimensions = array<i32: 1>} : vector<16x64xi32>
    %c4_i32_139 = arith.constant 4 : i32
    %224 = vector.broadcast %c4_i32_139 : i32 to vector<16x64xi32>
    %225 = arith.shrsi %223, %224 : vector<16x64xi32>
    %226 = arith.cmpi eq, %222, %225 : vector<16x64xi32>
    %cst_140 = arith.constant 1.000000e+00 : f32
    %cst_141 = arith.constant 0.000000e+00 : f32
    %227 = vector.broadcast %cst_140 : f32 to vector<16x64xf32>
    %228 = vector.broadcast %cst_141 : f32 to vector<16x64xf32>
    %229 = arith.select %226, %227, %228 : vector<16x64xi1>, vector<16x64xf32>
    %230 = arith.truncf %202 : vector<4x64xf32> to vector<4x64xbf16>
    %cst_142 = arith.constant dense<0.000000e+00> : vector<16x64xf32>
    %231 = tpu.matmul %219, %230, %cst_142 {dimension_numbers = #tpu.dot_dimension_numbers<[1], [0], [0], [1], [0, 0, 1, 1], [], []>} : vector<16x4xbf16>, vector<4x64xbf16>, vector<16x64xf32> -> vector<16x64xf32>
    %232 = arith.mulf %231, %229 : vector<16x64xf32>
    %233 = arith.truncf %232 : vector<16x64xf32> to vector<16x64xbf16>
    %234 = arith.truncf %210 : vector<4x64xf32> to vector<4x64xbf16>
    %cst_143 = arith.constant dense<0.000000e+00> : vector<16x64xf32>
    %235 = tpu.matmul %219, %234, %cst_143 {dimension_numbers = #tpu.dot_dimension_numbers<[1], [0], [0], [1], [0, 0, 1, 1], [], []>} : vector<16x4xbf16>, vector<4x64xbf16>, vector<16x64xf32> -> vector<16x64xf32>
    %236 = arith.mulf %235, %229 : vector<16x64xf32>
    %237 = arith.truncf %236 : vector<16x64xf32> to vector<16x64xbf16>
    %238 = arith.truncf %194 : vector<4x64xf32> to vector<4x64xbf16>
    %cst_144 = arith.constant dense<0.000000e+00> : vector<4x16xf32>
    %239 = tpu.matmul %238, %233, %cst_144 {dimension_numbers = #tpu.dot_dimension_numbers<[1], [1], [0], [0], [0, 0, 1, 0], [], []>} : vector<4x64xbf16>, vector<16x64xbf16>, vector<4x16xf32> -> vector<4x16xf32>
    %cst_145 = arith.constant 2.500000e-01 : f32
    %240 = vector.broadcast %cst_145 : f32 to vector<4x16xf32>
    %241 = arith.mulf %239, %240 : vector<4x16xf32>
    %cst_146 = arith.constant dense<0xFF800000> : vector<4xf32>
    %242 = vector.multi_reduction <maximumf>, %241, %cst_146 [1] : vector<4x16xf32> to vector<4xf32>
    %243 = vector.shape_cast %242 : vector<4xf32> to vector<4x1xf32>
    %244 = vector.broadcast %243 : vector<4x1xf32> to vector<4x16xf32>
    %245 = arith.subf %241, %244 : vector<4x16xf32>
    %246 = math.exp %245 : vector<4x16xf32>
    %247 = arith.truncf %246 : vector<4x16xf32> to vector<4x16xbf16>
    %248 = arith.truncf %229 : vector<16x64xf32> to vector<16x64xbf16>
    %cst_147 = arith.constant dense<0.000000e+00> : vector<4x64xf32>
    %249 = tpu.matmul %247, %248, %cst_147 {dimension_numbers = #tpu.dot_dimension_numbers<[1], [0], [0], [1], [0, 0, 1, 1], [], []>} : vector<4x16xbf16>, vector<16x64xbf16>, vector<4x64xf32> -> vector<4x64xf32>
    %cst_148 = arith.constant dense<0.000000e+00> : vector<4x64xf32>
    %250 = tpu.matmul %247, %237, %cst_148 {dimension_numbers = #tpu.dot_dimension_numbers<[1], [0], [0], [1], [0, 0, 1, 1], [], []>} : vector<4x16xbf16>, vector<16x64xbf16>, vector<4x64xf32> -> vector<4x64xf32>
    %251 = tpu.reciprocal %249 {approx = true} : vector<4x64xf32> -> vector<4x64xf32>
    %252 = arith.mulf %250, %251 : vector<4x64xf32>
    %c1_149 = arith.constant 1 : index
    %c0_150 = arith.constant 0 : index
    %c0_151 = arith.constant 0 : index
    %253 = vector.load %arg11[%c1_149, %c0_150, %c0_151] : memref<2x64x64xbf16, #tpu.memory_space<vmem>>, vector<1x64x64xbf16>
    %254 = vector.shape_cast %253 : vector<1x64x64xbf16> to vector<64x64xbf16>
    %255 = arith.truncf %252 : vector<4x64xf32> to vector<4x64xbf16>
    %cst_152 = arith.constant dense<0.000000e+00> : vector<4x64xf32>
    %256 = tpu.matmul %255, %254, %cst_152 {dimension_numbers = #tpu.dot_dimension_numbers<[1], [0], [0], [1], [0, 0, 1, 1], [], []>} : vector<4x64xbf16>, vector<64x64xbf16>, vector<4x64xf32> -> vector<4x64xf32>
    %c1_153 = arith.constant 1 : index
    %c0_154 = arith.constant 0 : index
    %c0_155 = arith.constant 0 : index
    %257 = vector.load %arg12[%c1_153, %c0_154, %c0_155] : memref<2x1x64xf32, #tpu.memory_space<vmem>>, vector<1x1x64xf32>
    %258 = vector.shape_cast %257 : vector<1x1x64xf32> to vector<1x64xf32>
    %259 = vector.broadcast %258 : vector<1x64xf32> to vector<4x64xf32>
    %260 = arith.addf %256, %259 : vector<4x64xf32>
    %261 = arith.addf %162, %260 : vector<4x64xf32>
    %c1_156 = arith.constant 1 : index
    %c1_157 = arith.constant 1 : index
    %c0_158 = arith.constant 0 : index
    %c0_159 = arith.constant 0 : index
    %262 = vector.load %arg7[%c1_156, %c1_157, %c0_158, %c0_159] : memref<2x2x1x64xf32, #tpu.memory_space<vmem>>, vector<1x1x1x64xf32>
    %263 = vector.shape_cast %262 : vector<1x1x1x64xf32> to vector<1x64xf32>
    %c1_160 = arith.constant 1 : index
    %c1_161 = arith.constant 1 : index
    %c0_162 = arith.constant 0 : index
    %c0_163 = arith.constant 0 : index
    %264 = vector.load %arg8[%c1_160, %c1_161, %c0_162, %c0_163] : memref<2x2x1x64xf32, #tpu.memory_space<vmem>>, vector<1x1x1x64xf32>
    %265 = vector.shape_cast %264 : vector<1x1x1x64xf32> to vector<1x64xf32>
    %cst_164 = arith.constant dense<0.000000e+00> : vector<4xf32>
    %266 = vector.multi_reduction <add>, %261, %cst_164 [1] : vector<4x64xf32> to vector<4xf32>
    %267 = vector.shape_cast %266 : vector<4xf32> to vector<4x1xf32>
    %cst_165 = arith.constant 6.400000e+01 : f32
    %268 = vector.broadcast %cst_165 : f32 to vector<4x1xf32>
    %269 = arith.divf %267, %268 : vector<4x1xf32>
    %270 = vector.broadcast %269 : vector<4x1xf32> to vector<4x64xf32>
    %271 = arith.subf %261, %270 : vector<4x64xf32>
    %272 = arith.mulf %271, %271 : vector<4x64xf32>
    %cst_166 = arith.constant dense<0.000000e+00> : vector<4xf32>
    %273 = vector.multi_reduction <add>, %272, %cst_166 [1] : vector<4x64xf32> to vector<4xf32>
    %274 = vector.shape_cast %273 : vector<4xf32> to vector<4x1xf32>
    %cst_167 = arith.constant 6.400000e+01 : f32
    %275 = vector.broadcast %cst_167 : f32 to vector<4x1xf32>
    %276 = arith.divf %274, %275 : vector<4x1xf32>
    %cst_168 = arith.constant 9.99999997E-7 : f32
    %277 = vector.broadcast %cst_168 : f32 to vector<4x1xf32>
    %278 = arith.addf %276, %277 : vector<4x1xf32>
    %279 = math.rsqrt %278 : vector<4x1xf32>
    %280 = vector.broadcast %279 : vector<4x1xf32> to vector<4x64xf32>
    %281 = arith.mulf %271, %280 : vector<4x64xf32>
    %282 = vector.broadcast %263 : vector<1x64xf32> to vector<4x64xf32>
    %283 = arith.mulf %281, %282 : vector<4x64xf32>
    %284 = vector.broadcast %265 : vector<1x64xf32> to vector<4x64xf32>
    %285 = arith.addf %283, %284 : vector<4x64xf32>
    %c1_169 = arith.constant 1 : index
    %c0_170 = arith.constant 0 : index
    %c0_171 = arith.constant 0 : index
    %286 = vector.load %arg13[%c1_169, %c0_170, %c0_171] : memref<2x64x256xbf16, #tpu.memory_space<vmem>>, vector<1x64x256xbf16>
    %287 = vector.shape_cast %286 : vector<1x64x256xbf16> to vector<64x256xbf16>
    %288 = arith.truncf %285 : vector<4x64xf32> to vector<4x64xbf16>
    %cst_172 = arith.constant dense<0.000000e+00> : vector<4x256xf32>
    %289 = tpu.matmul %288, %287, %cst_172 {dimension_numbers = #tpu.dot_dimension_numbers<[1], [0], [0], [1], [0, 0, 1, 1], [], []>} : vector<4x64xbf16>, vector<64x256xbf16>, vector<4x256xf32> -> vector<4x256xf32>
    %c1_173 = arith.constant 1 : index
    %c0_174 = arith.constant 0 : index
    %c0_175 = arith.constant 0 : index
    %290 = vector.load %arg14[%c1_173, %c0_174, %c0_175] : memref<2x1x256xf32, #tpu.memory_space<vmem>>, vector<1x1x256xf32>
    %291 = vector.shape_cast %290 : vector<1x1x256xf32> to vector<1x256xf32>
    %292 = vector.broadcast %291 : vector<1x256xf32> to vector<4x256xf32>
    %293 = arith.addf %289, %292 : vector<4x256xf32>
    %294 = arith.mulf %293, %293 : vector<4x256xf32>
    %295 = arith.mulf %293, %294 : vector<4x256xf32>
    %cst_176 = arith.constant 4.471500e-02 : f32
    %296 = vector.broadcast %cst_176 : f32 to vector<4x256xf32>
    %297 = arith.mulf %296, %295 : vector<4x256xf32>
    %298 = arith.addf %293, %297 : vector<4x256xf32>
    %cst_177 = arith.constant 0.797884583 : f32
    %299 = vector.broadcast %cst_177 : f32 to vector<4x256xf32>
    %300 = arith.mulf %299, %298 : vector<4x256xf32>
    %301 = math.tanh %300 : vector<4x256xf32>
    %cst_178 = arith.constant 1.000000e+00 : f32
    %302 = vector.broadcast %cst_178 : f32 to vector<4x256xf32>
    %303 = arith.addf %302, %301 : vector<4x256xf32>
    %cst_179 = arith.constant 5.000000e-01 : f32
    %304 = vector.broadcast %cst_179 : f32 to vector<4x256xf32>
    %305 = arith.mulf %304, %303 : vector<4x256xf32>
    %306 = arith.mulf %293, %305 : vector<4x256xf32>
    %c1_180 = arith.constant 1 : index
    %c0_181 = arith.constant 0 : index
    %c0_182 = arith.constant 0 : index
    %307 = vector.load %arg15[%c1_180, %c0_181, %c0_182] : memref<2x256x64xbf16, #tpu.memory_space<vmem>>, vector<1x256x64xbf16>
    %308 = vector.shape_cast %307 : vector<1x256x64xbf16> to vector<256x64xbf16>
    %309 = arith.truncf %306 : vector<4x256xf32> to vector<4x256xbf16>
    %cst_183 = arith.constant dense<0.000000e+00> : vector<4x64xf32>
    %310 = tpu.matmul %309, %308, %cst_183 {dimension_numbers = #tpu.dot_dimension_numbers<[1], [0], [0], [1], [0, 0, 1, 1], [], []>} : vector<4x256xbf16>, vector<256x64xbf16>, vector<4x64xf32> -> vector<4x64xf32>
    %311 = arith.addf %261, %310 : vector<4x64xf32>
    %c1_184 = arith.constant 1 : index
    %c0_185 = arith.constant 0 : index
    %c0_186 = arith.constant 0 : index
    %312 = vector.load %arg16[%c1_184, %c0_185, %c0_186] : memref<2x1x64xf32, #tpu.memory_space<vmem>>, vector<1x1x64xf32>
    %313 = vector.shape_cast %312 : vector<1x1x64xf32> to vector<1x64xf32>
    %314 = vector.broadcast %313 : vector<1x64xf32> to vector<4x64xf32>
    %315 = arith.addf %311, %314 : vector<4x64xf32>
    %c0_187 = arith.constant 0 : index
    %c0_188 = arith.constant 0 : index
    %316 = vector.load %arg17[%c0_187, %c0_188] : memref<64x64xbf16, #tpu.memory_space<vmem>>, vector<64x64xbf16>
    %317 = arith.truncf %315 : vector<4x64xf32> to vector<4x64xbf16>
    %cst_189 = arith.constant dense<0.000000e+00> : vector<4x64xf32>
    %318 = tpu.matmul %317, %316, %cst_189 {dimension_numbers = #tpu.dot_dimension_numbers<[1], [0], [0], [1], [0, 0, 1, 1], [], []>} : vector<4x64xbf16>, vector<64x64xbf16>, vector<4x64xf32> -> vector<4x64xf32>
    %c0_190 = arith.constant 0 : index
    %c0_191 = arith.constant 0 : index
    %319 = vector.load %arg18[%c0_190, %c0_191] : memref<1x64xf32, #tpu.memory_space<vmem>>, vector<1x64xf32>
    %320 = vector.broadcast %319 : vector<1x64xf32> to vector<4x64xf32>
    %321 = arith.addf %318, %320 : vector<4x64xf32>
    %c0_192 = arith.constant 0 : index
    %c0_193 = arith.constant 0 : index
    %322 = vector.load %arg19[%c0_192, %c0_193] : memref<1x64xf32, #tpu.memory_space<vmem>>, vector<1x64xf32>
    %c0_194 = arith.constant 0 : index
    %c0_195 = arith.constant 0 : index
    %323 = vector.load %arg20[%c0_194, %c0_195] : memref<1x64xf32, #tpu.memory_space<vmem>>, vector<1x64xf32>
    %cst_196 = arith.constant dense<0.000000e+00> : vector<4xf32>
    %324 = vector.multi_reduction <add>, %321, %cst_196 [1] : vector<4x64xf32> to vector<4xf32>
    %325 = vector.shape_cast %324 : vector<4xf32> to vector<4x1xf32>
    %cst_197 = arith.constant 6.400000e+01 : f32
    %326 = vector.broadcast %cst_197 : f32 to vector<4x1xf32>
    %327 = arith.divf %325, %326 : vector<4x1xf32>
    %328 = vector.broadcast %327 : vector<4x1xf32> to vector<4x64xf32>
    %329 = arith.subf %321, %328 : vector<4x64xf32>
    %330 = arith.mulf %329, %329 : vector<4x64xf32>
    %cst_198 = arith.constant dense<0.000000e+00> : vector<4xf32>
    %331 = vector.multi_reduction <add>, %330, %cst_198 [1] : vector<4x64xf32> to vector<4xf32>
    %332 = vector.shape_cast %331 : vector<4xf32> to vector<4x1xf32>
    %cst_199 = arith.constant 6.400000e+01 : f32
    %333 = vector.broadcast %cst_199 : f32 to vector<4x1xf32>
    %334 = arith.divf %332, %333 : vector<4x1xf32>
    %cst_200 = arith.constant 9.99999974E-6 : f32
    %335 = vector.broadcast %cst_200 : f32 to vector<4x1xf32>
    %336 = arith.addf %334, %335 : vector<4x1xf32>
    %337 = math.rsqrt %336 : vector<4x1xf32>
    %338 = vector.broadcast %337 : vector<4x1xf32> to vector<4x64xf32>
    %339 = arith.mulf %329, %338 : vector<4x64xf32>
    %340 = vector.broadcast %322 : vector<1x64xf32> to vector<4x64xf32>
    %341 = arith.mulf %339, %340 : vector<4x64xf32>
    %342 = vector.broadcast %323 : vector<1x64xf32> to vector<4x64xf32>
    %343 = arith.addf %341, %342 : vector<4x64xf32>
    %344 = arith.mulf %343, %343 : vector<4x64xf32>
    %345 = arith.mulf %343, %344 : vector<4x64xf32>
    %cst_201 = arith.constant 4.471500e-02 : f32
    %346 = vector.broadcast %cst_201 : f32 to vector<4x64xf32>
    %347 = arith.mulf %346, %345 : vector<4x64xf32>
    %348 = arith.addf %343, %347 : vector<4x64xf32>
    %cst_202 = arith.constant 0.797884583 : f32
    %349 = vector.broadcast %cst_202 : f32 to vector<4x64xf32>
    %350 = arith.mulf %349, %348 : vector<4x64xf32>
    %351 = math.tanh %350 : vector<4x64xf32>
    %cst_203 = arith.constant 1.000000e+00 : f32
    %352 = vector.broadcast %cst_203 : f32 to vector<4x64xf32>
    %353 = arith.addf %352, %351 : vector<4x64xf32>
    %cst_204 = arith.constant 5.000000e-01 : f32
    %354 = vector.broadcast %cst_204 : f32 to vector<4x64xf32>
    %355 = arith.mulf %354, %353 : vector<4x64xf32>
    %356 = arith.mulf %343, %355 : vector<4x64xf32>
    %c0_205 = arith.constant 0 : index
    %c0_206 = arith.constant 0 : index
    %357 = vector.load %arg21[%c0_205, %c0_206] : memref<64x64xbf16, #tpu.memory_space<vmem>>, vector<64x64xbf16>
    %358 = arith.truncf %356 : vector<4x64xf32> to vector<4x64xbf16>
    %cst_207 = arith.constant dense<0.000000e+00> : vector<4x64xf32>
    %359 = tpu.matmul %358, %357, %cst_207 {dimension_numbers = #tpu.dot_dimension_numbers<[1], [0], [0], [1], [0, 0, 1, 1], [], []>} : vector<4x64xbf16>, vector<64x64xbf16>, vector<4x64xf32> -> vector<4x64xf32>
    %c0_208 = arith.constant 0 : index
    %c0_209 = arith.constant 0 : index
    %360 = vector.load %arg22[%c0_208, %c0_209] : memref<1x64xf32, #tpu.memory_space<vmem>>, vector<1x64xf32>
    %361 = vector.broadcast %360 : vector<1x64xf32> to vector<4x64xf32>
    %362 = arith.addf %359, %361 : vector<4x64xf32>
    %c0_210 = arith.constant 0 : index
    %c0_211 = arith.constant 0 : index
    %c0_212 = arith.constant 0 : index
    %363 = vector.load %arg2[%c0_210, %c0_211, %c0_212] : memref<1x8x64xf32, #tpu.memory_space<vmem>>, vector<1x8x64xf32>
    %364 = vector.shape_cast %363 : vector<1x8x64xf32> to vector<8x64xf32>
    %365 = tpu.iota {dimensions = array<i32: 0>} : vector<8x64xi32>
    %366 = tpu.iota {dimensions = array<i32: 1>} : vector<8x64xi32>
    %c7_i32 = arith.constant 7 : i32
    %367 = vector.broadcast %c7_i32 : i32 to vector<8x64xi32>
    %368 = arith.andi %366, %367 : vector<8x64xi32>
    %369 = arith.cmpi sgt, %368, %365 : vector<8x64xi32>
    %cst_213 = arith.constant -1.000000e+30 : f32
    %cst_214 = arith.constant 0.000000e+00 : f32
    %370 = vector.broadcast %cst_213 : f32 to vector<8x64xf32>
    %371 = vector.broadcast %cst_214 : f32 to vector<8x64xf32>
    %372 = arith.select %369, %370, %371 : vector<8x64xi1>, vector<8x64xf32>
    %c0_215 = arith.constant 0 : index
    %c0_216 = arith.constant 0 : index
    %c0_217 = arith.constant 0 : index
    %373 = vector.load %arg3[%c0_215, %c0_216, %c0_217] : memref<1x1x64xf32, #tpu.memory_space<vmem>>, vector<1x1x64xf32>
    %374 = vector.shape_cast %373 : vector<1x1x64xf32> to vector<1x64xf32>
    %375 = vector.broadcast %374 : vector<1x64xf32> to vector<8x64xf32>
    %376 = arith.addf %372, %375 : vector<8x64xf32>
    %c0_218 = arith.constant 0 : index
    %c0_219 = arith.constant 0 : index
    %c0_220 = arith.constant 0 : index
    %c0_221 = arith.constant 0 : index
    %377 = vector.load %arg23[%c0_218, %c0_219, %c0_220, %c0_221] : memref<2x3x1x64xf32, #tpu.memory_space<vmem>>, vector<1x1x1x64xf32>
    %378 = vector.shape_cast %377 : vector<1x1x1x64xf32> to vector<1x64xf32>
    %c0_222 = arith.constant 0 : index
    %c0_223 = arith.constant 0 : index
    %c0_224 = arith.constant 0 : index
    %c0_225 = arith.constant 0 : index
    %379 = vector.load %arg24[%c0_222, %c0_223, %c0_224, %c0_225] : memref<2x3x1x64xf32, #tpu.memory_space<vmem>>, vector<1x1x1x64xf32>
    %380 = vector.shape_cast %379 : vector<1x1x1x64xf32> to vector<1x64xf32>
    %cst_226 = arith.constant dense<0.000000e+00> : vector<8xf32>
    %381 = vector.multi_reduction <add>, %364, %cst_226 [1] : vector<8x64xf32> to vector<8xf32>
    %382 = vector.shape_cast %381 : vector<8xf32> to vector<8x1xf32>
    %cst_227 = arith.constant 6.400000e+01 : f32
    %383 = vector.broadcast %cst_227 : f32 to vector<8x1xf32>
    %384 = arith.divf %382, %383 : vector<8x1xf32>
    %385 = vector.broadcast %384 : vector<8x1xf32> to vector<8x64xf32>
    %386 = arith.subf %364, %385 : vector<8x64xf32>
    %387 = arith.mulf %386, %386 : vector<8x64xf32>
    %cst_228 = arith.constant dense<0.000000e+00> : vector<8xf32>
    %388 = vector.multi_reduction <add>, %387, %cst_228 [1] : vector<8x64xf32> to vector<8xf32>
    %389 = vector.shape_cast %388 : vector<8xf32> to vector<8x1xf32>
    %cst_229 = arith.constant 6.400000e+01 : f32
    %390 = vector.broadcast %cst_229 : f32 to vector<8x1xf32>
    %391 = arith.divf %389, %390 : vector<8x1xf32>
    %cst_230 = arith.constant 9.99999974E-6 : f32
    %392 = vector.broadcast %cst_230 : f32 to vector<8x1xf32>
    %393 = arith.addf %391, %392 : vector<8x1xf32>
    %394 = math.rsqrt %393 : vector<8x1xf32>
    %395 = vector.broadcast %394 : vector<8x1xf32> to vector<8x64xf32>
    %396 = arith.mulf %386, %395 : vector<8x64xf32>
    %397 = vector.broadcast %378 : vector<1x64xf32> to vector<8x64xf32>
    %398 = arith.mulf %396, %397 : vector<8x64xf32>
    %399 = vector.broadcast %380 : vector<1x64xf32> to vector<8x64xf32>
    %400 = arith.addf %398, %399 : vector<8x64xf32>
    %c0_231 = arith.constant 0 : index
    %c0_232 = arith.constant 0 : index
    %c0_233 = arith.constant 0 : index
    %c0_234 = arith.constant 0 : index
    %401 = vector.load %arg25[%c0_231, %c0_232, %c0_233, %c0_234] : memref<2x3x64x64xbf16, #tpu.memory_space<vmem>>, vector<1x1x64x64xbf16>
    %402 = vector.shape_cast %401 : vector<1x1x64x64xbf16> to vector<64x64xbf16>
    %403 = arith.truncf %400 : vector<8x64xf32> to vector<8x64xbf16>
    %cst_235 = arith.constant dense<0.000000e+00> : vector<8x64xf32>
    %404 = tpu.matmul %403, %402, %cst_235 {dimension_numbers = #tpu.dot_dimension_numbers<[1], [0], [0], [1], [0, 0, 1, 1], [], []>} : vector<8x64xbf16>, vector<64x64xbf16>, vector<8x64xf32> -> vector<8x64xf32>
    %c0_236 = arith.constant 0 : index
    %c0_237 = arith.constant 0 : index
    %c0_238 = arith.constant 0 : index
    %c0_239 = arith.constant 0 : index
    %405 = vector.load %arg26[%c0_236, %c0_237, %c0_238, %c0_239] : memref<2x3x1x64xf32, #tpu.memory_space<vmem>>, vector<1x1x1x64xf32>
    %406 = vector.shape_cast %405 : vector<1x1x1x64xf32> to vector<1x64xf32>
    %407 = vector.broadcast %406 : vector<1x64xf32> to vector<8x64xf32>
    %408 = arith.addf %404, %407 : vector<8x64xf32>
    %c0_240 = arith.constant 0 : index
    %c1_241 = arith.constant 1 : index
    %c0_242 = arith.constant 0 : index
    %c0_243 = arith.constant 0 : index
    %409 = vector.load %arg25[%c0_240, %c1_241, %c0_242, %c0_243] : memref<2x3x64x64xbf16, #tpu.memory_space<vmem>>, vector<1x1x64x64xbf16>
    %410 = vector.shape_cast %409 : vector<1x1x64x64xbf16> to vector<64x64xbf16>
    %411 = arith.truncf %400 : vector<8x64xf32> to vector<8x64xbf16>
    %cst_244 = arith.constant dense<0.000000e+00> : vector<8x64xf32>
    %412 = tpu.matmul %411, %410, %cst_244 {dimension_numbers = #tpu.dot_dimension_numbers<[1], [0], [0], [1], [0, 0, 1, 1], [], []>} : vector<8x64xbf16>, vector<64x64xbf16>, vector<8x64xf32> -> vector<8x64xf32>
    %c0_245 = arith.constant 0 : index
    %c1_246 = arith.constant 1 : index
    %c0_247 = arith.constant 0 : index
    %c0_248 = arith.constant 0 : index
    %413 = vector.load %arg26[%c0_245, %c1_246, %c0_247, %c0_248] : memref<2x3x1x64xf32, #tpu.memory_space<vmem>>, vector<1x1x1x64xf32>
    %414 = vector.shape_cast %413 : vector<1x1x1x64xf32> to vector<1x64xf32>
    %415 = vector.broadcast %414 : vector<1x64xf32> to vector<8x64xf32>
    %416 = arith.addf %412, %415 : vector<8x64xf32>
    %c0_249 = arith.constant 0 : index
    %c2_250 = arith.constant 2 : index
    %c0_251 = arith.constant 0 : index
    %c0_252 = arith.constant 0 : index
    %417 = vector.load %arg25[%c0_249, %c2_250, %c0_251, %c0_252] : memref<2x3x64x64xbf16, #tpu.memory_space<vmem>>, vector<1x1x64x64xbf16>
    %418 = vector.shape_cast %417 : vector<1x1x64x64xbf16> to vector<64x64xbf16>
    %419 = arith.truncf %400 : vector<8x64xf32> to vector<8x64xbf16>
    %cst_253 = arith.constant dense<0.000000e+00> : vector<8x64xf32>
    %420 = tpu.matmul %419, %418, %cst_253 {dimension_numbers = #tpu.dot_dimension_numbers<[1], [0], [0], [1], [0, 0, 1, 1], [], []>} : vector<8x64xbf16>, vector<64x64xbf16>, vector<8x64xf32> -> vector<8x64xf32>
    %c0_254 = arith.constant 0 : index
    %c2_255 = arith.constant 2 : index
    %c0_256 = arith.constant 0 : index
    %c0_257 = arith.constant 0 : index
    %421 = vector.load %arg26[%c0_254, %c2_255, %c0_256, %c0_257] : memref<2x3x1x64xf32, #tpu.memory_space<vmem>>, vector<1x1x1x64xf32>
    %422 = vector.shape_cast %421 : vector<1x1x1x64xf32> to vector<1x64xf32>
    %423 = vector.broadcast %422 : vector<1x64xf32> to vector<8x64xf32>
    %424 = arith.addf %420, %423 : vector<8x64xf32>
    %425 = tpu.iota {dimensions = array<i32: 0>} : vector<64x8xi32>
    %c7_i32_258 = arith.constant 7 : i32
    %426 = vector.broadcast %c7_i32_258 : i32 to vector<64x8xi32>
    %427 = arith.andi %425, %426 : vector<64x8xi32>
    %428 = tpu.iota {dimensions = array<i32: 1>} : vector<64x8xi32>
    %429 = arith.cmpi eq, %427, %428 : vector<64x8xi32>
    %cst_259 = arith.constant 1.000000e+00 : f32
    %cst_260 = arith.constant 0.000000e+00 : f32
    %430 = vector.broadcast %cst_259 : f32 to vector<64x8xf32>
    %431 = vector.broadcast %cst_260 : f32 to vector<64x8xf32>
    %432 = arith.select %429, %430, %431 : vector<64x8xi1>, vector<64x8xf32>
    %433 = arith.truncf %432 : vector<64x8xf32> to vector<64x8xbf16>
    %434 = tpu.iota {dimensions = array<i32: 0>} : vector<64x64xi32>
    %c3_i32_261 = arith.constant 3 : i32
    %435 = vector.broadcast %c3_i32_261 : i32 to vector<64x64xi32>
    %436 = arith.shrsi %434, %435 : vector<64x64xi32>
    %437 = tpu.iota {dimensions = array<i32: 1>} : vector<64x64xi32>
    %c3_i32_262 = arith.constant 3 : i32
    %438 = vector.broadcast %c3_i32_262 : i32 to vector<64x64xi32>
    %439 = arith.shrsi %437, %438 : vector<64x64xi32>
    %440 = arith.cmpi eq, %436, %439 : vector<64x64xi32>
    %cst_263 = arith.constant 1.000000e+00 : f32
    %cst_264 = arith.constant 0.000000e+00 : f32
    %441 = vector.broadcast %cst_263 : f32 to vector<64x64xf32>
    %442 = vector.broadcast %cst_264 : f32 to vector<64x64xf32>
    %443 = arith.select %440, %441, %442 : vector<64x64xi1>, vector<64x64xf32>
    %444 = arith.truncf %416 : vector<8x64xf32> to vector<8x64xbf16>
    %cst_265 = arith.constant dense<0.000000e+00> : vector<64x64xf32>
    %445 = tpu.matmul %433, %444, %cst_265 {dimension_numbers = #tpu.dot_dimension_numbers<[1], [0], [0], [1], [0, 0, 1, 1], [], []>} : vector<64x8xbf16>, vector<8x64xbf16>, vector<64x64xf32> -> vector<64x64xf32>
    %446 = arith.mulf %445, %443 : vector<64x64xf32>
    %447 = arith.truncf %446 : vector<64x64xf32> to vector<64x64xbf16>
    %448 = arith.truncf %424 : vector<8x64xf32> to vector<8x64xbf16>
    %cst_266 = arith.constant dense<0.000000e+00> : vector<64x64xf32>
    %449 = tpu.matmul %433, %448, %cst_266 {dimension_numbers = #tpu.dot_dimension_numbers<[1], [0], [0], [1], [0, 0, 1, 1], [], []>} : vector<64x8xbf16>, vector<8x64xbf16>, vector<64x64xf32> -> vector<64x64xf32>
    %450 = arith.mulf %449, %443 : vector<64x64xf32>
    %451 = arith.truncf %450 : vector<64x64xf32> to vector<64x64xbf16>
    %452 = arith.truncf %408 : vector<8x64xf32> to vector<8x64xbf16>
    %cst_267 = arith.constant dense<0.000000e+00> : vector<8x64xf32>
    %453 = tpu.matmul %452, %447, %cst_267 {dimension_numbers = #tpu.dot_dimension_numbers<[1], [1], [0], [0], [0, 0, 1, 0], [], []>} : vector<8x64xbf16>, vector<64x64xbf16>, vector<8x64xf32> -> vector<8x64xf32>
    %cst_268 = arith.constant 0.353553385 : f32
    %454 = vector.broadcast %cst_268 : f32 to vector<8x64xf32>
    %455 = arith.mulf %453, %454 : vector<8x64xf32>
    %456 = arith.addf %455, %376 : vector<8x64xf32>
    %cst_269 = arith.constant dense<0xFF800000> : vector<8xf32>
    %457 = vector.multi_reduction <maximumf>, %456, %cst_269 [1] : vector<8x64xf32> to vector<8xf32>
    %458 = vector.shape_cast %457 : vector<8xf32> to vector<8x1xf32>
    %459 = vector.broadcast %458 : vector<8x1xf32> to vector<8x64xf32>
    %460 = arith.subf %456, %459 : vector<8x64xf32>
    %461 = math.exp %460 : vector<8x64xf32>
    %462 = arith.truncf %461 : vector<8x64xf32> to vector<8x64xbf16>
    %463 = arith.truncf %443 : vector<64x64xf32> to vector<64x64xbf16>
    %cst_270 = arith.constant dense<0.000000e+00> : vector<8x64xf32>
    %464 = tpu.matmul %462, %463, %cst_270 {dimension_numbers = #tpu.dot_dimension_numbers<[1], [0], [0], [1], [0, 0, 1, 1], [], []>} : vector<8x64xbf16>, vector<64x64xbf16>, vector<8x64xf32> -> vector<8x64xf32>
    %cst_271 = arith.constant dense<0.000000e+00> : vector<8x64xf32>
    %465 = tpu.matmul %462, %451, %cst_271 {dimension_numbers = #tpu.dot_dimension_numbers<[1], [0], [0], [1], [0, 0, 1, 1], [], []>} : vector<8x64xbf16>, vector<64x64xbf16>, vector<8x64xf32> -> vector<8x64xf32>
    %466 = tpu.reciprocal %464 {approx = true} : vector<8x64xf32> -> vector<8x64xf32>
    %467 = arith.mulf %465, %466 : vector<8x64xf32>
    %c0_272 = arith.constant 0 : index
    %c0_273 = arith.constant 0 : index
    %c0_274 = arith.constant 0 : index
    %468 = vector.load %arg27[%c0_272, %c0_273, %c0_274] : memref<2x64x64xbf16, #tpu.memory_space<vmem>>, vector<1x64x64xbf16>
    %469 = vector.shape_cast %468 : vector<1x64x64xbf16> to vector<64x64xbf16>
    %470 = arith.truncf %467 : vector<8x64xf32> to vector<8x64xbf16>
    %cst_275 = arith.constant dense<0.000000e+00> : vector<8x64xf32>
    %471 = tpu.matmul %470, %469, %cst_275 {dimension_numbers = #tpu.dot_dimension_numbers<[1], [0], [0], [1], [0, 0, 1, 1], [], []>} : vector<8x64xbf16>, vector<64x64xbf16>, vector<8x64xf32> -> vector<8x64xf32>
    %c0_276 = arith.constant 0 : index
    %c0_277 = arith.constant 0 : index
    %c0_278 = arith.constant 0 : index
    %472 = vector.load %arg28[%c0_276, %c0_277, %c0_278] : memref<2x1x64xf32, #tpu.memory_space<vmem>>, vector<1x1x64xf32>
    %473 = vector.shape_cast %472 : vector<1x1x64xf32> to vector<1x64xf32>
    %474 = vector.broadcast %473 : vector<1x64xf32> to vector<8x64xf32>
    %475 = arith.addf %471, %474 : vector<8x64xf32>
    %476 = arith.addf %364, %475 : vector<8x64xf32>
    %c0_279 = arith.constant 0 : index
    %c1_280 = arith.constant 1 : index
    %c0_281 = arith.constant 0 : index
    %c0_282 = arith.constant 0 : index
    %477 = vector.load %arg23[%c0_279, %c1_280, %c0_281, %c0_282] : memref<2x3x1x64xf32, #tpu.memory_space<vmem>>, vector<1x1x1x64xf32>
    %478 = vector.shape_cast %477 : vector<1x1x1x64xf32> to vector<1x64xf32>
    %c0_283 = arith.constant 0 : index
    %c1_284 = arith.constant 1 : index
    %c0_285 = arith.constant 0 : index
    %c0_286 = arith.constant 0 : index
    %479 = vector.load %arg24[%c0_283, %c1_284, %c0_285, %c0_286] : memref<2x3x1x64xf32, #tpu.memory_space<vmem>>, vector<1x1x1x64xf32>
    %480 = vector.shape_cast %479 : vector<1x1x1x64xf32> to vector<1x64xf32>
    %cst_287 = arith.constant dense<0.000000e+00> : vector<8xf32>
    %481 = vector.multi_reduction <add>, %476, %cst_287 [1] : vector<8x64xf32> to vector<8xf32>
    %482 = vector.shape_cast %481 : vector<8xf32> to vector<8x1xf32>
    %cst_288 = arith.constant 6.400000e+01 : f32
    %483 = vector.broadcast %cst_288 : f32 to vector<8x1xf32>
    %484 = arith.divf %482, %483 : vector<8x1xf32>
    %485 = vector.broadcast %484 : vector<8x1xf32> to vector<8x64xf32>
    %486 = arith.subf %476, %485 : vector<8x64xf32>
    %487 = arith.mulf %486, %486 : vector<8x64xf32>
    %cst_289 = arith.constant dense<0.000000e+00> : vector<8xf32>
    %488 = vector.multi_reduction <add>, %487, %cst_289 [1] : vector<8x64xf32> to vector<8xf32>
    %489 = vector.shape_cast %488 : vector<8xf32> to vector<8x1xf32>
    %cst_290 = arith.constant 6.400000e+01 : f32
    %490 = vector.broadcast %cst_290 : f32 to vector<8x1xf32>
    %491 = arith.divf %489, %490 : vector<8x1xf32>
    %cst_291 = arith.constant 9.99999974E-6 : f32
    %492 = vector.broadcast %cst_291 : f32 to vector<8x1xf32>
    %493 = arith.addf %491, %492 : vector<8x1xf32>
    %494 = math.rsqrt %493 : vector<8x1xf32>
    %495 = vector.broadcast %494 : vector<8x1xf32> to vector<8x64xf32>
    %496 = arith.mulf %486, %495 : vector<8x64xf32>
    %497 = vector.broadcast %478 : vector<1x64xf32> to vector<8x64xf32>
    %498 = arith.mulf %496, %497 : vector<8x64xf32>
    %499 = vector.broadcast %480 : vector<1x64xf32> to vector<8x64xf32>
    %500 = arith.addf %498, %499 : vector<8x64xf32>
    %c0_292 = arith.constant 0 : index
    %c0_293 = arith.constant 0 : index
    %c0_294 = arith.constant 0 : index
    %c0_295 = arith.constant 0 : index
    %501 = vector.load %arg29[%c0_292, %c0_293, %c0_294, %c0_295] : memref<2x3x64x64xbf16, #tpu.memory_space<vmem>>, vector<1x1x64x64xbf16>
    %502 = vector.shape_cast %501 : vector<1x1x64x64xbf16> to vector<64x64xbf16>
    %503 = arith.truncf %500 : vector<8x64xf32> to vector<8x64xbf16>
    %cst_296 = arith.constant dense<0.000000e+00> : vector<8x64xf32>
    %504 = tpu.matmul %503, %502, %cst_296 {dimension_numbers = #tpu.dot_dimension_numbers<[1], [0], [0], [1], [0, 0, 1, 1], [], []>} : vector<8x64xbf16>, vector<64x64xbf16>, vector<8x64xf32> -> vector<8x64xf32>
    %c0_297 = arith.constant 0 : index
    %c0_298 = arith.constant 0 : index
    %c0_299 = arith.constant 0 : index
    %c0_300 = arith.constant 0 : index
    %505 = vector.load %arg30[%c0_297, %c0_298, %c0_299, %c0_300] : memref<2x3x1x64xf32, #tpu.memory_space<vmem>>, vector<1x1x1x64xf32>
    %506 = vector.shape_cast %505 : vector<1x1x1x64xf32> to vector<1x64xf32>
    %507 = vector.broadcast %506 : vector<1x64xf32> to vector<8x64xf32>
    %508 = arith.addf %504, %507 : vector<8x64xf32>
    %c0_301 = arith.constant 0 : index
    %c1_302 = arith.constant 1 : index
    %c0_303 = arith.constant 0 : index
    %c0_304 = arith.constant 0 : index
    %509 = vector.load %arg29[%c0_301, %c1_302, %c0_303, %c0_304] : memref<2x3x64x64xbf16, #tpu.memory_space<vmem>>, vector<1x1x64x64xbf16>
    %510 = vector.shape_cast %509 : vector<1x1x64x64xbf16> to vector<64x64xbf16>
    %511 = arith.truncf %362 : vector<4x64xf32> to vector<4x64xbf16>
    %cst_305 = arith.constant dense<0.000000e+00> : vector<4x64xf32>
    %512 = tpu.matmul %511, %510, %cst_305 {dimension_numbers = #tpu.dot_dimension_numbers<[1], [0], [0], [1], [0, 0, 1, 1], [], []>} : vector<4x64xbf16>, vector<64x64xbf16>, vector<4x64xf32> -> vector<4x64xf32>
    %c0_306 = arith.constant 0 : index
    %c1_307 = arith.constant 1 : index
    %c0_308 = arith.constant 0 : index
    %c0_309 = arith.constant 0 : index
    %513 = vector.load %arg30[%c0_306, %c1_307, %c0_308, %c0_309] : memref<2x3x1x64xf32, #tpu.memory_space<vmem>>, vector<1x1x1x64xf32>
    %514 = vector.shape_cast %513 : vector<1x1x1x64xf32> to vector<1x64xf32>
    %515 = vector.broadcast %514 : vector<1x64xf32> to vector<4x64xf32>
    %516 = arith.addf %512, %515 : vector<4x64xf32>
    %c0_310 = arith.constant 0 : index
    %c2_311 = arith.constant 2 : index
    %c0_312 = arith.constant 0 : index
    %c0_313 = arith.constant 0 : index
    %517 = vector.load %arg29[%c0_310, %c2_311, %c0_312, %c0_313] : memref<2x3x64x64xbf16, #tpu.memory_space<vmem>>, vector<1x1x64x64xbf16>
    %518 = vector.shape_cast %517 : vector<1x1x64x64xbf16> to vector<64x64xbf16>
    %519 = arith.truncf %362 : vector<4x64xf32> to vector<4x64xbf16>
    %cst_314 = arith.constant dense<0.000000e+00> : vector<4x64xf32>
    %520 = tpu.matmul %519, %518, %cst_314 {dimension_numbers = #tpu.dot_dimension_numbers<[1], [0], [0], [1], [0, 0, 1, 1], [], []>} : vector<4x64xbf16>, vector<64x64xbf16>, vector<4x64xf32> -> vector<4x64xf32>
    %c0_315 = arith.constant 0 : index
    %c2_316 = arith.constant 2 : index
    %c0_317 = arith.constant 0 : index
    %c0_318 = arith.constant 0 : index
    %521 = vector.load %arg30[%c0_315, %c2_316, %c0_317, %c0_318] : memref<2x3x1x64xf32, #tpu.memory_space<vmem>>, vector<1x1x1x64xf32>
    %522 = vector.shape_cast %521 : vector<1x1x1x64xf32> to vector<1x64xf32>
    %523 = vector.broadcast %522 : vector<1x64xf32> to vector<4x64xf32>
    %524 = arith.addf %520, %523 : vector<4x64xf32>
    %525 = tpu.iota {dimensions = array<i32: 0>} : vector<32x4xi32>
    %c3_i32_319 = arith.constant 3 : i32
    %526 = vector.broadcast %c3_i32_319 : i32 to vector<32x4xi32>
    %527 = arith.andi %525, %526 : vector<32x4xi32>
    %528 = tpu.iota {dimensions = array<i32: 1>} : vector<32x4xi32>
    %529 = arith.cmpi eq, %527, %528 : vector<32x4xi32>
    %cst_320 = arith.constant 1.000000e+00 : f32
    %cst_321 = arith.constant 0.000000e+00 : f32
    %530 = vector.broadcast %cst_320 : f32 to vector<32x4xf32>
    %531 = vector.broadcast %cst_321 : f32 to vector<32x4xf32>
    %532 = arith.select %529, %530, %531 : vector<32x4xi1>, vector<32x4xf32>
    %533 = arith.truncf %532 : vector<32x4xf32> to vector<32x4xbf16>
    %534 = tpu.iota {dimensions = array<i32: 0>} : vector<32x64xi32>
    %c2_i32_322 = arith.constant 2 : i32
    %535 = vector.broadcast %c2_i32_322 : i32 to vector<32x64xi32>
    %536 = arith.shrsi %534, %535 : vector<32x64xi32>
    %537 = tpu.iota {dimensions = array<i32: 1>} : vector<32x64xi32>
    %c3_i32_323 = arith.constant 3 : i32
    %538 = vector.broadcast %c3_i32_323 : i32 to vector<32x64xi32>
    %539 = arith.shrsi %537, %538 : vector<32x64xi32>
    %540 = arith.cmpi eq, %536, %539 : vector<32x64xi32>
    %cst_324 = arith.constant 1.000000e+00 : f32
    %cst_325 = arith.constant 0.000000e+00 : f32
    %541 = vector.broadcast %cst_324 : f32 to vector<32x64xf32>
    %542 = vector.broadcast %cst_325 : f32 to vector<32x64xf32>
    %543 = arith.select %540, %541, %542 : vector<32x64xi1>, vector<32x64xf32>
    %544 = arith.truncf %516 : vector<4x64xf32> to vector<4x64xbf16>
    %cst_326 = arith.constant dense<0.000000e+00> : vector<32x64xf32>
    %545 = tpu.matmul %533, %544, %cst_326 {dimension_numbers = #tpu.dot_dimension_numbers<[1], [0], [0], [1], [0, 0, 1, 1], [], []>} : vector<32x4xbf16>, vector<4x64xbf16>, vector<32x64xf32> -> vector<32x64xf32>
    %546 = arith.mulf %545, %543 : vector<32x64xf32>
    %547 = arith.truncf %546 : vector<32x64xf32> to vector<32x64xbf16>
    %548 = arith.truncf %524 : vector<4x64xf32> to vector<4x64xbf16>
    %cst_327 = arith.constant dense<0.000000e+00> : vector<32x64xf32>
    %549 = tpu.matmul %533, %548, %cst_327 {dimension_numbers = #tpu.dot_dimension_numbers<[1], [0], [0], [1], [0, 0, 1, 1], [], []>} : vector<32x4xbf16>, vector<4x64xbf16>, vector<32x64xf32> -> vector<32x64xf32>
    %550 = arith.mulf %549, %543 : vector<32x64xf32>
    %551 = arith.truncf %550 : vector<32x64xf32> to vector<32x64xbf16>
    %552 = arith.truncf %508 : vector<8x64xf32> to vector<8x64xbf16>
    %cst_328 = arith.constant dense<0.000000e+00> : vector<8x32xf32>
    %553 = tpu.matmul %552, %547, %cst_328 {dimension_numbers = #tpu.dot_dimension_numbers<[1], [1], [0], [0], [0, 0, 1, 0], [], []>} : vector<8x64xbf16>, vector<32x64xbf16>, vector<8x32xf32> -> vector<8x32xf32>
    %cst_329 = arith.constant 0.353553385 : f32
    %554 = vector.broadcast %cst_329 : f32 to vector<8x32xf32>
    %555 = arith.mulf %553, %554 : vector<8x32xf32>
    %cst_330 = arith.constant dense<0xFF800000> : vector<8xf32>
    %556 = vector.multi_reduction <maximumf>, %555, %cst_330 [1] : vector<8x32xf32> to vector<8xf32>
    %557 = vector.shape_cast %556 : vector<8xf32> to vector<8x1xf32>
    %558 = vector.broadcast %557 : vector<8x1xf32> to vector<8x32xf32>
    %559 = arith.subf %555, %558 : vector<8x32xf32>
    %560 = math.exp %559 : vector<8x32xf32>
    %561 = arith.truncf %560 : vector<8x32xf32> to vector<8x32xbf16>
    %562 = arith.truncf %543 : vector<32x64xf32> to vector<32x64xbf16>
    %cst_331 = arith.constant dense<0.000000e+00> : vector<8x64xf32>
    %563 = tpu.matmul %561, %562, %cst_331 {dimension_numbers = #tpu.dot_dimension_numbers<[1], [0], [0], [1], [0, 0, 1, 1], [], []>} : vector<8x32xbf16>, vector<32x64xbf16>, vector<8x64xf32> -> vector<8x64xf32>
    %cst_332 = arith.constant dense<0.000000e+00> : vector<8x64xf32>
    %564 = tpu.matmul %561, %551, %cst_332 {dimension_numbers = #tpu.dot_dimension_numbers<[1], [0], [0], [1], [0, 0, 1, 1], [], []>} : vector<8x32xbf16>, vector<32x64xbf16>, vector<8x64xf32> -> vector<8x64xf32>
    %565 = tpu.reciprocal %563 {approx = true} : vector<8x64xf32> -> vector<8x64xf32>
    %566 = arith.mulf %564, %565 : vector<8x64xf32>
    %c0_333 = arith.constant 0 : index
    %c0_334 = arith.constant 0 : index
    %c0_335 = arith.constant 0 : index
    %567 = vector.load %arg31[%c0_333, %c0_334, %c0_335] : memref<2x64x64xbf16, #tpu.memory_space<vmem>>, vector<1x64x64xbf16>
    %568 = vector.shape_cast %567 : vector<1x64x64xbf16> to vector<64x64xbf16>
    %569 = arith.truncf %566 : vector<8x64xf32> to vector<8x64xbf16>
    %cst_336 = arith.constant dense<0.000000e+00> : vector<8x64xf32>
    %570 = tpu.matmul %569, %568, %cst_336 {dimension_numbers = #tpu.dot_dimension_numbers<[1], [0], [0], [1], [0, 0, 1, 1], [], []>} : vector<8x64xbf16>, vector<64x64xbf16>, vector<8x64xf32> -> vector<8x64xf32>
    %c0_337 = arith.constant 0 : index
    %c0_338 = arith.constant 0 : index
    %c0_339 = arith.constant 0 : index
    %571 = vector.load %arg32[%c0_337, %c0_338, %c0_339] : memref<2x1x64xf32, #tpu.memory_space<vmem>>, vector<1x1x64xf32>
    %572 = vector.shape_cast %571 : vector<1x1x64xf32> to vector<1x64xf32>
    %573 = vector.broadcast %572 : vector<1x64xf32> to vector<8x64xf32>
    %574 = arith.addf %570, %573 : vector<8x64xf32>
    %575 = arith.addf %476, %574 : vector<8x64xf32>
    %c0_340 = arith.constant 0 : index
    %c2_341 = arith.constant 2 : index
    %c0_342 = arith.constant 0 : index
    %c0_343 = arith.constant 0 : index
    %576 = vector.load %arg23[%c0_340, %c2_341, %c0_342, %c0_343] : memref<2x3x1x64xf32, #tpu.memory_space<vmem>>, vector<1x1x1x64xf32>
    %577 = vector.shape_cast %576 : vector<1x1x1x64xf32> to vector<1x64xf32>
    %c0_344 = arith.constant 0 : index
    %c2_345 = arith.constant 2 : index
    %c0_346 = arith.constant 0 : index
    %c0_347 = arith.constant 0 : index
    %578 = vector.load %arg24[%c0_344, %c2_345, %c0_346, %c0_347] : memref<2x3x1x64xf32, #tpu.memory_space<vmem>>, vector<1x1x1x64xf32>
    %579 = vector.shape_cast %578 : vector<1x1x1x64xf32> to vector<1x64xf32>
    %cst_348 = arith.constant dense<0.000000e+00> : vector<8xf32>
    %580 = vector.multi_reduction <add>, %575, %cst_348 [1] : vector<8x64xf32> to vector<8xf32>
    %581 = vector.shape_cast %580 : vector<8xf32> to vector<8x1xf32>
    %cst_349 = arith.constant 6.400000e+01 : f32
    %582 = vector.broadcast %cst_349 : f32 to vector<8x1xf32>
    %583 = arith.divf %581, %582 : vector<8x1xf32>
    %584 = vector.broadcast %583 : vector<8x1xf32> to vector<8x64xf32>
    %585 = arith.subf %575, %584 : vector<8x64xf32>
    %586 = arith.mulf %585, %585 : vector<8x64xf32>
    %cst_350 = arith.constant dense<0.000000e+00> : vector<8xf32>
    %587 = vector.multi_reduction <add>, %586, %cst_350 [1] : vector<8x64xf32> to vector<8xf32>
    %588 = vector.shape_cast %587 : vector<8xf32> to vector<8x1xf32>
    %cst_351 = arith.constant 6.400000e+01 : f32
    %589 = vector.broadcast %cst_351 : f32 to vector<8x1xf32>
    %590 = arith.divf %588, %589 : vector<8x1xf32>
    %cst_352 = arith.constant 9.99999974E-6 : f32
    %591 = vector.broadcast %cst_352 : f32 to vector<8x1xf32>
    %592 = arith.addf %590, %591 : vector<8x1xf32>
    %593 = math.rsqrt %592 : vector<8x1xf32>
    %594 = vector.broadcast %593 : vector<8x1xf32> to vector<8x64xf32>
    %595 = arith.mulf %585, %594 : vector<8x64xf32>
    %596 = vector.broadcast %577 : vector<1x64xf32> to vector<8x64xf32>
    %597 = arith.mulf %595, %596 : vector<8x64xf32>
    %598 = vector.broadcast %579 : vector<1x64xf32> to vector<8x64xf32>
    %599 = arith.addf %597, %598 : vector<8x64xf32>
    %c0_353 = arith.constant 0 : index
    %c0_354 = arith.constant 0 : index
    %c0_355 = arith.constant 0 : index
    %600 = vector.load %arg33[%c0_353, %c0_354, %c0_355] : memref<2x64x128xbf16, #tpu.memory_space<vmem>>, vector<1x64x128xbf16>
    %601 = vector.shape_cast %600 : vector<1x64x128xbf16> to vector<64x128xbf16>
    %602 = arith.truncf %599 : vector<8x64xf32> to vector<8x64xbf16>
    %cst_356 = arith.constant dense<0.000000e+00> : vector<8x128xf32>
    %603 = tpu.matmul %602, %601, %cst_356 {dimension_numbers = #tpu.dot_dimension_numbers<[1], [0], [0], [1], [0, 0, 1, 1], [], []>} : vector<8x64xbf16>, vector<64x128xbf16>, vector<8x128xf32> -> vector<8x128xf32>
    %c0_357 = arith.constant 0 : index
    %c0_358 = arith.constant 0 : index
    %c0_359 = arith.constant 0 : index
    %604 = vector.load %arg34[%c0_357, %c0_358, %c0_359] : memref<2x1x128xf32, #tpu.memory_space<vmem>>, vector<1x1x128xf32>
    %605 = vector.shape_cast %604 : vector<1x1x128xf32> to vector<1x128xf32>
    %606 = vector.broadcast %605 : vector<1x128xf32> to vector<8x128xf32>
    %607 = arith.addf %603, %606 : vector<8x128xf32>
    %cst_360 = arith.constant 0.000000e+00 : f32
    %608 = vector.broadcast %cst_360 : f32 to vector<8x128xf32>
    %609 = arith.maximumf %607, %608 : vector<8x128xf32>
    %c0_361 = arith.constant 0 : index
    %c0_362 = arith.constant 0 : index
    %c0_363 = arith.constant 0 : index
    %610 = vector.load %arg35[%c0_361, %c0_362, %c0_363] : memref<2x128x64xbf16, #tpu.memory_space<vmem>>, vector<1x128x64xbf16>
    %611 = vector.shape_cast %610 : vector<1x128x64xbf16> to vector<128x64xbf16>
    %612 = arith.truncf %609 : vector<8x128xf32> to vector<8x128xbf16>
    %cst_364 = arith.constant dense<0.000000e+00> : vector<8x64xf32>
    %613 = tpu.matmul %612, %611, %cst_364 {dimension_numbers = #tpu.dot_dimension_numbers<[1], [0], [0], [1], [0, 0, 1, 1], [], []>} : vector<8x128xbf16>, vector<128x64xbf16>, vector<8x64xf32> -> vector<8x64xf32>
    %614 = arith.addf %575, %613 : vector<8x64xf32>
    %c0_365 = arith.constant 0 : index
    %c0_366 = arith.constant 0 : index
    %c0_367 = arith.constant 0 : index
    %615 = vector.load %arg36[%c0_365, %c0_366, %c0_367] : memref<2x1x64xf32, #tpu.memory_space<vmem>>, vector<1x1x64xf32>
    %616 = vector.shape_cast %615 : vector<1x1x64xf32> to vector<1x64xf32>
    %617 = vector.broadcast %616 : vector<1x64xf32> to vector<8x64xf32>
    %618 = arith.addf %614, %617 : vector<8x64xf32>
    %c1_368 = arith.constant 1 : index
    %c0_369 = arith.constant 0 : index
    %c0_370 = arith.constant 0 : index
    %c0_371 = arith.constant 0 : index
    %619 = vector.load %arg23[%c1_368, %c0_369, %c0_370, %c0_371] : memref<2x3x1x64xf32, #tpu.memory_space<vmem>>, vector<1x1x1x64xf32>
    %620 = vector.shape_cast %619 : vector<1x1x1x64xf32> to vector<1x64xf32>
    %c1_372 = arith.constant 1 : index
    %c0_373 = arith.constant 0 : index
    %c0_374 = arith.constant 0 : index
    %c0_375 = arith.constant 0 : index
    %621 = vector.load %arg24[%c1_372, %c0_373, %c0_374, %c0_375] : memref<2x3x1x64xf32, #tpu.memory_space<vmem>>, vector<1x1x1x64xf32>
    %622 = vector.shape_cast %621 : vector<1x1x1x64xf32> to vector<1x64xf32>
    %cst_376 = arith.constant dense<0.000000e+00> : vector<8xf32>
    %623 = vector.multi_reduction <add>, %618, %cst_376 [1] : vector<8x64xf32> to vector<8xf32>
    %624 = vector.shape_cast %623 : vector<8xf32> to vector<8x1xf32>
    %cst_377 = arith.constant 6.400000e+01 : f32
    %625 = vector.broadcast %cst_377 : f32 to vector<8x1xf32>
    %626 = arith.divf %624, %625 : vector<8x1xf32>
    %627 = vector.broadcast %626 : vector<8x1xf32> to vector<8x64xf32>
    %628 = arith.subf %618, %627 : vector<8x64xf32>
    %629 = arith.mulf %628, %628 : vector<8x64xf32>
    %cst_378 = arith.constant dense<0.000000e+00> : vector<8xf32>
    %630 = vector.multi_reduction <add>, %629, %cst_378 [1] : vector<8x64xf32> to vector<8xf32>
    %631 = vector.shape_cast %630 : vector<8xf32> to vector<8x1xf32>
    %cst_379 = arith.constant 6.400000e+01 : f32
    %632 = vector.broadcast %cst_379 : f32 to vector<8x1xf32>
    %633 = arith.divf %631, %632 : vector<8x1xf32>
    %cst_380 = arith.constant 9.99999974E-6 : f32
    %634 = vector.broadcast %cst_380 : f32 to vector<8x1xf32>
    %635 = arith.addf %633, %634 : vector<8x1xf32>
    %636 = math.rsqrt %635 : vector<8x1xf32>
    %637 = vector.broadcast %636 : vector<8x1xf32> to vector<8x64xf32>
    %638 = arith.mulf %628, %637 : vector<8x64xf32>
    %639 = vector.broadcast %620 : vector<1x64xf32> to vector<8x64xf32>
    %640 = arith.mulf %638, %639 : vector<8x64xf32>
    %641 = vector.broadcast %622 : vector<1x64xf32> to vector<8x64xf32>
    %642 = arith.addf %640, %641 : vector<8x64xf32>
    %c1_381 = arith.constant 1 : index
    %c0_382 = arith.constant 0 : index
    %c0_383 = arith.constant 0 : index
    %c0_384 = arith.constant 0 : index
    %643 = vector.load %arg25[%c1_381, %c0_382, %c0_383, %c0_384] : memref<2x3x64x64xbf16, #tpu.memory_space<vmem>>, vector<1x1x64x64xbf16>
    %644 = vector.shape_cast %643 : vector<1x1x64x64xbf16> to vector<64x64xbf16>
    %645 = arith.truncf %642 : vector<8x64xf32> to vector<8x64xbf16>
    %cst_385 = arith.constant dense<0.000000e+00> : vector<8x64xf32>
    %646 = tpu.matmul %645, %644, %cst_385 {dimension_numbers = #tpu.dot_dimension_numbers<[1], [0], [0], [1], [0, 0, 1, 1], [], []>} : vector<8x64xbf16>, vector<64x64xbf16>, vector<8x64xf32> -> vector<8x64xf32>
    %c1_386 = arith.constant 1 : index
    %c0_387 = arith.constant 0 : index
    %c0_388 = arith.constant 0 : index
    %c0_389 = arith.constant 0 : index
    %647 = vector.load %arg26[%c1_386, %c0_387, %c0_388, %c0_389] : memref<2x3x1x64xf32, #tpu.memory_space<vmem>>, vector<1x1x1x64xf32>
    %648 = vector.shape_cast %647 : vector<1x1x1x64xf32> to vector<1x64xf32>
    %649 = vector.broadcast %648 : vector<1x64xf32> to vector<8x64xf32>
    %650 = arith.addf %646, %649 : vector<8x64xf32>
    %c1_390 = arith.constant 1 : index
    %c1_391 = arith.constant 1 : index
    %c0_392 = arith.constant 0 : index
    %c0_393 = arith.constant 0 : index
    %651 = vector.load %arg25[%c1_390, %c1_391, %c0_392, %c0_393] : memref<2x3x64x64xbf16, #tpu.memory_space<vmem>>, vector<1x1x64x64xbf16>
    %652 = vector.shape_cast %651 : vector<1x1x64x64xbf16> to vector<64x64xbf16>
    %653 = arith.truncf %642 : vector<8x64xf32> to vector<8x64xbf16>
    %cst_394 = arith.constant dense<0.000000e+00> : vector<8x64xf32>
    %654 = tpu.matmul %653, %652, %cst_394 {dimension_numbers = #tpu.dot_dimension_numbers<[1], [0], [0], [1], [0, 0, 1, 1], [], []>} : vector<8x64xbf16>, vector<64x64xbf16>, vector<8x64xf32> -> vector<8x64xf32>
    %c1_395 = arith.constant 1 : index
    %c1_396 = arith.constant 1 : index
    %c0_397 = arith.constant 0 : index
    %c0_398 = arith.constant 0 : index
    %655 = vector.load %arg26[%c1_395, %c1_396, %c0_397, %c0_398] : memref<2x3x1x64xf32, #tpu.memory_space<vmem>>, vector<1x1x1x64xf32>
    %656 = vector.shape_cast %655 : vector<1x1x1x64xf32> to vector<1x64xf32>
    %657 = vector.broadcast %656 : vector<1x64xf32> to vector<8x64xf32>
    %658 = arith.addf %654, %657 : vector<8x64xf32>
    %c1_399 = arith.constant 1 : index
    %c2_400 = arith.constant 2 : index
    %c0_401 = arith.constant 0 : index
    %c0_402 = arith.constant 0 : index
    %659 = vector.load %arg25[%c1_399, %c2_400, %c0_401, %c0_402] : memref<2x3x64x64xbf16, #tpu.memory_space<vmem>>, vector<1x1x64x64xbf16>
    %660 = vector.shape_cast %659 : vector<1x1x64x64xbf16> to vector<64x64xbf16>
    %661 = arith.truncf %642 : vector<8x64xf32> to vector<8x64xbf16>
    %cst_403 = arith.constant dense<0.000000e+00> : vector<8x64xf32>
    %662 = tpu.matmul %661, %660, %cst_403 {dimension_numbers = #tpu.dot_dimension_numbers<[1], [0], [0], [1], [0, 0, 1, 1], [], []>} : vector<8x64xbf16>, vector<64x64xbf16>, vector<8x64xf32> -> vector<8x64xf32>
    %c1_404 = arith.constant 1 : index
    %c2_405 = arith.constant 2 : index
    %c0_406 = arith.constant 0 : index
    %c0_407 = arith.constant 0 : index
    %663 = vector.load %arg26[%c1_404, %c2_405, %c0_406, %c0_407] : memref<2x3x1x64xf32, #tpu.memory_space<vmem>>, vector<1x1x1x64xf32>
    %664 = vector.shape_cast %663 : vector<1x1x1x64xf32> to vector<1x64xf32>
    %665 = vector.broadcast %664 : vector<1x64xf32> to vector<8x64xf32>
    %666 = arith.addf %662, %665 : vector<8x64xf32>
    %667 = tpu.iota {dimensions = array<i32: 0>} : vector<64x8xi32>
    %c7_i32_408 = arith.constant 7 : i32
    %668 = vector.broadcast %c7_i32_408 : i32 to vector<64x8xi32>
    %669 = arith.andi %667, %668 : vector<64x8xi32>
    %670 = tpu.iota {dimensions = array<i32: 1>} : vector<64x8xi32>
    %671 = arith.cmpi eq, %669, %670 : vector<64x8xi32>
    %cst_409 = arith.constant 1.000000e+00 : f32
    %cst_410 = arith.constant 0.000000e+00 : f32
    %672 = vector.broadcast %cst_409 : f32 to vector<64x8xf32>
    %673 = vector.broadcast %cst_410 : f32 to vector<64x8xf32>
    %674 = arith.select %671, %672, %673 : vector<64x8xi1>, vector<64x8xf32>
    %675 = arith.truncf %674 : vector<64x8xf32> to vector<64x8xbf16>
    %676 = tpu.iota {dimensions = array<i32: 0>} : vector<64x64xi32>
    %c3_i32_411 = arith.constant 3 : i32
    %677 = vector.broadcast %c3_i32_411 : i32 to vector<64x64xi32>
    %678 = arith.shrsi %676, %677 : vector<64x64xi32>
    %679 = tpu.iota {dimensions = array<i32: 1>} : vector<64x64xi32>
    %c3_i32_412 = arith.constant 3 : i32
    %680 = vector.broadcast %c3_i32_412 : i32 to vector<64x64xi32>
    %681 = arith.shrsi %679, %680 : vector<64x64xi32>
    %682 = arith.cmpi eq, %678, %681 : vector<64x64xi32>
    %cst_413 = arith.constant 1.000000e+00 : f32
    %cst_414 = arith.constant 0.000000e+00 : f32
    %683 = vector.broadcast %cst_413 : f32 to vector<64x64xf32>
    %684 = vector.broadcast %cst_414 : f32 to vector<64x64xf32>
    %685 = arith.select %682, %683, %684 : vector<64x64xi1>, vector<64x64xf32>
    %686 = arith.truncf %658 : vector<8x64xf32> to vector<8x64xbf16>
    %cst_415 = arith.constant dense<0.000000e+00> : vector<64x64xf32>
    %687 = tpu.matmul %675, %686, %cst_415 {dimension_numbers = #tpu.dot_dimension_numbers<[1], [0], [0], [1], [0, 0, 1, 1], [], []>} : vector<64x8xbf16>, vector<8x64xbf16>, vector<64x64xf32> -> vector<64x64xf32>
    %688 = arith.mulf %687, %685 : vector<64x64xf32>
    %689 = arith.truncf %688 : vector<64x64xf32> to vector<64x64xbf16>
    %690 = arith.truncf %666 : vector<8x64xf32> to vector<8x64xbf16>
    %cst_416 = arith.constant dense<0.000000e+00> : vector<64x64xf32>
    %691 = tpu.matmul %675, %690, %cst_416 {dimension_numbers = #tpu.dot_dimension_numbers<[1], [0], [0], [1], [0, 0, 1, 1], [], []>} : vector<64x8xbf16>, vector<8x64xbf16>, vector<64x64xf32> -> vector<64x64xf32>
    %692 = arith.mulf %691, %685 : vector<64x64xf32>
    %693 = arith.truncf %692 : vector<64x64xf32> to vector<64x64xbf16>
    %694 = arith.truncf %650 : vector<8x64xf32> to vector<8x64xbf16>
    %cst_417 = arith.constant dense<0.000000e+00> : vector<8x64xf32>
    %695 = tpu.matmul %694, %689, %cst_417 {dimension_numbers = #tpu.dot_dimension_numbers<[1], [1], [0], [0], [0, 0, 1, 0], [], []>} : vector<8x64xbf16>, vector<64x64xbf16>, vector<8x64xf32> -> vector<8x64xf32>
    %cst_418 = arith.constant 0.353553385 : f32
    %696 = vector.broadcast %cst_418 : f32 to vector<8x64xf32>
    %697 = arith.mulf %695, %696 : vector<8x64xf32>
    %698 = arith.addf %697, %376 : vector<8x64xf32>
    %cst_419 = arith.constant dense<0xFF800000> : vector<8xf32>
    %699 = vector.multi_reduction <maximumf>, %698, %cst_419 [1] : vector<8x64xf32> to vector<8xf32>
    %700 = vector.shape_cast %699 : vector<8xf32> to vector<8x1xf32>
    %701 = vector.broadcast %700 : vector<8x1xf32> to vector<8x64xf32>
    %702 = arith.subf %698, %701 : vector<8x64xf32>
    %703 = math.exp %702 : vector<8x64xf32>
    %704 = arith.truncf %703 : vector<8x64xf32> to vector<8x64xbf16>
    %705 = arith.truncf %685 : vector<64x64xf32> to vector<64x64xbf16>
    %cst_420 = arith.constant dense<0.000000e+00> : vector<8x64xf32>
    %706 = tpu.matmul %704, %705, %cst_420 {dimension_numbers = #tpu.dot_dimension_numbers<[1], [0], [0], [1], [0, 0, 1, 1], [], []>} : vector<8x64xbf16>, vector<64x64xbf16>, vector<8x64xf32> -> vector<8x64xf32>
    %cst_421 = arith.constant dense<0.000000e+00> : vector<8x64xf32>
    %707 = tpu.matmul %704, %693, %cst_421 {dimension_numbers = #tpu.dot_dimension_numbers<[1], [0], [0], [1], [0, 0, 1, 1], [], []>} : vector<8x64xbf16>, vector<64x64xbf16>, vector<8x64xf32> -> vector<8x64xf32>
    %708 = tpu.reciprocal %706 {approx = true} : vector<8x64xf32> -> vector<8x64xf32>
    %709 = arith.mulf %707, %708 : vector<8x64xf32>
    %c1_422 = arith.constant 1 : index
    %c0_423 = arith.constant 0 : index
    %c0_424 = arith.constant 0 : index
    %710 = vector.load %arg27[%c1_422, %c0_423, %c0_424] : memref<2x64x64xbf16, #tpu.memory_space<vmem>>, vector<1x64x64xbf16>
    %711 = vector.shape_cast %710 : vector<1x64x64xbf16> to vector<64x64xbf16>
    %712 = arith.truncf %709 : vector<8x64xf32> to vector<8x64xbf16>
    %cst_425 = arith.constant dense<0.000000e+00> : vector<8x64xf32>
    %713 = tpu.matmul %712, %711, %cst_425 {dimension_numbers = #tpu.dot_dimension_numbers<[1], [0], [0], [1], [0, 0, 1, 1], [], []>} : vector<8x64xbf16>, vector<64x64xbf16>, vector<8x64xf32> -> vector<8x64xf32>
    %c1_426 = arith.constant 1 : index
    %c0_427 = arith.constant 0 : index
    %c0_428 = arith.constant 0 : index
    %714 = vector.load %arg28[%c1_426, %c0_427, %c0_428] : memref<2x1x64xf32, #tpu.memory_space<vmem>>, vector<1x1x64xf32>
    %715 = vector.shape_cast %714 : vector<1x1x64xf32> to vector<1x64xf32>
    %716 = vector.broadcast %715 : vector<1x64xf32> to vector<8x64xf32>
    %717 = arith.addf %713, %716 : vector<8x64xf32>
    %718 = arith.addf %618, %717 : vector<8x64xf32>
    %c1_429 = arith.constant 1 : index
    %c1_430 = arith.constant 1 : index
    %c0_431 = arith.constant 0 : index
    %c0_432 = arith.constant 0 : index
    %719 = vector.load %arg23[%c1_429, %c1_430, %c0_431, %c0_432] : memref<2x3x1x64xf32, #tpu.memory_space<vmem>>, vector<1x1x1x64xf32>
    %720 = vector.shape_cast %719 : vector<1x1x1x64xf32> to vector<1x64xf32>
    %c1_433 = arith.constant 1 : index
    %c1_434 = arith.constant 1 : index
    %c0_435 = arith.constant 0 : index
    %c0_436 = arith.constant 0 : index
    %721 = vector.load %arg24[%c1_433, %c1_434, %c0_435, %c0_436] : memref<2x3x1x64xf32, #tpu.memory_space<vmem>>, vector<1x1x1x64xf32>
    %722 = vector.shape_cast %721 : vector<1x1x1x64xf32> to vector<1x64xf32>
    %cst_437 = arith.constant dense<0.000000e+00> : vector<8xf32>
    %723 = vector.multi_reduction <add>, %718, %cst_437 [1] : vector<8x64xf32> to vector<8xf32>
    %724 = vector.shape_cast %723 : vector<8xf32> to vector<8x1xf32>
    %cst_438 = arith.constant 6.400000e+01 : f32
    %725 = vector.broadcast %cst_438 : f32 to vector<8x1xf32>
    %726 = arith.divf %724, %725 : vector<8x1xf32>
    %727 = vector.broadcast %726 : vector<8x1xf32> to vector<8x64xf32>
    %728 = arith.subf %718, %727 : vector<8x64xf32>
    %729 = arith.mulf %728, %728 : vector<8x64xf32>
    %cst_439 = arith.constant dense<0.000000e+00> : vector<8xf32>
    %730 = vector.multi_reduction <add>, %729, %cst_439 [1] : vector<8x64xf32> to vector<8xf32>
    %731 = vector.shape_cast %730 : vector<8xf32> to vector<8x1xf32>
    %cst_440 = arith.constant 6.400000e+01 : f32
    %732 = vector.broadcast %cst_440 : f32 to vector<8x1xf32>
    %733 = arith.divf %731, %732 : vector<8x1xf32>
    %cst_441 = arith.constant 9.99999974E-6 : f32
    %734 = vector.broadcast %cst_441 : f32 to vector<8x1xf32>
    %735 = arith.addf %733, %734 : vector<8x1xf32>
    %736 = math.rsqrt %735 : vector<8x1xf32>
    %737 = vector.broadcast %736 : vector<8x1xf32> to vector<8x64xf32>
    %738 = arith.mulf %728, %737 : vector<8x64xf32>
    %739 = vector.broadcast %720 : vector<1x64xf32> to vector<8x64xf32>
    %740 = arith.mulf %738, %739 : vector<8x64xf32>
    %741 = vector.broadcast %722 : vector<1x64xf32> to vector<8x64xf32>
    %742 = arith.addf %740, %741 : vector<8x64xf32>
    %c1_442 = arith.constant 1 : index
    %c0_443 = arith.constant 0 : index
    %c0_444 = arith.constant 0 : index
    %c0_445 = arith.constant 0 : index
    %743 = vector.load %arg29[%c1_442, %c0_443, %c0_444, %c0_445] : memref<2x3x64x64xbf16, #tpu.memory_space<vmem>>, vector<1x1x64x64xbf16>
    %744 = vector.shape_cast %743 : vector<1x1x64x64xbf16> to vector<64x64xbf16>
    %745 = arith.truncf %742 : vector<8x64xf32> to vector<8x64xbf16>
    %cst_446 = arith.constant dense<0.000000e+00> : vector<8x64xf32>
    %746 = tpu.matmul %745, %744, %cst_446 {dimension_numbers = #tpu.dot_dimension_numbers<[1], [0], [0], [1], [0, 0, 1, 1], [], []>} : vector<8x64xbf16>, vector<64x64xbf16>, vector<8x64xf32> -> vector<8x64xf32>
    %c1_447 = arith.constant 1 : index
    %c0_448 = arith.constant 0 : index
    %c0_449 = arith.constant 0 : index
    %c0_450 = arith.constant 0 : index
    %747 = vector.load %arg30[%c1_447, %c0_448, %c0_449, %c0_450] : memref<2x3x1x64xf32, #tpu.memory_space<vmem>>, vector<1x1x1x64xf32>
    %748 = vector.shape_cast %747 : vector<1x1x1x64xf32> to vector<1x64xf32>
    %749 = vector.broadcast %748 : vector<1x64xf32> to vector<8x64xf32>
    %750 = arith.addf %746, %749 : vector<8x64xf32>
    %c1_451 = arith.constant 1 : index
    %c1_452 = arith.constant 1 : index
    %c0_453 = arith.constant 0 : index
    %c0_454 = arith.constant 0 : index
    %751 = vector.load %arg29[%c1_451, %c1_452, %c0_453, %c0_454] : memref<2x3x64x64xbf16, #tpu.memory_space<vmem>>, vector<1x1x64x64xbf16>
    %752 = vector.shape_cast %751 : vector<1x1x64x64xbf16> to vector<64x64xbf16>
    %753 = arith.truncf %362 : vector<4x64xf32> to vector<4x64xbf16>
    %cst_455 = arith.constant dense<0.000000e+00> : vector<4x64xf32>
    %754 = tpu.matmul %753, %752, %cst_455 {dimension_numbers = #tpu.dot_dimension_numbers<[1], [0], [0], [1], [0, 0, 1, 1], [], []>} : vector<4x64xbf16>, vector<64x64xbf16>, vector<4x64xf32> -> vector<4x64xf32>
    %c1_456 = arith.constant 1 : index
    %c1_457 = arith.constant 1 : index
    %c0_458 = arith.constant 0 : index
    %c0_459 = arith.constant 0 : index
    %755 = vector.load %arg30[%c1_456, %c1_457, %c0_458, %c0_459] : memref<2x3x1x64xf32, #tpu.memory_space<vmem>>, vector<1x1x1x64xf32>
    %756 = vector.shape_cast %755 : vector<1x1x1x64xf32> to vector<1x64xf32>
    %757 = vector.broadcast %756 : vector<1x64xf32> to vector<4x64xf32>
    %758 = arith.addf %754, %757 : vector<4x64xf32>
    %c1_460 = arith.constant 1 : index
    %c2_461 = arith.constant 2 : index
    %c0_462 = arith.constant 0 : index
    %c0_463 = arith.constant 0 : index
    %759 = vector.load %arg29[%c1_460, %c2_461, %c0_462, %c0_463] : memref<2x3x64x64xbf16, #tpu.memory_space<vmem>>, vector<1x1x64x64xbf16>
    %760 = vector.shape_cast %759 : vector<1x1x64x64xbf16> to vector<64x64xbf16>
    %761 = arith.truncf %362 : vector<4x64xf32> to vector<4x64xbf16>
    %cst_464 = arith.constant dense<0.000000e+00> : vector<4x64xf32>
    %762 = tpu.matmul %761, %760, %cst_464 {dimension_numbers = #tpu.dot_dimension_numbers<[1], [0], [0], [1], [0, 0, 1, 1], [], []>} : vector<4x64xbf16>, vector<64x64xbf16>, vector<4x64xf32> -> vector<4x64xf32>
    %c1_465 = arith.constant 1 : index
    %c2_466 = arith.constant 2 : index
    %c0_467 = arith.constant 0 : index
    %c0_468 = arith.constant 0 : index
    %763 = vector.load %arg30[%c1_465, %c2_466, %c0_467, %c0_468] : memref<2x3x1x64xf32, #tpu.memory_space<vmem>>, vector<1x1x1x64xf32>
    %764 = vector.shape_cast %763 : vector<1x1x1x64xf32> to vector<1x64xf32>
    %765 = vector.broadcast %764 : vector<1x64xf32> to vector<4x64xf32>
    %766 = arith.addf %762, %765 : vector<4x64xf32>
    %767 = tpu.iota {dimensions = array<i32: 0>} : vector<32x4xi32>
    %c3_i32_469 = arith.constant 3 : i32
    %768 = vector.broadcast %c3_i32_469 : i32 to vector<32x4xi32>
    %769 = arith.andi %767, %768 : vector<32x4xi32>
    %770 = tpu.iota {dimensions = array<i32: 1>} : vector<32x4xi32>
    %771 = arith.cmpi eq, %769, %770 : vector<32x4xi32>
    %cst_470 = arith.constant 1.000000e+00 : f32
    %cst_471 = arith.constant 0.000000e+00 : f32
    %772 = vector.broadcast %cst_470 : f32 to vector<32x4xf32>
    %773 = vector.broadcast %cst_471 : f32 to vector<32x4xf32>
    %774 = arith.select %771, %772, %773 : vector<32x4xi1>, vector<32x4xf32>
    %775 = arith.truncf %774 : vector<32x4xf32> to vector<32x4xbf16>
    %776 = tpu.iota {dimensions = array<i32: 0>} : vector<32x64xi32>
    %c2_i32_472 = arith.constant 2 : i32
    %777 = vector.broadcast %c2_i32_472 : i32 to vector<32x64xi32>
    %778 = arith.shrsi %776, %777 : vector<32x64xi32>
    %779 = tpu.iota {dimensions = array<i32: 1>} : vector<32x64xi32>
    %c3_i32_473 = arith.constant 3 : i32
    %780 = vector.broadcast %c3_i32_473 : i32 to vector<32x64xi32>
    %781 = arith.shrsi %779, %780 : vector<32x64xi32>
    %782 = arith.cmpi eq, %778, %781 : vector<32x64xi32>
    %cst_474 = arith.constant 1.000000e+00 : f32
    %cst_475 = arith.constant 0.000000e+00 : f32
    %783 = vector.broadcast %cst_474 : f32 to vector<32x64xf32>
    %784 = vector.broadcast %cst_475 : f32 to vector<32x64xf32>
    %785 = arith.select %782, %783, %784 : vector<32x64xi1>, vector<32x64xf32>
    %786 = arith.truncf %758 : vector<4x64xf32> to vector<4x64xbf16>
    %cst_476 = arith.constant dense<0.000000e+00> : vector<32x64xf32>
    %787 = tpu.matmul %775, %786, %cst_476 {dimension_numbers = #tpu.dot_dimension_numbers<[1], [0], [0], [1], [0, 0, 1, 1], [], []>} : vector<32x4xbf16>, vector<4x64xbf16>, vector<32x64xf32> -> vector<32x64xf32>
    %788 = arith.mulf %787, %785 : vector<32x64xf32>
    %789 = arith.truncf %788 : vector<32x64xf32> to vector<32x64xbf16>
    %790 = arith.truncf %766 : vector<4x64xf32> to vector<4x64xbf16>
    %cst_477 = arith.constant dense<0.000000e+00> : vector<32x64xf32>
    %791 = tpu.matmul %775, %790, %cst_477 {dimension_numbers = #tpu.dot_dimension_numbers<[1], [0], [0], [1], [0, 0, 1, 1], [], []>} : vector<32x4xbf16>, vector<4x64xbf16>, vector<32x64xf32> -> vector<32x64xf32>
    %792 = arith.mulf %791, %785 : vector<32x64xf32>
    %793 = arith.truncf %792 : vector<32x64xf32> to vector<32x64xbf16>
    %794 = arith.truncf %750 : vector<8x64xf32> to vector<8x64xbf16>
    %cst_478 = arith.constant dense<0.000000e+00> : vector<8x32xf32>
    %795 = tpu.matmul %794, %789, %cst_478 {dimension_numbers = #tpu.dot_dimension_numbers<[1], [1], [0], [0], [0, 0, 1, 0], [], []>} : vector<8x64xbf16>, vector<32x64xbf16>, vector<8x32xf32> -> vector<8x32xf32>
    %cst_479 = arith.constant 0.353553385 : f32
    %796 = vector.broadcast %cst_479 : f32 to vector<8x32xf32>
    %797 = arith.mulf %795, %796 : vector<8x32xf32>
    %cst_480 = arith.constant dense<0xFF800000> : vector<8xf32>
    %798 = vector.multi_reduction <maximumf>, %797, %cst_480 [1] : vector<8x32xf32> to vector<8xf32>
    %799 = vector.shape_cast %798 : vector<8xf32> to vector<8x1xf32>
    %800 = vector.broadcast %799 : vector<8x1xf32> to vector<8x32xf32>
    %801 = arith.subf %797, %800 : vector<8x32xf32>
    %802 = math.exp %801 : vector<8x32xf32>
    %803 = arith.truncf %802 : vector<8x32xf32> to vector<8x32xbf16>
    %804 = arith.truncf %785 : vector<32x64xf32> to vector<32x64xbf16>
    %cst_481 = arith.constant dense<0.000000e+00> : vector<8x64xf32>
    %805 = tpu.matmul %803, %804, %cst_481 {dimension_numbers = #tpu.dot_dimension_numbers<[1], [0], [0], [1], [0, 0, 1, 1], [], []>} : vector<8x32xbf16>, vector<32x64xbf16>, vector<8x64xf32> -> vector<8x64xf32>
    %cst_482 = arith.constant dense<0.000000e+00> : vector<8x64xf32>
    %806 = tpu.matmul %803, %793, %cst_482 {dimension_numbers = #tpu.dot_dimension_numbers<[1], [0], [0], [1], [0, 0, 1, 1], [], []>} : vector<8x32xbf16>, vector<32x64xbf16>, vector<8x64xf32> -> vector<8x64xf32>
    %807 = tpu.reciprocal %805 {approx = true} : vector<8x64xf32> -> vector<8x64xf32>
    %808 = arith.mulf %806, %807 : vector<8x64xf32>
    %c1_483 = arith.constant 1 : index
    %c0_484 = arith.constant 0 : index
    %c0_485 = arith.constant 0 : index
    %809 = vector.load %arg31[%c1_483, %c0_484, %c0_485] : memref<2x64x64xbf16, #tpu.memory_space<vmem>>, vector<1x64x64xbf16>
    %810 = vector.shape_cast %809 : vector<1x64x64xbf16> to vector<64x64xbf16>
    %811 = arith.truncf %808 : vector<8x64xf32> to vector<8x64xbf16>
    %cst_486 = arith.constant dense<0.000000e+00> : vector<8x64xf32>
    %812 = tpu.matmul %811, %810, %cst_486 {dimension_numbers = #tpu.dot_dimension_numbers<[1], [0], [0], [1], [0, 0, 1, 1], [], []>} : vector<8x64xbf16>, vector<64x64xbf16>, vector<8x64xf32> -> vector<8x64xf32>
    %c1_487 = arith.constant 1 : index
    %c0_488 = arith.constant 0 : index
    %c0_489 = arith.constant 0 : index
    %813 = vector.load %arg32[%c1_487, %c0_488, %c0_489] : memref<2x1x64xf32, #tpu.memory_space<vmem>>, vector<1x1x64xf32>
    %814 = vector.shape_cast %813 : vector<1x1x64xf32> to vector<1x64xf32>
    %815 = vector.broadcast %814 : vector<1x64xf32> to vector<8x64xf32>
    %816 = arith.addf %812, %815 : vector<8x64xf32>
    %817 = arith.addf %718, %816 : vector<8x64xf32>
    %c1_490 = arith.constant 1 : index
    %c2_491 = arith.constant 2 : index
    %c0_492 = arith.constant 0 : index
    %c0_493 = arith.constant 0 : index
    %818 = vector.load %arg23[%c1_490, %c2_491, %c0_492, %c0_493] : memref<2x3x1x64xf32, #tpu.memory_space<vmem>>, vector<1x1x1x64xf32>
    %819 = vector.shape_cast %818 : vector<1x1x1x64xf32> to vector<1x64xf32>
    %c1_494 = arith.constant 1 : index
    %c2_495 = arith.constant 2 : index
    %c0_496 = arith.constant 0 : index
    %c0_497 = arith.constant 0 : index
    %820 = vector.load %arg24[%c1_494, %c2_495, %c0_496, %c0_497] : memref<2x3x1x64xf32, #tpu.memory_space<vmem>>, vector<1x1x1x64xf32>
    %821 = vector.shape_cast %820 : vector<1x1x1x64xf32> to vector<1x64xf32>
    %cst_498 = arith.constant dense<0.000000e+00> : vector<8xf32>
    %822 = vector.multi_reduction <add>, %817, %cst_498 [1] : vector<8x64xf32> to vector<8xf32>
    %823 = vector.shape_cast %822 : vector<8xf32> to vector<8x1xf32>
    %cst_499 = arith.constant 6.400000e+01 : f32
    %824 = vector.broadcast %cst_499 : f32 to vector<8x1xf32>
    %825 = arith.divf %823, %824 : vector<8x1xf32>
    %826 = vector.broadcast %825 : vector<8x1xf32> to vector<8x64xf32>
    %827 = arith.subf %817, %826 : vector<8x64xf32>
    %828 = arith.mulf %827, %827 : vector<8x64xf32>
    %cst_500 = arith.constant dense<0.000000e+00> : vector<8xf32>
    %829 = vector.multi_reduction <add>, %828, %cst_500 [1] : vector<8x64xf32> to vector<8xf32>
    %830 = vector.shape_cast %829 : vector<8xf32> to vector<8x1xf32>
    %cst_501 = arith.constant 6.400000e+01 : f32
    %831 = vector.broadcast %cst_501 : f32 to vector<8x1xf32>
    %832 = arith.divf %830, %831 : vector<8x1xf32>
    %cst_502 = arith.constant 9.99999974E-6 : f32
    %833 = vector.broadcast %cst_502 : f32 to vector<8x1xf32>
    %834 = arith.addf %832, %833 : vector<8x1xf32>
    %835 = math.rsqrt %834 : vector<8x1xf32>
    %836 = vector.broadcast %835 : vector<8x1xf32> to vector<8x64xf32>
    %837 = arith.mulf %827, %836 : vector<8x64xf32>
    %838 = vector.broadcast %819 : vector<1x64xf32> to vector<8x64xf32>
    %839 = arith.mulf %837, %838 : vector<8x64xf32>
    %840 = vector.broadcast %821 : vector<1x64xf32> to vector<8x64xf32>
    %841 = arith.addf %839, %840 : vector<8x64xf32>
    %c1_503 = arith.constant 1 : index
    %c0_504 = arith.constant 0 : index
    %c0_505 = arith.constant 0 : index
    %842 = vector.load %arg33[%c1_503, %c0_504, %c0_505] : memref<2x64x128xbf16, #tpu.memory_space<vmem>>, vector<1x64x128xbf16>
    %843 = vector.shape_cast %842 : vector<1x64x128xbf16> to vector<64x128xbf16>
    %844 = arith.truncf %841 : vector<8x64xf32> to vector<8x64xbf16>
    %cst_506 = arith.constant dense<0.000000e+00> : vector<8x128xf32>
    %845 = tpu.matmul %844, %843, %cst_506 {dimension_numbers = #tpu.dot_dimension_numbers<[1], [0], [0], [1], [0, 0, 1, 1], [], []>} : vector<8x64xbf16>, vector<64x128xbf16>, vector<8x128xf32> -> vector<8x128xf32>
    %c1_507 = arith.constant 1 : index
    %c0_508 = arith.constant 0 : index
    %c0_509 = arith.constant 0 : index
    %846 = vector.load %arg34[%c1_507, %c0_508, %c0_509] : memref<2x1x128xf32, #tpu.memory_space<vmem>>, vector<1x1x128xf32>
    %847 = vector.shape_cast %846 : vector<1x1x128xf32> to vector<1x128xf32>
    %848 = vector.broadcast %847 : vector<1x128xf32> to vector<8x128xf32>
    %849 = arith.addf %845, %848 : vector<8x128xf32>
    %cst_510 = arith.constant 0.000000e+00 : f32
    %850 = vector.broadcast %cst_510 : f32 to vector<8x128xf32>
    %851 = arith.maximumf %849, %850 : vector<8x128xf32>
    %c1_511 = arith.constant 1 : index
    %c0_512 = arith.constant 0 : index
    %c0_513 = arith.constant 0 : index
    %852 = vector.load %arg35[%c1_511, %c0_512, %c0_513] : memref<2x128x64xbf16, #tpu.memory_space<vmem>>, vector<1x128x64xbf16>
    %853 = vector.shape_cast %852 : vector<1x128x64xbf16> to vector<128x64xbf16>
    %854 = arith.truncf %851 : vector<8x128xf32> to vector<8x128xbf16>
    %cst_514 = arith.constant dense<0.000000e+00> : vector<8x64xf32>
    %855 = tpu.matmul %854, %853, %cst_514 {dimension_numbers = #tpu.dot_dimension_numbers<[1], [0], [0], [1], [0, 0, 1, 1], [], []>} : vector<8x128xbf16>, vector<128x64xbf16>, vector<8x64xf32> -> vector<8x64xf32>
    %856 = arith.addf %817, %855 : vector<8x64xf32>
    %c1_515 = arith.constant 1 : index
    %c0_516 = arith.constant 0 : index
    %c0_517 = arith.constant 0 : index
    %857 = vector.load %arg36[%c1_515, %c0_516, %c0_517] : memref<2x1x64xf32, #tpu.memory_space<vmem>>, vector<1x1x64xf32>
    %858 = vector.shape_cast %857 : vector<1x1x64xf32> to vector<1x64xf32>
    %859 = vector.broadcast %858 : vector<1x64xf32> to vector<8x64xf32>
    %860 = arith.addf %856, %859 : vector<8x64xf32>
    %c0_518 = arith.constant 0 : index
    %c0_519 = arith.constant 0 : index
    %861 = vector.load %arg37[%c0_518, %c0_519] : memref<1x64xf32, #tpu.memory_space<vmem>>, vector<1x64xf32>
    %c0_520 = arith.constant 0 : index
    %c0_521 = arith.constant 0 : index
    %862 = vector.load %arg38[%c0_520, %c0_521] : memref<1x64xf32, #tpu.memory_space<vmem>>, vector<1x64xf32>
    %cst_522 = arith.constant dense<0.000000e+00> : vector<8xf32>
    %863 = vector.multi_reduction <add>, %860, %cst_522 [1] : vector<8x64xf32> to vector<8xf32>
    %864 = vector.shape_cast %863 : vector<8xf32> to vector<8x1xf32>
    %cst_523 = arith.constant 6.400000e+01 : f32
    %865 = vector.broadcast %cst_523 : f32 to vector<8x1xf32>
    %866 = arith.divf %864, %865 : vector<8x1xf32>
    %867 = vector.broadcast %866 : vector<8x1xf32> to vector<8x64xf32>
    %868 = arith.subf %860, %867 : vector<8x64xf32>
    %869 = arith.mulf %868, %868 : vector<8x64xf32>
    %cst_524 = arith.constant dense<0.000000e+00> : vector<8xf32>
    %870 = vector.multi_reduction <add>, %869, %cst_524 [1] : vector<8x64xf32> to vector<8xf32>
    %871 = vector.shape_cast %870 : vector<8xf32> to vector<8x1xf32>
    %cst_525 = arith.constant 6.400000e+01 : f32
    %872 = vector.broadcast %cst_525 : f32 to vector<8x1xf32>
    %873 = arith.divf %871, %872 : vector<8x1xf32>
    %cst_526 = arith.constant 9.99999974E-6 : f32
    %874 = vector.broadcast %cst_526 : f32 to vector<8x1xf32>
    %875 = arith.addf %873, %874 : vector<8x1xf32>
    %876 = math.rsqrt %875 : vector<8x1xf32>
    %877 = vector.broadcast %876 : vector<8x1xf32> to vector<8x64xf32>
    %878 = arith.mulf %868, %877 : vector<8x64xf32>
    %879 = vector.broadcast %861 : vector<1x64xf32> to vector<8x64xf32>
    %880 = arith.mulf %878, %879 : vector<8x64xf32>
    %881 = vector.broadcast %862 : vector<1x64xf32> to vector<8x64xf32>
    %882 = arith.addf %880, %881 : vector<8x64xf32>
    %c0_527 = arith.constant 0 : index
    %c0_528 = arith.constant 0 : index
    %883 = vector.load %arg39[%c0_527, %c0_528] : memref<64x128xbf16, #tpu.memory_space<vmem>>, vector<64x128xbf16>
    %884 = arith.truncf %882 : vector<8x64xf32> to vector<8x64xbf16>
    %cst_529 = arith.constant dense<0.000000e+00> : vector<8x128xf32>
    %885 = tpu.matmul %884, %883, %cst_529 {dimension_numbers = #tpu.dot_dimension_numbers<[1], [0], [0], [1], [0, 0, 1, 1], [], []>} : vector<8x64xbf16>, vector<64x128xbf16>, vector<8x128xf32> -> vector<8x128xf32>
    %c0_530 = arith.constant 0 : index
    %c0_531 = arith.constant 0 : index
    %c0_532 = arith.constant 0 : index
    %886 = vector.load %arg40[%c0_530, %c0_531, %c0_532] : memref<1x8x128xf32, #tpu.memory_space<vmem>>, vector<1x8x128xf32>
    %887 = vector.shape_cast %886 : vector<1x8x128xf32> to vector<8x128xf32>
    %888 = vector.shape_cast %885 : vector<8x128xf32> to vector<1x8x128xf32>
    tpu.vector_store %arg40[%c0_530, %c0_531, %c0_532], %888 {strides = array<i32>} : memref<1x8x128xf32, #tpu.memory_space<vmem>>, vector<1x8x128xf32>,
    return
  }
  func.func @transform_0(%arg0: i32) -> (i32, i32, i32) {
    %c0_i32 = arith.constant 0 : i32
    %c0_i32_0 = arith.constant 0 : i32
    %c0_i32_1 = arith.constant 0 : i32
    return %arg0, %c0_i32, %c0_i32_0 : i32, i32, i32
  }
  func.func @transform_1(%arg0: i32) -> (i32, i32, i32) {
    %c0_i32 = arith.constant 0 : i32
    %c0_i32_0 = arith.constant 0 : i32
    %c0_i32_1 = arith.constant 0 : i32
    return %arg0, %c0_i32, %c0_i32_0 : i32, i32, i32
  }
  func.func @transform_2(%arg0: i32) -> (i32, i32, i32) {
    %c0_i32 = arith.constant 0 : i32
    %c0_i32_0 = arith.constant 0 : i32
    %c0_i32_1 = arith.constant 0 : i32
    return %arg0, %c0_i32, %c0_i32_0 : i32, i32, i32
  }
  func.func @transform_3(%arg0: i32) -> (i32, i32) {
    %c0_i32 = arith.constant 0 : i32
    %c0_i32_0 = arith.constant 0 : i32
    %c0_i32_1 = arith.constant 0 : i32
    return %c0_i32, %c0_i32_0 : i32, i32
  }
  func.func @transform_4(%arg0: i32) -> (i32, i32) {
    %c0_i32 = arith.constant 0 : i32
    %c0_i32_0 = arith.constant 0 : i32
    %c0_i32_1 = arith.constant 0 : i32
    return %c0_i32, %c0_i32_0 : i32, i32
  }
  func.func @transform_5(%arg0: i32) -> (i32, i32) {
    %c0_i32 = arith.constant 0 : i32
    %c0_i32_0 = arith.constant 0 : i32
    %c0_i32_1 = arith.constant 0 : i32
    return %c0_i32, %c0_i32_0 : i32, i32
  }
  func.func @transform_6(%arg0: i32) -> (i32, i32, i32, i32) {
    %c0_i32 = arith.constant 0 : i32
    %c0_i32_0 = arith.constant 0 : i32
    %c0_i32_1 = arith.constant 0 : i32
    %c0_i32_2 = arith.constant 0 : i32
    %c0_i32_3 = arith.constant 0 : i32
    return %c0_i32, %c0_i32_0, %c0_i32_1, %c0_i32_2 : i32, i32, i32, i32
  }
  func.func @transform_7(%arg0: i32) -> (i32, i32, i32, i32) {
    %c0_i32 = arith.constant 0 : i32
    %c0_i32_0 = arith.constant 0 : i32
    %c0_i32_1 = arith.constant 0 : i32
    %c0_i32_2 = arith.constant 0 : i32
    %c0_i32_3 = arith.constant 0 : i32
    return %c0_i32, %c0_i32_0, %c0_i32_1, %c0_i32_2 : i32, i32, i32, i32
  }
  func.func @transform_8(%arg0: i32) -> (i32, i32, i32, i32) {
    %c0_i32 = arith.constant 0 : i32
    %c0_i32_0 = arith.constant 0 : i32
    %c0_i32_1 = arith.constant 0 : i32
    %c0_i32_2 = arith.constant 0 : i32
    %c0_i32_3 = arith.constant 0 : i32
    return %c0_i32, %c0_i32_0, %c0_i32_1, %c0_i32_2 : i32, i32, i32, i32
  }
  func.func @transform_9(%arg0: i32) -> (i32, i32, i32, i32) {
    %c0_i32 = arith.constant 0 : i32
    %c0_i32_0 = arith.constant 0 : i32
    %c0_i32_1 = arith.constant 0 : i32
    %c0_i32_2 = arith.constant 0 : i32
    %c0_i32_3 = arith.constant 0 : i32
    return %c0_i32, %c0_i32_0, %c0_i32_1, %c0_i32_2 : i32, i32, i32, i32
  }
  func.func @transform_10(%arg0: i32) -> (i32, i32, i32) {
    %c0_i32 = arith.constant 0 : i32
    %c0_i32_0 = arith.constant 0 : i32
    %c0_i32_1 = arith.constant 0 : i32
    %c0_i32_2 = arith.constant 0 : i32
    return %c0_i32, %c0_i32_0, %c0_i32_1 : i32, i32, i32
  }
  func.func @transform_11(%arg0: i32) -> (i32, i32, i32) {
    %c0_i32 = arith.constant 0 : i32
    %c0_i32_0 = arith.constant 0 : i32
    %c0_i32_1 = arith.constant 0 : i32
    %c0_i32_2 = arith.constant 0 : i32
    return %c0_i32, %c0_i32_0, %c0_i32_1 : i32, i32, i32
  }
  func.func @transform_12(%arg0: i32) -> (i32, i32, i32) {
    %c0_i32 = arith.constant 0 : i32
    %c0_i32_0 = arith.constant 0 : i32
    %c0_i32_1 = arith.constant 0 : i32
    %c0_i32_2 = arith.constant 0 : i32
    return %c0_i32, %c0_i32_0, %c0_i32_1 : i32, i32, i32
  }
  func.func @transform_13(%arg0: i32) -> (i32, i32, i32) {
    %c0_i32 = arith.constant 0 : i32
    %c0_i32_0 = arith.constant 0 : i32
    %c0_i32_1 = arith.constant 0 : i32
    %c0_i32_2 = arith.constant 0 : i32
    return %c0_i32, %c0_i32_0, %c0_i32_1 : i32, i32, i32
  }
  func.func @transform_14(%arg0: i32) -> (i32, i32, i32) {
    %c0_i32 = arith.constant 0 : i32
    %c0_i32_0 = arith.constant 0 : i32
    %c0_i32_1 = arith.constant 0 : i32
    %c0_i32_2 = arith.constant 0 : i32
    return %c0_i32, %c0_i32_0, %c0_i32_1 : i32, i32, i32
  }
  func.func @transform_15(%arg0: i32) -> (i32, i32, i32) {
    %c0_i32 = arith.constant 0 : i32
    %c0_i32_0 = arith.constant 0 : i32
    %c0_i32_1 = arith.constant 0 : i32
    %c0_i32_2 = arith.constant 0 : i32
    return %c0_i32, %c0_i32_0, %c0_i32_1 : i32, i32, i32
  }
  func.func @transform_16(%arg0: i32) -> (i32, i32) {
    %c0_i32 = arith.constant 0 : i32
    %c0_i32_0 = arith.constant 0 : i32
    %c0_i32_1 = arith.constant 0 : i32
    return %c0_i32, %c0_i32_0 : i32, i32
  }
  func.func @transform_17(%arg0: i32) -> (i32, i32) {
    %c0_i32 = arith.constant 0 : i32
    %c0_i32_0 = arith.constant 0 : i32
    %c0_i32_1 = arith.constant 0 : i32
    return %c0_i32, %c0_i32_0 : i32, i32
  }
  func.func @transform_18(%arg0: i32) -> (i32, i32) {
    %c0_i32 = arith.constant 0 : i32
    %c0_i32_0 = arith.constant 0 : i32
    %c0_i32_1 = arith.constant 0 : i32
    return %c0_i32, %c0_i32_0 : i32, i32
  }
  func.func @transform_19(%arg0: i32) -> (i32, i32) {
    %c0_i32 = arith.constant 0 : i32
    %c0_i32_0 = arith.constant 0 : i32
    %c0_i32_1 = arith.constant 0 : i32
    return %c0_i32, %c0_i32_0 : i32, i32
  }
  func.func @transform_20(%arg0: i32) -> (i32, i32) {
    %c0_i32 = arith.constant 0 : i32
    %c0_i32_0 = arith.constant 0 : i32
    %c0_i32_1 = arith.constant 0 : i32
    return %c0_i32, %c0_i32_0 : i32, i32
  }
  func.func @transform_21(%arg0: i32) -> (i32, i32) {
    %c0_i32 = arith.constant 0 : i32
    %c0_i32_0 = arith.constant 0 : i32
    %c0_i32_1 = arith.constant 0 : i32
    return %c0_i32, %c0_i32_0 : i32, i32
  }
  func.func @transform_22(%arg0: i32) -> (i32, i32, i32, i32) {
    %c0_i32 = arith.constant 0 : i32
    %c0_i32_0 = arith.constant 0 : i32
    %c0_i32_1 = arith.constant 0 : i32
    %c0_i32_2 = arith.constant 0 : i32
    %c0_i32_3 = arith.constant 0 : i32
    return %c0_i32, %c0_i32_0, %c0_i32_1, %c0_i32_2 : i32, i32, i32, i32
  }
  func.func @transform_23(%arg0: i32) -> (i32, i32, i32, i32) {
    %c0_i32 = arith.constant 0 : i32
    %c0_i32_0 = arith.constant 0 : i32
    %c0_i32_1 = arith.constant 0 : i32
    %c0_i32_2 = arith.constant 0 : i32
    %c0_i32_3 = arith.constant 0 : i32
    return %c0_i32, %c0_i32_0, %c0_i32_1, %c0_i32_2 : i32, i32, i32, i32
  }
  func.func @transform_24(%arg0: i32) -> (i32, i32, i32, i32) {
    %c0_i32 = arith.constant 0 : i32
    %c0_i32_0 = arith.constant 0 : i32
    %c0_i32_1 = arith.constant 0 : i32
    %c0_i32_2 = arith.constant 0 : i32
    %c0_i32_3 = arith.constant 0 : i32
    return %c0_i32, %c0_i32_0, %c0_i32_1, %c0_i32_2 : i32, i32, i32, i32
  }
  func.func @transform_25(%arg0: i32) -> (i32, i32, i32, i32) {
    %c0_i32 = arith.constant 0 : i32
    %c0_i32_0 = arith.constant 0 : i32
    %c0_i32_1 = arith.constant 0 : i32
    %c0_i32_2 = arith.constant 0 : i32
    %c0_i32_3 = arith.constant 0 : i32
    return %c0_i32, %c0_i32_0, %c0_i32_1, %c0_i32_2 : i32, i32, i32, i32
  }
  func.func @transform_26(%arg0: i32) -> (i32, i32, i32) {
    %c0_i32 = arith.constant 0 : i32
    %c0_i32_0 = arith.constant 0 : i32
    %c0_i32_1 = arith.constant 0 : i32
    %c0_i32_2 = arith.constant 0 : i32
    return %c0_i32, %c0_i32_0, %c0_i32_1 : i32, i32, i32
  }
  func.func @transform_27(%arg0: i32) -> (i32, i32, i32) {
    %c0_i32 = arith.constant 0 : i32
    %c0_i32_0 = arith.constant 0 : i32
    %c0_i32_1 = arith.constant 0 : i32
    %c0_i32_2 = arith.constant 0 : i32
    return %c0_i32, %c0_i32_0, %c0_i32_1 : i32, i32, i32
  }
  func.func @transform_28(%arg0: i32) -> (i32, i32, i32, i32) {
    %c0_i32 = arith.constant 0 : i32
    %c0_i32_0 = arith.constant 0 : i32
    %c0_i32_1 = arith.constant 0 : i32
    %c0_i32_2 = arith.constant 0 : i32
    %c0_i32_3 = arith.constant 0 : i32
    return %c0_i32, %c0_i32_0, %c0_i32_1, %c0_i32_2 : i32, i32, i32, i32
  }
  func.func @transform_29(%arg0: i32) -> (i32, i32, i32, i32) {
    %c0_i32 = arith.constant 0 : i32
    %c0_i32_0 = arith.constant 0 : i32
    %c0_i32_1 = arith.constant 0 : i32
    %c0_i32_2 = arith.constant 0 : i32
    %c0_i32_3 = arith.constant 0 : i32
    return %c0_i32, %c0_i32_0, %c0_i32_1, %c0_i32_2 : i32, i32, i32, i32
  }
  func.func @transform_30(%arg0: i32) -> (i32, i32, i32) {
    %c0_i32 = arith.constant 0 : i32
    %c0_i32_0 = arith.constant 0 : i32
    %c0_i32_1 = arith.constant 0 : i32
    %c0_i32_2 = arith.constant 0 : i32
    return %c0_i32, %c0_i32_0, %c0_i32_1 : i32, i32, i32
  }
  func.func @transform_31(%arg0: i32) -> (i32, i32, i32) {
    %c0_i32 = arith.constant 0 : i32
    %c0_i32_0 = arith.constant 0 : i32
    %c0_i32_1 = arith.constant 0 : i32
    %c0_i32_2 = arith.constant 0 : i32
    return %c0_i32, %c0_i32_0, %c0_i32_1 : i32, i32, i32
  }
  func.func @transform_32(%arg0: i32) -> (i32, i32, i32) {
    %c0_i32 = arith.constant 0 : i32
    %c0_i32_0 = arith.constant 0 : i32
    %c0_i32_1 = arith.constant 0 : i32
    %c0_i32_2 = arith.constant 0 : i32
    return %c0_i32, %c0_i32_0, %c0_i32_1 : i32, i32, i32
  }
  func.func @transform_33(%arg0: i32) -> (i32, i32, i32) {
    %c0_i32 = arith.constant 0 : i32
    %c0_i32_0 = arith.constant 0 : i32
    %c0_i32_1 = arith.constant 0 : i32
    %c0_i32_2 = arith.constant 0 : i32
    return %c0_i32, %c0_i32_0, %c0_i32_1 : i32, i32, i32
  }
  func.func @transform_34(%arg0: i32) -> (i32, i32, i32) {
    %c0_i32 = arith.constant 0 : i32
    %c0_i32_0 = arith.constant 0 : i32
    %c0_i32_1 = arith.constant 0 : i32
    %c0_i32_2 = arith.constant 0 : i32
    return %c0_i32, %c0_i32_0, %c0_i32_1 : i32, i32, i32
  }
  func.func @transform_35(%arg0: i32) -> (i32, i32, i32) {
    %c0_i32 = arith.constant 0 : i32
    %c0_i32_0 = arith.constant 0 : i32
    %c0_i32_1 = arith.constant 0 : i32
    %c0_i32_2 = arith.constant 0 : i32
    return %c0_i32, %c0_i32_0, %c0_i32_1 : i32, i32, i32
  }
  func.func @transform_36(%arg0: i32) -> (i32, i32) {
    %c0_i32 = arith.constant 0 : i32
    %c0_i32_0 = arith.constant 0 : i32
    %c0_i32_1 = arith.constant 0 : i32
    return %c0_i32, %c0_i32_0 : i32, i32
  }
  func.func @transform_37(%arg0: i32) -> (i32, i32) {
    %c0_i32 = arith.constant 0 : i32
    %c0_i32_0 = arith.constant 0 : i32
    %c0_i32_1 = arith.constant 0 : i32
    return %c0_i32, %c0_i32_0 : i32, i32
  }
  func.func @transform_38(%arg0: i32) -> (i32, i32) {
    %c0_i32 = arith.constant 0 : i32
    %c0_i32_0 = arith.constant 0 : i32
    %c0_i32_1 = arith.constant 0 : i32
    return %c0_i32, %c0_i32_0 : i32, i32
  }
  func.func @transform_39(%arg0: i32) -> (i32, i32, i32) {
    %c0_i32 = arith.constant 0 : i32
    %c0_i32_0 = arith.constant 0 : i32
    %c0_i32_1 = arith.constant 0 : i32
    return %arg0, %c0_i32, %c0_i32_0 : i32, i32, i32
  }
}

</mosaic_0001>

<llo_original>
// kernel: generator_forward.1
$region0: #{generator_forward.1}
  #allocation0 [shape = 'u32[]', space=smem, size = 0x4, offset = 0x4, fixed_abs, tag = 'smem constant byte address 0x4 - core index']
  #allocation1 [shape = 'u32[144,128]{1,0:T(1,128)}', space=vmem, size = 0x12000, scoped, tag = 'internal scratch']
  %s0 = inlined_call_operand.smem [shape: u32[40], index: -1, kind: input, shape index: {}]
  %s1 = sld [smem:[%s0]]
  %s2 = scalar_lea.smem %s0, 1
  %s3 = sld [smem:[%s2]]
  %s4 = scalar_lea.smem %s0, 2
  %s5 = sld [smem:[%s4]]
  %s6 = scalar_lea.smem %s0, 3
  %s7 = sld [smem:[%s6]]
  %s8 = scalar_lea.smem %s0, 4
  %s9 = sld [smem:[%s8]]
  %s10 = scalar_lea.smem %s0, 5
  %s11 = sld [smem:[%s10]]
  %s12 = scalar_lea.smem %s0, 6
  %s13 = sld [smem:[%s12]]
  %s14 = scalar_lea.smem %s0, 7
  %s15 = sld [smem:[%s14]]
  %s16 = scalar_lea.smem %s0, 8
  %s17 = sld [smem:[%s16]]
  %s18 = scalar_lea.smem %s0, 9
  %s19 = sld [smem:[%s18]]
  %s20 = scalar_lea.smem %s0, 10
  %s21 = sld [smem:[%s20]]
  %s22 = scalar_lea.smem %s0, 11
  %s23 = sld [smem:[%s22]]
  %s24 = scalar_lea.smem %s0, 12
  %s25 = sld [smem:[%s24]]
  %s26 = scalar_lea.smem %s0, 13
  %s27 = sld [smem:[%s26]]
  %s28 = scalar_lea.smem %s0, 14
  %s29 = sld [smem:[%s28]]
  %s30 = scalar_lea.smem %s0, 15
  %s31 = sld [smem:[%s30]]
  %s32 = scalar_lea.smem %s0, 16
  %s33 = sld [smem:[%s32]]
  %s34 = scalar_lea.smem %s0, 17
  %s35 = sld [smem:[%s34]]
  %s36 = scalar_lea.smem %s0, 18
  %s37 = sld [smem:[%s36]]
  %s38 = scalar_lea.smem %s0, 19
  %s39 = sld [smem:[%s38]]
  %s40 = scalar_lea.smem %s0, 20
  %s41 = sld [smem:[%s40]]
  %s42 = scalar_lea.smem %s0, 21
  %s43 = sld [smem:[%s42]]
  %s44 = scalar_lea.smem %s0, 22
  %s45 = sld [smem:[%s44]]
  %s46 = scalar_lea.smem %s0, 23
  %s47 = sld [smem:[%s46]]
  %s48 = scalar_lea.smem %s0, 24
  %s49 = sld [smem:[%s48]]
  %s50 = scalar_lea.smem %s0, 25
  %s51 = sld [smem:[%s50]]
  %s52 = scalar_lea.smem %s0, 26
  %s53 = sld [smem:[%s52]]
  %s54 = scalar_lea.smem %s0, 27
  %s55 = sld [smem:[%s54]]
  %s56 = scalar_lea.smem %s0, 28
  %s57 = sld [smem:[%s56]]
  %s58 = scalar_lea.smem %s0, 29
  %s59 = sld [smem:[%s58]]
  %s60 = scalar_lea.smem %s0, 30
  %s61 = sld [smem:[%s60]]
  %s62 = scalar_lea.smem %s0, 31
  %s63 = sld [smem:[%s62]]
  %s64 = scalar_lea.smem %s0, 32
  %s65 = sld [smem:[%s64]]
  %s66 = scalar_lea.smem %s0, 33
  %s67 = sld [smem:[%s66]]
  %s68 = scalar_lea.smem %s0, 34
  %s69 = sld [smem:[%s68]]
  %s70 = scalar_lea.smem %s0, 35
  %s71 = sld [smem:[%s70]]
  %s72 = scalar_lea.smem %s0, 36
  %s73 = sld [smem:[%s72]]
  %s74 = scalar_lea.smem %s0, 37
  %s75 = sld [smem:[%s74]]
  %s76 = scalar_lea.smem %s0, 38
  %s77 = sld [smem:[%s76]]
  %s78 = scalar_lea.smem %s0, 39
  %s79 = sld [smem:[%s78]]
  %s80 = sld [smem:[#allocation0]]
  $region189: #{generator_forward.1} parent=0
    _
  %s82 = ssub.s32 1, %s80
  %s83 = scalar_select 0, %s82, %s80
  $region1: #{generator_forward.1} parent=0
    #allocation2 [shape = 'u8[8192]{0}', space=vmem, size = 0x2000, scoped, tag = 'output window, operand 0']
    #allocation3 [shape = 's32[2]{0}', space=sflag, size = 0x8, scoped, tag = 'scoped memory for generator_forward.1']
    %84 = vsyncpa [#allocation3], 0
    %s85 = scalar_lea.sflag [#allocation3], 1
    %86 = vsyncpa %s85, 0
    loop: start=0, step=1, limit=4
    $region2: #{generator_forward.1} parent=1 // loop_pre_header
      _
    $region3: #{generator_forward.1} parent=1 // loop_header
      %s88 = sphi 0, %s92
      %p89 = scmp.ge.s32.totalorder %s88, 4
      %s98 = sphi 0, %s100
      %s101 = sphi 0, %s98
      %s102 = sphi 0, %s101
      %s118 = sphi 0, %s102
      %s124 = sphi 0, %s126
      %s127 = sphi 0, %s124
      %s128 = sphi 0, %s127
      %s144 = sphi 0, %s128
      %s150 = sphi 0, %s152
      %s153 = sphi 0, %s150
      %s154 = sphi 0, %s153
      %s170 = sphi 0, %s154
      %s174 = sphi 0, %s174
      %s176 = sphi 0, %s174
      %s177 = sphi 0, %s176
      %s191 = sphi 0, %s177
      %s195 = sphi 0, %s195
      %s197 = sphi 0, %s195
      %s198 = sphi 0, %s197
      %s212 = sphi 0, %s198
      %s216 = sphi 0, %s216
      %s218 = sphi 0, %s216
      %s219 = sphi 0, %s218
      %s233 = sphi 0, %s219
      %s237 = sphi 0, %s237
      %s239 = sphi 0, %s237
      %s240 = sphi 0, %s239
      %s254 = sphi 0, %s240
      %s258 = sphi 0, %s258
      %s260 = sphi 0, %s258
      %s261 = sphi 0, %s260
      %s275 = sphi 0, %s261
      %s279 = sphi 0, %s279
      %s281 = sphi 0, %s279
      %s282 = sphi 0, %s281
      %s296 = sphi 0, %s282
      %s300 = sphi 0, %s300
      %s302 = sphi 0, %s300
      %s303 = sphi 0, %s302
      %s317 = sphi 0, %s303
      %s321 = sphi 0, %s321
      %s323 = sphi 0, %s321
      %s324 = sphi 0, %s323
      %s338 = sphi 0, %s324
      %s342 = sphi 0, %s342
      %s344 = sphi 0, %s342
      %s345 = sphi 0, %s344
      %s359 = sphi 0, %s345
      %s363 = sphi 0, %s363
      %s365 = sphi 0, %s363
      %s366 = sphi 0, %s365
      %s380 = sphi 0, %s366
      %s384 = sphi 0, %s384
      %s386 = sphi 0, %s384
      %s387 = sphi 0, %s386
      %s401 = sphi 0, %s387
      %s405 = sphi 0, %s405
      %s407 = sphi 0, %s405
      %s408 = sphi 0, %s407
      %s422 = sphi 0, %s408
      %s426 = sphi 0, %s426
      %s428 = sphi 0, %s426
      %s429 = sphi 0, %s428
      %s443 = sphi 0, %s429
      %s447 = sphi 0, %s447
      %s449 = sphi 0, %s447
      %s450 = sphi 0, %s449
      %s464 = sphi 0, %s450
      %s468 = sphi 0, %s468
      %s470 = sphi 0, %s468
      %s471 = sphi 0, %s470
      %s485 = sphi 0, %s471
      %s489 = sphi 0, %s489
      %s491 = sphi 0, %s489
      %s492 = sphi 0, %s491
      %s506 = sphi 0, %s492
      %s510 = sphi 0, %s510
      %s512 = sphi 0, %s510
      %s513 = sphi 0, %s512
      %s527 = sphi 0, %s513
      %s531 = sphi 0, %s531
      %s533 = sphi 0, %s531
      %s534 = sphi 0, %s533
      %s548 = sphi 0, %s534
      %s552 = sphi 0, %s552
      %s554 = sphi 0, %s552
      %s555 = sphi 0, %s554
      %s569 = sphi 0, %s555
      %s573 = sphi 0, %s573
      %s575 = sphi 0, %s573
      %s576 = sphi 0, %s575
      %s590 = sphi 0, %s576
      %s594 = sphi 0, %s594
      %s596 = sphi 0, %s594
      %s597 = sphi 0, %s596
      %s611 = sphi 0, %s597
      %s615 = sphi 0, %s615
      %s617 = sphi 0, %s615
      %s618 = sphi 0, %s617
      %s632 = sphi 0, %s618
      %s636 = sphi 0, %s636
      %s638 = sphi 0, %s636
      %s639 = sphi 0, %s638
      %s653 = sphi 0, %s639
      %s657 = sphi 0, %s657
      %s659 = sphi 0, %s657
      %s660 = sphi 0, %s659
      %s674 = sphi 0, %s660
      %s678 = sphi 0, %s678
      %s680 = sphi 0, %s678
      %s681 = sphi 0, %s680
      %s695 = sphi 0, %s681
      %s699 = sphi 0, %s699
      %s701 = sphi 0, %s699
      %s702 = sphi 0, %s701
      %s716 = sphi 0, %s702
      %s720 = sphi 0, %s720
      %s722 = sphi 0, %s720
      %s723 = sphi 0, %s722
      %s737 = sphi 0, %s723
      %s741 = sphi 0, %s741
      %s743 = sphi 0, %s741
      %s744 = sphi 0, %s743
      %s758 = sphi 0, %s744
      %s762 = sphi 0, %s762
      %s764 = sphi 0, %s762
      %s765 = sphi 0, %s764
      %s779 = sphi 0, %s765
      %s783 = sphi 0, %s783
      %s785 = sphi 0, %s783
      %s786 = sphi 0, %s785
      %s800 = sphi 0, %s786
      %s804 = sphi 0, %s804
      %s806 = sphi 0, %s804
      %s807 = sphi 0, %s806
      %s821 = sphi 0, %s807
      %s825 = sphi 0, %s825
      %s827 = sphi 0, %s825
      %s828 = sphi 0, %s827
      %s842 = sphi 0, %s828
      %s846 = sphi 0, %s846
      %s848 = sphi 0, %s846
      %s849 = sphi 0, %s848
      %s863 = sphi 0, %s849
      %s867 = sphi 0, %s867
      %s869 = sphi 0, %s867
      %s870 = sphi 0, %s869
      %s884 = sphi 0, %s870
      %s888 = sphi 0, %s888
      %s890 = sphi 0, %s888
      %s891 = sphi 0, %s890
      %s905 = sphi 0, %s891
      %s909 = sphi 0, %s909
      %s911 = sphi 0, %s909
      %s912 = sphi 0, %s911
      %s926 = sphi 0, %s912
      %s932 = sphi 0, %s934
      %s935 = sphi 0, %s932
      %s936 = sphi 0, %s935
      %s952 = sphi 0, %s936
    $region4: #{generator_forward.1} parent=1 // loop_header_branch
      %91 = sbr.rel (%p89) target = $region8
    $region5: #{generator_forward.1} parent=1 // loop_body
      %s93 = ssub.s32 %s88, 1
      %s94 = ssub.s32 %s88, 2
      %s95 = sadd.s32 %s88, 1
      %s96 = ssub.s32 %s88, %s95
      %p97 = scmp.eq.s32.totalorder %s96, 0
      %s99 = sadd.s32 %s98, 1
      %s100 = scalar_select %p97, %s98, %s99
      %p103 = pneg %p97
      %p104 = scmp.eq.s32.totalorder %s88, 1
      %p105 = por %p103, %p104
      %p106 = scmp.ne.s32.totalorder %s98, %s101
      %p107 = scmp.eq.s32.totalorder %s88, 0
      %p108 = por %p106, %p107
      %p109 = scmp.ne.s32.totalorder %s98, %s101
      %p110 = scmp.eq.s32.totalorder %s93, 1
      %p111 = por %p109, %p110
      %p112 = scmp.ne.s32.totalorder %s101, %s102
      %p113 = scmp.eq.s32.totalorder %s93, 0
      %p114 = por %p112, %p113
      %p115 = scmp.ne.s32.totalorder %s101, %s102
      %p116 = scmp.eq.s32.totalorder %s94, 1
      %p117 = por %p115, %p116
      %p119 = scmp.ne.s32.totalorder %s102, %s118
      %p120 = scmp.eq.s32.totalorder %s94, 0
      %p121 = por %p119, %p120
      %s122 = ssub.s32 %s88, %s95
      %p123 = scmp.eq.s32.totalorder %s122, 0
      %s125 = sadd.s32 %s124, 1
      %s126 = scalar_select %p123, %s124, %s125
      %p129 = pneg %p123
      %p130 = scmp.eq.s32.totalorder %s88, 1
      %p131 = por %p129, %p130
      %p132 = scmp.ne.s32.totalorder %s124, %s127
      %p133 = scmp.eq.s32.totalorder %s88, 0
      %p134 = por %p132, %p133
      %p135 = scmp.ne.s32.totalorder %s124, %s127
      %p136 = scmp.eq.s32.totalorder %s93, 1
      %p137 = por %p135, %p136
      %p138 = scmp.ne.s32.totalorder %s127, %s128
      %p139 = scmp.eq.s32.totalorder %s93, 0
      %p140 = por %p138, %p139
      %p141 = scmp.ne.s32.totalorder %s127, %s128
      %p142 = scmp.eq.s32.totalorder %s94, 1
      %p143 = por %p141, %p142
      %p145 = scmp.ne.s32.totalorder %s128, %s144
      %p146 = scmp.eq.s32.totalorder %s94, 0
      %p147 = por %p145, %p146
      %s148 = ssub.s32 %s88, %s95
      %p149 = scmp.eq.s32.totalorder %s148, 0
      %s151 = sadd.s32 %s150, 1
      %s152 = scalar_select %p149, %s150, %s151
      %p155 = pneg %p149
      %p156 = scmp.eq.s32.totalorder %s88, 1
      %p157 = por %p155, %p156
      %p158 = scmp.ne.s32.totalorder %s150, %s153
      %p159 = scmp.eq.s32.totalorder %s88, 0
      %p160 = por %p158, %p159
      %p161 = scmp.ne.s32.totalorder %s150, %s153
      %p162 = scmp.eq.s32.totalorder %s93, 1
      %p163 = por %p161, %p162
      %p164 = scmp.ne.s32.totalorder %s153, %s154
      %p165 = scmp.eq.s32.totalorder %s93, 0
      %p166 = por %p164, %p165
      %p167 = scmp.ne.s32.totalorder %s153, %s154
      %p168 = scmp.eq.s32.totalorder %s94, 1
      %p169 = por %p167, %p168
      %p171 = scmp.ne.s32.totalorder %s154, %s170
      %p172 = scmp.eq.s32.totalorder %s94, 0
      %p173 = por %p171, %p172
      %s175 = sadd.s32 %s174, 1
      %p178 = scmp.eq.s32.totalorder %s88, 1
      %p179 = scmp.ne.s32.totalorder %s174, %s176
      %p180 = scmp.eq.s32.totalorder %s88, 0
      %p181 = por %p179, %p180
      %p182 = scmp.ne.s32.totalorder %s174, %s176
      %p183 = scmp.eq.s32.totalorder %s93, 1
      %p184 = por %p182, %p183
      %p185 = scmp.ne.s32.totalorder %s176, %s177
      %p186 = scmp.eq.s32.totalorder %s93, 0
      %p187 = por %p185, %p186
      %p188 = scmp.ne.s32.totalorder %s176, %s177
      %p189 = scmp.eq.s32.totalorder %s94, 1
      %p190 = por %p188, %p189
      %p192 = scmp.ne.s32.totalorder %s177, %s191
      %p193 = scmp.eq.s32.totalorder %s94, 0
      %p194 = por %p192, %p193
      %s196 = sadd.s32 %s195, 1
      %p199 = scmp.eq.s32.totalorder %s88, 1
      %p200 = scmp.ne.s32.totalorder %s195, %s197
      %p201 = scmp.eq.s32.totalorder %s88, 0
      %p202 = por %p200, %p201
      %p203 = scmp.ne.s32.totalorder %s195, %s197
      %p204 = scmp.eq.s32.totalorder %s93, 1
      %p205 = por %p203, %p204
      %p206 = scmp.ne.s32.totalorder %s197, %s198
      %p207 = scmp.eq.s32.totalorder %s93, 0
      %p208 = por %p206, %p207
      %p209 = scmp.ne.s32.totalorder %s197, %s198
      %p210 = scmp.eq.s32.totalorder %s94, 1
      %p211 = por %p209, %p210
      %p213 = scmp.ne.s32.totalorder %s198, %s212
      %p214 = scmp.eq.s32.totalorder %s94, 0
      %p215 = por %p213, %p214
      %s217 = sadd.s32 %s216, 1
      %p220 = scmp.eq.s32.totalorder %s88, 1
      %p221 = scmp.ne.s32.totalorder %s216, %s218
      %p222 = scmp.eq.s32.totalorder %s88, 0
      %p223 = por %p221, %p222
      %p224 = scmp.ne.s32.totalorder %s216, %s218
      %p225 = scmp.eq.s32.totalorder %s93, 1
      %p226 = por %p224, %p225
      %p227 = scmp.ne.s32.totalorder %s218, %s219
      %p228 = scmp.eq.s32.totalorder %s93, 0
      %p229 = por %p227, %p228
      %p230 = scmp.ne.s32.totalorder %s218, %s219
      %p231 = scmp.eq.s32.totalorder %s94, 1
      %p232 = por %p230, %p231
      %p234 = scmp.ne.s32.totalorder %s219, %s233
      %p235 = scmp.eq.s32.totalorder %s94, 0
      %p236 = por %p234, %p235
      %s238 = sadd.s32 %s237, 1
      %p241 = scmp.eq.s32.totalorder %s88, 1
      %p242 = scmp.ne.s32.totalorder %s237, %s239
      %p243 = scmp.eq.s32.totalorder %s88, 0
      %p244 = por %p242, %p243
      %p245 = scmp.ne.s32.totalorder %s237, %s239
      %p246 = scmp.eq.s32.totalorder %s93, 1
      %p247 = por %p245, %p246
      %p248 = scmp.ne.s32.totalorder %s239, %s240
      %p249 = scmp.eq.s32.totalorder %s93, 0
      %p250 = por %p248, %p249
      %p251 = scmp.ne.s32.totalorder %s239, %s240
      %p252 = scmp.eq.s32.totalorder %s94, 1
      %p253 = por %p251, %p252
      %p255 = scmp.ne.s32.totalorder %s240, %s254
      %p256 = scmp.eq.s32.totalorder %s94, 0
      %p257 = por %p255, %p256
      %s259 = sadd.s32 %s258, 1
      %p262 = scmp.eq.s32.totalorder %s88, 1
      %p263 = scmp.ne.s32.totalorder %s258, %s260
      %p264 = scmp.eq.s32.totalorder %s88, 0
      %p265 = por %p263, %p264
      %p266 = scmp.ne.s32.totalorder %s258, %s260
      %p267 = scmp.eq.s32.totalorder %s93, 1
      %p268 = por %p266, %p267
      %p269 = scmp.ne.s32.totalorder %s260, %s261
      %p270 = scmp.eq.s32.totalorder %s93, 0
      %p271 = por %p269, %p270
      %p272 = scmp.ne.s32.totalorder %s260, %s261
      %p273 = scmp.eq.s32.totalorder %s94, 1
      %p274 = por %p272, %p273
      %p276 = scmp.ne.s32.totalorder %s261, %s275
      %p277 = scmp.eq.s32.totalorder %s94, 0
      %p278 = por %p276, %p277
      %s280 = sadd.s32 %s279, 1
      %p283 = scmp.eq.s32.totalorder %s88, 1
      %p284 = scmp.ne.s32.totalorder %s279, %s281
      %p285 = scmp.eq.s32.totalorder %s88, 0
      %p286 = por %p284, %p285
      %p287 = scmp.ne.s32.totalorder %s279, %s281
      %p288 = scmp.eq.s32.totalorder %s93, 1
      %p289 = por %p287, %p288
      %p290 = scmp.ne.s32.totalorder %s281, %s282
      %p291 = scmp.eq.s32.totalorder %s93, 0
      %p292 = por %p290, %p291
      %p293 = scmp.ne.s32.totalorder %s281, %s282
      %p294 = scmp.eq.s32.totalorder %s94, 1
      %p295 = por %p293, %p294
      %p297 = scmp.ne.s32.totalorder %s282, %s296
      %p298 = scmp.eq.s32.totalorder %s94, 0
      %p299 = por %p297, %p298
      %s301 = sadd.s32 %s300, 1
      %p304 = scmp.eq.s32.totalorder %s88, 1
      %p305 = scmp.ne.s32.totalorder %s300, %s302
      %p306 = scmp.eq.s32.totalorder %s88, 0
      %p307 = por %p305, %p306
      %p308 = scmp.ne.s32.totalorder %s300, %s302
      %p309 = scmp.eq.s32.totalorder %s93, 1
      %p310 = por %p308, %p309
      %p311 = scmp.ne.s32.totalorder %s302, %s303
      %p312 = scmp.eq.s32.totalorder %s93, 0
      %p313 = por %p311, %p312
      %p314 = scmp.ne.s32.totalorder %s302, %s303
      %p315 = scmp.eq.s32.totalorder %s94, 1
      %p316 = por %p314, %p315
      %p318 = scmp.ne.s32.totalorder %s303, %s317
      %p319 = scmp.eq.s32.totalorder %s94, 0
      %p320 = por %p318, %p319
      %s322 = sadd.s32 %s321, 1
      %p325 = scmp.eq.s32.totalorder %s88, 1
      %p326 = scmp.ne.s32.totalorder %s321, %s323
      %p327 = scmp.eq.s32.totalorder %s88, 0
      %p328 = por %p326, %p327
      %p329 = scmp.ne.s32.totalorder %s321, %s323
      %p330 = scmp.eq.s32.totalorder %s93, 1
      %p331 = por %p329, %p330
      %p332 = scmp.ne.s32.totalorder %s323, %s324
      %p333 = scmp.eq.s32.totalorder %s93, 0
      %p334 = por %p332, %p333
      %p335 = scmp.ne.s32.totalorder %s323, %s324
      %p336 = scmp.eq.s32.totalorder %s94, 1
      %p337 = por %p335, %p336
      %p339 = scmp.ne.s32.totalorder %s324, %s338
      %p340 = scmp.eq.s32.totalorder %s94, 0
      %p341 = por %p339, %p340
      %s343 = sadd.s32 %s342, 1
      %p346 = scmp.eq.s32.totalorder %s88, 1
      %p347 = scmp.ne.s32.totalorder %s342, %s344
      %p348 = scmp.eq.s32.totalorder %s88, 0
      %p349 = por %p347, %p348
      %p350 = scmp.ne.s32.totalorder %s342, %s344
      %p351 = scmp.eq.s32.totalorder %s93, 1
      %p352 = por %p350, %p351
      %p353 = scmp.ne.s32.totalorder %s344, %s345
      %p354 = scmp.eq.s32.totalorder %s93, 0
      %p355 = por %p353, %p354
      %p356 = scmp.ne.s32.totalorder %s344, %s345
      %p357 = scmp.eq.s32.totalorder %s94, 1
      %p358 = por %p356, %p357
      %p360 = scmp.ne.s32.totalorder %s345, %s359
      %p361 = scmp.eq.s32.totalorder %s94, 0
      %p362 = por %p360, %p361
      %s364 = sadd.s32 %s363, 1
      %p367 = scmp.eq.s32.totalorder %s88, 1
      %p368 = scmp.ne.s32.totalorder %s363, %s365
      %p369 = scmp.eq.s32.totalorder %s88, 0
      %p370 = por %p368, %p369
      %p371 = scmp.ne.s32.totalorder %s363, %s365
      %p372 = scmp.eq.s32.totalorder %s93, 1
      %p373 = por %p371, %p372
      %p374 = scmp.ne.s32.totalorder %s365, %s366
      %p375 = scmp.eq.s32.totalorder %s93, 0
      %p376 = por %p374, %p375
      %p377 = scmp.ne.s32.totalorder %s365, %s366
      %p378 = scmp.eq.s32.totalorder %s94, 1
      %p379 = por %p377, %p378
      %p381 = scmp.ne.s32.totalorder %s366, %s380
      %p382 = scmp.eq.s32.totalorder %s94, 0
      %p383 = por %p381, %p382
      %s385 = sadd.s32 %s384, 1
      %p388 = scmp.eq.s32.totalorder %s88, 1
      %p389 = scmp.ne.s32.totalorder %s384, %s386
      %p390 = scmp.eq.s32.totalorder %s88, 0
      %p391 = por %p389, %p390
      %p392 = scmp.ne.s32.totalorder %s384, %s386
      %p393 = scmp.eq.s32.totalorder %s93, 1
      %p394 = por %p392, %p393
      %p395 = scmp.ne.s32.totalorder %s386, %s387
      %p396 = scmp.eq.s32.totalorder %s93, 0
      %p397 = por %p395, %p396
      %p398 = scmp.ne.s32.totalorder %s386, %s387
      %p399 = scmp.eq.s32.totalorder %s94, 1
      %p400 = por %p398, %p399
      %p402 = scmp.ne.s32.totalorder %s387, %s401
      %p403 = scmp.eq.s32.totalorder %s94, 0
      %p404 = por %p402, %p403
      %s406 = sadd.s32 %s405, 1
      %p409 = scmp.eq.s32.totalorder %s88, 1
      %p410 = scmp.ne.s32.totalorder %s405, %s407
      %p411 = scmp.eq.s32.totalorder %s88, 0
      %p412 = por %p410, %p411
      %p413 = scmp.ne.s32.totalorder %s405, %s407
      %p414 = scmp.eq.s32.totalorder %s93, 1
      %p415 = por %p413, %p414
      %p416 = scmp.ne.s32.totalorder %s407, %s408
      %p417 = scmp.eq.s32.totalorder %s93, 0
      %p418 = por %p416, %p417
      %p419 = scmp.ne.s32.totalorder %s407, %s408
      %p420 = scmp.eq.s32.totalorder %s94, 1
      %p421 = por %p419, %p420
      %p423 = scmp.ne.s32.totalorder %s408, %s422
      %p424 = scmp.eq.s32.totalorder %s94, 0
      %p425 = por %p423, %p424
      %s427 = sadd.s32 %s426, 1
      %p430 = scmp.eq.s32.totalorder %s88, 1
      %p431 = scmp.ne.s32.totalorder %s426, %s428
      %p432 = scmp.eq.s32.totalorder %s88, 0
      %p433 = por %p431, %p432
      %p434 = scmp.ne.s32.totalorder %s426, %s428
      %p435 = scmp.eq.s32.totalorder %s93, 1
      %p436 = por %p434, %p435
      %p437 = scmp.ne.s32.totalorder %s428, %s429
      %p438 = scmp.eq.s32.totalorder %s93, 0
      %p439 = por %p437, %p438
      %p440 = scmp.ne.s32.totalorder %s428, %s429
      %p441 = scmp.eq.s32.totalorder %s94, 1
      %p442 = por %p440, %p441
      %p444 = scmp.ne.s32.totalorder %s429, %s443
      %p445 = scmp.eq.s32.totalorder %s94, 0
      %p446 = por %p444, %p445
      %s448 = sadd.s32 %s447, 1
      %p451 = scmp.eq.s32.totalorder %s88, 1
      %p452 = scmp.ne.s32.totalorder %s447, %s449
      %p453 = scmp.eq.s32.totalorder %s88, 0
      %p454 = por %p452, %p453
      %p455 = scmp.ne.s32.totalorder %s447, %s449
      %p456 = scmp.eq.s32.totalorder %s93, 1
      %p457 = por %p455, %p456
      %p458 = scmp.ne.s32.totalorder %s449, %s450
      %p459 = scmp.eq.s32.totalorder %s93, 0
      %p460 = por %p458, %p459
      %p461 = scmp.ne.s32.totalorder %s449, %s450
      %p462 = scmp.eq.s32.totalorder %s94, 1
      %p463 = por %p461, %p462
      %p465 = scmp.ne.s32.totalorder %s450, %s464
      %p466 = scmp.eq.s32.totalorder %s94, 0
      %p467 = por %p465, %p466
      %s469 = sadd.s32 %s468, 1
      %p472 = scmp.eq.s32.totalorder %s88, 1
      %p473 = scmp.ne.s32.totalorder %s468, %s470
      %p474 = scmp.eq.s32.totalorder %s88, 0
      %p475 = por %p473, %p474
      %p476 = scmp.ne.s32.totalorder %s468, %s470
      %p477 = scmp.eq.s32.totalorder %s93, 1
      %p478 = por %p476, %p477
      %p479 = scmp.ne.s32.totalorder %s470, %s471
      %p480 = scmp.eq.s32.totalorder %s93, 0
      %p481 = por %p479, %p480
      %p482 = scmp.ne.s32.totalorder %s470, %s471
      %p483 = scmp.eq.s32.totalorder %s94, 1
      %p484 = por %p482, %p483
      %p486 = scmp.ne.s32.totalorder %s471, %s485
      %p487 = scmp.eq.s32.totalorder %s94, 0
      %p488 = por %p486, %p487
      %s490 = sadd.s32 %s489, 1
      %p493 = scmp.eq.s32.totalorder %s88, 1
      %p494 = scmp.ne.s32.totalorder %s489, %s491
      %p495 = scmp.eq.s32.totalorder %s88, 0
      %p496 = por %p494, %p495
      %p497 = scmp.ne.s32.totalorder %s489, %s491
      %p498 = scmp.eq.s32.totalorder %s93, 1
      %p499 = por %p497, %p498
      %p500 = scmp.ne.s32.totalorder %s491, %s492
      %p501 = scmp.eq.s32.totalorder %s93, 0
      %p502 = por %p500, %p501
      %p503 = scmp.ne.s32.totalorder %s491, %s492
      %p504 = scmp.eq.s32.totalorder %s94, 1
      %p505 = por %p503, %p504
      %p507 = scmp.ne.s32.totalorder %s492, %s506
      %p508 = scmp.eq.s32.totalorder %s94, 0
      %p509 = por %p507, %p508
      %s511 = sadd.s32 %s510, 1
      %p514 = scmp.eq.s32.totalorder %s88, 1
      %p515 = scmp.ne.s32.totalorder %s510, %s512
      %p516 = scmp.eq.s32.totalorder %s88, 0
      %p517 = por %p515, %p516
      %p518 = scmp.ne.s32.totalorder %s510, %s512
      %p519 = scmp.eq.s32.totalorder %s93, 1
      %p520 = por %p518, %p519
      %p521 = scmp.ne.s32.totalorder %s512, %s513
      %p522 = scmp.eq.s32.totalorder %s93, 0
      %p523 = por %p521, %p522
      %p524 = scmp.ne.s32.totalorder %s512, %s513
      %p525 = scmp.eq.s32.totalorder %s94, 1
      %p526 = por %p524, %p525
      %p528 = scmp.ne.s32.totalorder %s513, %s527
      %p529 = scmp.eq.s32.totalorder %s94, 0
      %p530 = por %p528, %p529
      %s532 = sadd.s32 %s531, 1
      %p535 = scmp.eq.s32.totalorder %s88, 1
      %p536 = scmp.ne.s32.totalorder %s531, %s533
      %p537 = scmp.eq.s32.totalorder %s88, 0
      %p538 = por %p536, %p537
      %p539 = scmp.ne.s32.totalorder %s531, %s533
      %p540 = scmp.eq.s32.totalorder %s93, 1
      %p541 = por %p539, %p540
      %p542 = scmp.ne.s32.totalorder %s533, %s534
      %p543 = scmp.eq.s32.totalorder %s93, 0
      %p544 = por %p542, %p543
      %p545 = scmp.ne.s32.totalorder %s533, %s534
      %p546 = scmp.eq.s32.totalorder %s94, 1
      %p547 = por %p545, %p546
      %p549 = scmp.ne.s32.totalorder %s534, %s548
      %p550 = scmp.eq.s32.totalorder %s94, 0
      %p551 = por %p549, %p550
      %s553 = sadd.s32 %s552, 1
      %p556 = scmp.eq.s32.totalorder %s88, 1
      %p557 = scmp.ne.s32.totalorder %s552, %s554
      %p558 = scmp.eq.s32.totalorder %s88, 0
      %p559 = por %p557, %p558
      %p560 = scmp.ne.s32.totalorder %s552, %s554
      %p561 = scmp.eq.s32.totalorder %s93, 1
      %p562 = por %p560, %p561
      %p563 = scmp.ne.s32.totalorder %s554, %s555
      %p564 = scmp.eq.s32.totalorder %s93, 0
      %p565 = por %p563, %p564
      %p566 = scmp.ne.s32.totalorder %s554, %s555
      %p567 = scmp.eq.s32.totalorder %s94, 1
      %p568 = por %p566, %p567
      %p570 = scmp.ne.s32.totalorder %s555, %s569
      %p571 = scmp.eq.s32.totalorder %s94, 0
      %p572 = por %p570, %p571
      %s574 = sadd.s32 %s573, 1
      %p577 = scmp.eq.s32.totalorder %s88, 1
      %p578 = scmp.ne.s32.totalorder %s573, %s575
      %p579 = scmp.eq.s32.totalorder %s88, 0
      %p580 = por %p578, %p579
      %p581 = scmp.ne.s32.totalorder %s573, %s575
      %p582 = scmp.eq.s32.totalorder %s93, 1
      %p583 = por %p581, %p582
      %p584 = scmp.ne.s32.totalorder %s575, %s576
      %p585 = scmp.eq.s32.totalorder %s93, 0
      %p586 = por %p584, %p585
      %p587 = scmp.ne.s32.totalorder %s575, %s576
      %p588 = scmp.eq.s32.totalorder %s94, 1
      %p589 = por %p587, %p588
      %p591 = scmp.ne.s32.totalorder %s576, %s590
      %p592 = scmp.eq.s32.totalorder %s94, 0
      %p593 = por %p591, %p592
      %s595 = sadd.s32 %s594, 1
      %p598 = scmp.eq.s32.totalorder %s88, 1
      %p599 = scmp.ne.s32.totalorder %s594, %s596
      %p600 = scmp.eq.s32.totalorder %s88, 0
      %p601 = por %p599, %p600
      %p602 = scmp.ne.s32.totalorder %s594, %s596
      %p603 = scmp.eq.s32.totalorder %s93, 1
      %p604 = por %p602, %p603
      %p605 = scmp.ne.s32.totalorder %s596, %s597
      %p606 = scmp.eq.s32.totalorder %s93, 0
      %p607 = por %p605, %p606
      %p608 = scmp.ne.s32.totalorder %s596, %s597
      %p609 = scmp.eq.s32.totalorder %s94, 1
      %p610 = por %p608, %p609
      %p612 = scmp.ne.s32.totalorder %s597, %s611
      %p613 = scmp.eq.s32.totalorder %s94, 0
      %p614 = por %p612, %p613
      %s616 = sadd.s32 %s615, 1
      %p619 = scmp.eq.s32.totalorder %s88, 1
      %p620 = scmp.ne.s32.totalorder %s615, %s617
      %p621 = scmp.eq.s32.totalorder %s88, 0
      %p622 = por %p620, %p621
      %p623 = scmp.ne.s32.totalorder %s615, %s617
      %p624 = scmp.eq.s32.totalorder %s93, 1
      %p625 = por %p623, %p624
      %p626 = scmp.ne.s32.totalorder %s617, %s618
      %p627 = scmp.eq.s32.totalorder %s93, 0
      %p628 = por %p626, %p627
      %p629 = scmp.ne.s32.totalorder %s617, %s618
      %p630 = scmp.eq.s32.totalorder %s94, 1
      %p631 = por %p629, %p630
      %p633 = scmp.ne.s32.totalorder %s618, %s632
      %p634 = scmp.eq.s32.totalorder %s94, 0
      %p635 = por %p633, %p634
      %s637 = sadd.s32 %s636, 1
      %p640 = scmp.eq.s32.totalorder %s88, 1
      %p641 = scmp.ne.s32.totalorder %s636, %s638
      %p642 = scmp.eq.s32.totalorder %s88, 0
      %p643 = por %p641, %p642
      %p644 = scmp.ne.s32.totalorder %s636, %s638
      %p645 = scmp.eq.s32.totalorder %s93, 1
      %p646 = por %p644, %p645
      %p647 = scmp.ne.s32.totalorder %s638, %s639
      %p648 = scmp.eq.s32.totalorder %s93, 0
      %p649 = por %p647, %p648
      %p650 = scmp.ne.s32.totalorder %s638, %s639
      %p651 = scmp.eq.s32.totalorder %s94, 1
      %p652 = por %p650, %p651
      %p654 = scmp.ne.s32.totalorder %s639, %s653
      %p655 = scmp.eq.s32.totalorder %s94, 0
      %p656 = por %p654, %p655
      %s658 = sadd.s32 %s657, 1
      %p661 = scmp.eq.s32.totalorder %s88, 1
      %p662 = scmp.ne.s32.totalorder %s657, %s659
      %p663 = scmp.eq.s32.totalorder %s88, 0
      %p664 = por %p662, %p663
      %p665 = scmp.ne.s32.totalorder %s657, %s659
      %p666 = scmp.eq.s32.totalorder %s93, 1
      %p667 = por %p665, %p666
      %p668 = scmp.ne.s32.totalorder %s659, %s660
      %p669 = scmp.eq.s32.totalorder %s93, 0
      %p670 = por %p668, %p669
      %p671 = scmp.ne.s32.totalorder %s659, %s660
      %p672 = scmp.eq.s32.totalorder %s94, 1
      %p673 = por %p671, %p672
      %p675 = scmp.ne.s32.totalorder %s660, %s674
      %p676 = scmp.eq.s32.totalorder %s94, 0
      %p677 = por %p675, %p676
      %s679 = sadd.s32 %s678, 1
      %p682 = scmp.eq.s32.totalorder %s88, 1
      %p683 = scmp.ne.s32.totalorder %s678, %s680
      %p684 = scmp.eq.s32.totalorder %s88, 0
      %p685 = por %p683, %p684
      %p686 = scmp.ne.s32.totalorder %s678, %s680
      %p687 = scmp.eq.s32.totalorder %s93, 1
      %p688 = por %p686, %p687
      %p689 = scmp.ne.s32.totalorder %s680, %s681
      %p690 = scmp.eq.s32.totalorder %s93, 0
      %p691 = por %p689, %p690
      %p692 = scmp.ne.s32.totalorder %s680, %s681
      %p693 = scmp.eq.s32.totalorder %s94, 1
      %p694 = por %p692, %p693
      %p696 = scmp.ne.s32.totalorder %s681, %s695
      %p697 = scmp.eq.s32.totalorder %s94, 0
      %p698 = por %p696, %p697
      %s700 = sadd.s32 %s699, 1
      %p703 = scmp.eq.s32.totalorder %s88, 1
      %p704 = scmp.ne.s32.totalorder %s699, %s701
      %p705 = scmp.eq.s32.totalorder %s88, 0
      %p706 = por %p704, %p705
      %p707 = scmp.ne.s32.totalorder %s699, %s701
      %p708 = scmp.eq.s32.totalorder %s93, 1
      %p709 = por %p707, %p708
      %p710 = scmp.ne.s32.totalorder %s701, %s702
      %p711 = scmp.eq.s32.totalorder %s93, 0
      %p712 = por %p710, %p711
      %p713 = scmp.ne.s32.totalorder %s701, %s702
      %p714 = scmp.eq.s32.totalorder %s94, 1
      %p715 = por %p713, %p714
      %p717 = scmp.ne.s32.totalorder %s702, %s716
      %p718 = scmp.eq.s32.totalorder %s94, 0
      %p719 = por %p717, %p718
      %s721 = sadd.s32 %s720, 1
      %p724 = scmp.eq.s32.totalorder %s88, 1
      %p725 = scmp.ne.s32.totalorder %s720, %s722
      %p726 = scmp.eq.s32.totalorder %s88, 0
      %p727 = por %p725, %p726
      %p728 = scmp.ne.s32.totalorder %s720, %s722
      %p729 = scmp.eq.s32.totalorder %s93, 1
      %p730 = por %p728, %p729
      %p731 = scmp.ne.s32.totalorder %s722, %s723
      %p732 = scmp.eq.s32.totalorder %s93, 0
      %p733 = por %p731, %p732
      %p734 = scmp.ne.s32.totalorder %s722, %s723
      %p735 = scmp.eq.s32.totalorder %s94, 1
      %p736 = por %p734, %p735
      %p738 = scmp.ne.s32.totalorder %s723, %s737
      %p739 = scmp.eq.s32.totalorder %s94, 0
      %p740 = por %p738, %p739
      %s742 = sadd.s32 %s741, 1
      %p745 = scmp.eq.s32.totalorder %s88, 1
      %p746 = scmp.ne.s32.totalorder %s741, %s743
      %p747 = scmp.eq.s32.totalorder %s88, 0
      %p748 = por %p746, %p747
      %p749 = scmp.ne.s32.totalorder %s741, %s743
      %p750 = scmp.eq.s32.totalorder %s93, 1
      %p751 = por %p749, %p750
      %p752 = scmp.ne.s32.totalorder %s743, %s744
      %p753 = scmp.eq.s32.totalorder %s93, 0
      %p754 = por %p752, %p753
      %p755 = scmp.ne.s32.totalorder %s743, %s744
      %p756 = scmp.eq.s32.totalorder %s94, 1
      %p757 = por %p755, %p756
      %p759 = scmp.ne.s32.totalorder %s744, %s758
      %p760 = scmp.eq.s32.totalorder %s94, 0
      %p761 = por %p759, %p760
      %s763 = sadd.s32 %s762, 1
      %p766 = scmp.eq.s32.totalorder %s88, 1
      %p767 = scmp.ne.s32.totalorder %s762, %s764
      %p768 = scmp.eq.s32.totalorder %s88, 0
      %p769 = por %p767, %p768
      %p770 = scmp.ne.s32.totalorder %s762, %s764
      %p771 = scmp.eq.s32.totalorder %s93, 1
      %p772 = por %p770, %p771
      %p773 = scmp.ne.s32.totalorder %s764, %s765
      %p774 = scmp.eq.s32.totalorder %s93, 0
      %p775 = por %p773, %p774
      %p776 = scmp.ne.s32.totalorder %s764, %s765
      %p777 = scmp.eq.s32.totalorder %s94, 1
      %p778 = por %p776, %p777
      %p780 = scmp.ne.s32.totalorder %s765, %s779
      %p781 = scmp.eq.s32.totalorder %s94, 0
      %p782 = por %p780, %p781
      %s784 = sadd.s32 %s783, 1
      %p787 = scmp.eq.s32.totalorder %s88, 1
      %p788 = scmp.ne.s32.totalorder %s783, %s785
      %p789 = scmp.eq.s32.totalorder %s88, 0
      %p790 = por %p788, %p789
      %p791 = scmp.ne.s32.totalorder %s783, %s785
      %p792 = scmp.eq.s32.totalorder %s93, 1
      %p793 = por %p791, %p792
      %p794 = scmp.ne.s32.totalorder %s785, %s786
      %p795 = scmp.eq.s32.totalorder %s93, 0
      %p796 = por %p794, %p795
      %p797 = scmp.ne.s32.totalorder %s785, %s786
      %p798 = scmp.eq.s32.totalorder %s94, 1
      %p799 = por %p797, %p798
      %p801 = scmp.ne.s32.totalorder %s786, %s800
      %p802 = scmp.eq.s32.totalorder %s94, 0
      %p803 = por %p801, %p802
      %s805 = sadd.s32 %s804, 1
      %p808 = scmp.eq.s32.totalorder %s88, 1
      %p809 = scmp.ne.s32.totalorder %s804, %s806
      %p810 = scmp.eq.s32.totalorder %s88, 0
      %p811 = por %p809, %p810
      %p812 = scmp.ne.s32.totalorder %s804, %s806
      %p813 = scmp.eq.s32.totalorder %s93, 1
      %p814 = por %p812, %p813
      %p815 = scmp.ne.s32.totalorder %s806, %s807
      %p816 = scmp.eq.s32.totalorder %s93, 0
      %p817 = por %p815, %p816
      %p818 = scmp.ne.s32.totalorder %s806, %s807
      %p819 = scmp.eq.s32.totalorder %s94, 1
      %p820 = por %p818, %p819
      %p822 = scmp.ne.s32.totalorder %s807, %s821
      %p823 = scmp.eq.s32.totalorder %s94, 0
      %p824 = por %p822, %p823
      %s826 = sadd.s32 %s825, 1
      %p829 = scmp.eq.s32.totalorder %s88, 1
      %p830 = scmp.ne.s32.totalorder %s825, %s827
      %p831 = scmp.eq.s32.totalorder %s88, 0
      %p832 = por %p830, %p831
      %p833 = scmp.ne.s32.totalorder %s825, %s827
      %p834 = scmp.eq.s32.totalorder %s93, 1
      %p835 = por %p833, %p834
      %p836 = scmp.ne.s32.totalorder %s827, %s828
      %p837 = scmp.eq.s32.totalorder %s93, 0
      %p838 = por %p836, %p837
      %p839 = scmp.ne.s32.totalorder %s827, %s828
      %p840 = scmp.eq.s32.totalorder %s94, 1
      %p841 = por %p839, %p840
      %p843 = scmp.ne.s32.totalorder %s828, %s842
      %p844 = scmp.eq.s32.totalorder %s94, 0
      %p845 = por %p843, %p844
      %s847 = sadd.s32 %s846, 1
      %p850 = scmp.eq.s32.totalorder %s88, 1
      %p851 = scmp.ne.s32.totalorder %s846, %s848
      %p852 = scmp.eq.s32.totalorder %s88, 0
      %p853 = por %p851, %p852
      %p854 = scmp.ne.s32.totalorder %s846, %s848
      %p855 = scmp.eq.s32.totalorder %s93, 1
      %p856 = por %p854, %p855
      %p857 = scmp.ne.s32.totalorder %s848, %s849
      %p858 = scmp.eq.s32.totalorder %s93, 0
      %p859 = por %p857, %p858
      %p860 = scmp.ne.s32.totalorder %s848, %s849
      %p861 = scmp.eq.s32.totalorder %s94, 1
      %p862 = por %p860, %p861
      %p864 = scmp.ne.s32.totalorder %s849, %s863
      %p865 = scmp.eq.s32.totalorder %s94, 0
      %p866 = por %p864, %p865
      %s868 = sadd.s32 %s867, 1
      %p871 = scmp.eq.s32.totalorder %s88, 1
      %p872 = scmp.ne.s32.totalorder %s867, %s869
      %p873 = scmp.eq.s32.totalorder %s88, 0
      %p874 = por %p872, %p873
      %p875 = scmp.ne.s32.totalorder %s867, %s869
      %p876 = scmp.eq.s32.totalorder %s93, 1
      %p877 = por %p875, %p876
      %p878 = scmp.ne.s32.totalorder %s869, %s870
      %p879 = scmp.eq.s32.totalorder %s93, 0
      %p880 = por %p878, %p879
      %p881 = scmp.ne.s32.totalorder %s869, %s870
      %p882 = scmp.eq.s32.totalorder %s94, 1
      %p883 = por %p881, %p882
      %p885 = scmp.ne.s32.totalorder %s870, %s884
      %p886 = scmp.eq.s32.totalorder %s94, 0
      %p887 = por %p885, %p886
      %s889 = sadd.s32 %s888, 1
      %p892 = scmp.eq.s32.totalorder %s88, 1
      %p893 = scmp.ne.s32.totalorder %s888, %s890
      %p894 = scmp.eq.s32.totalorder %s88, 0
      %p895 = por %p893, %p894
      %p896 = scmp.ne.s32.totalorder %s888, %s890
      %p897 = scmp.eq.s32.totalorder %s93, 1
      %p898 = por %p896, %p897
      %p899 = scmp.ne.s32.totalorder %s890, %s891
      %p900 = scmp.eq.s32.totalorder %s93, 0
      %p901 = por %p899, %p900
      %p902 = scmp.ne.s32.totalorder %s890, %s891
      %p903 = scmp.eq.s32.totalorder %s94, 1
      %p904 = por %p902, %p903
      %p906 = scmp.ne.s32.totalorder %s891, %s905
      %p907 = scmp.eq.s32.totalorder %s94, 0
      %p908 = por %p906, %p907
      %s910 = sadd.s32 %s909, 1
      %p913 = scmp.eq.s32.totalorder %s88, 1
      %p914 = scmp.ne.s32.totalorder %s909, %s911
      %p915 = scmp.eq.s32.totalorder %s88, 0
      %p916 = por %p914, %p915
      %p917 = scmp.ne.s32.totalorder %s909, %s911
      %p918 = scmp.eq.s32.totalorder %s93, 1
      %p919 = por %p917, %p918
      %p920 = scmp.ne.s32.totalorder %s911, %s912
      %p921 = scmp.eq.s32.totalorder %s93, 0
      %p922 = por %p920, %p921
      %p923 = scmp.ne.s32.totalorder %s911, %s912
      %p924 = scmp.eq.s32.totalorder %s94, 1
      %p925 = por %p923, %p924
      %p927 = scmp.ne.s32.totalorder %s912, %s926
      %p928 = scmp.eq.s32.totalorder %s94, 0
      %p929 = por %p927, %p928
      %s930 = ssub.s32 %s88, %s95
      %p931 = scmp.eq.s32.totalorder %s930, 0
      %s933 = sadd.s32 %s932, 1
      %s934 = scalar_select %p931, %s932, %s933
      %p937 = pneg %p931
      %p938 = scmp.eq.s32.totalorder %s88, 1
      %p939 = por %p937, %p938
      %p940 = scmp.ne.s32.totalorder %s932, %s935
      %p941 = scmp.eq.s32.totalorder %s88, 0
      %p942 = por %p940, %p941
      %p943 = scmp.ne.s32.totalorder %s932, %s935
      %p944 = scmp.eq.s32.totalorder %s93, 1
      %p945 = por %p943, %p944
      %p946 = scmp.ne.s32.totalorder %s935, %s936
      %p947 = scmp.eq.s32.totalorder %s93, 0
      %p948 = por %p946, %p947
      %p949 = scmp.ne.s32.totalorder %s935, %s936
      %p950 = scmp.eq.s32.totalorder %s94, 1
      %p951 = por %p949, %p950
      %p953 = scmp.ne.s32.totalorder %s936, %s952
      %p954 = scmp.eq.s32.totalorder %s94, 0
      %p955 = por %p953, %p954
      %p956 = scmp.le.s32.totalorder 1, %s88
      %p957 = scmp.lt.s32.totalorder %s88, 3
      %p958 = pnand %p956, %p957
      %p959 = pneg %p958
      // Predicated region
      $region9: #{generator_forward.1} parent=5 // pred_check
        _
      $region10: #{generator_forward.1} parent=5 // pred_check_branch
        %961 = sbr.rel (%p958) target = $region12
      $region11: #{generator_forward.1} parent=5 // pred_region
        %s962 = ssub.s32 %s88, 1
        // Predicated region
        $region13: #{generator_forward.1} parent=11 // pred_check
          %p963 = pneg %p187
        $region14: #{generator_forward.1} parent=11 // pred_check_branch
          %965 = sbr.rel (%p963) target = $region16
        $region15: #{generator_forward.1} parent=11 // pred_region
          _
        $region16: #{generator_forward.1} parent=11 // pred_fallthru
          _
        // Predicated region
        $region17: #{generator_forward.1} parent=11 // pred_check
          %p966 = pneg %p208
        $region18: #{generator_forward.1} parent=11 // pred_check_branch
          %968 = sbr.rel (%p966) target = $region20
        $region19: #{generator_forward.1} parent=11 // pred_region
          _
        $region20: #{generator_forward.1} parent=11 // pred_fallthru
          _
        // Predicated region
        $region21: #{generator_forward.1} parent=11 // pred_check
          %p969 = pneg %p229
        $region22: #{generator_forward.1} parent=11 // pred_check_branch
          %971 = sbr.rel (%p969) target = $region24
        $region23: #{generator_forward.1} parent=11 // pred_region
          _
        $region24: #{generator_forward.1} parent=11 // pred_fallthru
          _
        // Predicated region
        $region25: #{generator_forward.1} parent=11 // pred_check
          %p972 = pneg %p250
        $region26: #{generator_forward.1} parent=11 // pred_check_branch
          %974 = sbr.rel (%p972) target = $region28
        $region27: #{generator_forward.1} parent=11 // pred_region
          _
        $region28: #{generator_forward.1} parent=11 // pred_fallthru
          _
        // Predicated region
        $region29: #{generator_forward.1} parent=11 // pred_check
          %p975 = pneg %p271
        $region30: #{generator_forward.1} parent=11 // pred_check_branch
          %977 = sbr.rel (%p975) target = $region32
        $region31: #{generator_forward.1} parent=11 // pred_region
          _
        $region32: #{generator_forward.1} parent=11 // pred_fallthru
          _
        // Predicated region
        $region33: #{generator_forward.1} parent=11 // pred_check
          %p978 = pneg %p292
        $region34: #{generator_forward.1} parent=11 // pred_check_branch
          %980 = sbr.rel (%p978) target = $region36
        $region35: #{generator_forward.1} parent=11 // pred_region
          _
        $region36: #{generator_forward.1} parent=11 // pred_fallthru
          _
        // Predicated region
        $region37: #{generator_forward.1} parent=11 // pred_check
          %p981 = pneg %p313
        $region38: #{generator_forward.1} parent=11 // pred_check_branch
          %983 = sbr.rel (%p981) target = $region40
        $region39: #{generator_forward.1} parent=11 // pred_region
          _
        $region40: #{generator_forward.1} parent=11 // pred_fallthru
          _
        // Predicated region
        $region41: #{generator_forward.1} parent=11 // pred_check
          %p984 = pneg %p334
        $region42: #{generator_forward.1} parent=11 // pred_check_branch
          %986 = sbr.rel (%p984) target = $region44
        $region43: #{generator_forward.1} parent=11 // pred_region
          _
        $region44: #{generator_forward.1} parent=11 // pred_fallthru
          _
        // Predicated region
        $region45: #{generator_forward.1} parent=11 // pred_check
          %p987 = pneg %p355
        $region46: #{generator_forward.1} parent=11 // pred_check_branch
          %989 = sbr.rel (%p987) target = $region48
        $region47: #{generator_forward.1} parent=11 // pred_region
          _
        $region48: #{generator_forward.1} parent=11 // pred_fallthru
          _
        // Predicated region
        $region49: #{generator_forward.1} parent=11 // pred_check
          %p990 = pneg %p376
        $region50: #{generator_forward.1} parent=11 // pred_check_branch
          %992 = sbr.rel (%p990) target = $region52
        $region51: #{generator_forward.1} parent=11 // pred_region
          _
        $region52: #{generator_forward.1} parent=11 // pred_fallthru
          _
        // Predicated region
        $region53: #{generator_forward.1} parent=11 // pred_check
          %p993 = pneg %p397
        $region54: #{generator_forward.1} parent=11 // pred_check_branch
          %995 = sbr.rel (%p993) target = $region56
        $region55: #{generator_forward.1} parent=11 // pred_region
          _
        $region56: #{generator_forward.1} parent=11 // pred_fallthru
          _
        // Predicated region
        $region57: #{generator_forward.1} parent=11 // pred_check
          %p996 = pneg %p418
        $region58: #{generator_forward.1} parent=11 // pred_check_branch
          %998 = sbr.rel (%p996) target = $region60
        $region59: #{generator_forward.1} parent=11 // pred_region
          _
        $region60: #{generator_forward.1} parent=11 // pred_fallthru
          _
        // Predicated region
        $region61: #{generator_forward.1} parent=11 // pred_check
          %p999 = pneg %p439
        $region62: #{generator_forward.1} parent=11 // pred_check_branch
          %1001 = sbr.rel (%p999) target = $region64
        $region63: #{generator_forward.1} parent=11 // pred_region
          _
        $region64: #{generator_forward.1} parent=11 // pred_fallthru
          _
        // Predicated region
        $region65: #{generator_forward.1} parent=11 // pred_check
          %p1002 = pneg %p460
        $region66: #{generator_forward.1} parent=11 // pred_check_branch
          %1004 = sbr.rel (%p1002) target = $region68
        $region67: #{generator_forward.1} parent=11 // pred_region
          _
        $region68: #{generator_forward.1} parent=11 // pred_fallthru
          _
        // Predicated region
        $region69: #{generator_forward.1} parent=11 // pred_check
          %p1005 = pneg %p481
        $region70: #{generator_forward.1} parent=11 // pred_check_branch
          %1007 = sbr.rel (%p1005) target = $region72
        $region71: #{generator_forward.1} parent=11 // pred_region
          _
        $region72: #{generator_forward.1} parent=11 // pred_fallthru
          _
        // Predicated region
        $region73: #{generator_forward.1} parent=11 // pred_check
          %p1008 = pneg %p502
        $region74: #{generator_forward.1} parent=11 // pred_check_branch
          %1010 = sbr.rel (%p1008) target = $region76
        $region75: #{generator_forward.1} parent=11 // pred_region
          _
        $region76: #{generator_forward.1} parent=11 // pred_fallthru
          _
        // Predicated region
        $region77: #{generator_forward.1} parent=11 // pred_check
          %p1011 = pneg %p523
        $region78: #{generator_forward.1} parent=11 // pred_check_branch
          %1013 = sbr.rel (%p1011) target = $region80
        $region79: #{generator_forward.1} parent=11 // pred_region
          _
        $region80: #{generator_forward.1} parent=11 // pred_fallthru
          _
        // Predicated region
        $region81: #{generator_forward.1} parent=11 // pred_check
          %p1014 = pneg %p544
        $region82: #{generator_forward.1} parent=11 // pred_check_branch
          %1016 = sbr.rel (%p1014) target = $region84
        $region83: #{generator_forward.1} parent=11 // pred_region
          _
        $region84: #{generator_forward.1} parent=11 // pred_fallthru
          _
        // Predicated region
        $region85: #{generator_forward.1} parent=11 // pred_check
          %p1017 = pneg %p565
        $region86: #{generator_forward.1} parent=11 // pred_check_branch
          %1019 = sbr.rel (%p1017) target = $region88
        $region87: #{generator_forward.1} parent=11 // pred_region
          _
        $region88: #{generator_forward.1} parent=11 // pred_fallthru
          _
        // Predicated region
        $region89: #{generator_forward.1} parent=11 // pred_check
          %p1020 = pneg %p586
        $region90: #{generator_forward.1} parent=11 // pred_check_branch
          %1022 = sbr.rel (%p1020) target = $region92
        $region91: #{generator_forward.1} parent=11 // pred_region
          _
        $region92: #{generator_forward.1} parent=11 // pred_fallthru
          _
        // Predicated region
        $region93: #{generator_forward.1} parent=11 // pred_check
          %p1023 = pneg %p607
        $region94: #{generator_forward.1} parent=11 // pred_check_branch
          %1025 = sbr.rel (%p1023) target = $region96
        $region95: #{generator_forward.1} parent=11 // pred_region
          _
        $region96: #{generator_forward.1} parent=11 // pred_fallthru
          _
        // Predicated region
        $region97: #{generator_forward.1} parent=11 // pred_check
          %p1026 = pneg %p628
        $region98: #{generator_forward.1} parent=11 // pred_check_branch
          %1028 = sbr.rel (%p1026) target = $region100
        $region99: #{generator_forward.1} parent=11 // pred_region
          _
        $region100: #{generator_forward.1} parent=11 // pred_fallthru
          _
        // Predicated region
        $region101: #{generator_forward.1} parent=11 // pred_check
          %p1029 = pneg %p649
        $region102: #{generator_forward.1} parent=11 // pred_check_branch
          %1031 = sbr.rel (%p1029) target = $region104
        $region103: #{generator_forward.1} parent=11 // pred_region
          _
        $region104: #{generator_forward.1} parent=11 // pred_fallthru
          _
        // Predicated region
        $region105: #{generator_forward.1} parent=11 // pred_check
          %p1032 = pneg %p670
        $region106: #{generator_forward.1} parent=11 // pred_check_branch
          %1034 = sbr.rel (%p1032) target = $region108
        $region107: #{generator_forward.1} parent=11 // pred_region
          _
        $region108: #{generator_forward.1} parent=11 // pred_fallthru
          _
        // Predicated region
        $region109: #{generator_forward.1} parent=11 // pred_check
          %p1035 = pneg %p691
        $region110: #{generator_forward.1} parent=11 // pred_check_branch
          %1037 = sbr.rel (%p1035) target = $region112
        $region111: #{generator_forward.1} parent=11 // pred_region
          _
        $region112: #{generator_forward.1} parent=11 // pred_fallthru
          _
        // Predicated region
        $region113: #{generator_forward.1} parent=11 // pred_check
          %p1038 = pneg %p712
        $region114: #{generator_forward.1} parent=11 // pred_check_branch
          %1040 = sbr.rel (%p1038) target = $region116
        $region115: #{generator_forward.1} parent=11 // pred_region
          _
        $region116: #{generator_forward.1} parent=11 // pred_fallthru
          _
        // Predicated region
        $region117: #{generator_forward.1} parent=11 // pred_check
          %p1041 = pneg %p733
        $region118: #{generator_forward.1} parent=11 // pred_check_branch
          %1043 = sbr.rel (%p1041) target = $region120
        $region119: #{generator_forward.1} parent=11 // pred_region
          _
        $region120: #{generator_forward.1} parent=11 // pred_fallthru
          _
        // Predicated region
        $region121: #{generator_forward.1} parent=11 // pred_check
          %p1044 = pneg %p754
        $region122: #{generator_forward.1} parent=11 // pred_check_branch
          %1046 = sbr.rel (%p1044) target = $region124
        $region123: #{generator_forward.1} parent=11 // pred_region
          _
        $region124: #{generator_forward.1} parent=11 // pred_fallthru
          _
        // Predicated region
        $region125: #{generator_forward.1} parent=11 // pred_check
          %p1047 = pneg %p775
        $region126: #{generator_forward.1} parent=11 // pred_check_branch
          %1049 = sbr.rel (%p1047) target = $region128
        $region127: #{generator_forward.1} parent=11 // pred_region
          _
        $region128: #{generator_forward.1} parent=11 // pred_fallthru
          _
        // Predicated region
        $region129: #{generator_forward.1} parent=11 // pred_check
          %p1050 = pneg %p796
        $region130: #{generator_forward.1} parent=11 // pred_check_branch
          %1052 = sbr.rel (%p1050) target = $region132
        $region131: #{generator_forward.1} parent=11 // pred_region
          _
        $region132: #{generator_forward.1} parent=11 // pred_fallthru
          _
        // Predicated region
        $region133: #{generator_forward.1} parent=11 // pred_check
          %p1053 = pneg %p817
        $region134: #{generator_forward.1} parent=11 // pred_check_branch
          %1055 = sbr.rel (%p1053) target = $region136
        $region135: #{generator_forward.1} parent=11 // pred_region
          _
        $region136: #{generator_forward.1} parent=11 // pred_fallthru
          _
        // Predicated region
        $region137: #{generator_forward.1} parent=11 // pred_check
          %p1056 = pneg %p838
        $region138: #{generator_forward.1} parent=11 // pred_check_branch
          %1058 = sbr.rel (%p1056) target = $region140
        $region139: #{generator_forward.1} parent=11 // pred_region
          _
        $region140: #{generator_forward.1} parent=11 // pred_fallthru
          _
        // Predicated region
        $region141: #{generator_forward.1} parent=11 // pred_check
          %p1059 = pneg %p859
        $region142: #{generator_forward.1} parent=11 // pred_check_branch
          %1061 = sbr.rel (%p1059) target = $region144
        $region143: #{generator_forward.1} parent=11 // pred_region
          _
        $region144: #{generator_forward.1} parent=11 // pred_fallthru
          _
        // Predicated region
        $region145: #{generator_forward.1} parent=11 // pred_check
          %p1062 = pneg %p880
        $region146: #{generator_forward.1} parent=11 // pred_check_branch
          %1064 = sbr.rel (%p1062) target = $region148
        $region147: #{generator_forward.1} parent=11 // pred_region
          _
        $region148: #{generator_forward.1} parent=11 // pred_fallthru
          _
        // Predicated region
        $region149: #{generator_forward.1} parent=11 // pred_check
          %p1065 = pneg %p901
        $region150: #{generator_forward.1} parent=11 // pred_check_branch
          %1067 = sbr.rel (%p1065) target = $region152
        $region151: #{generator_forward.1} parent=11 // pred_region
          _
        $region152: #{generator_forward.1} parent=11 // pred_fallthru
          _
        // Predicated region
        $region153: #{generator_forward.1} parent=11 // pred_check
          %p1068 = pneg %p922
        $region154: #{generator_forward.1} parent=11 // pred_check_branch
          %1070 = sbr.rel (%p1068) target = $region156
        $region155: #{generator_forward.1} parent=11 // pred_region
          _
        $region156: #{generator_forward.1} parent=11 // pred_fallthru
          _
      $region12: #{generator_forward.1} parent=5 // pred_fallthru
        _
      %p1071 = scmp.lt.s32.totalorder %s88, 2
      // Predicated region
      $region157: #{generator_forward.1} parent=5 // pred_check
        %p1072 = pneg %p1071
      $region158: #{generator_forward.1} parent=5 // pred_check_branch
        %1074 = sbr.rel (%p1072) target = $region160
      $region159: #{generator_forward.1} parent=5 // pred_region
        // Predicated region
        $region161: #{generator_forward.1} parent=159 // pred_check
          %p1075 = pneg %p108
        $region162: #{generator_forward.1} parent=159 // pred_check_branch
          %1077 = sbr.rel (%p1075) target = $region164
        $region163: #{generator_forward.1} parent=159 // pred_region
          %p1078 = scmp.lt.s32.totalorder %s88, 1
          %s1079 = scalar_select %p1078, %s88, 1
          %s1080 = smul.addr %s1079, 5
          %s1081 = smul.addr %s1080, 4
          %s1082 = scalar_lea.vmem %s1, %s1081
        $region164: #{generator_forward.1} parent=159 // pred_fallthru
          _
        // Predicated region
        $region165: #{generator_forward.1} parent=159 // pred_check
          %p1083 = pneg %p134
        $region166: #{generator_forward.1} parent=159 // pred_check_branch
          %1085 = sbr.rel (%p1083) target = $region168
        $region167: #{generator_forward.1} parent=159 // pred_region
          %p1086 = scmp.lt.s32.totalorder %s88, 1
          %s1087 = scalar_select %p1086, %s88, 1
          %s1088 = smul.addr %s1087, 8
          %s1089 = scalar_lea.vmem %s3, %s1088
        $region168: #{generator_forward.1} parent=159 // pred_fallthru
          _
        // Predicated region
        $region169: #{generator_forward.1} parent=159 // pred_check
          %p1090 = pneg %p160
        $region170: #{generator_forward.1} parent=159 // pred_check_branch
          %1092 = sbr.rel (%p1090) target = $region172
        $region171: #{generator_forward.1} parent=159 // pred_region
          %p1093 = scmp.lt.s32.totalorder %s88, 1
          %s1094 = scalar_select %p1093, %s88, 1
          %s1095 = scalar_lea.vmem %s5, %s1094
        $region172: #{generator_forward.1} parent=159 // pred_fallthru
          _
      $region160: #{generator_forward.1} parent=5 // pred_fallthru
        _
      %p1096 = scmp.le.s32.totalorder 1, %s88
      %p1097 = scmp.lt.s32.totalorder %s88, 3
      %p1098 = pnand %p1096, %p1097
      %p1099 = pneg %p1098
      // Predicated region
      $region173: #{generator_forward.1} parent=5 // pred_check
        _
      $region174: #{generator_forward.1} parent=5 // pred_check_branch
        %1101 = sbr.rel (%p1098) target = $region176
      $region175: #{generator_forward.1} parent=5 // pred_region
        %s1102 = ssub.s32 %s88, 1
        %p1103 = scmp.lt.s32.totalorder %s93, 1
        %s1104 = scalar_select %p1103, %s93, 1
        %s1105 = smul.addr %s1104, 5
        %s1106 = smul.addr %s1105, 4
        %s1107 = scalar_lea.vmem %s1, %s1106
        %p1108 = pneg %p114
        %p1109 = pneg %p111
        %p1110 = scmp.lt.s32.totalorder %s93, 1
        %s1111 = scalar_select %p1110, %s93, 1
        %s1112 = smul.addr %s1111, 8
        %s1113 = scalar_lea.vmem %s3, %s1112
        %p1114 = pneg %p140
        %p1115 = pneg %p137
        %p1116 = scmp.lt.s32.totalorder %s93, 1
        %s1117 = scalar_select %p1116, %s93, 1
        %s1118 = scalar_lea.vmem %s5, %s1117
        %p1119 = pneg %p166
        %p1120 = pneg %p163
        %p1121 = pneg %p187
        %p1122 = pneg %p184
        %p1123 = pneg %p208
        %p1124 = pneg %p205
        %p1125 = pneg %p229
        %p1126 = pneg %p226
        %p1127 = pneg %p250
        %p1128 = pneg %p247
        %p1129 = pneg %p271
        %p1130 = pneg %p268
        %p1131 = pneg %p292
        %p1132 = pneg %p289
        %p1133 = pneg %p313
        %p1134 = pneg %p310
        %p1135 = pneg %p334
        %p1136 = pneg %p331
        %p1137 = pneg %p355
        %p1138 = pneg %p352
        %p1139 = pneg %p376
        %p1140 = pneg %p373
        %p1141 = pneg %p397
        %p1142 = pneg %p394
        %p1143 = pneg %p418
        %p1144 = pneg %p415
        %p1145 = pneg %p439
        %p1146 = pneg %p436
        %p1147 = pneg %p460
        %p1148 = pneg %p457
        %p1149 = pneg %p481
        %p1150 = pneg %p478
        %p1151 = pneg %p502
        %p1152 = pneg %p499
        %p1153 = pneg %p523
        %p1154 = pneg %p520
        %p1155 = pneg %p544
        %p1156 = pneg %p541
        %p1157 = pneg %p565
        %p1158 = pneg %p562
        %p1159 = pneg %p586
        %p1160 = pneg %p583
        %p1161 = pneg %p607
        %p1162 = pneg %p604
        %p1163 = pneg %p628
        %p1164 = pneg %p625
        %p1165 = pneg %p649
        %p1166 = pneg %p646
        %p1167 = pneg %p670
        %p1168 = pneg %p667
        %p1169 = pneg %p691
        %p1170 = pneg %p688
        %p1171 = pneg %p712
        %p1172 = pneg %p709
        %p1173 = pneg %p733
        %p1174 = pneg %p730
        %p1175 = pneg %p754
        %p1176 = pneg %p751
        %p1177 = pneg %p775
        %p1178 = pneg %p772
        %p1179 = pneg %p796
        %p1180 = pneg %p793
        %p1181 = pneg %p817
        %p1182 = pneg %p814
        %p1183 = pneg %p838
        %p1184 = pneg %p835
        %p1185 = pneg %p859
        %p1186 = pneg %p856
        %p1187 = pneg %p880
        %p1188 = pneg %p877
        %p1189 = pneg %p901
        %p1190 = pneg %p898
        %p1191 = pneg %p922
        %p1192 = pneg %p919
        %p1193 = pneg %p948
        %p1194 = pneg %p945
        %s1195 = sand.u32 %s935, 1
        %s1196 = scalar_lea.sflag [#allocation3], %s1195
        %s1197 = sand.u32 %s935, 1
        %s1198 = smul.addr %s1197, 8
        %s1199 = scalar_lea.vmem [#allocation2], %s1198
        %p1200 = scmp.lt.s32.totalorder %s93, 1
        %s1201 = scalar_select %p1200, %s93, 1
        %s1202 = smul.addr %s1201, 5
        %s1203 = smul.addr %s1202, 4
        %s1204 = scalar_lea.vmem %s1, %s1203
        %p1205 = scmp.lt.s32.totalorder %s93, 1
        %s1206 = scalar_select %p1205, %s93, 1
        %s1207 = smul.addr %s1206, 8
        %s1208 = scalar_lea.vmem %s3, %s1207
        %p1209 = scmp.lt.s32.totalorder %s93, 1
        %s1210 = scalar_select %p1209, %s93, 1
        %s1211 = scalar_lea.vmem %s5, %s1210
        %v1213 = vld [vmem:[%s1204] sm:$0xff]
        %v1214 = vld [vmem:[%s1204 + $0x8] sm:$0xff]
        %v1215 = vld [vmem:[%s1204 + $0x10] sm:$0xf]
        %v1216 = vld [vmem:[%s7] sm:$0xf]
        %v1217 = vld [vmem:[%s7 + $0x4] sm:$0xf]
        %v1218 = vld [vmem:[%s7 + $0x8] sm:$0xf]
        %v1219 = vld [vmem:[%s7 + $0xc] sm:$0xf]
        %v1220 = vld [vmem:[%s7 + $0x10] sm:$0xf]
        %v1221 = vld [vmem:[%s7 + $0x14] sm:$0xf]
        %v1222 = vld [vmem:[%s7 + $0x18] sm:$0xf]
        %v1223 = vld [vmem:[%s7 + $0x1c] sm:$0xf]
        %v1224 = vld [vmem:[%s7 + $0x20] sm:$0xf]
        %v1225 = vld [vmem:[%s7 + $0x24] sm:$0xf]
        %v1226 = vld [vmem:[%s7 + $0x28] sm:$0xf]
        %v1227 = vld [vmem:[%s7 + $0x2c] sm:$0xf]
        %v1228 = vld [vmem:[%s7 + $0x30] sm:$0xf]
        %v1229 = vld [vmem:[%s7 + $0x34] sm:$0xf]
        %v1230 = vld [vmem:[%s7 + $0x38] sm:$0xf]
        %v1231 = vld [vmem:[%s7 + $0x3c] sm:$0xf]
        %v1232 = vld [vmem:[%s7 + $0x40] sm:$0xf]
        %v1233 = vld [vmem:[%s7 + $0x44] sm:$0xf]
        %v1234 = vld [vmem:[%s7 + $0x48] sm:$0xf]
        %v1235 = vld [vmem:[%s7 + $0x4c] sm:$0xf]
        %v1236 = vld [vmem:[%s7 + $0x50] sm:$0xf]
        %v1237 = vld [vmem:[%s7 + $0x54] sm:$0xf]
        %v1238 = vld [vmem:[%s7 + $0x58] sm:$0xf]
        %v1239 = vld [vmem:[%s7 + $0x5c] sm:$0xf]
        %v1240 = vld [vmem:[%s7 + $0x60] sm:$0xf]
        %v1241 = vld [vmem:[%s7 + $0x64] sm:$0xf]
        %v1242 = vld [vmem:[%s7 + $0x68] sm:$0xf]
        %v1243 = vld [vmem:[%s7 + $0x6c] sm:$0xf]
        %v1244 = vld [vmem:[%s7 + $0x70] sm:$0xf]
        %v1245 = vld [vmem:[%s7 + $0x74] sm:$0xf]
        %v1246 = vld [vmem:[%s7 + $0x78] sm:$0xf]
        %v1247 = vld [vmem:[%s7 + $0x7c] sm:$0xf]
        %v1248 = vld [vmem:[%s7 + $0x80] sm:$0xf]
        %v1249 = vld [vmem:[%s7 + $0x84] sm:$0xf]
        %v1250 = vld [vmem:[%s7 + $0x88] sm:$0xf]
        %v1251 = vld [vmem:[%s7 + $0x8c] sm:$0xf]
        %v1252 = vld [vmem:[%s7 + $0x90] sm:$0xf]
        %v1253 = vld [vmem:[%s7 + $0x94] sm:$0xf]
        %v1254 = vld [vmem:[%s7 + $0x98] sm:$0xf]
        %v1255 = vld [vmem:[%s7 + $0x9c] sm:$0xf]
        %v1256 = vld [vmem:[%s7 + $0xa0] sm:$0xf]
        %v1257 = vld [vmem:[%s7 + $0xa4] sm:$0xf]
        %v1258 = vld [vmem:[%s7 + $0xa8] sm:$0xf]
        %v1259 = vld [vmem:[%s7 + $0xac] sm:$0xf]
        %v1260 = vld [vmem:[%s7 + $0xb0] sm:$0xf]
        %v1261 = vld [vmem:[%s7 + $0xb4] sm:$0xf]
        %v1262 = vld [vmem:[%s7 + $0xb8] sm:$0xf]
        %v1263 = vld [vmem:[%s7 + $0xbc] sm:$0xf]
        %v1264 = vld [vmem:[%s7 + $0xc0] sm:$0xf]
        %v1265 = vld [vmem:[%s7 + $0xc4] sm:$0xf]
        %v1266 = vld [vmem:[%s7 + $0xc8] sm:$0xf]
        %v1267 = vld [vmem:[%s7 + $0xcc] sm:$0xf]
        %v1268 = vld [vmem:[%s7 + $0xd0] sm:$0xf]
        %v1269 = vld [vmem:[%s7 + $0xd4] sm:$0xf]
        %v1270 = vld [vmem:[%s7 + $0xd8] sm:$0xf]
        %v1271 = vld [vmem:[%s7 + $0xdc] sm:$0xf]
        %v1272 = vld [vmem:[%s7 + $0xe0] sm:$0xf]
        %v1273 = vld [vmem:[%s7 + $0xe4] sm:$0xf]
        %v1274 = vld [vmem:[%s7 + $0xe8] sm:$0xf]
        %v1275 = vld [vmem:[%s7 + $0xec] sm:$0xf]
        %v1276 = vld [vmem:[%s7 + $0xf0] sm:$0xf]
        %v1277 = vld [vmem:[%s7 + $0xf4] sm:$0xf]
        %v1278 = vld [vmem:[%s7 + $0xf8] sm:$0xf]
        %v1279 = vld [vmem:[%s7 + $0xfc] sm:$0xf]
        %v1280 = vld [vmem:[%s7 + $0x100] sm:$0xf]
        %v1281 = vld [vmem:[%s7 + $0x104] sm:$0xf]
        %v1282 = vld [vmem:[%s7 + $0x108] sm:$0xf]
        %v1283 = vld [vmem:[%s7 + $0x10c] sm:$0xf]
        %v1284 = vld [vmem:[%s7 + $0x110] sm:$0xf]
        %v1285 = vld [vmem:[%s7 + $0x114] sm:$0xf]
        %v1286 = vld [vmem:[%s7 + $0x118] sm:$0xf]
        %v1287 = vld [vmem:[%s7 + $0x11c] sm:$0xf]
        %v1288 = vld [vmem:[%s7 + $0x120] sm:$0xf]
        %v1289 = vld [vmem:[%s7 + $0x124] sm:$0xf]
        %v1290 = vld [vmem:[%s7 + $0x128] sm:$0xf]
        %v1293 = vcombine.high %v1213, %v1213
        %v1294 = vcombine.high %v1214, %v1214
        %v1297 = vpack.c.bf16 %v1213, %v1213
        %v1298 = vpack.c.bf16 %v1293, %v1293
        %v1299 = vpack.c.bf16 %v1214, %v1214
        %v1300 = vpack.c.bf16 %v1294, %v1294
        %v1301 = vpack.c.bf16 %v1215, %v1215
        %v1302 = vld [vmem:[%s9] sm:$0x1]
        %v1304 = vlaneseq
        %v1305 = vshrl.u32 %v1304, 7
        %v1306 = vsub.s32 0, %v1305
        %v1307 = vrot.slane %v1302, %v1306
        %v1384 = vunpack.c.l.b16 %v1216
        %v1385 = vunpack.c.l.b16 %v1217
        %v1386 = vunpack.c.l.b16 %v1218
        %v1387 = vunpack.c.l.b16 %v1219
        %v1388 = vunpack.c.l.b16 %v1220
        %v1389 = vunpack.c.l.b16 %v1221
        %v1390 = vunpack.c.l.b16 %v1222
        %v1391 = vunpack.c.l.b16 %v1223
        %v1392 = vunpack.c.l.b16 %v1224
        %v1393 = vunpack.c.l.b16 %v1225
        %v1394 = vunpack.c.l.b16 %v1226
        %v1395 = vunpack.c.l.b16 %v1227
        %v1396 = vunpack.c.l.b16 %v1228
        %v1397 = vunpack.c.l.b16 %v1229
        %v1398 = vunpack.c.l.b16 %v1230
        %v1399 = vunpack.c.l.b16 %v1231
        %v1400 = vunpack.c.l.b16 %v1232
        %v1401 = vunpack.c.l.b16 %v1233
        %v1402 = vunpack.c.l.b16 %v1234
        %v1403 = vunpack.c.l.b16 %v1235
        %v1404 = vunpack.c.l.b16 %v1236
        %v1405 = vunpack.c.l.b16 %v1237
        %v1406 = vunpack.c.l.b16 %v1238
        %v1407 = vunpack.c.l.b16 %v1239
        %v1408 = vunpack.c.l.b16 %v1240
        %v1409 = vunpack.c.l.b16 %v1241
        %v1410 = vunpack.c.l.b16 %v1242
        %v1411 = vunpack.c.l.b16 %v1243
        %v1412 = vunpack.c.l.b16 %v1244
        %v1413 = vunpack.c.l.b16 %v1245
        %v1414 = vunpack.c.l.b16 %v1246
        %v1415 = vunpack.c.l.b16 %v1247
        %v1416 = vunpack.c.l.b16 %v1248
        %v1417 = vunpack.c.l.b16 %v1249
        %v1418 = vunpack.c.l.b16 %v1250
        %v1419 = vunpack.c.l.b16 %v1251
        %v1420 = vunpack.c.l.b16 %v1252
        %v1421 = vunpack.c.l.b16 %v1253
        %v1422 = vunpack.c.l.b16 %v1254
        %v1423 = vunpack.c.l.b16 %v1255
        %v1424 = vunpack.c.l.b16 %v1256
        %v1425 = vunpack.c.l.b16 %v1257
        %v1426 = vunpack.c.l.b16 %v1258
        %v1427 = vunpack.c.l.b16 %v1259
        %v1428 = vunpack.c.l.b16 %v1260
        %v1429 = vunpack.c.l.b16 %v1261
        %v1430 = vunpack.c.l.b16 %v1262
        %v1431 = vunpack.c.l.b16 %v1263
        %v1432 = vunpack.c.l.b16 %v1264
        %v1433 = vunpack.c.l.b16 %v1265
        %v1434 = vunpack.c.l.b16 %v1266
        %v1435 = vunpack.c.l.b16 %v1267
        %v1436 = vunpack.c.l.b16 %v1268
        %v1437 = vunpack.c.l.b16 %v1269
        %v1438 = vunpack.c.l.b16 %v1270
        %v1439 = vunpack.c.l.b16 %v1271
        %v1440 = vunpack.c.l.b16 %v1272
        %v1441 = vunpack.c.l.b16 %v1273
        %v1442 = vunpack.c.l.b16 %v1274
        %v1443 = vunpack.c.l.b16 %v1275
        %v1444 = vunpack.c.l.b16 %v1276
        %v1445 = vunpack.c.l.b16 %v1277
        %v1446 = vunpack.c.l.b16 %v1278
        %v1447 = vunpack.c.l.b16 %v1279
        %v1448 = vunpack.c.l.b16 %v1280
        %v1449 = vunpack.c.l.b16 %v1281
        %v1450 = vunpack.c.l.b16 %v1282
        %v1451 = vunpack.c.l.b16 %v1283
        %v1452 = vunpack.c.l.b16 %v1284
        %v1453 = vunpack.c.l.b16 %v1285
        %v1454 = vunpack.c.l.b16 %v1286
        %v1455 = vunpack.c.l.b16 %v1287
        %v1456 = vunpack.c.l.b16 %v1288
        %v1457 = vunpack.c.l.b16 %v1289
        %v1458 = vunpack.c.l.b16 %v1290
        %v1459 = vpack.c.b16 %v1385, %v1384
        %v1460 = vpack.c.b16 %v1387, %v1386
        %v1461 = vpack.c.b16 %v1389, %v1388
        %v1462 = vpack.c.b16 %v1391, %v1390
        %v1463 = vpack.c.b16 %v1393, %v1392
        %v1464 = vpack.c.b16 %v1395, %v1394
        %v1465 = vpack.c.b16 %v1397, %v1396
        %v1466 = vpack.c.b16 %v1399, %v1398
        %v1467 = vpack.c.b16 %v1401, %v1400
        %v1468 = vpack.c.b16 %v1403, %v1402
        %v1469 = vpack.c.b16 %v1405, %v1404
        %v1470 = vpack.c.b16 %v1407, %v1406
        %v1471 = vpack.c.b16 %v1409, %v1408
        %v1472 = vpack.c.b16 %v1411, %v1410
        %v1473 = vpack.c.b16 %v1413, %v1412
        %v1474 = vpack.c.b16 %v1415, %v1414
        %v1475 = vpack.c.b16 %v1417, %v1416
        %v1476 = vpack.c.b16 %v1419, %v1418
        %v1477 = vpack.c.b16 %v1421, %v1420
        %v1478 = vpack.c.b16 %v1423, %v1422
        %v1479 = vpack.c.b16 %v1425, %v1424
        %v1480 = vpack.c.b16 %v1427, %v1426
        %v1481 = vpack.c.b16 %v1429, %v1428
        %v1482 = vpack.c.b16 %v1431, %v1430
        %v1483 = vpack.c.b16 %v1433, %v1432
        %v1484 = vpack.c.b16 %v1435, %v1434
        %v1485 = vpack.c.b16 %v1437, %v1436
        %v1486 = vpack.c.b16 %v1439, %v1438
        %v1487 = vpack.c.b16 %v1441, %v1440
        %v1488 = vpack.c.b16 %v1443, %v1442
        %v1489 = vpack.c.b16 %v1445, %v1444
        %v1490 = vpack.c.b16 %v1447, %v1446
        %v1491 = vpack.c.b16 %v1449, %v1448
        %v1492 = vpack.c.b16 %v1451, %v1450
        %v1493 = vpack.c.b16 %v1453, %v1452
        %v1494 = vpack.c.b16 %v1455, %v1454
        %v1495 = vpack.c.b16 %v1457, %v1456
        %v1496 = vpack.c.b16 %v1458, %v1458
        %vm1534 = vcmask 719872
        %v1536 = vsel %vm1534, %v1301, 0
        %vm1538 = vcmask 1043456
        %v1540 = vsel %vm1538, %v1496, 0
        %1542 = vmatprep.subr.bf16.mxu0 0
        %1543 = vmatpush1.bf16.msra.mxu0 %v1459
        %1544 = vmatprep.subr.bf16.mxu0 0
        %1545 = vmatpush1.bf16.msra.mxu0 %v1460
        %1546 = vmatprep.subr.bf16.mxu0 0
        %1547 = vmatpush1.bf16.msra.mxu0 %v1461
        %1548 = vmatprep.subr.bf16.mxu0 0
        %1549 = vmatpush1.bf16.msra.mxu0 %v1462
        %1550 = vmatprep.subr.bf16.mxu0 0
        %1551 = vmatpush1.bf16.msra.mxu0 %v1463
        %1552 = vmatprep.subr.bf16.mxu0 0
        %1553 = vmatpush1.bf16.msra.mxu0 %v1464
        %1554 = vmatprep.subr.bf16.mxu0 0
        %1555 = vmatpush1.bf16.msra.mxu0 %v1465
        %1556 = vmatprep.subr.bf16.mxu0 0
        %1557 = vmatpush1.bf16.msra.mxu0 %v1466
        %1558 = vmatprep.subr.bf16.mxu0 0
        %1559 = vmatpush1.bf16.msra.mxu0 %v1467
        %1560 = vmatprep.subr.bf16.mxu0 0
        %1561 = vmatpush1.bf16.msra.mxu0 %v1468
        %1562 = vmatprep.subr.bf16.mxu0 0
        %1563 = vmatpush1.bf16.msra.mxu0 %v1469
        %1564 = vmatprep.subr.bf16.mxu0 0
        %1565 = vmatpush1.bf16.msra.mxu0 %v1470
        %1566 = vmatprep.subr.bf16.mxu0 0
        %1567 = vmatpush1.bf16.msra.mxu0 %v1471
        %1568 = vmatprep.subr.bf16.mxu0 0
        %1569 = vmatpush1.bf16.msra.mxu0 %v1472
        %1570 = vmatprep.subr.bf16.mxu0 0
        %1571 = vmatpush1.bf16.msra.mxu0 %v1473
        %1572 = vmatprep.subr.bf16.mxu0 0
        %1573 = vmatpush1.bf16.msra.mxu0 %v1474
        %1574 = vmatprep.mubr.bf16.mxu0 %v1298
        %1575 = vmatmul.mubr.bf16.gmra.mrb[0].mxu0 %v1297
        %v1576 = vpop.f32.mrb[0].mxu0
        %v1577 = vadd.f32 %v1307, %v1576
        %v1578 = vpop.f32.mrb[0].mxu0
        %v1579 = vpop.f32.mrb[0].mxu0
        %v1580 = vpop.f32.mrb[0].mxu0
        %1581 = vdwg.mxu0
        %1582 = vmatprep.subr.bf16.mxu0 0
        %1583 = vmatpush1.bf16.msra.mxu0 %v1475
        %1584 = vmatprep.subr.bf16.mxu0 0
        %1585 = vmatpush1.bf16.msra.mxu0 %v1476
        %1586 = vmatprep.subr.bf16.mxu0 0
        %1587 = vmatpush1.bf16.msra.mxu0 %v1477
        %1588 = vmatprep.subr.bf16.mxu0 0
        %1589 = vmatpush1.bf16.msra.mxu0 %v1478
        %1590 = vmatprep.subr.bf16.mxu0 0
        %1591 = vmatpush1.bf16.msra.mxu0 %v1479
        %1592 = vmatprep.subr.bf16.mxu0 0
        %1593 = vmatpush1.bf16.msra.mxu0 %v1480
        %1594 = vmatprep.subr.bf16.mxu0 0
        %1595 = vmatpush1.bf16.msra.mxu0 %v1481
        %1596 = vmatprep.subr.bf16.mxu0 0
        %1597 = vmatpush1.bf16.msra.mxu0 %v1482
        %1598 = vmatprep.subr.bf16.mxu0 0
        %1599 = vmatpush1.bf16.msra.mxu0 %v1483
        %1600 = vmatprep.subr.bf16.mxu0 0
        %1601 = vmatpush1.bf16.msra.mxu0 %v1484
        %1602 = vmatprep.subr.bf16.mxu0 0
        %1603 = vmatpush1.bf16.msra.mxu0 %v1485
        %1604 = vmatprep.subr.bf16.mxu0 0
        %1605 = vmatpush1.bf16.msra.mxu0 %v1486
        %1606 = vmatprep.subr.bf16.mxu0 0
        %1607 = vmatpush1.bf16.msra.mxu0 %v1487
        %1608 = vmatprep.subr.bf16.mxu0 0
        %1609 = vmatpush1.bf16.msra.mxu0 %v1488
        %1610 = vmatprep.subr.bf16.mxu0 0
        %1611 = vmatpush1.bf16.msra.mxu0 %v1489
        %1612 = vmatprep.subr.bf16.mxu0 0
        %1613 = vmatpush1.bf16.msra.mxu0 %v1490
        %1614 = vmatprep.mubr.bf16.mxu0 %v1300
        %1615 = vmatmul.mubr.bf16.gmra.mrb[0].mxu0 %v1299
        %v1616 = vpop.f32.mrb[0].mxu0
        %v1617 = vadd.f32 %v1577, %v1616
        %v1618 = vpop.f32.mrb[0].mxu0
        %v1619 = vpop.f32.mrb[0].mxu0
        %v1620 = vpop.f32.mrb[0].mxu0
        %1621 = vdwg.mxu0
        %1622 = vmatprep.subr.bf16.mxu0 0
        %1623 = vmatpush1.bf16.msra.mxu0 %v1491
        %1624 = vmatprep.subr.bf16.mxu0 0
        %1625 = vmatpush1.bf16.msra.mxu0 %v1492
        %1626 = vmatprep.subr.bf16.mxu0 0
        %1627 = vmatpush1.bf16.msra.mxu0 %v1493
        %1628 = vmatprep.subr.bf16.mxu0 0
        %1629 = vmatpush1.bf16.msra.mxu0 %v1494
        %1630 = vmatprep.subr.bf16.mxu0 0
        %1631 = vmatpush1.bf16.msra.mxu0 %v1495
        %1632 = vmatprep.subr.bf16.mxu0 0
        %1633 = vmatpush1.bf16.msra.mxu0 %v1540
        %1634 = vmatprep.subr.bf16.mxu0 0
        %1635 = vmatpush1.bf16.msra.mxu0 0
        %1636 = vmatprep.subr.bf16.mxu0 0
        %1637 = vmatpush1.bf16.msra.mxu0 0
        %1638 = vmatprep.subr.bf16.mxu0 0
        %1639 = vmatpush1.bf16.msra.mxu0 0
        %1640 = vmatprep.subr.bf16.mxu0 0
        %1641 = vmatpush1.bf16.msra.mxu0 0
        %1642 = vmatprep.subr.bf16.mxu0 0
        %1643 = vmatpush1.bf16.msra.mxu0 0
        %1644 = vmatprep.subr.bf16.mxu0 0
        %1645 = vmatpush1.bf16.msra.mxu0 0
        %1646 = vmatprep.subr.bf16.mxu0 0
        %1647 = vmatpush1.bf16.msra.mxu0 0
        %1648 = vmatprep.subr.bf16.mxu0 0
        %1649 = vmatpush1.bf16.msra.mxu0 0
        %1650 = vmatprep.subr.bf16.mxu0 0
        %1651 = vmatpush1.bf16.msra.mxu0 0
        %1652 = vmatprep.subr.bf16.mxu0 0
        %1653 = vmatpush1.bf16.msra.mxu0 0
        %1654 = vmatprep.mubr.bf16.mxu0 0
        %1655 = vmatmul.mubr.bf16.gmra.mrb[0].mxu0 %v1536
        %v1656 = vpop.f32.mrb[0].mxu0
        %v1657 = vadd.f32 %v1617, %v1656
        %v1658 = vpop.f32.mrb[0].mxu0
        %v1659 = vpop.f32.mrb[0].mxu0
        %v1660 = vpop.f32.mrb[0].mxu0
        %1661 = vdwg.mxu0
        %v1662 = vld [vmem:[%s11] sm:$0xf]
        %v1663 = vadd.f32 %v1657, %v1662
        %v1664 = vld [vmem:[%s13] sm:$0x1]
        %v1665 = vld [vmem:[%s15] sm:$0x1]
        %vm1666 = vcmask 519168
        %v1667 = vsel %vm1666, %v1663, 0.0
        %1668 = vadd.xlane.f32.xlu0 %v1667
        %v1669 = vpop.xlane.xlu0 %1668
        %v1670 = vrcp.pop 64.0
        %v1671 = vmul.f32 %v1669, %v1670
        %v1672 = vsub.f32 %v1663, %v1671
        %v1673 = vmul.f32 %v1672, %v1672
        %v1674 = vsel %vm1666, %v1673, 0.0
        %1675 = vadd.xlane.f32.xlu0 %v1674
        %v1676 = vpop.xlane.xlu0 %1675
        %v1677 = vmul.f32 %v1676, %v1670
        %v1678 = vadd.f32 %v1677, 1e-06
        %v1679 = vrsqrt.pop %v1678
        %v1680 = vmul.f32 %v1672, %v1679
        %v1682 = vlaneseq
        %v1683 = vshrl.u32 %v1682, 7
        %v1684 = vsub.s32 0, %v1683
        %v1685 = vrot.slane %v1664, %v1684
        %v1687 = vmul.f32 %v1680, %v1685
        %v1689 = vlaneseq
        %v1690 = vshrl.u32 %v1689, 7
        %v1691 = vsub.s32 0, %v1690
        %v1692 = vrot.slane %v1665, %v1691
        %v1694 = vadd.f32 %v1687, %v1692
        %v1695 = vld [vmem:[%s17] sm:$0xf]
        %v1696 = vld [vmem:[%s17 + $0x4] sm:$0xf]
        %v1697 = vld [vmem:[%s17 + $0x8] sm:$0xf]
        %v1698 = vld [vmem:[%s17 + $0xc] sm:$0xf]
        %v1699 = vld [vmem:[%s17 + $0x10] sm:$0xf]
        %v1700 = vld [vmem:[%s17 + $0x14] sm:$0xf]
        %v1701 = vld [vmem:[%s17 + $0x18] sm:$0xf]
        %v1702 = vld [vmem:[%s17 + $0x1c] sm:$0xf]
        %v1703 = vpack.c.bf16 %v1694, %v1694
        %v1704 = vld [vmem:[%s19] sm:$0x1]
        %v1706 = vlaneseq
        %v1707 = vshrl.u32 %v1706, 7
        %v1708 = vsub.s32 0, %v1707
        %v1709 = vrot.slane %v1704, %v1708
        %v1719 = vunpack.c.l.b16 %v1695
        %v1720 = vunpack.c.l.b16 %v1696
        %v1721 = vunpack.c.l.b16 %v1697
        %v1722 = vunpack.c.l.b16 %v1698
        %v1723 = vunpack.c.l.b16 %v1699
        %v1724 = vunpack.c.l.b16 %v1700
        %v1725 = vunpack.c.l.b16 %v1701
        %v1726 = vunpack.c.l.b16 %v1702
        %v1727 = vpack.c.b16 %v1720, %v1719
        %v1728 = vpack.c.b16 %v1722, %v1721
        %v1729 = vpack.c.b16 %v1724, %v1723
        %v1730 = vpack.c.b16 %v1726, %v1725
        %vm1735 = vcmask 523264
        %v1737 = vsel %vm1735, %v1703, 0
        %1739 = vmatprep.subr.bf16.mxu0 0
        %1740 = vmatpush1.bf16.msra.mxu0 %v1727
        %1741 = vmatprep.subr.bf16.mxu0 0
        %1742 = vmatpush1.bf16.msra.mxu0 %v1728
        %1743 = vmatprep.subr.bf16.mxu0 0
        %1744 = vmatpush1.bf16.msra.mxu0 %v1729
        %1745 = vmatprep.subr.bf16.mxu0 0
        %1746 = vmatpush1.bf16.msra.mxu0 %v1730
        %1747 = vmatprep.subr.bf16.mxu0 0
        %1748 = vmatpush1.bf16.msra.mxu0 0
        %1749 = vmatprep.subr.bf16.mxu0 0
        %1750 = vmatpush1.bf16.msra.mxu0 0
        %1751 = vmatprep.subr.bf16.mxu0 0
        %1752 = vmatpush1.bf16.msra.mxu0 0
        %1753 = vmatprep.subr.bf16.mxu0 0
        %1754 = vmatpush1.bf16.msra.mxu0 0
        %1755 = vmatprep.subr.bf16.mxu0 0
        %1756 = vmatpush1.bf16.msra.mxu0 0
        %1757 = vmatprep.subr.bf16.mxu0 0
        %1758 = vmatpush1.bf16.msra.mxu0 0
        %1759 = vmatprep.subr.bf16.mxu0 0
        %1760 = vmatpush1.bf16.msra.mxu0 0
        %1761 = vmatprep.subr.bf16.mxu0 0
        %1762 = vmatpush1.bf16.msra.mxu0 0
        %1763 = vmatprep.subr.bf16.mxu0 0
        %1764 = vmatpush1.bf16.msra.mxu0 0
        %1765 = vmatprep.subr.bf16.mxu0 0
        %1766 = vmatpush1.bf16.msra.mxu0 0
        %1767 = vmatprep.subr.bf16.mxu0 0
        %1768 = vmatpush1.bf16.msra.mxu0 0
        %1769 = vmatprep.subr.bf16.mxu0 0
        %1770 = vmatpush1.bf16.msra.mxu0 0
        %1771 = vmatprep.mubr.bf16.mxu0 0
        %1772 = vmatmul.mubr.bf16.gmra.mrb[0].mxu0 %v1737
        %v1773 = vpop.f32.mrb[0].mxu0
        %v1774 = vadd.f32 %v1709, %v1773
        %v1775 = vpop.f32.mrb[0].mxu0
        %v1776 = vpop.f32.mrb[0].mxu0
        %v1777 = vpop.f32.mrb[0].mxu0
        %1778 = vdwg.mxu0
        %s1779 = scalar_lea.vmem %s17, 32
        %v1780 = vld [vmem:[%s1779] sm:$0xf]
        %v1781 = vld [vmem:[%s1779 + $0x4] sm:$0xf]
        %v1782 = vld [vmem:[%s1779 + $0x8] sm:$0xf]
        %v1783 = vld [vmem:[%s1779 + $0xc] sm:$0xf]
        %v1784 = vld [vmem:[%s1779 + $0x10] sm:$0xf]
        %v1785 = vld [vmem:[%s1779 + $0x14] sm:$0xf]
        %v1786 = vld [vmem:[%s1779 + $0x18] sm:$0xf]
        %v1787 = vld [vmem:[%s1779 + $0x1c] sm:$0xf]
        %s1788 = scalar_lea.vmem %s19, 1
        %v1789 = vld [vmem:[%s1788] sm:$0x1]
        %v1791 = vlaneseq
        %v1792 = vshrl.u32 %v1791, 7
        %v1793 = vsub.s32 0, %v1792
        %v1794 = vrot.slane %v1789, %v1793
        %v1804 = vunpack.c.l.b16 %v1780
        %v1805 = vunpack.c.l.b16 %v1781
        %v1806 = vunpack.c.l.b16 %v1782
        %v1807 = vunpack.c.l.b16 %v1783
        %v1808 = vunpack.c.l.b16 %v1784
        %v1809 = vunpack.c.l.b16 %v1785
        %v1810 = vunpack.c.l.b16 %v1786
        %v1811 = vunpack.c.l.b16 %v1787
        %v1812 = vpack.c.b16 %v1805, %v1804
        %v1813 = vpack.c.b16 %v1807, %v1806
        %v1814 = vpack.c.b16 %v1809, %v1808
        %v1815 = vpack.c.b16 %v1811, %v1810
        %1820 = vmatprep.subr.bf16.mxu0 0
        %1821 = vmatpush1.bf16.msra.mxu0 %v1812
        %1822 = vmatprep.subr.bf16.mxu0 0
        %1823 = vmatpush1.bf16.msra.mxu0 %v1813
        %1824 = vmatprep.subr.bf16.mxu0 0
        %1825 = vmatpush1.bf16.msra.mxu0 %v1814
        %1826 = vmatprep.subr.bf16.mxu0 0
        %1827 = vmatpush1.bf16.msra.mxu0 %v1815
        %1828 = vmatprep.subr.bf16.mxu0 0
        %1829 = vmatpush1.bf16.msra.mxu0 0
        %1830 = vmatprep.subr.bf16.mxu0 0
        %1831 = vmatpush1.bf16.msra.mxu0 0
        %1832 = vmatprep.subr.bf16.mxu0 0
        %1833 = vmatpush1.bf16.msra.mxu0 0
        %1834 = vmatprep.subr.bf16.mxu0 0
        %1835 = vmatpush1.bf16.msra.mxu0 0
        %1836 = vmatprep.subr.bf16.mxu0 0
        %1837 = vmatpush1.bf16.msra.mxu0 0
        %1838 = vmatprep.subr.bf16.mxu0 0
        %1839 = vmatpush1.bf16.msra.mxu0 0
        %1840 = vmatprep.subr.bf16.mxu0 0
        %1841 = vmatpush1.bf16.msra.mxu0 0
        %1842 = vmatprep.subr.bf16.mxu0 0
        %1843 = vmatpush1.bf16.msra.mxu0 0
        %1844 = vmatprep.subr.bf16.mxu0 0
        %1845 = vmatpush1.bf16.msra.mxu0 0
        %1846 = vmatprep.subr.bf16.mxu0 0
        %1847 = vmatpush1.bf16.msra.mxu0 0
        %1848 = vmatprep.subr.bf16.mxu0 0
        %1849 = vmatpush1.bf16.msra.mxu0 0
        %1850 = vmatprep.subr.bf16.mxu0 0
        %1851 = vmatpush1.bf16.msra.mxu0 0
        %1852 = vmatprep.mubr.bf16.mxu0 0
        %1853 = vmatmul.mubr.bf16.gmra.mrb[0].mxu0 %v1737
        %v1854 = vpop.f32.mrb[0].mxu0
        %v1855 = vadd.f32 %v1794, %v1854
        %v1856 = vpop.f32.mrb[0].mxu0
        %v1857 = vpop.f32.mrb[0].mxu0
        %v1858 = vpop.f32.mrb[0].mxu0
        %1859 = vdwg.mxu0
        %s1860 = scalar_lea.vmem %s17, 64
        %v1861 = vld [vmem:[%s1860] sm:$0xf]
        %v1862 = vld [vmem:[%s1860 + $0x4] sm:$0xf]
        %v1863 = vld [vmem:[%s1860 + $0x8] sm:$0xf]
        %v1864 = vld [vmem:[%s1860 + $0xc] sm:$0xf]
        %v1865 = vld [vmem:[%s1860 + $0x10] sm:$0xf]
        %v1866 = vld [vmem:[%s1860 + $0x14] sm:$0xf]
        %v1867 = vld [vmem:[%s1860 + $0x18] sm:$0xf]
        %v1868 = vld [vmem:[%s1860 + $0x1c] sm:$0xf]
        %s1869 = scalar_lea.vmem %s19, 2
        %v1870 = vld [vmem:[%s1869] sm:$0x1]
        %v1872 = vlaneseq
        %v1873 = vshrl.u32 %v1872, 7
        %v1874 = vsub.s32 0, %v1873
        %v1875 = vrot.slane %v1870, %v1874
        %v1885 = vunpack.c.l.b16 %v1861
        %v1886 = vunpack.c.l.b16 %v1862
        %v1887 = vunpack.c.l.b16 %v1863
        %v1888 = vunpack.c.l.b16 %v1864
        %v1889 = vunpack.c.l.b16 %v1865
        %v1890 = vunpack.c.l.b16 %v1866
        %v1891 = vunpack.c.l.b16 %v1867
        %v1892 = vunpack.c.l.b16 %v1868
        %v1893 = vpack.c.b16 %v1886, %v1885
        %v1894 = vpack.c.b16 %v1888, %v1887
        %v1895 = vpack.c.b16 %v1890, %v1889
        %v1896 = vpack.c.b16 %v1892, %v1891
        %1901 = vmatprep.subr.bf16.mxu0 0
        %1902 = vmatpush1.bf16.msra.mxu0 %v1893
        %1903 = vmatprep.subr.bf16.mxu0 0
        %1904 = vmatpush1.bf16.msra.mxu0 %v1894
        %1905 = vmatprep.subr.bf16.mxu0 0
        %1906 = vmatpush1.bf16.msra.mxu0 %v1895
        %1907 = vmatprep.subr.bf16.mxu0 0
        %1908 = vmatpush1.bf16.msra.mxu0 %v1896
        %1909 = vmatprep.subr.bf16.mxu0 0
        %1910 = vmatpush1.bf16.msra.mxu0 0
        %1911 = vmatprep.subr.bf16.mxu0 0
        %1912 = vmatpush1.bf16.msra.mxu0 0
        %1913 = vmatprep.subr.bf16.mxu0 0
        %1914 = vmatpush1.bf16.msra.mxu0 0
        %1915 = vmatprep.subr.bf16.mxu0 0
        %1916 = vmatpush1.bf16.msra.mxu0 0
        %1917 = vmatprep.subr.bf16.mxu0 0
        %1918 = vmatpush1.bf16.msra.mxu0 0
        %1919 = vmatprep.subr.bf16.mxu0 0
        %1920 = vmatpush1.bf16.msra.mxu0 0
        %1921 = vmatprep.subr.bf16.mxu0 0
        %1922 = vmatpush1.bf16.msra.mxu0 0
        %1923 = vmatprep.subr.bf16.mxu0 0
        %1924 = vmatpush1.bf16.msra.mxu0 0
        %1925 = vmatprep.subr.bf16.mxu0 0
        %1926 = vmatpush1.bf16.msra.mxu0 0
        %1927 = vmatprep.subr.bf16.mxu0 0
        %1928 = vmatpush1.bf16.msra.mxu0 0
        %1929 = vmatprep.subr.bf16.mxu0 0
        %1930 = vmatpush1.bf16.msra.mxu0 0
        %1931 = vmatprep.subr.bf16.mxu0 0
        %1932 = vmatpush1.bf16.msra.mxu0 0
        %1933 = vmatprep.mubr.bf16.mxu0 0
        %1934 = vmatmul.mubr.bf16.gmra.mrb[0].mxu0 %v1737
        %v1935 = vpop.f32.mrb[0].mxu0
        %v1936 = vadd.f32 %v1875, %v1935
        %v1937 = vpop.f32.mrb[0].mxu0
        %v1938 = vpop.f32.mrb[0].mxu0
        %v1939 = vpop.f32.mrb[0].mxu0
        %1940 = vdwg.mxu0
        %v1941 = vlaneseq
        %v1942 = vshrl.u32 %v1941, 7
        %v1943 = vadd.s32 %v1942, 8
        %v1944 = vand.u32 %v1942, 3
        %v1945 = vand.u32 %v1943, 3
        %v1946 = vlaneseq
        %v1947 = vand.u32 %v1946, 127
        %vm1948 = vcmp.eq.s32.totalorder %v1944, %v1947
        %vm1949 = vcmp.eq.s32.totalorder %v1945, %v1947
        %v1950 = vsel %vm1948, 1.0, 0.0
        %v1951 = vsel %vm1949, 1.0, 0.0
        %v1952 = vpack.c.bf16 %v1951, %v1950
        %v1953 = vshra.s32 %v1942, 2
        %v1954 = vshra.s32 %v1943, 2
        %v1955 = vshra.s32 %v1947, 4
        %vm1956 = vcmp.eq.s32.totalorder %v1953, %v1955
        %vm1957 = vcmp.eq.s32.totalorder %v1954, %v1955
        %v1958 = vsel %vm1956, 1.0, 0.0
        %v1959 = vsel %vm1957, 1.0, 0.0
        %v1960 = vpack.c.bf16 %v1855, %v1855
        %vm1961 = vcmask 31744
        %v1963 = vsel %vm1961, %v1952, 0
        %vm1965 = vcmask 1041408
        %v1967 = vsel %vm1965, %v1960, 0
        %1969 = vmatprep.subr.bf16.mxu0 0
        %1970 = vmatpush1.bf16.msra.mxu0 %v1967
        %1971 = vmatprep.subr.bf16.mxu0 0
        %1972 = vmatpush1.bf16.msra.mxu0 0
        %1973 = vmatprep.subr.bf16.mxu0 0
        %1974 = vmatpush1.bf16.msra.mxu0 0
        %1975 = vmatprep.subr.bf16.mxu0 0
        %1976 = vmatpush1.bf16.msra.mxu0 0
        %1977 = vmatprep.subr.bf16.mxu0 0
        %1978 = vmatpush1.bf16.msra.mxu0 0
        %1979 = vmatprep.subr.bf16.mxu0 0
        %1980 = vmatpush1.bf16.msra.mxu0 0
        %1981 = vmatprep.subr.bf16.mxu0 0
        %1982 = vmatpush1.bf16.msra.mxu0 0
        %1983 = vmatprep.subr.bf16.mxu0 0
        %1984 = vmatpush1.bf16.msra.mxu0 0
        %1985 = vmatprep.subr.bf16.mxu0 0
        %1986 = vmatpush1.bf16.msra.mxu0 0
        %1987 = vmatprep.subr.bf16.mxu0 0
        %1988 = vmatpush1.bf16.msra.mxu0 0
        %1989 = vmatprep.subr.bf16.mxu0 0
        %1990 = vmatpush1.bf16.msra.mxu0 0
        %1991 = vmatprep.subr.bf16.mxu0 0
        %1992 = vmatpush1.bf16.msra.mxu0 0
        %1993 = vmatprep.subr.bf16.mxu0 0
        %1994 = vmatpush1.bf16.msra.mxu0 0
        %1995 = vmatprep.subr.bf16.mxu0 0
        %1996 = vmatpush1.bf16.msra.mxu0 0
        %1997 = vmatprep.subr.bf16.mxu0 0
        %1998 = vmatpush1.bf16.msra.mxu0 0
        %1999 = vmatprep.subr.bf16.mxu0 0
        %2000 = vmatpush1.bf16.msra.mxu0 0
        %2001 = vmatprep.mubr.bf16.mxu0 0
        %2002 = vmatmul.mubr.bf16.gmra.mrb[0].mxu0 %v1963
        %v2003 = vpop.f32.mrb[0].mxu0
        %v2004 = vadd.f32 0.0, %v2003
        %v2005 = vpop.f32.mrb[0].mxu0
        %v2006 = vpop.f32.mrb[0].mxu0
        %v2007 = vadd.f32 0.0, %v2006
        %v2008 = vpop.f32.mrb[0].mxu0
        %2009 = vdwg.mxu0
        %v2010 = vmul.f32 %v2004, %v1958
        %v2011 = vmul.f32 %v2007, %v1959
        %v2012 = vpack.c.bf16 %v2011, %v2010
        %v2013 = vpack.c.bf16 %v1936, %v1936
        %v2015 = vsel %vm1965, %v2013, 0
        %2017 = vmatprep.subr.bf16.mxu0 0
        %2018 = vmatpush1.bf16.msra.mxu0 %v2015
        %2019 = vmatprep.subr.bf16.mxu0 0
        %2020 = vmatpush1.bf16.msra.mxu0 0
        %2021 = vmatprep.subr.bf16.mxu0 0
        %2022 = vmatpush1.bf16.msra.mxu0 0
        %2023 = vmatprep.subr.bf16.mxu0 0
        %2024 = vmatpush1.bf16.msra.mxu0 0
        %2025 = vmatprep.subr.bf16.mxu0 0
        %2026 = vmatpush1.bf16.msra.mxu0 0
        %2027 = vmatprep.subr.bf16.mxu0 0
        %2028 = vmatpush1.bf16.msra.mxu0 0
        %2029 = vmatprep.subr.bf16.mxu0 0
        %2030 = vmatpush1.bf16.msra.mxu0 0
        %2031 = vmatprep.subr.bf16.mxu0 0
        %2032 = vmatpush1.bf16.msra.mxu0 0
        %2033 = vmatprep.subr.bf16.mxu0 0
        %2034 = vmatpush1.bf16.msra.mxu0 0
        %2035 = vmatprep.subr.bf16.mxu0 0
        %2036 = vmatpush1.bf16.msra.mxu0 0
        %2037 = vmatprep.subr.bf16.mxu0 0
        %2038 = vmatpush1.bf16.msra.mxu0 0
        %2039 = vmatprep.subr.bf16.mxu0 0
        %2040 = vmatpush1.bf16.msra.mxu0 0
        %2041 = vmatprep.subr.bf16.mxu0 0
        %2042 = vmatpush1.bf16.msra.mxu0 0
        %2043 = vmatprep.subr.bf16.mxu0 0
        %2044 = vmatpush1.bf16.msra.mxu0 0
        %2045 = vmatprep.subr.bf16.mxu0 0
        %2046 = vmatpush1.bf16.msra.mxu0 0
        %2047 = vmatprep.subr.bf16.mxu0 0
        %2048 = vmatpush1.bf16.msra.mxu0 0
        %2049 = vmatprep.mubr.bf16.mxu0 0
        %2050 = vmatmul.mubr.bf16.gmra.mrb[0].mxu0 %v1963
        %v2051 = vpop.f32.mrb[0].mxu0
        %v2052 = vadd.f32 0.0, %v2051
        %v2053 = vpop.f32.mrb[0].mxu0
        %v2054 = vpop.f32.mrb[0].mxu0
        %v2055 = vadd.f32 0.0, %v2054
        %v2056 = vpop.f32.mrb[0].mxu0
        %2057 = vdwg.mxu0
        %v2058 = vmul.f32 %v2052, %v1958
        %v2059 = vmul.f32 %v2055, %v1959
        %v2060 = vpack.c.bf16 %v2059, %v2058
        %v2061 = vpack.c.bf16 %v1774, %v1774
        %v2063 = vsel %vm1735, %v2061, 0
        %v2066 = vsel %vm1735, %v2012, 0
        %2068 = vmatprep.subr.bf16.mxu0 0
        %2069 = vmatpush1.bf16.xpose.msra.mxu0 %v2066
        %2070 = vmatprep.subr.bf16.mxu0 0
        %2071 = vmatpush1.bf16.xpose.msra.mxu0 0
        %2072 = vmatprep.subr.bf16.mxu0 0
        %2073 = vmatpush1.bf16.xpose.msra.mxu0 0
        %2074 = vmatprep.subr.bf16.mxu0 0
        %2075 = vmatpush1.bf16.xpose.msra.mxu0 0
        %2076 = vmatprep.subr.bf16.mxu0 0
        %2077 = vmatpush1.bf16.xpose.msra.mxu0 0
        %2078 = vmatprep.subr.bf16.mxu0 0
        %2079 = vmatpush1.bf16.xpose.msra.mxu0 0
        %2080 = vmatprep.subr.bf16.mxu0 0
        %2081 = vmatpush1.bf16.xpose.msra.mxu0 0
        %2082 = vmatprep.subr.bf16.mxu0 0
        %2083 = vmatpush1.bf16.xpose.msra.mxu0 0
        %2084 = vmatprep.subr.bf16.mxu0 0
        %2085 = vmatpush1.bf16.xpose.msra.mxu0 0
        %2086 = vmatprep.subr.bf16.mxu0 0
        %2087 = vmatpush1.bf16.xpose.msra.mxu0 0
        %2088 = vmatprep.subr.bf16.mxu0 0
        %2089 = vmatpush1.bf16.xpose.msra.mxu0 0
        %2090 = vmatprep.subr.bf16.mxu0 0
        %2091 = vmatpush1.bf16.xpose.msra.mxu0 0
        %2092 = vmatprep.subr.bf16.mxu0 0
        %2093 = vmatpush1.bf16.xpose.msra.mxu0 0
        %2094 = vmatprep.subr.bf16.mxu0 0
        %2095 = vmatpush1.bf16.xpose.msra.mxu0 0
        %2096 = vmatprep.subr.bf16.mxu0 0
        %2097 = vmatpush1.bf16.xpose.msra.mxu0 0
        %2098 = vmatprep.subr.bf16.mxu0 0
        %2099 = vmatpush1.bf16.xpose.msra.mxu0 0
        %2100 = vmatprep.mubr.bf16.mxu0 0
        %2101 = vmatmul.mubr.bf16.gmra.mrb[0].mxu0 %v2063
        %v2102 = vpop.f32.mrb[0].mxu0
        %v2103 = vadd.f32 0.0, %v2102
        %v2104 = vpop.f32.mrb[0].mxu0
        %v2105 = vpop.f32.mrb[0].mxu0
        %v2106 = vpop.f32.mrb[0].mxu0
        %2107 = vdwg.mxu0
        %v2108 = vmul.f32 %v2103, 0.25
        %vm2109 = vcmask 125952
        %v2110 = vsel %vm2109, %v2108, -inf
        %2111 = vmax.xlane.f32.xlu0 %v2110
        %v2112 = vpop.xlane.xlu0 %2111
        %v2113 = vsub.f32 %v2108, %v2112
        %v2114 = vmul.f32 %v2113, 1.442695
        %v2115 = vpow.pop %v2114
        %v2116 = vpack.c.bf16 %v2115, %v2115
        %v2117 = vpack.c.bf16 %v1959, %v1958
        %vm2118 = vcmask 130048
        %v2120 = vsel %vm2118, %v2116, 0
        %2122 = vmatprep.subr.bf16.mxu0 0
        %2123 = vmatpush1.bf16.msra.mxu0 %v2117
        %2124 = vmatprep.subr.bf16.mxu0 0
        %2125 = vmatpush1.bf16.msra.mxu0 0
        %2126 = vmatprep.subr.bf16.mxu0 0
        %2127 = vmatpush1.bf16.msra.mxu0 0
        %2128 = vmatprep.subr.bf16.mxu0 0
        %2129 = vmatpush1.bf16.msra.mxu0 0
        %2130 = vmatprep.subr.bf16.mxu0 0
        %2131 = vmatpush1.bf16.msra.mxu0 0
        %2132 = vmatprep.subr.bf16.mxu0 0
        %2133 = vmatpush1.bf16.msra.mxu0 0
        %2134 = vmatprep.subr.bf16.mxu0 0
        %2135 = vmatpush1.bf16.msra.mxu0 0
        %2136 = vmatprep.subr.bf16.mxu0 0
        %2137 = vmatpush1.bf16.msra.mxu0 0
        %2138 = vmatprep.subr.bf16.mxu0 0
        %2139 = vmatpush1.bf16.msra.mxu0 0
        %2140 = vmatprep.subr.bf16.mxu0 0
        %2141 = vmatpush1.bf16.msra.mxu0 0
        %2142 = vmatprep.subr.bf16.mxu0 0
        %2143 = vmatpush1.bf16.msra.mxu0 0
        %2144 = vmatprep.subr.bf16.mxu0 0
        %2145 = vmatpush1.bf16.msra.mxu0 0
        %2146 = vmatprep.subr.bf16.mxu0 0
        %2147 = vmatpush1.bf16.msra.mxu0 0
        %2148 = vmatprep.subr.bf16.mxu0 0
        %2149 = vmatpush1.bf16.msra.mxu0 0
        %2150 = vmatprep.subr.bf16.mxu0 0
        %2151 = vmatpush1.bf16.msra.mxu0 0
        %2152 = vmatprep.subr.bf16.mxu0 0
        %2153 = vmatpush1.bf16.msra.mxu0 0
        %2154 = vmatprep.mubr.bf16.mxu0 0
        %2155 = vmatmul.mubr.bf16.gmra.mrb[0].mxu0 %v2120
        %v2156 = vpop.f32.mrb[0].mxu0
        %v2157 = vadd.f32 0.0, %v2156
        %v2158 = vpop.f32.mrb[0].mxu0
        %v2159 = vpop.f32.mrb[0].mxu0
        %v2160 = vpop.f32.mrb[0].mxu0
        %2161 = vdwg.mxu0
        %2162 = vmatprep.subr.bf16.mxu0 0
        %2163 = vmatpush1.bf16.msra.mxu0 %v2060
        %2164 = vmatprep.subr.bf16.mxu0 0
        %2165 = vmatpush1.bf16.msra.mxu0 0
        %2166 = vmatprep.subr.bf16.mxu0 0
        %2167 = vmatpush1.bf16.msra.mxu0 0
        %2168 = vmatprep.subr.bf16.mxu0 0
        %2169 = vmatpush1.bf16.msra.mxu0 0
        %2170 = vmatprep.subr.bf16.mxu0 0
        %2171 = vmatpush1.bf16.msra.mxu0 0
        %2172 = vmatprep.subr.bf16.mxu0 0
        %2173 = vmatpush1.bf16.msra.mxu0 0
        %2174 = vmatprep.subr.bf16.mxu0 0
        %2175 = vmatpush1.bf16.msra.mxu0 0
        %2176 = vmatprep.subr.bf16.mxu0 0
        %2177 = vmatpush1.bf16.msra.mxu0 0
        %2178 = vmatprep.subr.bf16.mxu0 0
        %2179 = vmatpush1.bf16.msra.mxu0 0
        %2180 = vmatprep.subr.bf16.mxu0 0
        %2181 = vmatpush1.bf16.msra.mxu0 0
        %2182 = vmatprep.subr.bf16.mxu0 0
        %2183 = vmatpush1.bf16.msra.mxu0 0
        %2184 = vmatprep.subr.bf16.mxu0 0
        %2185 = vmatpush1.bf16.msra.mxu0 0
        %2186 = vmatprep.subr.bf16.mxu0 0
        %2187 = vmatpush1.bf16.msra.mxu0 0
        %2188 = vmatprep.subr.bf16.mxu0 0
        %2189 = vmatpush1.bf16.msra.mxu0 0
        %2190 = vmatprep.subr.bf16.mxu0 0
        %2191 = vmatpush1.bf16.msra.mxu0 0
        %2192 = vmatprep.subr.bf16.mxu0 0
        %2193 = vmatpush1.bf16.msra.mxu0 0
        %2194 = vmatprep.mubr.bf16.mxu0 0
        %2195 = vmatmul.mubr.bf16.gmra.mrb[0].mxu0 %v2120
        %v2196 = vpop.f32.mrb[0].mxu0
        %v2197 = vadd.f32 0.0, %v2196
        %v2198 = vpop.f32.mrb[0].mxu0
        %v2199 = vpop.f32.mrb[0].mxu0
        %v2200 = vpop.f32.mrb[0].mxu0
        %2201 = vdwg.mxu0
        %v2202 = vrcp.pop %v2157
        %v2203 = vmul.f32 %v2197, %v2202
        %v2204 = vld [vmem:[%s21] sm:$0xf]
        %v2205 = vld [vmem:[%s21 + $0x4] sm:$0xf]
        %v2206 = vld [vmem:[%s21 + $0x8] sm:$0xf]
        %v2207 = vld [vmem:[%s21 + $0xc] sm:$0xf]
        %v2208 = vld [vmem:[%s21 + $0x10] sm:$0xf]
        %v2209 = vld [vmem:[%s21 + $0x14] sm:$0xf]
        %v2210 = vld [vmem:[%s21 + $0x18] sm:$0xf]
        %v2211 = vld [vmem:[%s21 + $0x1c] sm:$0xf]
        %v2212 = vpack.c.bf16 %v2203, %v2203
        %v2213 = vld [vmem:[%s23] sm:$0x1]
        %v2215 = vlaneseq
        %v2216 = vshrl.u32 %v2215, 7
        %v2217 = vsub.s32 0, %v2216
        %v2218 = vrot.slane %v2213, %v2217
        %v2228 = vunpack.c.l.b16 %v2204
        %v2229 = vunpack.c.l.b16 %v2205
        %v2230 = vunpack.c.l.b16 %v2206
        %v2231 = vunpack.c.l.b16 %v2207
        %v2232 = vunpack.c.l.b16 %v2208
        %v2233 = vunpack.c.l.b16 %v2209
        %v2234 = vunpack.c.l.b16 %v2210
        %v2235 = vunpack.c.l.b16 %v2211
        %v2236 = vpack.c.b16 %v2229, %v2228
        %v2237 = vpack.c.b16 %v2231, %v2230
        %v2238 = vpack.c.b16 %v2233, %v2232
        %v2239 = vpack.c.b16 %v2235, %v2234
        %v2245 = vsel %vm1735, %v2212, 0
        %2247 = vmatprep.subr.bf16.mxu0 0
        %2248 = vmatpush1.bf16.msra.mxu0 %v2236
        %2249 = vmatprep.subr.bf16.mxu0 0
        %2250 = vmatpush1.bf16.msra.mxu0 %v2237
        %2251 = vmatprep.subr.bf16.mxu0 0
        %2252 = vmatpush1.bf16.msra.mxu0 %v2238
        %2253 = vmatprep.subr.bf16.mxu0 0
        %2254 = vmatpush1.bf16.msra.mxu0 %v2239
        %2255 = vmatprep.subr.bf16.mxu0 0
        %2256 = vmatpush1.bf16.msra.mxu0 0
        %2257 = vmatprep.subr.bf16.mxu0 0
        %2258 = vmatpush1.bf16.msra.mxu0 0
        %2259 = vmatprep.subr.bf16.mxu0 0
        %2260 = vmatpush1.bf16.msra.mxu0 0
        %2261 = vmatprep.subr.bf16.mxu0 0
        %2262 = vmatpush1.bf16.msra.mxu0 0
        %2263 = vmatprep.subr.bf16.mxu0 0
        %2264 = vmatpush1.bf16.msra.mxu0 0
        %2265 = vmatprep.subr.bf16.mxu0 0
        %2266 = vmatpush1.bf16.msra.mxu0 0
        %2267 = vmatprep.subr.bf16.mxu0 0
        %2268 = vmatpush1.bf16.msra.mxu0 0
        %2269 = vmatprep.subr.bf16.mxu0 0
        %2270 = vmatpush1.bf16.msra.mxu0 0
        %2271 = vmatprep.subr.bf16.mxu0 0
        %2272 = vmatpush1.bf16.msra.mxu0 0
        %2273 = vmatprep.subr.bf16.mxu0 0
        %2274 = vmatpush1.bf16.msra.mxu0 0
        %2275 = vmatprep.subr.bf16.mxu0 0
        %2276 = vmatpush1.bf16.msra.mxu0 0
        %2277 = vmatprep.subr.bf16.mxu0 0
        %2278 = vmatpush1.bf16.msra.mxu0 0
        %2279 = vmatprep.mubr.bf16.mxu0 0
        %2280 = vmatmul.mubr.bf16.gmra.mrb[0].mxu0 %v2245
        %v2281 = vpop.f32.mrb[0].mxu0
        %v2282 = vadd.f32 %v2218, %v2281
        %v2283 = vpop.f32.mrb[0].mxu0
        %v2284 = vpop.f32.mrb[0].mxu0
        %v2285 = vpop.f32.mrb[0].mxu0
        %2286 = vdwg.mxu0
        %v2287 = vadd.f32 %v1663, %v2282
        %s2288 = scalar_lea.vmem %s13, 1
        %v2289 = vld [vmem:[%s2288] sm:$0x1]
        %s2290 = scalar_lea.vmem %s15, 1
        %v2291 = vld [vmem:[%s2290] sm:$0x1]
        %v2292 = vsel %vm1666, %v2287, 0.0
        %2293 = vadd.xlane.f32.xlu0 %v2292
        %v2294 = vpop.xlane.xlu0 %2293
        %v2295 = vmul.f32 %v2294, %v1670
        %v2296 = vsub.f32 %v2287, %v2295
        %v2297 = vmul.f32 %v2296, %v2296
        %v2298 = vsel %vm1666, %v2297, 0.0
        %2299 = vadd.xlane.f32.xlu0 %v2298
        %v2300 = vpop.xlane.xlu0 %2299
        %v2301 = vmul.f32 %v2300, %v1670
        %v2302 = vadd.f32 %v2301, 1e-06
        %v2303 = vrsqrt.pop %v2302
        %v2304 = vmul.f32 %v2296, %v2303
        %v2306 = vlaneseq
        %v2307 = vshrl.u32 %v2306, 7
        %v2308 = vsub.s32 0, %v2307
        %v2309 = vrot.slane %v2289, %v2308
        %v2311 = vmul.f32 %v2304, %v2309
        %v2313 = vlaneseq
        %v2314 = vshrl.u32 %v2313, 7
        %v2315 = vsub.s32 0, %v2314
        %v2316 = vrot.slane %v2291, %v2315
        %v2318 = vadd.f32 %v2311, %v2316
        %v2319 = vld [vmem:[%s25] sm:$0xff]
        %v2320 = vld [vmem:[%s25 + $0x8] sm:$0xff]
        %v2321 = vld [vmem:[%s25 + $0x10] sm:$0xff]
        %v2322 = vld [vmem:[%s25 + $0x18] sm:$0xff]
        %v2323 = vld [vmem:[%s25 + $0x20] sm:$0xff]
        %v2324 = vld [vmem:[%s25 + $0x28] sm:$0xff]
        %v2325 = vld [vmem:[%s25 + $0x30] sm:$0xff]
        %v2326 = vld [vmem:[%s25 + $0x38] sm:$0xff]
        %v2327 = vpack.c.bf16 %v2318, %v2318
        %v2328 = vld [vmem:[%s27] sm:$0x3]
        %v2330 = vlaneseq
        %v2331 = vshrl.u32 %v2330, 7
        %v2332 = vsub.s32 0, %v2331
        %v2333 = vrot.slane %v2328, %v2332
        %v2334 = vlaneseq
        %v2335 = vshrl.u32 %v2334, 7
        %v2336 = vsub.s32 1, %v2335
        %v2337 = vrot.slane %v2328, %v2336
        %v2348 = vunpack.c.l.b16 %v2319
        %v2349 = vunpack.c.h.b16 %v2319
        %v2350 = vunpack.c.l.b16 %v2320
        %v2351 = vunpack.c.h.b16 %v2320
        %v2352 = vunpack.c.l.b16 %v2321
        %v2353 = vunpack.c.h.b16 %v2321
        %v2354 = vunpack.c.l.b16 %v2322
        %v2355 = vunpack.c.h.b16 %v2322
        %v2356 = vunpack.c.l.b16 %v2323
        %v2357 = vunpack.c.h.b16 %v2323
        %v2358 = vunpack.c.l.b16 %v2324
        %v2359 = vunpack.c.h.b16 %v2324
        %v2360 = vunpack.c.l.b16 %v2325
        %v2361 = vunpack.c.h.b16 %v2325
        %v2362 = vunpack.c.l.b16 %v2326
        %v2363 = vunpack.c.h.b16 %v2326
        %v2364 = vpack.c.b16 %v2350, %v2348
        %v2365 = vpack.c.b16 %v2351, %v2349
        %v2366 = vpack.c.b16 %v2354, %v2352
        %v2367 = vpack.c.b16 %v2355, %v2353
        %v2368 = vpack.c.b16 %v2358, %v2356
        %v2369 = vpack.c.b16 %v2359, %v2357
        %v2370 = vpack.c.b16 %v2362, %v2360
        %v2371 = vpack.c.b16 %v2363, %v2361
        %v2381 = vsel %vm1735, %v2327, 0
        %2383 = vmatprep.subr.bf16.mxu0 %v2365
        %2384 = vmatpush1.bf16.msra.mxu0 %v2364
        %2385 = vmatprep.subr.bf16.mxu0 %v2367
        %2386 = vmatpush1.bf16.msra.mxu0 %v2366
        %2387 = vmatprep.subr.bf16.mxu0 %v2369
        %2388 = vmatpush1.bf16.msra.mxu0 %v2368
        %2389 = vmatprep.subr.bf16.mxu0 %v2371
        %2390 = vmatpush1.bf16.msra.mxu0 %v2370
        %2391 = vmatprep.subr.bf16.mxu0 0
        %2392 = vmatpush1.bf16.msra.mxu0 0
        %2393 = vmatprep.subr.bf16.mxu0 0
        %2394 = vmatpush1.bf16.msra.mxu0 0
        %2395 = vmatprep.subr.bf16.mxu0 0
        %2396 = vmatpush1.bf16.msra.mxu0 0
        %2397 = vmatprep.subr.bf16.mxu0 0
        %2398 = vmatpush1.bf16.msra.mxu0 0
        %2399 = vmatprep.subr.bf16.mxu0 0
        %2400 = vmatpush1.bf16.msra.mxu0 0
        %2401 = vmatprep.subr.bf16.mxu0 0
        %2402 = vmatpush1.bf16.msra.mxu0 0
        %2403 = vmatprep.subr.bf16.mxu0 0
        %2404 = vmatpush1.bf16.msra.mxu0 0
        %2405 = vmatprep.subr.bf16.mxu0 0
        %2406 = vmatpush1.bf16.msra.mxu0 0
        %2407 = vmatprep.subr.bf16.mxu0 0
        %2408 = vmatpush1.bf16.msra.mxu0 0
        %2409 = vmatprep.subr.bf16.mxu0 0
        %2410 = vmatpush1.bf16.msra.mxu0 0
        %2411 = vmatprep.subr.bf16.mxu0 0
        %2412 = vmatpush1.bf16.msra.mxu0 0
        %2413 = vmatprep.subr.bf16.mxu0 0
        %2414 = vmatpush1.bf16.msra.mxu0 0
        %2415 = vmatprep.mubr.bf16.mxu0 0
        %2416 = vmatmul.mubr.bf16.gmra.mrb[0].mxu0 %v2381
        %v2417 = vpop.f32.mrb[0].mxu0
        %v2418 = vadd.f32 %v2333, %v2417
        %v2419 = vpop.f32.mrb[0].mxu0
        %v2420 = vadd.f32 %v2337, %v2419
        %v2421 = vpop.f32.mrb[0].mxu0
        %v2422 = vpop.f32.mrb[0].mxu0
        %2423 = vdwg.mxu0
        %v2424 = vmul.f32 %v2418, %v2418
        %v2425 = vmul.f32 %v2420, %v2420
        %v2426 = vmul.f32 %v2418, %v2424
        %v2427 = vmul.f32 %v2420, %v2425
        %v2428 = vmul.f32 %v2426, 0.044715
        %v2429 = vmul.f32 %v2427, 0.044715
        %v2430 = vadd.f32 %v2418, %v2428
        %v2431 = vadd.f32 %v2420, %v2429
        %v2432 = vmul.f32 %v2430, 0.7978846
        %v2433 = vmul.f32 %v2431, 0.7978846
        %v2434 = vtanh.pop %v2432
        %v2435 = vtanh.pop %v2433
        %v2436 = vadd.f32 %v2434, 1.0
        %v2437 = vadd.f32 %v2435, 1.0
        %v2438 = vmul.f32 %v2436, 0.5
        %v2439 = vmul.f32 %v2437, 0.5
        %v2440 = vmul.f32 %v2418, %v2438
        %v2441 = vmul.f32 %v2420, %v2439
        %v2442 = vld [vmem:[%s29] sm:$0xf]
        %v2443 = vld [vmem:[%s29 + $0x4] sm:$0xf]
        %v2444 = vld [vmem:[%s29 + $0x8] sm:$0xf]
        %v2445 = vld [vmem:[%s29 + $0xc] sm:$0xf]
        %v2446 = vld [vmem:[%s29 + $0x10] sm:$0xf]
        %v2447 = vld [vmem:[%s29 + $0x14] sm:$0xf]
        %v2448 = vld [vmem:[%s29 + $0x18] sm:$0xf]
        %v2449 = vld [vmem:[%s29 + $0x1c] sm:$0xf]
        %v2450 = vld [vmem:[%s29 + $0x20] sm:$0xf]
        %v2451 = vld [vmem:[%s29 + $0x24] sm:$0xf]
        %v2452 = vld [vmem:[%s29 + $0x28] sm:$0xf]
        %v2453 = vld [vmem:[%s29 + $0x2c] sm:$0xf]
        %v2454 = vld [vmem:[%s29 + $0x30] sm:$0xf]
        %v2455 = vld [vmem:[%s29 + $0x34] sm:$0xf]
        %v2456 = vld [vmem:[%s29 + $0x38] sm:$0xf]
        %v2457 = vld [vmem:[%s29 + $0x3c] sm:$0xf]
        %v2458 = vld [vmem:[%s29 + $0x40] sm:$0xf]
        %v2459 = vld [vmem:[%s29 + $0x44] sm:$0xf]
        %v2460 = vld [vmem:[%s29 + $0x48] sm:$0xf]
        %v2461 = vld [vmem:[%s29 + $0x4c] sm:$0xf]
        %v2462 = vld [vmem:[%s29 + $0x50] sm:$0xf]
        %v2463 = vld [vmem:[%s29 + $0x54] sm:$0xf]
        %v2464 = vld [vmem:[%s29 + $0x58] sm:$0xf]
        %v2465 = vld [vmem:[%s29 + $0x5c] sm:$0xf]
        %v2466 = vld [vmem:[%s29 + $0x60] sm:$0xf]
        %v2467 = vld [vmem:[%s29 + $0x64] sm:$0xf]
        %v2468 = vld [vmem:[%s29 + $0x68] sm:$0xf]
        %v2469 = vld [vmem:[%s29 + $0x6c] sm:$0xf]
        %v2470 = vld [vmem:[%s29 + $0x70] sm:$0xf]
        %v2471 = vld [vmem:[%s29 + $0x74] sm:$0xf]
        %v2472 = vld [vmem:[%s29 + $0x78] sm:$0xf]
        %v2473 = vld [vmem:[%s29 + $0x7c] sm:$0xf]
        %v2474 = vpack.c.bf16 %v2440, %v2440
        %v2475 = vpack.c.bf16 %v2441, %v2441
        %v2508 = vunpack.c.l.b16 %v2442
        %v2509 = vunpack.c.l.b16 %v2443
        %v2510 = vunpack.c.l.b16 %v2444
        %v2511 = vunpack.c.l.b16 %v2445
        %v2512 = vunpack.c.l.b16 %v2446
        %v2513 = vunpack.c.l.b16 %v2447
        %v2514 = vunpack.c.l.b16 %v2448
        %v2515 = vunpack.c.l.b16 %v2449
        %v2516 = vunpack.c.l.b16 %v2450
        %v2517 = vunpack.c.l.b16 %v2451
        %v2518 = vunpack.c.l.b16 %v2452
        %v2519 = vunpack.c.l.b16 %v2453
        %v2520 = vunpack.c.l.b16 %v2454
        %v2521 = vunpack.c.l.b16 %v2455
        %v2522 = vunpack.c.l.b16 %v2456
        %v2523 = vunpack.c.l.b16 %v2457
        %v2524 = vunpack.c.l.b16 %v2458
        %v2525 = vunpack.c.l.b16 %v2459
        %v2526 = vunpack.c.l.b16 %v2460
        %v2527 = vunpack.c.l.b16 %v2461
        %v2528 = vunpack.c.l.b16 %v2462
        %v2529 = vunpack.c.l.b16 %v2463
        %v2530 = vunpack.c.l.b16 %v2464
        %v2531 = vunpack.c.l.b16 %v2465
        %v2532 = vunpack.c.l.b16 %v2466
        %v2533 = vunpack.c.l.b16 %v2467
        %v2534 = vunpack.c.l.b16 %v2468
        %v2535 = vunpack.c.l.b16 %v2469
        %v2536 = vunpack.c.l.b16 %v2470
        %v2537 = vunpack.c.l.b16 %v2471
        %v2538 = vunpack.c.l.b16 %v2472
        %v2539 = vunpack.c.l.b16 %v2473
        %v2540 = vpack.c.b16 %v2509, %v2508
        %v2541 = vpack.c.b16 %v2511, %v2510
        %v2542 = vpack.c.b16 %v2513, %v2512
        %v2543 = vpack.c.b16 %v2515, %v2514
        %v2544 = vpack.c.b16 %v2517, %v2516
        %v2545 = vpack.c.b16 %v2519, %v2518
        %v2546 = vpack.c.b16 %v2521, %v2520
        %v2547 = vpack.c.b16 %v2523, %v2522
        %v2548 = vpack.c.b16 %v2525, %v2524
        %v2549 = vpack.c.b16 %v2527, %v2526
        %v2550 = vpack.c.b16 %v2529, %v2528
        %v2551 = vpack.c.b16 %v2531, %v2530
        %v2552 = vpack.c.b16 %v2533, %v2532
        %v2553 = vpack.c.b16 %v2535, %v2534
        %v2554 = vpack.c.b16 %v2537, %v2536
        %v2555 = vpack.c.b16 %v2539, %v2538
        %2572 = vmatprep.subr.bf16.mxu0 0
        %2573 = vmatpush1.bf16.msra.mxu0 %v2540
        %2574 = vmatprep.subr.bf16.mxu0 0
        %2575 = vmatpush1.bf16.msra.mxu0 %v2541
        %2576 = vmatprep.subr.bf16.mxu0 0
        %2577 = vmatpush1.bf16.msra.mxu0 %v2542
        %2578 = vmatprep.subr.bf16.mxu0 0
        %2579 = vmatpush1.bf16.msra.mxu0 %v2543
        %2580 = vmatprep.subr.bf16.mxu0 0
        %2581 = vmatpush1.bf16.msra.mxu0 %v2544
        %2582 = vmatprep.subr.bf16.mxu0 0
        %2583 = vmatpush1.bf16.msra.mxu0 %v2545
        %2584 = vmatprep.subr.bf16.mxu0 0
        %2585 = vmatpush1.bf16.msra.mxu0 %v2546
        %2586 = vmatprep.subr.bf16.mxu0 0
        %2587 = vmatpush1.bf16.msra.mxu0 %v2547
        %2588 = vmatprep.subr.bf16.mxu0 0
        %2589 = vmatpush1.bf16.msra.mxu0 %v2548
        %2590 = vmatprep.subr.bf16.mxu0 0
        %2591 = vmatpush1.bf16.msra.mxu0 %v2549
        %2592 = vmatprep.subr.bf16.mxu0 0
        %2593 = vmatpush1.bf16.msra.mxu0 %v2550
        %2594 = vmatprep.subr.bf16.mxu0 0
        %2595 = vmatpush1.bf16.msra.mxu0 %v2551
        %2596 = vmatprep.subr.bf16.mxu0 0
        %2597 = vmatpush1.bf16.msra.mxu0 %v2552
        %2598 = vmatprep.subr.bf16.mxu0 0
        %2599 = vmatpush1.bf16.msra.mxu0 %v2553
        %2600 = vmatprep.subr.bf16.mxu0 0
        %2601 = vmatpush1.bf16.msra.mxu0 %v2554
        %2602 = vmatprep.subr.bf16.mxu0 0
        %2603 = vmatpush1.bf16.msra.mxu0 %v2555
        %2604 = vmatprep.mubr.bf16.mxu0 %v2475
        %2605 = vmatmul.mubr.bf16.gmra.mrb[0].mxu0 %v2474
        %v2606 = vpop.f32.mrb[0].mxu0
        %v2607 = vadd.f32 0.0, %v2606
        %v2608 = vpop.f32.mrb[0].mxu0
        %v2609 = vpop.f32.mrb[0].mxu0
        %v2610 = vpop.f32.mrb[0].mxu0
        %2611 = vdwg.mxu0
        %v2612 = vadd.f32 %v2287, %v2607
        %v2613 = vld [vmem:[%s31] sm:$0x1]
        %v2615 = vlaneseq
        %v2616 = vshrl.u32 %v2615, 7
        %v2617 = vsub.s32 0, %v2616
        %v2618 = vrot.slane %v2613, %v2617
        %v2620 = vadd.f32 %v2612, %v2618
        %s2621 = scalar_lea.vmem %s13, 2
        %v2622 = vld [vmem:[%s2621] sm:$0x1]
        %s2623 = scalar_lea.vmem %s15, 2
        %v2624 = vld [vmem:[%s2623] sm:$0x1]
        %v2625 = vsel %vm1666, %v2620, 0.0
        %2626 = vadd.xlane.f32.xlu0 %v2625
        %v2627 = vpop.xlane.xlu0 %2626
        %v2628 = vmul.f32 %v2627, %v1670
        %v2629 = vsub.f32 %v2620, %v2628
        %v2630 = vmul.f32 %v2629, %v2629
        %v2631 = vsel %vm1666, %v2630, 0.0
        %2632 = vadd.xlane.f32.xlu0 %v2631
        %v2633 = vpop.xlane.xlu0 %2632
        %v2634 = vmul.f32 %v2633, %v1670
        %v2635 = vadd.f32 %v2634, 1e-06
        %v2636 = vrsqrt.pop %v2635
        %v2637 = vmul.f32 %v2629, %v2636
        %v2639 = vlaneseq
        %v2640 = vshrl.u32 %v2639, 7
        %v2641 = vsub.s32 0, %v2640
        %v2642 = vrot.slane %v2622, %v2641
        %v2644 = vmul.f32 %v2637, %v2642
        %v2646 = vlaneseq
        %v2647 = vshrl.u32 %v2646, 7
        %v2648 = vsub.s32 0, %v2647
        %v2649 = vrot.slane %v2624, %v2648
        %v2651 = vadd.f32 %v2644, %v2649
        %s2652 = scalar_lea.vmem %s17, 96
        %v2653 = vld [vmem:[%s2652] sm:$0xf]
        %v2654 = vld [vmem:[%s2652 + $0x4] sm:$0xf]
        %v2655 = vld [vmem:[%s2652 + $0x8] sm:$0xf]
        %v2656 = vld [vmem:[%s2652 + $0xc] sm:$0xf]
        %v2657 = vld [vmem:[%s2652 + $0x10] sm:$0xf]
        %v2658 = vld [vmem:[%s2652 + $0x14] sm:$0xf]
        %v2659 = vld [vmem:[%s2652 + $0x18] sm:$0xf]
        %v2660 = vld [vmem:[%s2652 + $0x1c] sm:$0xf]
        %v2661 = vpack.c.bf16 %v2651, %v2651
        %s2662 = scalar_lea.vmem %s19, 3
        %v2663 = vld [vmem:[%s2662] sm:$0x1]
        %v2665 = vlaneseq
        %v2666 = vshrl.u32 %v2665, 7
        %v2667 = vsub.s32 0, %v2666
        %v2668 = vrot.slane %v2663, %v2667
        %v2678 = vunpack.c.l.b16 %v2653
        %v2679 = vunpack.c.l.b16 %v2654
        %v2680 = vunpack.c.l.b16 %v2655
        %v2681 = vunpack.c.l.b16 %v2656
        %v2682 = vunpack.c.l.b16 %v2657
        %v2683 = vunpack.c.l.b16 %v2658
        %v2684 = vunpack.c.l.b16 %v2659
        %v2685 = vunpack.c.l.b16 %v2660
        %v2686 = vpack.c.b16 %v2679, %v2678
        %v2687 = vpack.c.b16 %v2681, %v2680
        %v2688 = vpack.c.b16 %v2683, %v2682
        %v2689 = vpack.c.b16 %v2685, %v2684
        %v2695 = vsel %vm1735, %v2661, 0
        %2697 = vmatprep.subr.bf16.mxu0 0
        %2698 = vmatpush1.bf16.msra.mxu0 %v2686
        %2699 = vmatprep.subr.bf16.mxu0 0
        %2700 = vmatpush1.bf16.msra.mxu0 %v2687
        %2701 = vmatprep.subr.bf16.mxu0 0
        %2702 = vmatpush1.bf16.msra.mxu0 %v2688
        %2703 = vmatprep.subr.bf16.mxu0 0
        %2704 = vmatpush1.bf16.msra.mxu0 %v2689
        %2705 = vmatprep.subr.bf16.mxu0 0
        %2706 = vmatpush1.bf16.msra.mxu0 0
        %2707 = vmatprep.subr.bf16.mxu0 0
        %2708 = vmatpush1.bf16.msra.mxu0 0
        %2709 = vmatprep.subr.bf16.mxu0 0
        %2710 = vmatpush1.bf16.msra.mxu0 0
        %2711 = vmatprep.subr.bf16.mxu0 0
        %2712 = vmatpush1.bf16.msra.mxu0 0
        %2713 = vmatprep.subr.bf16.mxu0 0
        %2714 = vmatpush1.bf16.msra.mxu0 0
        %2715 = vmatprep.subr.bf16.mxu0 0
        %2716 = vmatpush1.bf16.msra.mxu0 0
        %2717 = vmatprep.subr.bf16.mxu0 0
        %2718 = vmatpush1.bf16.msra.mxu0 0
        %2719 = vmatprep.subr.bf16.mxu0 0
        %2720 = vmatpush1.bf16.msra.mxu0 0
        %2721 = vmatprep.subr.bf16.mxu0 0
        %2722 = vmatpush1.bf16.msra.mxu0 0
        %2723 = vmatprep.subr.bf16.mxu0 0
        %2724 = vmatpush1.bf16.msra.mxu0 0
        %2725 = vmatprep.subr.bf16.mxu0 0
        %2726 = vmatpush1.bf16.msra.mxu0 0
        %2727 = vmatprep.subr.bf16.mxu0 0
        %2728 = vmatpush1.bf16.msra.mxu0 0
        %2729 = vmatprep.mubr.bf16.mxu0 0
        %2730 = vmatmul.mubr.bf16.gmra.mrb[0].mxu0 %v2695
        %v2731 = vpop.f32.mrb[0].mxu0
        %v2732 = vadd.f32 %v2668, %v2731
        %v2733 = vpop.f32.mrb[0].mxu0
        %v2734 = vpop.f32.mrb[0].mxu0
        %v2735 = vpop.f32.mrb[0].mxu0
        %2736 = vdwg.mxu0
        %s2737 = scalar_lea.vmem %s17, 128
        %v2738 = vld [vmem:[%s2737] sm:$0xf]
        %v2739 = vld [vmem:[%s2737 + $0x4] sm:$0xf]
        %v2740 = vld [vmem:[%s2737 + $0x8] sm:$0xf]
        %v2741 = vld [vmem:[%s2737 + $0xc] sm:$0xf]
        %v2742 = vld [vmem:[%s2737 + $0x10] sm:$0xf]
        %v2743 = vld [vmem:[%s2737 + $0x14] sm:$0xf]
        %v2744 = vld [vmem:[%s2737 + $0x18] sm:$0xf]
        %v2745 = vld [vmem:[%s2737 + $0x1c] sm:$0xf]
        %s2746 = scalar_lea.vmem %s19, 4
        %v2747 = vld [vmem:[%s2746] sm:$0x1]
        %v2749 = vlaneseq
        %v2750 = vshrl.u32 %v2749, 7
        %v2751 = vsub.s32 0, %v2750
        %v2752 = vrot.slane %v2747, %v2751
        %v2762 = vunpack.c.l.b16 %v2738
        %v2763 = vunpack.c.l.b16 %v2739
        %v2764 = vunpack.c.l.b16 %v2740
        %v2765 = vunpack.c.l.b16 %v2741
        %v2766 = vunpack.c.l.b16 %v2742
        %v2767 = vunpack.c.l.b16 %v2743
        %v2768 = vunpack.c.l.b16 %v2744
        %v2769 = vunpack.c.l.b16 %v2745
        %v2770 = vpack.c.b16 %v2763, %v2762
        %v2771 = vpack.c.b16 %v2765, %v2764
        %v2772 = vpack.c.b16 %v2767, %v2766
        %v2773 = vpack.c.b16 %v2769, %v2768
        %2778 = vmatprep.subr.bf16.mxu0 0
        %2779 = vmatpush1.bf16.msra.mxu0 %v2770
        %2780 = vmatprep.subr.bf16.mxu0 0
        %2781 = vmatpush1.bf16.msra.mxu0 %v2771
        %2782 = vmatprep.subr.bf16.mxu0 0
        %2783 = vmatpush1.bf16.msra.mxu0 %v2772
        %2784 = vmatprep.subr.bf16.mxu0 0
        %2785 = vmatpush1.bf16.msra.mxu0 %v2773
        %2786 = vmatprep.subr.bf16.mxu0 0
        %2787 = vmatpush1.bf16.msra.mxu0 0
        %2788 = vmatprep.subr.bf16.mxu0 0
        %2789 = vmatpush1.bf16.msra.mxu0 0
        %2790 = vmatprep.subr.bf16.mxu0 0
        %2791 = vmatpush1.bf16.msra.mxu0 0
        %2792 = vmatprep.subr.bf16.mxu0 0
        %2793 = vmatpush1.bf16.msra.mxu0 0
        %2794 = vmatprep.subr.bf16.mxu0 0
        %2795 = vmatpush1.bf16.msra.mxu0 0
        %2796 = vmatprep.subr.bf16.mxu0 0
        %2797 = vmatpush1.bf16.msra.mxu0 0
        %2798 = vmatprep.subr.bf16.mxu0 0
        %2799 = vmatpush1.bf16.msra.mxu0 0
        %2800 = vmatprep.subr.bf16.mxu0 0
        %2801 = vmatpush1.bf16.msra.mxu0 0
        %2802 = vmatprep.subr.bf16.mxu0 0
        %2803 = vmatpush1.bf16.msra.mxu0 0
        %2804 = vmatprep.subr.bf16.mxu0 0
        %2805 = vmatpush1.bf16.msra.mxu0 0
        %2806 = vmatprep.subr.bf16.mxu0 0
        %2807 = vmatpush1.bf16.msra.mxu0 0
        %2808 = vmatprep.subr.bf16.mxu0 0
        %2809 = vmatpush1.bf16.msra.mxu0 0
        %2810 = vmatprep.mubr.bf16.mxu0 0
        %2811 = vmatmul.mubr.bf16.gmra.mrb[0].mxu0 %v2695
        %v2812 = vpop.f32.mrb[0].mxu0
        %v2813 = vadd.f32 %v2752, %v2812
        %v2814 = vpop.f32.mrb[0].mxu0
        %v2815 = vpop.f32.mrb[0].mxu0
        %v2816 = vpop.f32.mrb[0].mxu0
        %2817 = vdwg.mxu0
        %s2818 = scalar_lea.vmem %s17, 160
        %v2819 = vld [vmem:[%s2818] sm:$0xf]
        %v2820 = vld [vmem:[%s2818 + $0x4] sm:$0xf]
        %v2821 = vld [vmem:[%s2818 + $0x8] sm:$0xf]
        %v2822 = vld [vmem:[%s2818 + $0xc] sm:$0xf]
        %v2823 = vld [vmem:[%s2818 + $0x10] sm:$0xf]
        %v2824 = vld [vmem:[%s2818 + $0x14] sm:$0xf]
        %v2825 = vld [vmem:[%s2818 + $0x18] sm:$0xf]
        %v2826 = vld [vmem:[%s2818 + $0x1c] sm:$0xf]
        %s2827 = scalar_lea.vmem %s19, 5
        %v2828 = vld [vmem:[%s2827] sm:$0x1]
        %v2830 = vlaneseq
        %v2831 = vshrl.u32 %v2830, 7
        %v2832 = vsub.s32 0, %v2831
        %v2833 = vrot.slane %v2828, %v2832
        %v2843 = vunpack.c.l.b16 %v2819
        %v2844 = vunpack.c.l.b16 %v2820
        %v2845 = vunpack.c.l.b16 %v2821
        %v2846 = vunpack.c.l.b16 %v2822
        %v2847 = vunpack.c.l.b16 %v2823
        %v2848 = vunpack.c.l.b16 %v2824
        %v2849 = vunpack.c.l.b16 %v2825
        %v2850 = vunpack.c.l.b16 %v2826
        %v2851 = vpack.c.b16 %v2844, %v2843
        %v2852 = vpack.c.b16 %v2846, %v2845
        %v2853 = vpack.c.b16 %v2848, %v2847
        %v2854 = vpack.c.b16 %v2850, %v2849
        %2859 = vmatprep.subr.bf16.mxu0 0
        %2860 = vmatpush1.bf16.msra.mxu0 %v2851
        %2861 = vmatprep.subr.bf16.mxu0 0
        %2862 = vmatpush1.bf16.msra.mxu0 %v2852
        %2863 = vmatprep.subr.bf16.mxu0 0
        %2864 = vmatpush1.bf16.msra.mxu0 %v2853
        %2865 = vmatprep.subr.bf16.mxu0 0
        %2866 = vmatpush1.bf16.msra.mxu0 %v2854
        %2867 = vmatprep.subr.bf16.mxu0 0
        %2868 = vmatpush1.bf16.msra.mxu0 0
        %2869 = vmatprep.subr.bf16.mxu0 0
        %2870 = vmatpush1.bf16.msra.mxu0 0
        %2871 = vmatprep.subr.bf16.mxu0 0
        %2872 = vmatpush1.bf16.msra.mxu0 0
        %2873 = vmatprep.subr.bf16.mxu0 0
        %2874 = vmatpush1.bf16.msra.mxu0 0
        %2875 = vmatprep.subr.bf16.mxu0 0
        %2876 = vmatpush1.bf16.msra.mxu0 0
        %2877 = vmatprep.subr.bf16.mxu0 0
        %2878 = vmatpush1.bf16.msra.mxu0 0
        %2879 = vmatprep.subr.bf16.mxu0 0
        %2880 = vmatpush1.bf16.msra.mxu0 0
        %2881 = vmatprep.subr.bf16.mxu0 0
        %2882 = vmatpush1.bf16.msra.mxu0 0
        %2883 = vmatprep.subr.bf16.mxu0 0
        %2884 = vmatpush1.bf16.msra.mxu0 0
        %2885 = vmatprep.subr.bf16.mxu0 0
        %2886 = vmatpush1.bf16.msra.mxu0 0
        %2887 = vmatprep.subr.bf16.mxu0 0
        %2888 = vmatpush1.bf16.msra.mxu0 0
        %2889 = vmatprep.subr.bf16.mxu0 0
        %2890 = vmatpush1.bf16.msra.mxu0 0
        %2891 = vmatprep.mubr.bf16.mxu0 0
        %2892 = vmatmul.mubr.bf16.gmra.mrb[0].mxu0 %v2695
        %v2893 = vpop.f32.mrb[0].mxu0
        %v2894 = vadd.f32 %v2833, %v2893
        %v2895 = vpop.f32.mrb[0].mxu0
        %v2896 = vpop.f32.mrb[0].mxu0
        %v2897 = vpop.f32.mrb[0].mxu0
        %2898 = vdwg.mxu0
        %v2899 = vpack.c.bf16 %v2813, %v2813
        %v2901 = vsel %vm1965, %v2899, 0
        %2903 = vmatprep.subr.bf16.mxu0 0
        %2904 = vmatpush1.bf16.msra.mxu0 %v2901
        %2905 = vmatprep.subr.bf16.mxu0 0
        %2906 = vmatpush1.bf16.msra.mxu0 0
        %2907 = vmatprep.subr.bf16.mxu0 0
        %2908 = vmatpush1.bf16.msra.mxu0 0
        %2909 = vmatprep.subr.bf16.mxu0 0
        %2910 = vmatpush1.bf16.msra.mxu0 0
        %2911 = vmatprep.subr.bf16.mxu0 0
        %2912 = vmatpush1.bf16.msra.mxu0 0
        %2913 = vmatprep.subr.bf16.mxu0 0
        %2914 = vmatpush1.bf16.msra.mxu0 0
        %2915 = vmatprep.subr.bf16.mxu0 0
        %2916 = vmatpush1.bf16.msra.mxu0 0
        %2917 = vmatprep.subr.bf16.mxu0 0
        %2918 = vmatpush1.bf16.msra.mxu0 0
        %2919 = vmatprep.subr.bf16.mxu0 0
        %2920 = vmatpush1.bf16.msra.mxu0 0
        %2921 = vmatprep.subr.bf16.mxu0 0
        %2922 = vmatpush1.bf16.msra.mxu0 0
        %2923 = vmatprep.subr.bf16.mxu0 0
        %2924 = vmatpush1.bf16.msra.mxu0 0
        %2925 = vmatprep.subr.bf16.mxu0 0
        %2926 = vmatpush1.bf16.msra.mxu0 0
        %2927 = vmatprep.subr.bf16.mxu0 0
        %2928 = vmatpush1.bf16.msra.mxu0 0
        %2929 = vmatprep.subr.bf16.mxu0 0
        %2930 = vmatpush1.bf16.msra.mxu0 0
        %2931 = vmatprep.subr.bf16.mxu0 0
        %2932 = vmatpush1.bf16.msra.mxu0 0
        %2933 = vmatprep.subr.bf16.mxu0 0
        %2934 = vmatpush1.bf16.msra.mxu0 0
        %2935 = vmatprep.mubr.bf16.mxu0 0
        %2936 = vmatmul.mubr.bf16.gmra.mrb[0].mxu0 %v1963
        %v2937 = vpop.f32.mrb[0].mxu0
        %v2938 = vadd.f32 0.0, %v2937
        %v2939 = vpop.f32.mrb[0].mxu0
        %v2940 = vpop.f32.mrb[0].mxu0
        %v2941 = vadd.f32 0.0, %v2940
        %v2942 = vpop.f32.mrb[0].mxu0
        %2943 = vdwg.mxu0
        %v2944 = vmul.f32 %v2938, %v1958
        %v2945 = vmul.f32 %v2941, %v1959
        %v2946 = vpack.c.bf16 %v2945, %v2944
        %v2947 = vpack.c.bf16 %v2894, %v2894
        %v2949 = vsel %vm1965, %v2947, 0
        %2951 = vmatprep.subr.bf16.mxu0 0
        %2952 = vmatpush1.bf16.msra.mxu0 %v2949
        %2953 = vmatprep.subr.bf16.mxu0 0
        %2954 = vmatpush1.bf16.msra.mxu0 0
        %2955 = vmatprep.subr.bf16.mxu0 0
        %2956 = vmatpush1.bf16.msra.mxu0 0
        %2957 = vmatprep.subr.bf16.mxu0 0
        %2958 = vmatpush1.bf16.msra.mxu0 0
        %2959 = vmatprep.subr.bf16.mxu0 0
        %2960 = vmatpush1.bf16.msra.mxu0 0
        %2961 = vmatprep.subr.bf16.mxu0 0
        %2962 = vmatpush1.bf16.msra.mxu0 0
        %2963 = vmatprep.subr.bf16.mxu0 0
        %2964 = vmatpush1.bf16.msra.mxu0 0
        %2965 = vmatprep.subr.bf16.mxu0 0
        %2966 = vmatpush1.bf16.msra.mxu0 0
        %2967 = vmatprep.subr.bf16.mxu0 0
        %2968 = vmatpush1.bf16.msra.mxu0 0
        %2969 = vmatprep.subr.bf16.mxu0 0
        %2970 = vmatpush1.bf16.msra.mxu0 0
        %2971 = vmatprep.subr.bf16.mxu0 0
        %2972 = vmatpush1.bf16.msra.mxu0 0
        %2973 = vmatprep.subr.bf16.mxu0 0
        %2974 = vmatpush1.bf16.msra.mxu0 0
        %2975 = vmatprep.subr.bf16.mxu0 0
        %2976 = vmatpush1.bf16.msra.mxu0 0
        %2977 = vmatprep.subr.bf16.mxu0 0
        %2978 = vmatpush1.bf16.msra.mxu0 0
        %2979 = vmatprep.subr.bf16.mxu0 0
        %2980 = vmatpush1.bf16.msra.mxu0 0
        %2981 = vmatprep.subr.bf16.mxu0 0
        %2982 = vmatpush1.bf16.msra.mxu0 0
        %2983 = vmatprep.mubr.bf16.mxu0 0
        %2984 = vmatmul.mubr.bf16.gmra.mrb[0].mxu0 %v1963
        %v2985 = vpop.f32.mrb[0].mxu0
        %v2986 = vadd.f32 0.0, %v2985
        %v2987 = vpop.f32.mrb[0].mxu0
        %v2988 = vpop.f32.mrb[0].mxu0
        %v2989 = vadd.f32 0.0, %v2988
        %v2990 = vpop.f32.mrb[0].mxu0
        %2991 = vdwg.mxu0
        %v2992 = vmul.f32 %v2986, %v1958
        %v2993 = vmul.f32 %v2989, %v1959
        %v2994 = vpack.c.bf16 %v2993, %v2992
        %v2995 = vpack.c.bf16 %v2732, %v2732
        %v2997 = vsel %vm1735, %v2995, 0
        %v3000 = vsel %vm1735, %v2946, 0
        %3002 = vmatprep.subr.bf16.mxu0 0
        %3003 = vmatpush1.bf16.xpose.msra.mxu0 %v3000
        %3004 = vmatprep.subr.bf16.mxu0 0
        %3005 = vmatpush1.bf16.xpose.msra.mxu0 0
        %3006 = vmatprep.subr.bf16.mxu0 0
        %3007 = vmatpush1.bf16.xpose.msra.mxu0 0
        %3008 = vmatprep.subr.bf16.mxu0 0
        %3009 = vmatpush1.bf16.xpose.msra.mxu0 0
        %3010 = vmatprep.subr.bf16.mxu0 0
        %3011 = vmatpush1.bf16.xpose.msra.mxu0 0
        %3012 = vmatprep.subr.bf16.mxu0 0
        %3013 = vmatpush1.bf16.xpose.msra.mxu0 0
        %3014 = vmatprep.subr.bf16.mxu0 0
        %3015 = vmatpush1.bf16.xpose.msra.mxu0 0
        %3016 = vmatprep.subr.bf16.mxu0 0
        %3017 = vmatpush1.bf16.xpose.msra.mxu0 0
        %3018 = vmatprep.subr.bf16.mxu0 0
        %3019 = vmatpush1.bf16.xpose.msra.mxu0 0
        %3020 = vmatprep.subr.bf16.mxu0 0
        %3021 = vmatpush1.bf16.xpose.msra.mxu0 0
        %3022 = vmatprep.subr.bf16.mxu0 0
        %3023 = vmatpush1.bf16.xpose.msra.mxu0 0
        %3024 = vmatprep.subr.bf16.mxu0 0
        %3025 = vmatpush1.bf16.xpose.msra.mxu0 0
        %3026 = vmatprep.subr.bf16.mxu0 0
        %3027 = vmatpush1.bf16.xpose.msra.mxu0 0
        %3028 = vmatprep.subr.bf16.mxu0 0
        %3029 = vmatpush1.bf16.xpose.msra.mxu0 0
        %3030 = vmatprep.subr.bf16.mxu0 0
        %3031 = vmatpush1.bf16.xpose.msra.mxu0 0
        %3032 = vmatprep.subr.bf16.mxu0 0
        %3033 = vmatpush1.bf16.xpose.msra.mxu0 0
        %3034 = vmatprep.mubr.bf16.mxu0 0
        %3035 = vmatmul.mubr.bf16.gmra.mrb[0].mxu0 %v2997
        %v3036 = vpop.f32.mrb[0].mxu0
        %v3037 = vadd.f32 0.0, %v3036
        %v3038 = vpop.f32.mrb[0].mxu0
        %v3039 = vpop.f32.mrb[0].mxu0
        %v3040 = vpop.f32.mrb[0].mxu0
        %3041 = vdwg.mxu0
        %v3042 = vmul.f32 %v3037, 0.25
        %v3043 = vsel %vm2109, %v3042, -inf
        %3044 = vmax.xlane.f32.xlu0 %v3043
        %v3045 = vpop.xlane.xlu0 %3044
        %v3046 = vsub.f32 %v3042, %v3045
        %v3047 = vmul.f32 %v3046, 1.442695
        %v3048 = vpow.pop %v3047
        %v3049 = vpack.c.bf16 %v3048, %v3048
        %v3051 = vsel %vm2118, %v3049, 0
        %3053 = vmatprep.subr.bf16.mxu0 0
        %3054 = vmatpush1.bf16.msra.mxu0 %v2117
        %3055 = vmatprep.subr.bf16.mxu0 0
        %3056 = vmatpush1.bf16.msra.mxu0 0
        %3057 = vmatprep.subr.bf16.mxu0 0
        %3058 = vmatpush1.bf16.msra.mxu0 0
        %3059 = vmatprep.subr.bf16.mxu0 0
        %3060 = vmatpush1.bf16.msra.mxu0 0
        %3061 = vmatprep.subr.bf16.mxu0 0
        %3062 = vmatpush1.bf16.msra.mxu0 0
        %3063 = vmatprep.subr.bf16.mxu0 0
        %3064 = vmatpush1.bf16.msra.mxu0 0
        %3065 = vmatprep.subr.bf16.mxu0 0
        %3066 = vmatpush1.bf16.msra.mxu0 0
        %3067 = vmatprep.subr.bf16.mxu0 0
        %3068 = vmatpush1.bf16.msra.mxu0 0
        %3069 = vmatprep.subr.bf16.mxu0 0
        %3070 = vmatpush1.bf16.msra.mxu0 0
        %3071 = vmatprep.subr.bf16.mxu0 0
        %3072 = vmatpush1.bf16.msra.mxu0 0
        %3073 = vmatprep.subr.bf16.mxu0 0
        %3074 = vmatpush1.bf16.msra.mxu0 0
        %3075 = vmatprep.subr.bf16.mxu0 0
        %3076 = vmatpush1.bf16.msra.mxu0 0
        %3077 = vmatprep.subr.bf16.mxu0 0
        %3078 = vmatpush1.bf16.msra.mxu0 0
        %3079 = vmatprep.subr.bf16.mxu0 0
        %3080 = vmatpush1.bf16.msra.mxu0 0
        %3081 = vmatprep.subr.bf16.mxu0 0
        %3082 = vmatpush1.bf16.msra.mxu0 0
        %3083 = vmatprep.subr.bf16.mxu0 0
        %3084 = vmatpush1.bf16.msra.mxu0 0
        %3085 = vmatprep.mubr.bf16.mxu0 0
        %3086 = vmatmul.mubr.bf16.gmra.mrb[0].mxu0 %v3051
        %v3087 = vpop.f32.mrb[0].mxu0
        %v3088 = vadd.f32 0.0, %v3087
        %v3089 = vpop.f32.mrb[0].mxu0
        %v3090 = vpop.f32.mrb[0].mxu0
        %v3091 = vpop.f32.mrb[0].mxu0
        %3092 = vdwg.mxu0
        %3093 = vmatprep.subr.bf16.mxu0 0
        %3094 = vmatpush1.bf16.msra.mxu0 %v2994
        %3095 = vmatprep.subr.bf16.mxu0 0
        %3096 = vmatpush1.bf16.msra.mxu0 0
        %3097 = vmatprep.subr.bf16.mxu0 0
        %3098 = vmatpush1.bf16.msra.mxu0 0
        %3099 = vmatprep.subr.bf16.mxu0 0
        %3100 = vmatpush1.bf16.msra.mxu0 0
        %3101 = vmatprep.subr.bf16.mxu0 0
        %3102 = vmatpush1.bf16.msra.mxu0 0
        %3103 = vmatprep.subr.bf16.mxu0 0
        %3104 = vmatpush1.bf16.msra.mxu0 0
        %3105 = vmatprep.subr.bf16.mxu0 0
        %3106 = vmatpush1.bf16.msra.mxu0 0
        %3107 = vmatprep.subr.bf16.mxu0 0
        %3108 = vmatpush1.bf16.msra.mxu0 0
        %3109 = vmatprep.subr.bf16.mxu0 0
        %3110 = vmatpush1.bf16.msra.mxu0 0
        %3111 = vmatprep.subr.bf16.mxu0 0
        %3112 = vmatpush1.bf16.msra.mxu0 0
        %3113 = vmatprep.subr.bf16.mxu0 0
        %3114 = vmatpush1.bf16.msra.mxu0 0
        %3115 = vmatprep.subr.bf16.mxu0 0
        %3116 = vmatpush1.bf16.msra.mxu0 0
        %3117 = vmatprep.subr.bf16.mxu0 0
        %3118 = vmatpush1.bf16.msra.mxu0 0
        %3119 = vmatprep.subr.bf16.mxu0 0
        %3120 = vmatpush1.bf16.msra.mxu0 0
        %3121 = vmatprep.subr.bf16.mxu0 0
        %3122 = vmatpush1.bf16.msra.mxu0 0
        %3123 = vmatprep.subr.bf16.mxu0 0
        %3124 = vmatpush1.bf16.msra.mxu0 0
        %3125 = vmatprep.mubr.bf16.mxu0 0
        %3126 = vmatmul.mubr.bf16.gmra.mrb[0].mxu0 %v3051
        %v3127 = vpop.f32.mrb[0].mxu0
        %v3128 = vadd.f32 0.0, %v3127
        %v3129 = vpop.f32.mrb[0].mxu0
        %v3130 = vpop.f32.mrb[0].mxu0
        %v3131 = vpop.f32.mrb[0].mxu0
        %3132 = vdwg.mxu0
        %v3133 = vrcp.pop %v3088
        %v3134 = vmul.f32 %v3128, %v3133
        %s3135 = scalar_lea.vmem %s21, 32
        %v3136 = vld [vmem:[%s3135] sm:$0xf]
        %v3137 = vld [vmem:[%s3135 + $0x4] sm:$0xf]
        %v3138 = vld [vmem:[%s3135 + $0x8] sm:$0xf]
        %v3139 = vld [vmem:[%s3135 + $0xc] sm:$0xf]
        %v3140 = vld [vmem:[%s3135 + $0x10] sm:$0xf]
        %v3141 = vld [vmem:[%s3135 + $0x14] sm:$0xf]
        %v3142 = vld [vmem:[%s3135 + $0x18] sm:$0xf]
        %v3143 = vld [vmem:[%s3135 + $0x1c] sm:$0xf]
        %v3144 = vpack.c.bf16 %v3134, %v3134
        %s3145 = scalar_lea.vmem %s23, 1
        %v3146 = vld [vmem:[%s3145] sm:$0x1]
        %v3148 = vlaneseq
        %v3149 = vshrl.u32 %v3148, 7
        %v3150 = vsub.s32 0, %v3149
        %v3151 = vrot.slane %v3146, %v3150
        %v3161 = vunpack.c.l.b16 %v3136
        %v3162 = vunpack.c.l.b16 %v3137
        %v3163 = vunpack.c.l.b16 %v3138
        %v3164 = vunpack.c.l.b16 %v3139
        %v3165 = vunpack.c.l.b16 %v3140
        %v3166 = vunpack.c.l.b16 %v3141
        %v3167 = vunpack.c.l.b16 %v3142
        %v3168 = vunpack.c.l.b16 %v3143
        %v3169 = vpack.c.b16 %v3162, %v3161
        %v3170 = vpack.c.b16 %v3164, %v3163
        %v3171 = vpack.c.b16 %v3166, %v3165
        %v3172 = vpack.c.b16 %v3168, %v3167
        %v3178 = vsel %vm1735, %v3144, 0
        %3180 = vmatprep.subr.bf16.mxu0 0
        %3181 = vmatpush1.bf16.msra.mxu0 %v3169
        %3182 = vmatprep.subr.bf16.mxu0 0
        %3183 = vmatpush1.bf16.msra.mxu0 %v3170
        %3184 = vmatprep.subr.bf16.mxu0 0
        %3185 = vmatpush1.bf16.msra.mxu0 %v3171
        %3186 = vmatprep.subr.bf16.mxu0 0
        %3187 = vmatpush1.bf16.msra.mxu0 %v3172
        %3188 = vmatprep.subr.bf16.mxu0 0
        %3189 = vmatpush1.bf16.msra.mxu0 0
        %3190 = vmatprep.subr.bf16.mxu0 0
        %3191 = vmatpush1.bf16.msra.mxu0 0
        %3192 = vmatprep.subr.bf16.mxu0 0
        %3193 = vmatpush1.bf16.msra.mxu0 0
        %3194 = vmatprep.subr.bf16.mxu0 0
        %3195 = vmatpush1.bf16.msra.mxu0 0
        %3196 = vmatprep.subr.bf16.mxu0 0
        %3197 = vmatpush1.bf16.msra.mxu0 0
        %3198 = vmatprep.subr.bf16.mxu0 0
        %3199 = vmatpush1.bf16.msra.mxu0 0
        %3200 = vmatprep.subr.bf16.mxu0 0
        %3201 = vmatpush1.bf16.msra.mxu0 0
        %3202 = vmatprep.subr.bf16.mxu0 0
        %3203 = vmatpush1.bf16.msra.mxu0 0
        %3204 = vmatprep.subr.bf16.mxu0 0
        %3205 = vmatpush1.bf16.msra.mxu0 0
        %3206 = vmatprep.subr.bf16.mxu0 0
        %3207 = vmatpush1.bf16.msra.mxu0 0
        %3208 = vmatprep.subr.bf16.mxu0 0
        %3209 = vmatpush1.bf16.msra.mxu0 0
        %3210 = vmatprep.subr.bf16.mxu0 0
        %3211 = vmatpush1.bf16.msra.mxu0 0
        %3212 = vmatprep.mubr.bf16.mxu0 0
        %3213 = vmatmul.mubr.bf16.gmra.mrb[0].mxu0 %v3178
        %v3214 = vpop.f32.mrb[0].mxu0
        %v3215 = vadd.f32 %v3151, %v3214
        %v3216 = vpop.f32.mrb[0].mxu0
        %v3217 = vpop.f32.mrb[0].mxu0
        %v3218 = vpop.f32.mrb[0].mxu0
        %3219 = vdwg.mxu0
        %v3220 = vadd.f32 %v2620, %v3215
        %s3221 = scalar_lea.vmem %s13, 3
        %v3222 = vld [vmem:[%s3221] sm:$0x1]
        %s3223 = scalar_lea.vmem %s15, 3
        %v3224 = vld [vmem:[%s3223] sm:$0x1]
        %v3225 = vsel %vm1666, %v3220, 0.0
        %3226 = vadd.xlane.f32.xlu0 %v3225
        %v3227 = vpop.xlane.xlu0 %3226
        %v3228 = vmul.f32 %v3227, %v1670
        %v3229 = vsub.f32 %v3220, %v3228
        %v3230 = vmul.f32 %v3229, %v3229
        %v3231 = vsel %vm1666, %v3230, 0.0
        %3232 = vadd.xlane.f32.xlu0 %v3231
        %v3233 = vpop.xlane.xlu0 %3232
        %v3234 = vmul.f32 %v3233, %v1670
        %v3235 = vadd.f32 %v3234, 1e-06
        %v3236 = vrsqrt.pop %v3235
        %v3237 = vmul.f32 %v3229, %v3236
        %v3239 = vlaneseq
        %v3240 = vshrl.u32 %v3239, 7
        %v3241 = vsub.s32 0, %v3240
        %v3242 = vrot.slane %v3222, %v3241
        %v3244 = vmul.f32 %v3237, %v3242
        %v3246 = vlaneseq
        %v3247 = vshrl.u32 %v3246, 7
        %v3248 = vsub.s32 0, %v3247
        %v3249 = vrot.slane %v3224, %v3248
        %v3251 = vadd.f32 %v3244, %v3249
        %s3252 = scalar_lea.vmem %s25, 64
        %v3253 = vld [vmem:[%s3252] sm:$0xff]
        %v3254 = vld [vmem:[%s3252 + $0x8] sm:$0xff]
        %v3255 = vld [vmem:[%s3252 + $0x10] sm:$0xff]
        %v3256 = vld [vmem:[%s3252 + $0x18] sm:$0xff]
        %v3257 = vld [vmem:[%s3252 + $0x20] sm:$0xff]
        %v3258 = vld [vmem:[%s3252 + $0x28] sm:$0xff]
        %v3259 = vld [vmem:[%s3252 + $0x30] sm:$0xff]
        %v3260 = vld [vmem:[%s3252 + $0x38] sm:$0xff]
        %v3261 = vpack.c.bf16 %v3251, %v3251
        %s3262 = scalar_lea.vmem %s27, 2
        %v3263 = vld [vmem:[%s3262] sm:$0x3]
        %v3265 = vlaneseq
        %v3266 = vshrl.u32 %v3265, 7
        %v3267 = vsub.s32 0, %v3266
        %v3268 = vrot.slane %v3263, %v3267
        %v3269 = vlaneseq
        %v3270 = vshrl.u32 %v3269, 7
        %v3271 = vsub.s32 1, %v3270
        %v3272 = vrot.slane %v3263, %v3271
        %v3283 = vunpack.c.l.b16 %v3253
        %v3284 = vunpack.c.h.b16 %v3253
        %v3285 = vunpack.c.l.b16 %v3254
        %v3286 = vunpack.c.h.b16 %v3254
        %v3287 = vunpack.c.l.b16 %v3255
        %v3288 = vunpack.c.h.b16 %v3255
        %v3289 = vunpack.c.l.b16 %v3256
        %v3290 = vunpack.c.h.b16 %v3256
        %v3291 = vunpack.c.l.b16 %v3257
        %v3292 = vunpack.c.h.b16 %v3257
        %v3293 = vunpack.c.l.b16 %v3258
        %v3294 = vunpack.c.h.b16 %v3258
        %v3295 = vunpack.c.l.b16 %v3259
        %v3296 = vunpack.c.h.b16 %v3259
        %v3297 = vunpack.c.l.b16 %v3260
        %v3298 = vunpack.c.h.b16 %v3260
        %v3299 = vpack.c.b16 %v3285, %v3283
        %v3300 = vpack.c.b16 %v3286, %v3284
        %v3301 = vpack.c.b16 %v3289, %v3287
        %v3302 = vpack.c.b16 %v3290, %v3288
        %v3303 = vpack.c.b16 %v3293, %v3291
        %v3304 = vpack.c.b16 %v3294, %v3292
        %v3305 = vpack.c.b16 %v3297, %v3295
        %v3306 = vpack.c.b16 %v3298, %v3296
        %v3316 = vsel %vm1735, %v3261, 0
        %3318 = vmatprep.subr.bf16.mxu0 %v3300
        %3319 = vmatpush1.bf16.msra.mxu0 %v3299
        %3320 = vmatprep.subr.bf16.mxu0 %v3302
        %3321 = vmatpush1.bf16.msra.mxu0 %v3301
        %3322 = vmatprep.subr.bf16.mxu0 %v3304
        %3323 = vmatpush1.bf16.msra.mxu0 %v3303
        %3324 = vmatprep.subr.bf16.mxu0 %v3306
        %3325 = vmatpush1.bf16.msra.mxu0 %v3305
        %3326 = vmatprep.subr.bf16.mxu0 0
        %3327 = vmatpush1.bf16.msra.mxu0 0
        %3328 = vmatprep.subr.bf16.mxu0 0
        %3329 = vmatpush1.bf16.msra.mxu0 0
        %3330 = vmatprep.subr.bf16.mxu0 0
        %3331 = vmatpush1.bf16.msra.mxu0 0
        %3332 = vmatprep.subr.bf16.mxu0 0
        %3333 = vmatpush1.bf16.msra.mxu0 0
        %3334 = vmatprep.subr.bf16.mxu0 0
        %3335 = vmatpush1.bf16.msra.mxu0 0
        %3336 = vmatprep.subr.bf16.mxu0 0
        %3337 = vmatpush1.bf16.msra.mxu0 0
        %3338 = vmatprep.subr.bf16.mxu0 0
        %3339 = vmatpush1.bf16.msra.mxu0 0
        %3340 = vmatprep.subr.bf16.mxu0 0
        %3341 = vmatpush1.bf16.msra.mxu0 0
        %3342 = vmatprep.subr.bf16.mxu0 0
        %3343 = vmatpush1.bf16.msra.mxu0 0
        %3344 = vmatprep.subr.bf16.mxu0 0
        %3345 = vmatpush1.bf16.msra.mxu0 0
        %3346 = vmatprep.subr.bf16.mxu0 0
        %3347 = vmatpush1.bf16.msra.mxu0 0
        %3348 = vmatprep.subr.bf16.mxu0 0
        %3349 = vmatpush1.bf16.msra.mxu0 0
        %3350 = vmatprep.mubr.bf16.mxu0 0
        %3351 = vmatmul.mubr.bf16.gmra.mrb[0].mxu0 %v3316
        %v3352 = vpop.f32.mrb[0].mxu0
        %v3353 = vadd.f32 %v3268, %v3352
        %v3354 = vpop.f32.mrb[0].mxu0
        %v3355 = vadd.f32 %v3272, %v3354
        %v3356 = vpop.f32.mrb[0].mxu0
        %v3357 = vpop.f32.mrb[0].mxu0
        %3358 = vdwg.mxu0
        %v3359 = vmul.f32 %v3353, %v3353
        %v3360 = vmul.f32 %v3355, %v3355
        %v3361 = vmul.f32 %v3353, %v3359
        %v3362 = vmul.f32 %v3355, %v3360
        %v3363 = vmul.f32 %v3361, 0.044715
        %v3364 = vmul.f32 %v3362, 0.044715
        %v3365 = vadd.f32 %v3353, %v3363
        %v3366 = vadd.f32 %v3355, %v3364
        %v3367 = vmul.f32 %v3365, 0.7978846
        %v3368 = vmul.f32 %v3366, 0.7978846
        %v3369 = vtanh.pop %v3367
        %v3370 = vtanh.pop %v3368
        %v3371 = vadd.f32 %v3369, 1.0
        %v3372 = vadd.f32 %v3370, 1.0
        %v3373 = vmul.f32 %v3371, 0.5
        %v3374 = vmul.f32 %v3372, 0.5
        %v3375 = vmul.f32 %v3353, %v3373
        %v3376 = vmul.f32 %v3355, %v3374
        %s3377 = scalar_lea.vmem %s29, 128
        %v3378 = vld [vmem:[%s3377] sm:$0xf]
        %v3379 = vld [vmem:[%s3377 + $0x4] sm:$0xf]
        %v3380 = vld [vmem:[%s3377 + $0x8] sm:$0xf]
        %v3381 = vld [vmem:[%s3377 + $0xc] sm:$0xf]
        %v3382 = vld [vmem:[%s3377 + $0x10] sm:$0xf]
        %v3383 = vld [vmem:[%s3377 + $0x14] sm:$0xf]
        %v3384 = vld [vmem:[%s3377 + $0x18] sm:$0xf]
        %v3385 = vld [vmem:[%s3377 + $0x1c] sm:$0xf]
        %v3386 = vld [vmem:[%s3377 + $0x20] sm:$0xf]
        %v3387 = vld [vmem:[%s3377 + $0x24] sm:$0xf]
        %v3388 = vld [vmem:[%s3377 + $0x28] sm:$0xf]
        %v3389 = vld [vmem:[%s3377 + $0x2c] sm:$0xf]
        %v3390 = vld [vmem:[%s3377 + $0x30] sm:$0xf]
        %v3391 = vld [vmem:[%s3377 + $0x34] sm:$0xf]
        %v3392 = vld [vmem:[%s3377 + $0x38] sm:$0xf]
        %v3393 = vld [vmem:[%s3377 + $0x3c] sm:$0xf]
        %v3394 = vld [vmem:[%s3377 + $0x40] sm:$0xf]
        %v3395 = vld [vmem:[%s3377 + $0x44] sm:$0xf]
        %v3396 = vld [vmem:[%s3377 + $0x48] sm:$0xf]
        %v3397 = vld [vmem:[%s3377 + $0x4c] sm:$0xf]
        %v3398 = vld [vmem:[%s3377 + $0x50] sm:$0xf]
        %v3399 = vld [vmem:[%s3377 + $0x54] sm:$0xf]
        %v3400 = vld [vmem:[%s3377 + $0x58] sm:$0xf]
        %v3401 = vld [vmem:[%s3377 + $0x5c] sm:$0xf]
        %v3402 = vld [vmem:[%s3377 + $0x60] sm:$0xf]
        %v3403 = vld [vmem:[%s3377 + $0x64] sm:$0xf]
        %v3404 = vld [vmem:[%s3377 + $0x68] sm:$0xf]
        %v3405 = vld [vmem:[%s3377 + $0x6c] sm:$0xf]
        %v3406 = vld [vmem:[%s3377 + $0x70] sm:$0xf]
        %v3407 = vld [vmem:[%s3377 + $0x74] sm:$0xf]
        %v3408 = vld [vmem:[%s3377 + $0x78] sm:$0xf]
        %v3409 = vld [vmem:[%s3377 + $0x7c] sm:$0xf]
        %v3410 = vpack.c.bf16 %v3375, %v3375
        %v3411 = vpack.c.bf16 %v3376, %v3376
        %v3444 = vunpack.c.l.b16 %v3378
        %v3445 = vunpack.c.l.b16 %v3379
        %v3446 = vunpack.c.l.b16 %v3380
        %v3447 = vunpack.c.l.b16 %v3381
        %v3448 = vunpack.c.l.b16 %v3382
        %v3449 = vunpack.c.l.b16 %v3383
        %v3450 = vunpack.c.l.b16 %v3384
        %v3451 = vunpack.c.l.b16 %v3385
        %v3452 = vunpack.c.l.b16 %v3386
        %v3453 = vunpack.c.l.b16 %v3387
        %v3454 = vunpack.c.l.b16 %v3388
        %v3455 = vunpack.c.l.b16 %v3389
        %v3456 = vunpack.c.l.b16 %v3390
        %v3457 = vunpack.c.l.b16 %v3391
        %v3458 = vunpack.c.l.b16 %v3392
        %v3459 = vunpack.c.l.b16 %v3393
        %v3460 = vunpack.c.l.b16 %v3394
        %v3461 = vunpack.c.l.b16 %v3395
        %v3462 = vunpack.c.l.b16 %v3396
        %v3463 = vunpack.c.l.b16 %v3397
        %v3464 = vunpack.c.l.b16 %v3398
        %v3465 = vunpack.c.l.b16 %v3399
        %v3466 = vunpack.c.l.b16 %v3400
        %v3467 = vunpack.c.l.b16 %v3401
        %v3468 = vunpack.c.l.b16 %v3402
        %v3469 = vunpack.c.l.b16 %v3403
        %v3470 = vunpack.c.l.b16 %v3404
        %v3471 = vunpack.c.l.b16 %v3405
        %v3472 = vunpack.c.l.b16 %v3406
        %v3473 = vunpack.c.l.b16 %v3407
        %v3474 = vunpack.c.l.b16 %v3408
        %v3475 = vunpack.c.l.b16 %v3409
        %v3476 = vpack.c.b16 %v3445, %v3444
        %v3477 = vpack.c.b16 %v3447, %v3446
        %v3478 = vpack.c.b16 %v3449, %v3448
        %v3479 = vpack.c.b16 %v3451, %v3450
        %v3480 = vpack.c.b16 %v3453, %v3452
        %v3481 = vpack.c.b16 %v3455, %v3454
        %v3482 = vpack.c.b16 %v3457, %v3456
        %v3483 = vpack.c.b16 %v3459, %v3458
        %v3484 = vpack.c.b16 %v3461, %v3460
        %v3485 = vpack.c.b16 %v3463, %v3462
        %v3486 = vpack.c.b16 %v3465, %v3464
        %v3487 = vpack.c.b16 %v3467, %v3466
        %v3488 = vpack.c.b16 %v3469, %v3468
        %v3489 = vpack.c.b16 %v3471, %v3470
        %v3490 = vpack.c.b16 %v3473, %v3472
        %v3491 = vpack.c.b16 %v3475, %v3474
        %3508 = vmatprep.subr.bf16.mxu0 0
        %3509 = vmatpush1.bf16.msra.mxu0 %v3476
        %3510 = vmatprep.subr.bf16.mxu0 0
        %3511 = vmatpush1.bf16.msra.mxu0 %v3477
        %3512 = vmatprep.subr.bf16.mxu0 0
        %3513 = vmatpush1.bf16.msra.mxu0 %v3478
        %3514 = vmatprep.subr.bf16.mxu0 0
        %3515 = vmatpush1.bf16.msra.mxu0 %v3479
        %3516 = vmatprep.subr.bf16.mxu0 0
        %3517 = vmatpush1.bf16.msra.mxu0 %v3480
        %3518 = vmatprep.subr.bf16.mxu0 0
        %3519 = vmatpush1.bf16.msra.mxu0 %v3481
        %3520 = vmatprep.subr.bf16.mxu0 0
        %3521 = vmatpush1.bf16.msra.mxu0 %v3482
        %3522 = vmatprep.subr.bf16.mxu0 0
        %3523 = vmatpush1.bf16.msra.mxu0 %v3483
        %3524 = vmatprep.subr.bf16.mxu0 0
        %3525 = vmatpush1.bf16.msra.mxu0 %v3484
        %3526 = vmatprep.subr.bf16.mxu0 0
        %3527 = vmatpush1.bf16.msra.mxu0 %v3485
        %3528 = vmatprep.subr.bf16.mxu0 0
        %3529 = vmatpush1.bf16.msra.mxu0 %v3486
        %3530 = vmatprep.subr.bf16.mxu0 0
        %3531 = vmatpush1.bf16.msra.mxu0 %v3487
        %3532 = vmatprep.subr.bf16.mxu0 0
        %3533 = vmatpush1.bf16.msra.mxu0 %v3488
        %3534 = vmatprep.subr.bf16.mxu0 0
        %3535 = vmatpush1.bf16.msra.mxu0 %v3489
        %3536 = vmatprep.subr.bf16.mxu0 0
        %3537 = vmatpush1.bf16.msra.mxu0 %v3490
        %3538 = vmatprep.subr.bf16.mxu0 0
        %3539 = vmatpush1.bf16.msra.mxu0 %v3491
        %3540 = vmatprep.mubr.bf16.mxu0 %v3411
        %3541 = vmatmul.mubr.bf16.gmra.mrb[0].mxu0 %v3410
        %v3542 = vpop.f32.mrb[0].mxu0
        %v3543 = vadd.f32 0.0, %v3542
        %v3544 = vpop.f32.mrb[0].mxu0
        %v3545 = vpop.f32.mrb[0].mxu0
        %v3546 = vpop.f32.mrb[0].mxu0
        %3547 = vdwg.mxu0
        %v3548 = vadd.f32 %v3220, %v3543
        %s3549 = scalar_lea.vmem %s31, 1
        %v3550 = vld [vmem:[%s3549] sm:$0x1]
        %v3552 = vlaneseq
        %v3553 = vshrl.u32 %v3552, 7
        %v3554 = vsub.s32 0, %v3553
        %v3555 = vrot.slane %v3550, %v3554
        %v3557 = vadd.f32 %v3548, %v3555
        %v3558 = vld [vmem:[%s33] sm:$0xf]
        %v3559 = vld [vmem:[%s33 + $0x4] sm:$0xf]
        %v3560 = vld [vmem:[%s33 + $0x8] sm:$0xf]
        %v3561 = vld [vmem:[%s33 + $0xc] sm:$0xf]
        %v3562 = vld [vmem:[%s33 + $0x10] sm:$0xf]
        %v3563 = vld [vmem:[%s33 + $0x14] sm:$0xf]
        %v3564 = vld [vmem:[%s33 + $0x18] sm:$0xf]
        %v3565 = vld [vmem:[%s33 + $0x1c] sm:$0xf]
        %v3566 = vpack.c.bf16 %v3557, %v3557
        %v3567 = vld [vmem:[%s35] sm:$0x1]
        %v3569 = vlaneseq
        %v3570 = vshrl.u32 %v3569, 7
        %v3571 = vsub.s32 0, %v3570
        %v3572 = vrot.slane %v3567, %v3571
        %v3582 = vunpack.c.l.b16 %v3558
        %v3583 = vunpack.c.l.b16 %v3559
        %v3584 = vunpack.c.l.b16 %v3560
        %v3585 = vunpack.c.l.b16 %v3561
        %v3586 = vunpack.c.l.b16 %v3562
        %v3587 = vunpack.c.l.b16 %v3563
        %v3588 = vunpack.c.l.b16 %v3564
        %v3589 = vunpack.c.l.b16 %v3565
        %v3590 = vpack.c.b16 %v3583, %v3582
        %v3591 = vpack.c.b16 %v3585, %v3584
        %v3592 = vpack.c.b16 %v3587, %v3586
        %v3593 = vpack.c.b16 %v3589, %v3588
        %v3599 = vsel %vm1735, %v3566, 0
        %3601 = vmatprep.subr.bf16.mxu0 0
        %3602 = vmatpush1.bf16.msra.mxu0 %v3590
        %3603 = vmatprep.subr.bf16.mxu0 0
        %3604 = vmatpush1.bf16.msra.mxu0 %v3591
        %3605 = vmatprep.subr.bf16.mxu0 0
        %3606 = vmatpush1.bf16.msra.mxu0 %v3592
        %3607 = vmatprep.subr.bf16.mxu0 0
        %3608 = vmatpush1.bf16.msra.mxu0 %v3593
        %3609 = vmatprep.subr.bf16.mxu0 0
        %3610 = vmatpush1.bf16.msra.mxu0 0
        %3611 = vmatprep.subr.bf16.mxu0 0
        %3612 = vmatpush1.bf16.msra.mxu0 0
        %3613 = vmatprep.subr.bf16.mxu0 0
        %3614 = vmatpush1.bf16.msra.mxu0 0
        %3615 = vmatprep.subr.bf16.mxu0 0
        %3616 = vmatpush1.bf16.msra.mxu0 0
        %3617 = vmatprep.subr.bf16.mxu0 0
        %3618 = vmatpush1.bf16.msra.mxu0 0
        %3619 = vmatprep.subr.bf16.mxu0 0
        %3620 = vmatpush1.bf16.msra.mxu0 0
        %3621 = vmatprep.subr.bf16.mxu0 0
        %3622 = vmatpush1.bf16.msra.mxu0 0
        %3623 = vmatprep.subr.bf16.mxu0 0
        %3624 = vmatpush1.bf16.msra.mxu0 0
        %3625 = vmatprep.subr.bf16.mxu0 0
        %3626 = vmatpush1.bf16.msra.mxu0 0
        %3627 = vmatprep.subr.bf16.mxu0 0
        %3628 = vmatpush1.bf16.msra.mxu0 0
        %3629 = vmatprep.subr.bf16.mxu0 0
        %3630 = vmatpush1.bf16.msra.mxu0 0
        %3631 = vmatprep.subr.bf16.mxu0 0
        %3632 = vmatpush1.bf16.msra.mxu0 0
        %3633 = vmatprep.mubr.bf16.mxu0 0
        %3634 = vmatmul.mubr.bf16.gmra.mrb[0].mxu0 %v3599
        %v3635 = vpop.f32.mrb[0].mxu0
        %v3636 = vadd.f32 %v3572, %v3635
        %v3637 = vpop.f32.mrb[0].mxu0
        %v3638 = vpop.f32.mrb[0].mxu0
        %v3639 = vpop.f32.mrb[0].mxu0
        %3640 = vdwg.mxu0
        %v3641 = vld [vmem:[%s37] sm:$0x1]
        %v3642 = vld [vmem:[%s39] sm:$0x1]
        %v3643 = vsel %vm1666, %v3636, 0.0
        %3644 = vadd.xlane.f32.xlu0 %v3643
        %v3645 = vpop.xlane.xlu0 %3644
        %v3646 = vmul.f32 %v3645, %v1670
        %v3647 = vsub.f32 %v3636, %v3646
        %v3648 = vmul.f32 %v3647, %v3647
        %v3649 = vsel %vm1666, %v3648, 0.0
        %3650 = vadd.xlane.f32.xlu0 %v3649
        %v3651 = vpop.xlane.xlu0 %3650
        %v3652 = vmul.f32 %v3651, %v1670
        %v3653 = vadd.f32 %v3652, 1e-05
        %v3654 = vrsqrt.pop %v3653
        %v3655 = vmul.f32 %v3647, %v3654
        %v3657 = vlaneseq
        %v3658 = vshrl.u32 %v3657, 7
        %v3659 = vsub.s32 0, %v3658
        %v3660 = vrot.slane %v3641, %v3659
        %v3662 = vmul.f32 %v3655, %v3660
        %v3664 = vlaneseq
        %v3665 = vshrl.u32 %v3664, 7
        %v3666 = vsub.s32 0, %v3665
        %v3667 = vrot.slane %v3642, %v3666
        %v3669 = vadd.f32 %v3662, %v3667
        %v3670 = vmul.f32 %v3669, %v3669
        %v3671 = vmul.f32 %v3669, %v3670
        %v3672 = vmul.f32 %v3671, 0.044715
        %v3673 = vadd.f32 %v3669, %v3672
        %v3674 = vmul.f32 %v3673, 0.7978846
        %v3675 = vtanh.pop %v3674
        %v3676 = vadd.f32 %v3675, 1.0
        %v3677 = vmul.f32 %v3676, 0.5
        %v3678 = vmul.f32 %v3669, %v3677
        %v3679 = vld [vmem:[%s41] sm:$0xf]
        %v3680 = vld [vmem:[%s41 + $0x4] sm:$0xf]
        %v3681 = vld [vmem:[%s41 + $0x8] sm:$0xf]
        %v3682 = vld [vmem:[%s41 + $0xc] sm:$0xf]
        %v3683 = vld [vmem:[%s41 + $0x10] sm:$0xf]
        %v3684 = vld [vmem:[%s41 + $0x14] sm:$0xf]
        %v3685 = vld [vmem:[%s41 + $0x18] sm:$0xf]
        %v3686 = vld [vmem:[%s41 + $0x1c] sm:$0xf]
        %v3687 = vpack.c.bf16 %v3678, %v3678
        %v3688 = vld [vmem:[%s43] sm:$0x1]
        %v3690 = vlaneseq
        %v3691 = vshrl.u32 %v3690, 7
        %v3692 = vsub.s32 0, %v3691
        %v3693 = vrot.slane %v3688, %v3692
        %v3703 = vunpack.c.l.b16 %v3679
        %v3704 = vunpack.c.l.b16 %v3680
        %v3705 = vunpack.c.l.b16 %v3681
        %v3706 = vunpack.c.l.b16 %v3682
        %v3707 = vunpack.c.l.b16 %v3683
        %v3708 = vunpack.c.l.b16 %v3684
        %v3709 = vunpack.c.l.b16 %v3685
        %v3710 = vunpack.c.l.b16 %v3686
        %v3711 = vpack.c.b16 %v3704, %v3703
        %v3712 = vpack.c.b16 %v3706, %v3705
        %v3713 = vpack.c.b16 %v3708, %v3707
        %v3714 = vpack.c.b16 %v3710, %v3709
        %v3720 = vsel %vm1735, %v3687, 0
        %3722 = vmatprep.subr.bf16.mxu0 0
        %3723 = vmatpush1.bf16.msra.mxu0 %v3711
        %3724 = vmatprep.subr.bf16.mxu0 0
        %3725 = vmatpush1.bf16.msra.mxu0 %v3712
        %3726 = vmatprep.subr.bf16.mxu0 0
        %3727 = vmatpush1.bf16.msra.mxu0 %v3713
        %3728 = vmatprep.subr.bf16.mxu0 0
        %3729 = vmatpush1.bf16.msra.mxu0 %v3714
        %3730 = vmatprep.subr.bf16.mxu0 0
        %3731 = vmatpush1.bf16.msra.mxu0 0
        %3732 = vmatprep.subr.bf16.mxu0 0
        %3733 = vmatpush1.bf16.msra.mxu0 0
        %3734 = vmatprep.subr.bf16.mxu0 0
        %3735 = vmatpush1.bf16.msra.mxu0 0
        %3736 = vmatprep.subr.bf16.mxu0 0
        %3737 = vmatpush1.bf16.msra.mxu0 0
        %3738 = vmatprep.subr.bf16.mxu0 0
        %3739 = vmatpush1.bf16.msra.mxu0 0
        %3740 = vmatprep.subr.bf16.mxu0 0
        %3741 = vmatpush1.bf16.msra.mxu0 0
        %3742 = vmatprep.subr.bf16.mxu0 0
        %3743 = vmatpush1.bf16.msra.mxu0 0
        %3744 = vmatprep.subr.bf16.mxu0 0
        %3745 = vmatpush1.bf16.msra.mxu0 0
        %3746 = vmatprep.subr.bf16.mxu0 0
        %3747 = vmatpush1.bf16.msra.mxu0 0
        %3748 = vmatprep.subr.bf16.mxu0 0
        %3749 = vmatpush1.bf16.msra.mxu0 0
        %3750 = vmatprep.subr.bf16.mxu0 0
        %3751 = vmatpush1.bf16.msra.mxu0 0
        %3752 = vmatprep.subr.bf16.mxu0 0
        %3753 = vmatpush1.bf16.msra.mxu0 0
        %3754 = vmatprep.mubr.bf16.mxu0 0
        %3755 = vmatmul.mubr.bf16.gmra.mrb[0].mxu0 %v3720
        %v3756 = vpop.f32.mrb[0].mxu0
        %v3757 = vadd.f32 %v3693, %v3756
        %v3758 = vpop.f32.mrb[0].mxu0
        %v3759 = vpop.f32.mrb[0].mxu0
        %v3760 = vpop.f32.mrb[0].mxu0
        %3761 = vdwg.mxu0
        %v3762 = vld [vmem:[%s1208] sm:$0xff]
        %v3763 = vand.u32 %v1947, 7
        %vm3764 = vcmp.gt.s32.totalorder %v3763, %v1942
        %v3765 = vsel %vm3764, -1e+30, 0.0
        %v3766 = vld [vmem:[%s1211] sm:$0x1]
        %v3768 = vlaneseq
        %v3769 = vshrl.u32 %v3768, 7
        %v3770 = vsub.s32 0, %v3769
        %v3771 = vrot.slane %v3766, %v3770
        %v3773 = vadd.f32 %v3765, %v3771
        %v3774 = vld [vmem:[%s45] sm:$0x1]
        %v3775 = vld [vmem:[%s47] sm:$0x1]
        %v3776 = vsel %vm1735, %v3762, 0.0
        %3777 = vadd.xlane.f32.xlu0 %v3776
        %v3778 = vpop.xlane.xlu0 %3777
        %v3779 = vmul.f32 %v3778, %v1670
        %v3780 = vsub.f32 %v3762, %v3779
        %v3781 = vmul.f32 %v3780, %v3780
        %v3782 = vsel %vm1735, %v3781, 0.0
        %3783 = vadd.xlane.f32.xlu0 %v3782
        %v3784 = vpop.xlane.xlu0 %3783
        %v3785 = vmul.f32 %v3784, %v1670
        %v3786 = vadd.f32 %v3785, 1e-05
        %v3787 = vrsqrt.pop %v3786
        %v3788 = vmul.f32 %v3780, %v3787
        %v3790 = vlaneseq
        %v3791 = vshrl.u32 %v3790, 7
        %v3792 = vsub.s32 0, %v3791
        %v3793 = vrot.slane %v3774, %v3792
        %v3795 = vmul.f32 %v3788, %v3793
        %v3797 = vlaneseq
        %v3798 = vshrl.u32 %v3797, 7
        %v3799 = vsub.s32 0, %v3798
        %v3800 = vrot.slane %v3775, %v3799
        %v3802 = vadd.f32 %v3795, %v3800
        %v3803 = vld [vmem:[%s49] sm:$0xf]
        %v3804 = vld [vmem:[%s49 + $0x4] sm:$0xf]
        %v3805 = vld [vmem:[%s49 + $0x8] sm:$0xf]
        %v3806 = vld [vmem:[%s49 + $0xc] sm:$0xf]
        %v3807 = vld [vmem:[%s49 + $0x10] sm:$0xf]
        %v3808 = vld [vmem:[%s49 + $0x14] sm:$0xf]
        %v3809 = vld [vmem:[%s49 + $0x18] sm:$0xf]
        %v3810 = vld [vmem:[%s49 + $0x1c] sm:$0xf]
        %v3811 = vpack.c.bf16 %v3802, %v3802
        %v3812 = vld [vmem:[%s51] sm:$0x1]
        %v3814 = vlaneseq
        %v3815 = vshrl.u32 %v3814, 7
        %v3816 = vsub.s32 0, %v3815
        %v3817 = vrot.slane %v3812, %v3816
        %v3827 = vunpack.c.l.b16 %v3803
        %v3828 = vunpack.c.l.b16 %v3804
        %v3829 = vunpack.c.l.b16 %v3805
        %v3830 = vunpack.c.l.b16 %v3806
        %v3831 = vunpack.c.l.b16 %v3807
        %v3832 = vunpack.c.l.b16 %v3808
        %v3833 = vunpack.c.l.b16 %v3809
        %v3834 = vunpack.c.l.b16 %v3810
        %v3835 = vpack.c.b16 %v3828, %v3827
        %v3836 = vpack.c.b16 %v3830, %v3829
        %v3837 = vpack.c.b16 %v3832, %v3831
        %v3838 = vpack.c.b16 %v3834, %v3833
        %v3844 = vsel %vm1735, %v3811, 0
        %3846 = vmatprep.subr.bf16.mxu0 0
        %3847 = vmatpush1.bf16.msra.mxu0 %v3835
        %3848 = vmatprep.subr.bf16.mxu0 0
        %3849 = vmatpush1.bf16.msra.mxu0 %v3836
        %3850 = vmatprep.subr.bf16.mxu0 0
        %3851 = vmatpush1.bf16.msra.mxu0 %v3837
        %3852 = vmatprep.subr.bf16.mxu0 0
        %3853 = vmatpush1.bf16.msra.mxu0 %v3838
        %3854 = vmatprep.subr.bf16.mxu0 0
        %3855 = vmatpush1.bf16.msra.mxu0 0
        %3856 = vmatprep.subr.bf16.mxu0 0
        %3857 = vmatpush1.bf16.msra.mxu0 0
        %3858 = vmatprep.subr.bf16.mxu0 0
        %3859 = vmatpush1.bf16.msra.mxu0 0
        %3860 = vmatprep.subr.bf16.mxu0 0
        %3861 = vmatpush1.bf16.msra.mxu0 0
        %3862 = vmatprep.subr.bf16.mxu0 0
        %3863 = vmatpush1.bf16.msra.mxu0 0
        %3864 = vmatprep.subr.bf16.mxu0 0
        %3865 = vmatpush1.bf16.msra.mxu0 0
        %3866 = vmatprep.subr.bf16.mxu0 0
        %3867 = vmatpush1.bf16.msra.mxu0 0
        %3868 = vmatprep.subr.bf16.mxu0 0
        %3869 = vmatpush1.bf16.msra.mxu0 0
        %3870 = vmatprep.subr.bf16.mxu0 0
        %3871 = vmatpush1.bf16.msra.mxu0 0
        %3872 = vmatprep.subr.bf16.mxu0 0
        %3873 = vmatpush1.bf16.msra.mxu0 0
        %3874 = vmatprep.subr.bf16.mxu0 0
        %3875 = vmatpush1.bf16.msra.mxu0 0
        %3876 = vmatprep.subr.bf16.mxu0 0
        %3877 = vmatpush1.bf16.msra.mxu0 0
        %3878 = vmatprep.mubr.bf16.mxu0 0
        %3879 = vmatmul.mubr.bf16.gmra.mrb[0].mxu0 %v3844
        %v3880 = vpop.f32.mrb[0].mxu0
        %v3881 = vadd.f32 %v3817, %v3880
        %v3882 = vpop.f32.mrb[0].mxu0
        %v3883 = vpop.f32.mrb[0].mxu0
        %v3884 = vpop.f32.mrb[0].mxu0
        %3885 = vdwg.mxu0
        %s3886 = scalar_lea.vmem %s49, 32
        %v3887 = vld [vmem:[%s3886] sm:$0xf]
        %v3888 = vld [vmem:[%s3886 + $0x4] sm:$0xf]
        %v3889 = vld [vmem:[%s3886 + $0x8] sm:$0xf]
        %v3890 = vld [vmem:[%s3886 + $0xc] sm:$0xf]
        %v3891 = vld [vmem:[%s3886 + $0x10] sm:$0xf]
        %v3892 = vld [vmem:[%s3886 + $0x14] sm:$0xf]
        %v3893 = vld [vmem:[%s3886 + $0x18] sm:$0xf]
        %v3894 = vld [vmem:[%s3886 + $0x1c] sm:$0xf]
        %s3895 = scalar_lea.vmem %s51, 1
        %v3896 = vld [vmem:[%s3895] sm:$0x1]
        %v3898 = vlaneseq
        %v3899 = vshrl.u32 %v3898, 7
        %v3900 = vsub.s32 0, %v3899
        %v3901 = vrot.slane %v3896, %v3900
        %v3911 = vunpack.c.l.b16 %v3887
        %v3912 = vunpack.c.l.b16 %v3888
        %v3913 = vunpack.c.l.b16 %v3889
        %v3914 = vunpack.c.l.b16 %v3890
        %v3915 = vunpack.c.l.b16 %v3891
        %v3916 = vunpack.c.l.b16 %v3892
        %v3917 = vunpack.c.l.b16 %v3893
        %v3918 = vunpack.c.l.b16 %v3894
        %v3919 = vpack.c.b16 %v3912, %v3911
        %v3920 = vpack.c.b16 %v3914, %v3913
        %v3921 = vpack.c.b16 %v3916, %v3915
        %v3922 = vpack.c.b16 %v3918, %v3917
        %3927 = vmatprep.subr.bf16.mxu0 0
        %3928 = vmatpush1.bf16.msra.mxu0 %v3919
        %3929 = vmatprep.subr.bf16.mxu0 0
        %3930 = vmatpush1.bf16.msra.mxu0 %v3920
        %3931 = vmatprep.subr.bf16.mxu0 0
        %3932 = vmatpush1.bf16.msra.mxu0 %v3921
        %3933 = vmatprep.subr.bf16.mxu0 0
        %3934 = vmatpush1.bf16.msra.mxu0 %v3922
        %3935 = vmatprep.subr.bf16.mxu0 0
        %3936 = vmatpush1.bf16.msra.mxu0 0
        %3937 = vmatprep.subr.bf16.mxu0 0
        %3938 = vmatpush1.bf16.msra.mxu0 0
        %3939 = vmatprep.subr.bf16.mxu0 0
        %3940 = vmatpush1.bf16.msra.mxu0 0
        %3941 = vmatprep.subr.bf16.mxu0 0
        %3942 = vmatpush1.bf16.msra.mxu0 0
        %3943 = vmatprep.subr.bf16.mxu0 0
        %3944 = vmatpush1.bf16.msra.mxu0 0
        %3945 = vmatprep.subr.bf16.mxu0 0
        %3946 = vmatpush1.bf16.msra.mxu0 0
        %3947 = vmatprep.subr.bf16.mxu0 0
        %3948 = vmatpush1.bf16.msra.mxu0 0
        %3949 = vmatprep.subr.bf16.mxu0 0
        %3950 = vmatpush1.bf16.msra.mxu0 0
        %3951 = vmatprep.subr.bf16.mxu0 0
        %3952 = vmatpush1.bf16.msra.mxu0 0
        %3953 = vmatprep.subr.bf16.mxu0 0
        %3954 = vmatpush1.bf16.msra.mxu0 0
        %3955 = vmatprep.subr.bf16.mxu0 0
        %3956 = vmatpush1.bf16.msra.mxu0 0
        %3957 = vmatprep.subr.bf16.mxu0 0
        %3958 = vmatpush1.bf16.msra.mxu0 0
        %3959 = vmatprep.mubr.bf16.mxu0 0
        %3960 = vmatmul.mubr.bf16.gmra.mrb[0].mxu0 %v3844
        %v3961 = vpop.f32.mrb[0].mxu0
        %v3962 = vadd.f32 %v3901, %v3961
        %v3963 = vpop.f32.mrb[0].mxu0
        %v3964 = vpop.f32.mrb[0].mxu0
        %v3965 = vpop.f32.mrb[0].mxu0
        %3966 = vdwg.mxu0
        %s3967 = scalar_lea.vmem %s49, 64
        %v3968 = vld [vmem:[%s3967] sm:$0xf]
        %v3969 = vld [vmem:[%s3967 + $0x4] sm:$0xf]
        %v3970 = vld [vmem:[%s3967 + $0x8] sm:$0xf]
        %v3971 = vld [vmem:[%s3967 + $0xc] sm:$0xf]
        %v3972 = vld [vmem:[%s3967 + $0x10] sm:$0xf]
        %v3973 = vld [vmem:[%s3967 + $0x14] sm:$0xf]
        %v3974 = vld [vmem:[%s3967 + $0x18] sm:$0xf]
        %v3975 = vld [vmem:[%s3967 + $0x1c] sm:$0xf]
        %s3976 = scalar_lea.vmem %s51, 2
        %v3977 = vld [vmem:[%s3976] sm:$0x1]
        %v3979 = vlaneseq
        %v3980 = vshrl.u32 %v3979, 7
        %v3981 = vsub.s32 0, %v3980
        %v3982 = vrot.slane %v3977, %v3981
        %v3992 = vunpack.c.l.b16 %v3968
        %v3993 = vunpack.c.l.b16 %v3969
        %v3994 = vunpack.c.l.b16 %v3970
        %v3995 = vunpack.c.l.b16 %v3971
        %v3996 = vunpack.c.l.b16 %v3972
        %v3997 = vunpack.c.l.b16 %v3973
        %v3998 = vunpack.c.l.b16 %v3974
        %v3999 = vunpack.c.l.b16 %v3975
        %v4000 = vpack.c.b16 %v3993, %v3992
        %v4001 = vpack.c.b16 %v3995, %v3994
        %v4002 = vpack.c.b16 %v3997, %v3996
        %v4003 = vpack.c.b16 %v3999, %v3998
        %4008 = vmatprep.subr.bf16.mxu0 0
        %4009 = vmatpush1.bf16.msra.mxu0 %v4000
        %4010 = vmatprep.subr.bf16.mxu0 0
        %4011 = vmatpush1.bf16.msra.mxu0 %v4001
        %4012 = vmatprep.subr.bf16.mxu0 0
        %4013 = vmatpush1.bf16.msra.mxu0 %v4002
        %4014 = vmatprep.subr.bf16.mxu0 0
        %4015 = vmatpush1.bf16.msra.mxu0 %v4003
        %4016 = vmatprep.subr.bf16.mxu0 0
        %4017 = vmatpush1.bf16.msra.mxu0 0
        %4018 = vmatprep.subr.bf16.mxu0 0
        %4019 = vmatpush1.bf16.msra.mxu0 0
        %4020 = vmatprep.subr.bf16.mxu0 0
        %4021 = vmatpush1.bf16.msra.mxu0 0
        %4022 = vmatprep.subr.bf16.mxu0 0
        %4023 = vmatpush1.bf16.msra.mxu0 0
        %4024 = vmatprep.subr.bf16.mxu0 0
        %4025 = vmatpush1.bf16.msra.mxu0 0
        %4026 = vmatprep.subr.bf16.mxu0 0
        %4027 = vmatpush1.bf16.msra.mxu0 0
        %4028 = vmatprep.subr.bf16.mxu0 0
        %4029 = vmatpush1.bf16.msra.mxu0 0
        %4030 = vmatprep.subr.bf16.mxu0 0
        %4031 = vmatpush1.bf16.msra.mxu0 0
        %4032 = vmatprep.subr.bf16.mxu0 0
        %4033 = vmatpush1.bf16.msra.mxu0 0
        %4034 = vmatprep.subr.bf16.mxu0 0
        %4035 = vmatpush1.bf16.msra.mxu0 0
        %4036 = vmatprep.subr.bf16.mxu0 0
        %4037 = vmatpush1.bf16.msra.mxu0 0
        %4038 = vmatprep.subr.bf16.mxu0 0
        %4039 = vmatpush1.bf16.msra.mxu0 0
        %4040 = vmatprep.mubr.bf16.mxu0 0
        %4041 = vmatmul.mubr.bf16.gmra.mrb[0].mxu0 %v3844
        %v4042 = vpop.f32.mrb[0].mxu0
        %v4043 = vadd.f32 %v3982, %v4042
        %v4044 = vpop.f32.mrb[0].mxu0
        %v4045 = vpop.f32.mrb[0].mxu0
        %v4046 = vpop.f32.mrb[0].mxu0
        %4047 = vdwg.mxu0
        %v4048 = vadd.s32 %v1942, 16
        %v4049 = vadd.s32 %v1942, 24
        %v4050 = vadd.s32 %v1942, 32
        %v4051 = vadd.s32 %v1942, 40
        %v4052 = vadd.s32 %v1942, 48
        %v4053 = vadd.s32 %v1942, 56
        %v4054 = vand.u32 %v1942, 7
        %v4055 = vand.u32 %v1943, 7
        %v4056 = vand.u32 %v4048, 7
        %v4057 = vand.u32 %v4049, 7
        %v4058 = vand.u32 %v4050, 7
        %v4059 = vand.u32 %v4051, 7
        %v4060 = vand.u32 %v4052, 7
        %v4061 = vand.u32 %v4053, 7
        %vm4062 = vcmp.eq.s32.totalorder %v4054, %v1947
        %vm4063 = vcmp.eq.s32.totalorder %v4055, %v1947
        %vm4064 = vcmp.eq.s32.totalorder %v4056, %v1947
        %vm4065 = vcmp.eq.s32.totalorder %v4057, %v1947
        %vm4066 = vcmp.eq.s32.totalorder %v4058, %v1947
        %vm4067 = vcmp.eq.s32.totalorder %v4059, %v1947
        %vm4068 = vcmp.eq.s32.totalorder %v4060, %v1947
        %vm4069 = vcmp.eq.s32.totalorder %v4061, %v1947
        %v4070 = vsel %vm4062, 1.0, 0.0
        %v4071 = vsel %vm4063, 1.0, 0.0
        %v4072 = vsel %vm4064, 1.0, 0.0
        %v4073 = vsel %vm4065, 1.0, 0.0
        %v4074 = vsel %vm4066, 1.0, 0.0
        %v4075 = vsel %vm4067, 1.0, 0.0
        %v4076 = vsel %vm4068, 1.0, 0.0
        %v4077 = vsel %vm4069, 1.0, 0.0
        %v4078 = vpack.c.bf16 %v4071, %v4070
        %v4079 = vpack.c.bf16 %v4073, %v4072
        %v4080 = vpack.c.bf16 %v4075, %v4074
        %v4081 = vpack.c.bf16 %v4077, %v4076
        %v4082 = vshra.s32 %v1942, 3
        %v4083 = vshra.s32 %v1943, 3
        %v4084 = vshra.s32 %v4048, 3
        %v4085 = vshra.s32 %v4049, 3
        %v4086 = vshra.s32 %v4050, 3
        %v4087 = vshra.s32 %v4051, 3
        %v4088 = vshra.s32 %v4052, 3
        %v4089 = vshra.s32 %v4053, 3
        %v4090 = vshra.s32 %v1947, 3
        %vm4091 = vcmp.eq.s32.totalorder %v4082, %v4090
        %vm4092 = vcmp.eq.s32.totalorder %v4083, %v4090
        %vm4093 = vcmp.eq.s32.totalorder %v4084, %v4090
        %vm4094 = vcmp.eq.s32.totalorder %v4085, %v4090
        %vm4095 = vcmp.eq.s32.totalorder %v4086, %v4090
        %vm4096 = vcmp.eq.s32.totalorder %v4087, %v4090
        %vm4097 = vcmp.eq.s32.totalorder %v4088, %v4090
        %vm4098 = vcmp.eq.s32.totalorder %v4089, %v4090
        %v4099 = vsel %vm4091, 1.0, 0.0
        %v4100 = vsel %vm4092, 1.0, 0.0
        %v4101 = vsel %vm4093, 1.0, 0.0
        %v4102 = vsel %vm4094, 1.0, 0.0
        %v4103 = vsel %vm4095, 1.0, 0.0
        %v4104 = vsel %vm4096, 1.0, 0.0
        %v4105 = vsel %vm4097, 1.0, 0.0
        %v4106 = vsel %vm4098, 1.0, 0.0
        %v4107 = vpack.c.bf16 %v3962, %v3962
        %vm4108 = vcmask 64512
        %v4110 = vsel %vm4108, %v4078, 0
        %v4113 = vsel %vm4108, %v4079, 0
        %v4116 = vsel %vm4108, %v4080, 0
        %v4119 = vsel %vm4108, %v4081, 0
        %v4122 = vsel %vm1538, %v4107, 0
        %4124 = vmatprep.subr.bf16.mxu0 0
        %4125 = vmatpush1.bf16.msra.mxu0 %v4122
        %4126 = vmatprep.subr.bf16.mxu0 0
        %4127 = vmatpush1.bf16.msra.mxu0 0
        %4128 = vmatprep.subr.bf16.mxu0 0
        %4129 = vmatpush1.bf16.msra.mxu0 0
        %4130 = vmatprep.subr.bf16.mxu0 0
        %4131 = vmatpush1.bf16.msra.mxu0 0
        %4132 = vmatprep.subr.bf16.mxu0 0
        %4133 = vmatpush1.bf16.msra.mxu0 0
        %4134 = vmatprep.subr.bf16.mxu0 0
        %4135 = vmatpush1.bf16.msra.mxu0 0
        %4136 = vmatprep.subr.bf16.mxu0 0
        %4137 = vmatpush1.bf16.msra.mxu0 0
        %4138 = vmatprep.subr.bf16.mxu0 0
        %4139 = vmatpush1.bf16.msra.mxu0 0
        %4140 = vmatprep.subr.bf16.mxu0 0
        %4141 = vmatpush1.bf16.msra.mxu0 0
        %4142 = vmatprep.subr.bf16.mxu0 0
        %4143 = vmatpush1.bf16.msra.mxu0 0
        %4144 = vmatprep.subr.bf16.mxu0 0
        %4145 = vmatpush1.bf16.msra.mxu0 0
        %4146 = vmatprep.subr.bf16.mxu0 0
        %4147 = vmatpush1.bf16.msra.mxu0 0
        %4148 = vmatprep.subr.bf16.mxu0 0
        %4149 = vmatpush1.bf16.msra.mxu0 0
        %4150 = vmatprep.subr.bf16.mxu0 0
        %4151 = vmatpush1.bf16.msra.mxu0 0
        %4152 = vmatprep.subr.bf16.mxu0 0
        %4153 = vmatpush1.bf16.msra.mxu0 0
        %4154 = vmatprep.subr.bf16.mxu0 0
        %4155 = vmatpush1.bf16.msra.mxu0 0
        %4156 = vmatprep.mubr.bf16.mxu0 0
        %4157 = vmatmul.mubr.bf16.gmra.mrb[0].mxu0 %v4110
        %v4158 = vpop.f32.mrb[0].mxu0
        %v4159 = vadd.f32 0.0, %v4158
        %v4160 = vpop.f32.mrb[0].mxu0
        %v4161 = vpop.f32.mrb[0].mxu0
        %v4162 = vadd.f32 0.0, %v4161
        %v4163 = vpop.f32.mrb[0].mxu0
        %4164 = vmatprep.mubr.bf16.mxu0 0
        %4165 = vmatmul.mubr.bf16.gmra.mrb[0].mxu0 %v4113
        %v4166 = vpop.f32.mrb[0].mxu0
        %v4167 = vadd.f32 0.0, %v4166
        %v4168 = vpop.f32.mrb[0].mxu0
        %v4169 = vpop.f32.mrb[0].mxu0
        %v4170 = vadd.f32 0.0, %v4169
        %v4171 = vpop.f32.mrb[0].mxu0
        %4172 = vmatprep.mubr.bf16.mxu0 0
        %4173 = vmatmul.mubr.bf16.gmra.mrb[0].mxu0 %v4116
        %v4174 = vpop.f32.mrb[0].mxu0
        %v4175 = vadd.f32 0.0, %v4174
        %v4176 = vpop.f32.mrb[0].mxu0
        %v4177 = vpop.f32.mrb[0].mxu0
        %v4178 = vadd.f32 0.0, %v4177
        %v4179 = vpop.f32.mrb[0].mxu0
        %4180 = vmatprep.mubr.bf16.mxu0 0
        %4181 = vmatmul.mubr.bf16.gmra.mrb[0].mxu0 %v4119
        %v4182 = vpop.f32.mrb[0].mxu0
        %v4183 = vadd.f32 0.0, %v4182
        %v4184 = vpop.f32.mrb[0].mxu0
        %v4185 = vpop.f32.mrb[0].mxu0
        %v4186 = vadd.f32 0.0, %v4185
        %v4187 = vpop.f32.mrb[0].mxu0
        %4188 = vdwg.mxu0
        %v4189 = vmul.f32 %v4159, %v4099
        %v4190 = vmul.f32 %v4162, %v4100
        %v4191 = vmul.f32 %v4167, %v4101
        %v4192 = vmul.f32 %v4170, %v4102
        %v4193 = vmul.f32 %v4175, %v4103
        %v4194 = vmul.f32 %v4178, %v4104
        %v4195 = vmul.f32 %v4183, %v4105
        %v4196 = vmul.f32 %v4186, %v4106
        %v4197 = vpack.c.bf16 %v4190, %v4189
        %v4198 = vpack.c.bf16 %v4192, %v4191
        %v4199 = vpack.c.bf16 %v4194, %v4193
        %v4200 = vpack.c.bf16 %v4196, %v4195
        %v4201 = vpack.c.bf16 %v4043, %v4043
        %v4203 = vsel %vm1538, %v4201, 0
        %4205 = vmatprep.subr.bf16.mxu0 0
        %4206 = vmatpush1.bf16.msra.mxu0 %v4203
        %4207 = vmatprep.subr.bf16.mxu0 0
        %4208 = vmatpush1.bf16.msra.mxu0 0
        %4209 = vmatprep.subr.bf16.mxu0 0
        %4210 = vmatpush1.bf16.msra.mxu0 0
        %4211 = vmatprep.subr.bf16.mxu0 0
        %4212 = vmatpush1.bf16.msra.mxu0 0
        %4213 = vmatprep.subr.bf16.mxu0 0
        %4214 = vmatpush1.bf16.msra.mxu0 0
        %4215 = vmatprep.subr.bf16.mxu0 0
        %4216 = vmatpush1.bf16.msra.mxu0 0
        %4217 = vmatprep.subr.bf16.mxu0 0
        %4218 = vmatpush1.bf16.msra.mxu0 0
        %4219 = vmatprep.subr.bf16.mxu0 0
        %4220 = vmatpush1.bf16.msra.mxu0 0
        %4221 = vmatprep.subr.bf16.mxu0 0
        %4222 = vmatpush1.bf16.msra.mxu0 0
        %4223 = vmatprep.subr.bf16.mxu0 0
        %4224 = vmatpush1.bf16.msra.mxu0 0
        %4225 = vmatprep.subr.bf16.mxu0 0
        %4226 = vmatpush1.bf16.msra.mxu0 0
        %4227 = vmatprep.subr.bf16.mxu0 0
        %4228 = vmatpush1.bf16.msra.mxu0 0
        %4229 = vmatprep.subr.bf16.mxu0 0
        %4230 = vmatpush1.bf16.msra.mxu0 0
        %4231 = vmatprep.subr.bf16.mxu0 0
        %4232 = vmatpush1.bf16.msra.mxu0 0
        %4233 = vmatprep.subr.bf16.mxu0 0
        %4234 = vmatpush1.bf16.msra.mxu0 0
        %4235 = vmatprep.subr.bf16.mxu0 0
        %4236 = vmatpush1.bf16.msra.mxu0 0
        %4237 = vmatprep.mubr.bf16.mxu0 0
        %4238 = vmatmul.mubr.bf16.gmra.mrb[0].mxu0 %v4110
        %v4239 = vpop.f32.mrb[0].mxu0
        %v4240 = vadd.f32 0.0, %v4239
        %v4241 = vpop.f32.mrb[0].mxu0
        %v4242 = vpop.f32.mrb[0].mxu0
        %v4243 = vadd.f32 0.0, %v4242
        %v4244 = vpop.f32.mrb[0].mxu0
        %4245 = vmatprep.mubr.bf16.mxu0 0
        %4246 = vmatmul.mubr.bf16.gmra.mrb[0].mxu0 %v4113
        %v4247 = vpop.f32.mrb[0].mxu0
        %v4248 = vadd.f32 0.0, %v4247
        %v4249 = vpop.f32.mrb[0].mxu0
        %v4250 = vpop.f32.mrb[0].mxu0
        %v4251 = vadd.f32 0.0, %v4250
        %v4252 = vpop.f32.mrb[0].mxu0
        %4253 = vmatprep.mubr.bf16.mxu0 0
        %4254 = vmatmul.mubr.bf16.gmra.mrb[0].mxu0 %v4116
        %v4255 = vpop.f32.mrb[0].mxu0
        %v4256 = vadd.f32 0.0, %v4255
        %v4257 = vpop.f32.mrb[0].mxu0
        %v4258 = vpop.f32.mrb[0].mxu0
        %v4259 = vadd.f32 0.0, %v4258
        %v4260 = vpop.f32.mrb[0].mxu0
        %4261 = vmatprep.mubr.bf16.mxu0 0
        %4262 = vmatmul.mubr.bf16.gmra.mrb[0].mxu0 %v4119
        %v4263 = vpop.f32.mrb[0].mxu0
        %v4264 = vadd.f32 0.0, %v4263
        %v4265 = vpop.f32.mrb[0].mxu0
        %v4266 = vpop.f32.mrb[0].mxu0
        %v4267 = vadd.f32 0.0, %v4266
        %v4268 = vpop.f32.mrb[0].mxu0
        %4269 = vdwg.mxu0
        %v4270 = vmul.f32 %v4240, %v4099
        %v4271 = vmul.f32 %v4243, %v4100
        %v4272 = vmul.f32 %v4248, %v4101
        %v4273 = vmul.f32 %v4251, %v4102
        %v4274 = vmul.f32 %v4256, %v4103
        %v4275 = vmul.f32 %v4259, %v4104
        %v4276 = vmul.f32 %v4264, %v4105
        %v4277 = vmul.f32 %v4267, %v4106
        %v4278 = vpack.c.bf16 %v4271, %v4270
        %v4279 = vpack.c.bf16 %v4273, %v4272
        %v4280 = vpack.c.bf16 %v4275, %v4274
        %v4281 = vpack.c.bf16 %v4277, %v4276
        %v4282 = vpack.c.bf16 %v3881, %v3881
        %v4284 = vsel %vm1735, %v4282, 0
        %v4287 = vsel %vm1735, %v4197, 0
        %v4290 = vsel %vm1735, %v4198, 0
        %v4293 = vsel %vm1735, %v4199, 0
        %v4296 = vsel %vm1735, %v4200, 0
        %4298 = vmatprep.subr.bf16.mxu0 0
        %4299 = vmatpush1.bf16.xpose.msra.mxu0 %v4287
        %4300 = vmatprep.subr.bf16.mxu0 0
        %4301 = vmatpush1.bf16.xpose.msra.mxu0 %v4290
        %4302 = vmatprep.subr.bf16.mxu0 0
        %4303 = vmatpush1.bf16.xpose.msra.mxu0 %v4293
        %4304 = vmatprep.subr.bf16.mxu0 0
        %4305 = vmatpush1.bf16.xpose.msra.mxu0 %v4296
        %4306 = vmatprep.subr.bf16.mxu0 0
        %4307 = vmatpush1.bf16.xpose.msra.mxu0 0
        %4308 = vmatprep.subr.bf16.mxu0 0
        %4309 = vmatpush1.bf16.xpose.msra.mxu0 0
        %4310 = vmatprep.subr.bf16.mxu0 0
        %4311 = vmatpush1.bf16.xpose.msra.mxu0 0
        %4312 = vmatprep.subr.bf16.mxu0 0
        %4313 = vmatpush1.bf16.xpose.msra.mxu0 0
        %4314 = vmatprep.subr.bf16.mxu0 0
        %4315 = vmatpush1.bf16.xpose.msra.mxu0 0
        %4316 = vmatprep.subr.bf16.mxu0 0
        %4317 = vmatpush1.bf16.xpose.msra.mxu0 0
        %4318 = vmatprep.subr.bf16.mxu0 0
        %4319 = vmatpush1.bf16.xpose.msra.mxu0 0
        %4320 = vmatprep.subr.bf16.mxu0 0
        %4321 = vmatpush1.bf16.xpose.msra.mxu0 0
        %4322 = vmatprep.subr.bf16.mxu0 0
        %4323 = vmatpush1.bf16.xpose.msra.mxu0 0
        %4324 = vmatprep.subr.bf16.mxu0 0
        %4325 = vmatpush1.bf16.xpose.msra.mxu0 0
        %4326 = vmatprep.subr.bf16.mxu0 0
        %4327 = vmatpush1.bf16.xpose.msra.mxu0 0
        %4328 = vmatprep.subr.bf16.mxu0 0
        %4329 = vmatpush1.bf16.xpose.msra.mxu0 0
        %4330 = vmatprep.mubr.bf16.mxu0 0
        %4331 = vmatmul.mubr.bf16.gmra.mrb[0].mxu0 %v4284
        %v4332 = vpop.f32.mrb[0].mxu0
        %v4333 = vadd.f32 0.0, %v4332
        %v4334 = vpop.f32.mrb[0].mxu0
        %v4335 = vpop.f32.mrb[0].mxu0
        %v4336 = vpop.f32.mrb[0].mxu0
        %4337 = vdwg.mxu0
        %v4338 = vmul.f32 %v4333, 0.35355338
        %v4339 = vadd.f32 %v4338, %v3773
        %v4340 = vsel %vm1735, %v4339, -inf
        %4341 = vmax.xlane.f32.xlu0 %v4340
        %v4342 = vpop.xlane.xlu0 %4341
        %v4343 = vsub.f32 %v4339, %v4342
        %v4344 = vmul.f32 %v4343, 1.442695
        %v4345 = vpow.pop %v4344
        %v4346 = vpack.c.bf16 %v4345, %v4345
        %v4347 = vpack.c.bf16 %v4100, %v4099
        %v4348 = vpack.c.bf16 %v4102, %v4101
        %v4349 = vpack.c.bf16 %v4104, %v4103
        %v4350 = vpack.c.bf16 %v4106, %v4105
        %v4352 = vsel %vm1735, %v4346, 0
        %4354 = vmatprep.subr.bf16.mxu0 0
        %4355 = vmatpush1.bf16.msra.mxu0 %v4347
        %4356 = vmatprep.subr.bf16.mxu0 0
        %4357 = vmatpush1.bf16.msra.mxu0 %v4348
        %4358 = vmatprep.subr.bf16.mxu0 0
        %4359 = vmatpush1.bf16.msra.mxu0 %v4349
        %4360 = vmatprep.subr.bf16.mxu0 0
        %4361 = vmatpush1.bf16.msra.mxu0 %v4350
        %4362 = vmatprep.subr.bf16.mxu0 0
        %4363 = vmatpush1.bf16.msra.mxu0 0
        %4364 = vmatprep.subr.bf16.mxu0 0
        %4365 = vmatpush1.bf16.msra.mxu0 0
        %4366 = vmatprep.subr.bf16.mxu0 0
        %4367 = vmatpush1.bf16.msra.mxu0 0
        %4368 = vmatprep.subr.bf16.mxu0 0
        %4369 = vmatpush1.bf16.msra.mxu0 0
        %4370 = vmatprep.subr.bf16.mxu0 0
        %4371 = vmatpush1.bf16.msra.mxu0 0
        %4372 = vmatprep.subr.bf16.mxu0 0
        %4373 = vmatpush1.bf16.msra.mxu0 0
        %4374 = vmatprep.subr.bf16.mxu0 0
        %4375 = vmatpush1.bf16.msra.mxu0 0
        %4376 = vmatprep.subr.bf16.mxu0 0
        %4377 = vmatpush1.bf16.msra.mxu0 0
        %4378 = vmatprep.subr.bf16.mxu0 0
        %4379 = vmatpush1.bf16.msra.mxu0 0
        %4380 = vmatprep.subr.bf16.mxu0 0
        %4381 = vmatpush1.bf16.msra.mxu0 0
        %4382 = vmatprep.subr.bf16.mxu0 0
        %4383 = vmatpush1.bf16.msra.mxu0 0
        %4384 = vmatprep.subr.bf16.mxu0 0
        %4385 = vmatpush1.bf16.msra.mxu0 0
        %4386 = vmatprep.mubr.bf16.mxu0 0
        %4387 = vmatmul.mubr.bf16.gmra.mrb[0].mxu0 %v4352
        %v4388 = vpop.f32.mrb[0].mxu0
        %v4389 = vadd.f32 0.0, %v4388
        %v4390 = vpop.f32.mrb[0].mxu0
        %v4391 = vpop.f32.mrb[0].mxu0
        %v4392 = vpop.f32.mrb[0].mxu0
        %4393 = vdwg.mxu0
        %4394 = vmatprep.subr.bf16.mxu0 0
        %4395 = vmatpush1.bf16.msra.mxu0 %v4278
        %4396 = vmatprep.subr.bf16.mxu0 0
        %4397 = vmatpush1.bf16.msra.mxu0 %v4279
        %4398 = vmatprep.subr.bf16.mxu0 0
        %4399 = vmatpush1.bf16.msra.mxu0 %v4280
        %4400 = vmatprep.subr.bf16.mxu0 0
        %4401 = vmatpush1.bf16.msra.mxu0 %v4281
        %4402 = vmatprep.subr.bf16.mxu0 0
        %4403 = vmatpush1.bf16.msra.mxu0 0
        %4404 = vmatprep.subr.bf16.mxu0 0
        %4405 = vmatpush1.bf16.msra.mxu0 0
        %4406 = vmatprep.subr.bf16.mxu0 0
        %4407 = vmatpush1.bf16.msra.mxu0 0
        %4408 = vmatprep.subr.bf16.mxu0 0
        %4409 = vmatpush1.bf16.msra.mxu0 0
        %4410 = vmatprep.subr.bf16.mxu0 0
        %4411 = vmatpush1.bf16.msra.mxu0 0
        %4412 = vmatprep.subr.bf16.mxu0 0
        %4413 = vmatpush1.bf16.msra.mxu0 0
        %4414 = vmatprep.subr.bf16.mxu0 0
        %4415 = vmatpush1.bf16.msra.mxu0 0
        %4416 = vmatprep.subr.bf16.mxu0 0
        %4417 = vmatpush1.bf16.msra.mxu0 0
        %4418 = vmatprep.subr.bf16.mxu0 0
        %4419 = vmatpush1.bf16.msra.mxu0 0
        %4420 = vmatprep.subr.bf16.mxu0 0
        %4421 = vmatpush1.bf16.msra.mxu0 0
        %4422 = vmatprep.subr.bf16.mxu0 0
        %4423 = vmatpush1.bf16.msra.mxu0 0
        %4424 = vmatprep.subr.bf16.mxu0 0
        %4425 = vmatpush1.bf16.msra.mxu0 0
        %4426 = vmatprep.mubr.bf16.mxu0 0
        %4427 = vmatmul.mubr.bf16.gmra.mrb[0].mxu0 %v4352
        %v4428 = vpop.f32.mrb[0].mxu0
        %v4429 = vadd.f32 0.0, %v4428
        %v4430 = vpop.f32.mrb[0].mxu0
        %v4431 = vpop.f32.mrb[0].mxu0
        %v4432 = vpop.f32.mrb[0].mxu0
        %4433 = vdwg.mxu0
        %v4434 = vrcp.pop %v4389
        %v4435 = vmul.f32 %v4429, %v4434
        %v4436 = vld [vmem:[%s53] sm:$0xf]
        %v4437 = vld [vmem:[%s53 + $0x4] sm:$0xf]
        %v4438 = vld [vmem:[%s53 + $0x8] sm:$0xf]
        %v4439 = vld [vmem:[%s53 + $0xc] sm:$0xf]
        %v4440 = vld [vmem:[%s53 + $0x10] sm:$0xf]
        %v4441 = vld [vmem:[%s53 + $0x14] sm:$0xf]
        %v4442 = vld [vmem:[%s53 + $0x18] sm:$0xf]
        %v4443 = vld [vmem:[%s53 + $0x1c] sm:$0xf]
        %v4444 = vpack.c.bf16 %v4435, %v4435
        %v4445 = vld [vmem:[%s55] sm:$0x1]
        %v4447 = vlaneseq
        %v4448 = vshrl.u32 %v4447, 7
        %v4449 = vsub.s32 0, %v4448
        %v4450 = vrot.slane %v4445, %v4449
        %v4460 = vunpack.c.l.b16 %v4436
        %v4461 = vunpack.c.l.b16 %v4437
        %v4462 = vunpack.c.l.b16 %v4438
        %v4463 = vunpack.c.l.b16 %v4439
        %v4464 = vunpack.c.l.b16 %v4440
        %v4465 = vunpack.c.l.b16 %v4441
        %v4466 = vunpack.c.l.b16 %v4442
        %v4467 = vunpack.c.l.b16 %v4443
        %v4468 = vpack.c.b16 %v4461, %v4460
        %v4469 = vpack.c.b16 %v4463, %v4462
        %v4470 = vpack.c.b16 %v4465, %v4464
        %v4471 = vpack.c.b16 %v4467, %v4466
        %v4477 = vsel %vm1735, %v4444, 0
        %4479 = vmatprep.subr.bf16.mxu0 0
        %4480 = vmatpush1.bf16.msra.mxu0 %v4468
        %4481 = vmatprep.subr.bf16.mxu0 0
        %4482 = vmatpush1.bf16.msra.mxu0 %v4469
        %4483 = vmatprep.subr.bf16.mxu0 0
        %4484 = vmatpush1.bf16.msra.mxu0 %v4470
        %4485 = vmatprep.subr.bf16.mxu0 0
        %4486 = vmatpush1.bf16.msra.mxu0 %v4471
        %4487 = vmatprep.subr.bf16.mxu0 0
        %4488 = vmatpush1.bf16.msra.mxu0 0
        %4489 = vmatprep.subr.bf16.mxu0 0
        %4490 = vmatpush1.bf16.msra.mxu0 0
        %4491 = vmatprep.subr.bf16.mxu0 0
        %4492 = vmatpush1.bf16.msra.mxu0 0
        %4493 = vmatprep.subr.bf16.mxu0 0
        %4494 = vmatpush1.bf16.msra.mxu0 0
        %4495 = vmatprep.subr.bf16.mxu0 0
        %4496 = vmatpush1.bf16.msra.mxu0 0
        %4497 = vmatprep.subr.bf16.mxu0 0
        %4498 = vmatpush1.bf16.msra.mxu0 0
        %4499 = vmatprep.subr.bf16.mxu0 0
        %4500 = vmatpush1.bf16.msra.mxu0 0
        %4501 = vmatprep.subr.bf16.mxu0 0
        %4502 = vmatpush1.bf16.msra.mxu0 0
        %4503 = vmatprep.subr.bf16.mxu0 0
        %4504 = vmatpush1.bf16.msra.mxu0 0
        %4505 = vmatprep.subr.bf16.mxu0 0
        %4506 = vmatpush1.bf16.msra.mxu0 0
        %4507 = vmatprep.subr.bf16.mxu0 0
        %4508 = vmatpush1.bf16.msra.mxu0 0
        %4509 = vmatprep.subr.bf16.mxu0 0
        %4510 = vmatpush1.bf16.msra.mxu0 0
        %4511 = vmatprep.mubr.bf16.mxu0 0
        %4512 = vmatmul.mubr.bf16.gmra.mrb[0].mxu0 %v4477
        %v4513 = vpop.f32.mrb[0].mxu0
        %v4514 = vadd.f32 %v4450, %v4513
        %v4515 = vpop.f32.mrb[0].mxu0
        %v4516 = vpop.f32.mrb[0].mxu0
        %v4517 = vpop.f32.mrb[0].mxu0
        %4518 = vdwg.mxu0
        %v4519 = vadd.f32 %v3762, %v4514
        %s4520 = scalar_lea.vmem %s45, 1
        %v4521 = vld [vmem:[%s4520] sm:$0x1]
        %s4522 = scalar_lea.vmem %s47, 1
        %v4523 = vld [vmem:[%s4522] sm:$0x1]
        %v4524 = vsel %vm1735, %v4519, 0.0
        %4525 = vadd.xlane.f32.xlu0 %v4524
        %v4526 = vpop.xlane.xlu0 %4525
        %v4527 = vmul.f32 %v4526, %v1670
        %v4528 = vsub.f32 %v4519, %v4527
        %v4529 = vmul.f32 %v4528, %v4528
        %v4530 = vsel %vm1735, %v4529, 0.0
        %4531 = vadd.xlane.f32.xlu0 %v4530
        %v4532 = vpop.xlane.xlu0 %4531
        %v4533 = vmul.f32 %v4532, %v1670
        %v4534 = vadd.f32 %v4533, 1e-05
        %v4535 = vrsqrt.pop %v4534
        %v4536 = vmul.f32 %v4528, %v4535
        %v4538 = vlaneseq
        %v4539 = vshrl.u32 %v4538, 7
        %v4540 = vsub.s32 0, %v4539
        %v4541 = vrot.slane %v4521, %v4540
        %v4543 = vmul.f32 %v4536, %v4541
        %v4545 = vlaneseq
        %v4546 = vshrl.u32 %v4545, 7
        %v4547 = vsub.s32 0, %v4546
        %v4548 = vrot.slane %v4523, %v4547
        %v4550 = vadd.f32 %v4543, %v4548
        %v4551 = vld [vmem:[%s57] sm:$0xf]
        %v4552 = vld [vmem:[%s57 + $0x4] sm:$0xf]
        %v4553 = vld [vmem:[%s57 + $0x8] sm:$0xf]
        %v4554 = vld [vmem:[%s57 + $0xc] sm:$0xf]
        %v4555 = vld [vmem:[%s57 + $0x10] sm:$0xf]
        %v4556 = vld [vmem:[%s57 + $0x14] sm:$0xf]
        %v4557 = vld [vmem:[%s57 + $0x18] sm:$0xf]
        %v4558 = vld [vmem:[%s57 + $0x1c] sm:$0xf]
        %v4559 = vpack.c.bf16 %v4550, %v4550
        %v4560 = vld [vmem:[%s59] sm:$0x1]
        %v4562 = vlaneseq
        %v4563 = vshrl.u32 %v4562, 7
        %v4564 = vsub.s32 0, %v4563
        %v4565 = vrot.slane %v4560, %v4564
        %v4575 = vunpack.c.l.b16 %v4551
        %v4576 = vunpack.c.l.b16 %v4552
        %v4577 = vunpack.c.l.b16 %v4553
        %v4578 = vunpack.c.l.b16 %v4554
        %v4579 = vunpack.c.l.b16 %v4555
        %v4580 = vunpack.c.l.b16 %v4556
        %v4581 = vunpack.c.l.b16 %v4557
        %v4582 = vunpack.c.l.b16 %v4558
        %v4583 = vpack.c.b16 %v4576, %v4575
        %v4584 = vpack.c.b16 %v4578, %v4577
        %v4585 = vpack.c.b16 %v4580, %v4579
        %v4586 = vpack.c.b16 %v4582, %v4581
        %v4592 = vsel %vm1735, %v4559, 0
        %4594 = vmatprep.subr.bf16.mxu0 0
        %4595 = vmatpush1.bf16.msra.mxu0 %v4583
        %4596 = vmatprep.subr.bf16.mxu0 0
        %4597 = vmatpush1.bf16.msra.mxu0 %v4584
        %4598 = vmatprep.subr.bf16.mxu0 0
        %4599 = vmatpush1.bf16.msra.mxu0 %v4585
        %4600 = vmatprep.subr.bf16.mxu0 0
        %4601 = vmatpush1.bf16.msra.mxu0 %v4586
        %4602 = vmatprep.subr.bf16.mxu0 0
        %4603 = vmatpush1.bf16.msra.mxu0 0
        %4604 = vmatprep.subr.bf16.mxu0 0
        %4605 = vmatpush1.bf16.msra.mxu0 0
        %4606 = vmatprep.subr.bf16.mxu0 0
        %4607 = vmatpush1.bf16.msra.mxu0 0
        %4608 = vmatprep.subr.bf16.mxu0 0
        %4609 = vmatpush1.bf16.msra.mxu0 0
        %4610 = vmatprep.subr.bf16.mxu0 0
        %4611 = vmatpush1.bf16.msra.mxu0 0
        %4612 = vmatprep.subr.bf16.mxu0 0
        %4613 = vmatpush1.bf16.msra.mxu0 0
        %4614 = vmatprep.subr.bf16.mxu0 0
        %4615 = vmatpush1.bf16.msra.mxu0 0
        %4616 = vmatprep.subr.bf16.mxu0 0
        %4617 = vmatpush1.bf16.msra.mxu0 0
        %4618 = vmatprep.subr.bf16.mxu0 0
        %4619 = vmatpush1.bf16.msra.mxu0 0
        %4620 = vmatprep.subr.bf16.mxu0 0
        %4621 = vmatpush1.bf16.msra.mxu0 0
        %4622 = vmatprep.subr.bf16.mxu0 0
        %4623 = vmatpush1.bf16.msra.mxu0 0
        %4624 = vmatprep.subr.bf16.mxu0 0
        %4625 = vmatpush1.bf16.msra.mxu0 0
        %4626 = vmatprep.mubr.bf16.mxu0 0
        %4627 = vmatmul.mubr.bf16.gmra.mrb[0].mxu0 %v4592
        %v4628 = vpop.f32.mrb[0].mxu0
        %v4629 = vadd.f32 %v4565, %v4628
        %v4630 = vpop.f32.mrb[0].mxu0
        %v4631 = vpop.f32.mrb[0].mxu0
        %v4632 = vpop.f32.mrb[0].mxu0
        %4633 = vdwg.mxu0
        %s4634 = scalar_lea.vmem %s57, 32
        %v4635 = vld [vmem:[%s4634] sm:$0xf]
        %v4636 = vld [vmem:[%s4634 + $0x4] sm:$0xf]
        %v4637 = vld [vmem:[%s4634 + $0x8] sm:$0xf]
        %v4638 = vld [vmem:[%s4634 + $0xc] sm:$0xf]
        %v4639 = vld [vmem:[%s4634 + $0x10] sm:$0xf]
        %v4640 = vld [vmem:[%s4634 + $0x14] sm:$0xf]
        %v4641 = vld [vmem:[%s4634 + $0x18] sm:$0xf]
        %v4642 = vld [vmem:[%s4634 + $0x1c] sm:$0xf]
        %v4643 = vpack.c.bf16 %v3757, %v3757
        %s4644 = scalar_lea.vmem %s59, 1
        %v4645 = vld [vmem:[%s4644] sm:$0x1]
        %v4647 = vlaneseq
        %v4648 = vshrl.u32 %v4647, 7
        %v4649 = vsub.s32 0, %v4648
        %v4650 = vrot.slane %v4645, %v4649
        %v4660 = vunpack.c.l.b16 %v4635
        %v4661 = vunpack.c.l.b16 %v4636
        %v4662 = vunpack.c.l.b16 %v4637
        %v4663 = vunpack.c.l.b16 %v4638
        %v4664 = vunpack.c.l.b16 %v4639
        %v4665 = vunpack.c.l.b16 %v4640
        %v4666 = vunpack.c.l.b16 %v4641
        %v4667 = vunpack.c.l.b16 %v4642
        %v4668 = vpack.c.b16 %v4661, %v4660
        %v4669 = vpack.c.b16 %v4663, %v4662
        %v4670 = vpack.c.b16 %v4665, %v4664
        %v4671 = vpack.c.b16 %v4667, %v4666
        %v4677 = vsel %vm1735, %v4643, 0
        %4679 = vmatprep.subr.bf16.mxu0 0
        %4680 = vmatpush1.bf16.msra.mxu0 %v4668
        %4681 = vmatprep.subr.bf16.mxu0 0
        %4682 = vmatpush1.bf16.msra.mxu0 %v4669
        %4683 = vmatprep.subr.bf16.mxu0 0
        %4684 = vmatpush1.bf16.msra.mxu0 %v4670
        %4685 = vmatprep.subr.bf16.mxu0 0
        %4686 = vmatpush1.bf16.msra.mxu0 %v4671
        %4687 = vmatprep.subr.bf16.mxu0 0
        %4688 = vmatpush1.bf16.msra.mxu0 0
        %4689 = vmatprep.subr.bf16.mxu0 0
        %4690 = vmatpush1.bf16.msra.mxu0 0
        %4691 = vmatprep.subr.bf16.mxu0 0
        %4692 = vmatpush1.bf16.msra.mxu0 0
        %4693 = vmatprep.subr.bf16.mxu0 0
        %4694 = vmatpush1.bf16.msra.mxu0 0
        %4695 = vmatprep.subr.bf16.mxu0 0
        %4696 = vmatpush1.bf16.msra.mxu0 0
        %4697 = vmatprep.subr.bf16.mxu0 0
        %4698 = vmatpush1.bf16.msra.mxu0 0
        %4699 = vmatprep.subr.bf16.mxu0 0
        %4700 = vmatpush1.bf16.msra.mxu0 0
        %4701 = vmatprep.subr.bf16.mxu0 0
        %4702 = vmatpush1.bf16.msra.mxu0 0
        %4703 = vmatprep.subr.bf16.mxu0 0
        %4704 = vmatpush1.bf16.msra.mxu0 0
        %4705 = vmatprep.subr.bf16.mxu0 0
        %4706 = vmatpush1.bf16.msra.mxu0 0
        %4707 = vmatprep.subr.bf16.mxu0 0
        %4708 = vmatpush1.bf16.msra.mxu0 0
        %4709 = vmatprep.subr.bf16.mxu0 0
        %4710 = vmatpush1.bf16.msra.mxu0 0
        %4711 = vmatprep.mubr.bf16.mxu0 0
        %4712 = vmatmul.mubr.bf16.gmra.mrb[0].mxu0 %v4677
        %v4713 = vpop.f32.mrb[0].mxu0
        %v4714 = vadd.f32 %v4650, %v4713
        %v4715 = vpop.f32.mrb[0].mxu0
        %v4716 = vpop.f32.mrb[0].mxu0
        %v4717 = vpop.f32.mrb[0].mxu0
        %4718 = vdwg.mxu0
        %s4719 = scalar_lea.vmem %s57, 64
        %v4720 = vld [vmem:[%s4719] sm:$0xf]
        %v4721 = vld [vmem:[%s4719 + $0x4] sm:$0xf]
        %v4722 = vld [vmem:[%s4719 + $0x8] sm:$0xf]
        %v4723 = vld [vmem:[%s4719 + $0xc] sm:$0xf]
        %v4724 = vld [vmem:[%s4719 + $0x10] sm:$0xf]
        %v4725 = vld [vmem:[%s4719 + $0x14] sm:$0xf]
        %v4726 = vld [vmem:[%s4719 + $0x18] sm:$0xf]
        %v4727 = vld [vmem:[%s4719 + $0x1c] sm:$0xf]
        %s4728 = scalar_lea.vmem %s59, 2
        %v4729 = vld [vmem:[%s4728] sm:$0x1]
        %v4731 = vlaneseq
        %v4732 = vshrl.u32 %v4731, 7
        %v4733 = vsub.s32 0, %v4732
        %v4734 = vrot.slane %v4729, %v4733
        %v4744 = vunpack.c.l.b16 %v4720
        %v4745 = vunpack.c.l.b16 %v4721
        %v4746 = vunpack.c.l.b16 %v4722
        %v4747 = vunpack.c.l.b16 %v4723
        %v4748 = vunpack.c.l.b16 %v4724
        %v4749 = vunpack.c.l.b16 %v4725
        %v4750 = vunpack.c.l.b16 %v4726
        %v4751 = vunpack.c.l.b16 %v4727
        %v4752 = vpack.c.b16 %v4745, %v4744
        %v4753 = vpack.c.b16 %v4747, %v4746
        %v4754 = vpack.c.b16 %v4749, %v4748
        %v4755 = vpack.c.b16 %v4751, %v4750
        %4760 = vmatprep.subr.bf16.mxu0 0
        %4761 = vmatpush1.bf16.msra.mxu0 %v4752
        %4762 = vmatprep.subr.bf16.mxu0 0
        %4763 = vmatpush1.bf16.msra.mxu0 %v4753
        %4764 = vmatprep.subr.bf16.mxu0 0
        %4765 = vmatpush1.bf16.msra.mxu0 %v4754
        %4766 = vmatprep.subr.bf16.mxu0 0
        %4767 = vmatpush1.bf16.msra.mxu0 %v4755
        %4768 = vmatprep.subr.bf16.mxu0 0
        %4769 = vmatpush1.bf16.msra.mxu0 0
        %4770 = vmatprep.subr.bf16.mxu0 0
        %4771 = vmatpush1.bf16.msra.mxu0 0
        %4772 = vmatprep.subr.bf16.mxu0 0
        %4773 = vmatpush1.bf16.msra.mxu0 0
        %4774 = vmatprep.subr.bf16.mxu0 0
        %4775 = vmatpush1.bf16.msra.mxu0 0
        %4776 = vmatprep.subr.bf16.mxu0 0
        %4777 = vmatpush1.bf16.msra.mxu0 0
        %4778 = vmatprep.subr.bf16.mxu0 0
        %4779 = vmatpush1.bf16.msra.mxu0 0
        %4780 = vmatprep.subr.bf16.mxu0 0
        %4781 = vmatpush1.bf16.msra.mxu0 0
        %4782 = vmatprep.subr.bf16.mxu0 0
        %4783 = vmatpush1.bf16.msra.mxu0 0
        %4784 = vmatprep.subr.bf16.mxu0 0
        %4785 = vmatpush1.bf16.msra.mxu0 0
        %4786 = vmatprep.subr.bf16.mxu0 0
        %4787 = vmatpush1.bf16.msra.mxu0 0
        %4788 = vmatprep.subr.bf16.mxu0 0
        %4789 = vmatpush1.bf16.msra.mxu0 0
        %4790 = vmatprep.subr.bf16.mxu0 0
        %4791 = vmatpush1.bf16.msra.mxu0 0
        %4792 = vmatprep.mubr.bf16.mxu0 0
        %4793 = vmatmul.mubr.bf16.gmra.mrb[0].mxu0 %v4677
        %v4794 = vpop.f32.mrb[0].mxu0
        %v4795 = vadd.f32 %v4734, %v4794
        %v4796 = vpop.f32.mrb[0].mxu0
        %v4797 = vpop.f32.mrb[0].mxu0
        %v4798 = vpop.f32.mrb[0].mxu0
        %4799 = vdwg.mxu0
        %v4800 = vand.u32 %v4048, 3
        %v4801 = vand.u32 %v4049, 3
        %vm4802 = vcmp.eq.s32.totalorder %v4800, %v1947
        %vm4803 = vcmp.eq.s32.totalorder %v4801, %v1947
        %v4804 = vsel %vm4802, 1.0, 0.0
        %v4805 = vsel %vm4803, 1.0, 0.0
        %v4806 = vpack.c.bf16 %v4805, %v4804
        %v4807 = vshra.s32 %v4048, 2
        %v4808 = vshra.s32 %v4049, 2
        %vm4809 = vcmp.eq.s32.totalorder %v1953, %v4090
        %vm4810 = vcmp.eq.s32.totalorder %v1954, %v4090
        %vm4811 = vcmp.eq.s32.totalorder %v4807, %v4090
        %vm4812 = vcmp.eq.s32.totalorder %v4808, %v4090
        %v4813 = vsel %vm4809, 1.0, 0.0
        %v4814 = vsel %vm4810, 1.0, 0.0
        %v4815 = vsel %vm4811, 1.0, 0.0
        %v4816 = vsel %vm4812, 1.0, 0.0
        %v4817 = vpack.c.bf16 %v4714, %v4714
        %v4819 = vsel %vm1961, %v4806, 0
        %v4822 = vsel %vm1965, %v4817, 0
        %4824 = vmatprep.subr.bf16.mxu0 0
        %4825 = vmatpush1.bf16.msra.mxu0 %v4822
        %4826 = vmatprep.subr.bf16.mxu0 0
        %4827 = vmatpush1.bf16.msra.mxu0 0
        %4828 = vmatprep.subr.bf16.mxu0 0
        %4829 = vmatpush1.bf16.msra.mxu0 0
        %4830 = vmatprep.subr.bf16.mxu0 0
        %4831 = vmatpush1.bf16.msra.mxu0 0
        %4832 = vmatprep.subr.bf16.mxu0 0
        %4833 = vmatpush1.bf16.msra.mxu0 0
        %4834 = vmatprep.subr.bf16.mxu0 0
        %4835 = vmatpush1.bf16.msra.mxu0 0
        %4836 = vmatprep.subr.bf16.mxu0 0
        %4837 = vmatpush1.bf16.msra.mxu0 0
        %4838 = vmatprep.subr.bf16.mxu0 0
        %4839 = vmatpush1.bf16.msra.mxu0 0
        %4840 = vmatprep.subr.bf16.mxu0 0
        %4841 = vmatpush1.bf16.msra.mxu0 0
        %4842 = vmatprep.subr.bf16.mxu0 0
        %4843 = vmatpush1.bf16.msra.mxu0 0
        %4844 = vmatprep.subr.bf16.mxu0 0
        %4845 = vmatpush1.bf16.msra.mxu0 0
        %4846 = vmatprep.subr.bf16.mxu0 0
        %4847 = vmatpush1.bf16.msra.mxu0 0
        %4848 = vmatprep.subr.bf16.mxu0 0
        %4849 = vmatpush1.bf16.msra.mxu0 0
        %4850 = vmatprep.subr.bf16.mxu0 0
        %4851 = vmatpush1.bf16.msra.mxu0 0
        %4852 = vmatprep.subr.bf16.mxu0 0
        %4853 = vmatpush1.bf16.msra.mxu0 0
        %4854 = vmatprep.subr.bf16.mxu0 0
        %4855 = vmatpush1.bf16.msra.mxu0 0
        %4856 = vmatprep.mubr.bf16.mxu0 0
        %4857 = vmatmul.mubr.bf16.gmra.mrb[0].mxu0 %v1963
        %v4858 = vpop.f32.mrb[0].mxu0
        %v4859 = vadd.f32 0.0, %v4858
        %v4860 = vpop.f32.mrb[0].mxu0
        %v4861 = vpop.f32.mrb[0].mxu0
        %v4862 = vadd.f32 0.0, %v4861
        %v4863 = vpop.f32.mrb[0].mxu0
        %4864 = vmatprep.mubr.bf16.mxu0 0
        %4865 = vmatmul.mubr.bf16.gmra.mrb[0].mxu0 %v4819
        %v4866 = vpop.f32.mrb[0].mxu0
        %v4867 = vadd.f32 0.0, %v4866
        %v4868 = vpop.f32.mrb[0].mxu0
        %v4869 = vpop.f32.mrb[0].mxu0
        %v4870 = vadd.f32 0.0, %v4869
        %v4871 = vpop.f32.mrb[0].mxu0
        %4872 = vdwg.mxu0
        %v4873 = vmul.f32 %v4859, %v4813
        %v4874 = vmul.f32 %v4862, %v4814
        %v4875 = vmul.f32 %v4867, %v4815
        %v4876 = vmul.f32 %v4870, %v4816
        %v4877 = vpack.c.bf16 %v4874, %v4873
        %v4878 = vpack.c.bf16 %v4876, %v4875
        %v4879 = vpack.c.bf16 %v4795, %v4795
        %v4881 = vsel %vm1965, %v4879, 0
        %4883 = vmatprep.subr.bf16.mxu0 0
        %4884 = vmatpush1.bf16.msra.mxu0 %v4881
        %4885 = vmatprep.subr.bf16.mxu0 0
        %4886 = vmatpush1.bf16.msra.mxu0 0
        %4887 = vmatprep.subr.bf16.mxu0 0
        %4888 = vmatpush1.bf16.msra.mxu0 0
        %4889 = vmatprep.subr.bf16.mxu0 0
        %4890 = vmatpush1.bf16.msra.mxu0 0
        %4891 = vmatprep.subr.bf16.mxu0 0
        %4892 = vmatpush1.bf16.msra.mxu0 0
        %4893 = vmatprep.subr.bf16.mxu0 0
        %4894 = vmatpush1.bf16.msra.mxu0 0
        %4895 = vmatprep.subr.bf16.mxu0 0
        %4896 = vmatpush1.bf16.msra.mxu0 0
        %4897 = vmatprep.subr.bf16.mxu0 0
        %4898 = vmatpush1.bf16.msra.mxu0 0
        %4899 = vmatprep.subr.bf16.mxu0 0
        %4900 = vmatpush1.bf16.msra.mxu0 0
        %4901 = vmatprep.subr.bf16.mxu0 0
        %4902 = vmatpush1.bf16.msra.mxu0 0
        %4903 = vmatprep.subr.bf16.mxu0 0
        %4904 = vmatpush1.bf16.msra.mxu0 0
        %4905 = vmatprep.subr.bf16.mxu0 0
        %4906 = vmatpush1.bf16.msra.mxu0 0
        %4907 = vmatprep.subr.bf16.mxu0 0
        %4908 = vmatpush1.bf16.msra.mxu0 0
        %4909 = vmatprep.subr.bf16.mxu0 0
        %4910 = vmatpush1.bf16.msra.mxu0 0
        %4911 = vmatprep.subr.bf16.mxu0 0
        %4912 = vmatpush1.bf16.msra.mxu0 0
        %4913 = vmatprep.subr.bf16.mxu0 0
        %4914 = vmatpush1.bf16.msra.mxu0 0
        %4915 = vmatprep.mubr.bf16.mxu0 0
        %4916 = vmatmul.mubr.bf16.gmra.mrb[0].mxu0 %v1963
        %v4917 = vpop.f32.mrb[0].mxu0
        %v4918 = vadd.f32 0.0, %v4917
        %v4919 = vpop.f32.mrb[0].mxu0
        %v4920 = vpop.f32.mrb[0].mxu0
        %v4921 = vadd.f32 0.0, %v4920
        %v4922 = vpop.f32.mrb[0].mxu0
        %4923 = vmatprep.mubr.bf16.mxu0 0
        %4924 = vmatmul.mubr.bf16.gmra.mrb[0].mxu0 %v4819
        %v4925 = vpop.f32.mrb[0].mxu0
        %v4926 = vadd.f32 0.0, %v4925
        %v4927 = vpop.f32.mrb[0].mxu0
        %v4928 = vpop.f32.mrb[0].mxu0
        %v4929 = vadd.f32 0.0, %v4928
        %v4930 = vpop.f32.mrb[0].mxu0
        %4931 = vdwg.mxu0
        %v4932 = vmul.f32 %v4918, %v4813
        %v4933 = vmul.f32 %v4921, %v4814
        %v4934 = vmul.f32 %v4926, %v4815
        %v4935 = vmul.f32 %v4929, %v4816
        %v4936 = vpack.c.bf16 %v4933, %v4932
        %v4937 = vpack.c.bf16 %v4935, %v4934
        %v4938 = vpack.c.bf16 %v4629, %v4629
        %v4940 = vsel %vm1735, %v4938, 0
        %v4943 = vsel %vm1735, %v4877, 0
        %v4946 = vsel %vm1735, %v4878, 0
        %4948 = vmatprep.subr.bf16.mxu0 0
        %4949 = vmatpush1.bf16.xpose.msra.mxu0 %v4943
        %4950 = vmatprep.subr.bf16.mxu0 0
        %4951 = vmatpush1.bf16.xpose.msra.mxu0 %v4946
        %4952 = vmatprep.subr.bf16.mxu0 0
        %4953 = vmatpush1.bf16.xpose.msra.mxu0 0
        %4954 = vmatprep.subr.bf16.mxu0 0
        %4955 = vmatpush1.bf16.xpose.msra.mxu0 0
        %4956 = vmatprep.subr.bf16.mxu0 0
        %4957 = vmatpush1.bf16.xpose.msra.mxu0 0
        %4958 = vmatprep.subr.bf16.mxu0 0
        %4959 = vmatpush1.bf16.xpose.msra.mxu0 0
        %4960 = vmatprep.subr.bf16.mxu0 0
        %4961 = vmatpush1.bf16.xpose.msra.mxu0 0
        %4962 = vmatprep.subr.bf16.mxu0 0
        %4963 = vmatpush1.bf16.xpose.msra.mxu0 0
        %4964 = vmatprep.subr.bf16.mxu0 0
        %4965 = vmatpush1.bf16.xpose.msra.mxu0 0
        %4966 = vmatprep.subr.bf16.mxu0 0
        %4967 = vmatpush1.bf16.xpose.msra.mxu0 0
        %4968 = vmatprep.subr.bf16.mxu0 0
        %4969 = vmatpush1.bf16.xpose.msra.mxu0 0
        %4970 = vmatprep.subr.bf16.mxu0 0
        %4971 = vmatpush1.bf16.xpose.msra.mxu0 0
        %4972 = vmatprep.subr.bf16.mxu0 0
        %4973 = vmatpush1.bf16.xpose.msra.mxu0 0
        %4974 = vmatprep.subr.bf16.mxu0 0
        %4975 = vmatpush1.bf16.xpose.msra.mxu0 0
        %4976 = vmatprep.subr.bf16.mxu0 0
        %4977 = vmatpush1.bf16.xpose.msra.mxu0 0
        %4978 = vmatprep.subr.bf16.mxu0 0
        %4979 = vmatpush1.bf16.xpose.msra.mxu0 0
        %4980 = vmatprep.mubr.bf16.mxu0 0
        %4981 = vmatmul.mubr.bf16.gmra.mrb[0].mxu0 %v4940
        %v4982 = vpop.f32.mrb[0].mxu0
        %v4983 = vadd.f32 0.0, %v4982
        %v4984 = vpop.f32.mrb[0].mxu0
        %v4985 = vpop.f32.mrb[0].mxu0
        %v4986 = vpop.f32.mrb[0].mxu0
        %4987 = vdwg.mxu0
        %v4988 = vmul.f32 %v4983, 0.35355338
        %vm4989 = vcmask 261120
        %v4990 = vsel %vm4989, %v4988, -inf
        %4991 = vmax.xlane.f32.xlu0 %v4990
        %v4992 = vpop.xlane.xlu0 %4991
        %v4993 = vsub.f32 %v4988, %v4992
        %v4994 = vmul.f32 %v4993, 1.442695
        %v4995 = vpow.pop %v4994
        %v4996 = vpack.c.bf16 %v4995, %v4995
        %v4997 = vpack.c.bf16 %v4814, %v4813
        %v4998 = vpack.c.bf16 %v4816, %v4815
        %v5000 = vsel %vm4989, %v4996, 0
        %5002 = vmatprep.subr.bf16.mxu0 0
        %5003 = vmatpush1.bf16.msra.mxu0 %v4997
        %5004 = vmatprep.subr.bf16.mxu0 0
        %5005 = vmatpush1.bf16.msra.mxu0 %v4998
        %5006 = vmatprep.subr.bf16.mxu0 0
        %5007 = vmatpush1.bf16.msra.mxu0 0
        %5008 = vmatprep.subr.bf16.mxu0 0
        %5009 = vmatpush1.bf16.msra.mxu0 0
        %5010 = vmatprep.subr.bf16.mxu0 0
        %5011 = vmatpush1.bf16.msra.mxu0 0
        %5012 = vmatprep.subr.bf16.mxu0 0
        %5013 = vmatpush1.bf16.msra.mxu0 0
        %5014 = vmatprep.subr.bf16.mxu0 0
        %5015 = vmatpush1.bf16.msra.mxu0 0
        %5016 = vmatprep.subr.bf16.mxu0 0
        %5017 = vmatpush1.bf16.msra.mxu0 0
        %5018 = vmatprep.subr.bf16.mxu0 0
        %5019 = vmatpush1.bf16.msra.mxu0 0
        %5020 = vmatprep.subr.bf16.mxu0 0
        %5021 = vmatpush1.bf16.msra.mxu0 0
        %5022 = vmatprep.subr.bf16.mxu0 0
        %5023 = vmatpush1.bf16.msra.mxu0 0
        %5024 = vmatprep.subr.bf16.mxu0 0
        %5025 = vmatpush1.bf16.msra.mxu0 0
        %5026 = vmatprep.subr.bf16.mxu0 0
        %5027 = vmatpush1.bf16.msra.mxu0 0
        %5028 = vmatprep.subr.bf16.mxu0 0
        %5029 = vmatpush1.bf16.msra.mxu0 0
        %5030 = vmatprep.subr.bf16.mxu0 0
        %5031 = vmatpush1.bf16.msra.mxu0 0
        %5032 = vmatprep.subr.bf16.mxu0 0
        %5033 = vmatpush1.bf16.msra.mxu0 0
        %5034 = vmatprep.mubr.bf16.mxu0 0
        %5035 = vmatmul.mubr.bf16.gmra.mrb[0].mxu0 %v5000
        %v5036 = vpop.f32.mrb[0].mxu0
        %v5037 = vadd.f32 0.0, %v5036
        %v5038 = vpop.f32.mrb[0].mxu0
        %v5039 = vpop.f32.mrb[0].mxu0
        %v5040 = vpop.f32.mrb[0].mxu0
        %5041 = vdwg.mxu0
        %5042 = vmatprep.subr.bf16.mxu0 0
        %5043 = vmatpush1.bf16.msra.mxu0 %v4936
        %5044 = vmatprep.subr.bf16.mxu0 0
        %5045 = vmatpush1.bf16.msra.mxu0 %v4937
        %5046 = vmatprep.subr.bf16.mxu0 0
        %5047 = vmatpush1.bf16.msra.mxu0 0
        %5048 = vmatprep.subr.bf16.mxu0 0
        %5049 = vmatpush1.bf16.msra.mxu0 0
        %5050 = vmatprep.subr.bf16.mxu0 0
        %5051 = vmatpush1.bf16.msra.mxu0 0
        %5052 = vmatprep.subr.bf16.mxu0 0
        %5053 = vmatpush1.bf16.msra.mxu0 0
        %5054 = vmatprep.subr.bf16.mxu0 0
        %5055 = vmatpush1.bf16.msra.mxu0 0
        %5056 = vmatprep.subr.bf16.mxu0 0
        %5057 = vmatpush1.bf16.msra.mxu0 0
        %5058 = vmatprep.subr.bf16.mxu0 0
        %5059 = vmatpush1.bf16.msra.mxu0 0
        %5060 = vmatprep.subr.bf16.mxu0 0
        %5061 = vmatpush1.bf16.msra.mxu0 0
        %5062 = vmatprep.subr.bf16.mxu0 0
        %5063 = vmatpush1.bf16.msra.mxu0 0
        %5064 = vmatprep.subr.bf16.mxu0 0
        %5065 = vmatpush1.bf16.msra.mxu0 0
        %5066 = vmatprep.subr.bf16.mxu0 0
        %5067 = vmatpush1.bf16.msra.mxu0 0
        %5068 = vmatprep.subr.bf16.mxu0 0
        %5069 = vmatpush1.bf16.msra.mxu0 0
        %5070 = vmatprep.subr.bf16.mxu0 0
        %5071 = vmatpush1.bf16.msra.mxu0 0
        %5072 = vmatprep.subr.bf16.mxu0 0
        %5073 = vmatpush1.bf16.msra.mxu0 0
        %5074 = vmatprep.mubr.bf16.mxu0 0
        %5075 = vmatmul.mubr.bf16.gmra.mrb[0].mxu0 %v5000
        %v5076 = vpop.f32.mrb[0].mxu0
        %v5077 = vadd.f32 0.0, %v5076
        %v5078 = vpop.f32.mrb[0].mxu0
        %v5079 = vpop.f32.mrb[0].mxu0
        %v5080 = vpop.f32.mrb[0].mxu0
        %5081 = vdwg.mxu0
        %v5082 = vrcp.pop %v5037
        %v5083 = vmul.f32 %v5077, %v5082
        %v5084 = vld [vmem:[%s61] sm:$0xf]
        %v5085 = vld [vmem:[%s61 + $0x4] sm:$0xf]
        %v5086 = vld [vmem:[%s61 + $0x8] sm:$0xf]
        %v5087 = vld [vmem:[%s61 + $0xc] sm:$0xf]
        %v5088 = vld [vmem:[%s61 + $0x10] sm:$0xf]
        %v5089 = vld [vmem:[%s61 + $0x14] sm:$0xf]
        %v5090 = vld [vmem:[%s61 + $0x18] sm:$0xf]
        %v5091 = vld [vmem:[%s61 + $0x1c] sm:$0xf]
        %v5092 = vpack.c.bf16 %v5083, %v5083
        %v5093 = vld [vmem:[%s63] sm:$0x1]
        %v5095 = vlaneseq
        %v5096 = vshrl.u32 %v5095, 7
        %v5097 = vsub.s32 0, %v5096
        %v5098 = vrot.slane %v5093, %v5097
        %v5108 = vunpack.c.l.b16 %v5084
        %v5109 = vunpack.c.l.b16 %v5085
        %v5110 = vunpack.c.l.b16 %v5086
        %v5111 = vunpack.c.l.b16 %v5087
        %v5112 = vunpack.c.l.b16 %v5088
        %v5113 = vunpack.c.l.b16 %v5089
        %v5114 = vunpack.c.l.b16 %v5090
        %v5115 = vunpack.c.l.b16 %v5091
        %v5116 = vpack.c.b16 %v5109, %v5108
        %v5117 = vpack.c.b16 %v5111, %v5110
        %v5118 = vpack.c.b16 %v5113, %v5112
        %v5119 = vpack.c.b16 %v5115, %v5114
        %v5125 = vsel %vm1735, %v5092, 0
        %5127 = vmatprep.subr.bf16.mxu0 0
        %5128 = vmatpush1.bf16.msra.mxu0 %v5116
        %5129 = vmatprep.subr.bf16.mxu0 0
        %5130 = vmatpush1.bf16.msra.mxu0 %v5117
        %5131 = vmatprep.subr.bf16.mxu0 0
        %5132 = vmatpush1.bf16.msra.mxu0 %v5118
        %5133 = vmatprep.subr.bf16.mxu0 0
        %5134 = vmatpush1.bf16.msra.mxu0 %v5119
        %5135 = vmatprep.subr.bf16.mxu0 0
        %5136 = vmatpush1.bf16.msra.mxu0 0
        %5137 = vmatprep.subr.bf16.mxu0 0
        %5138 = vmatpush1.bf16.msra.mxu0 0
        %5139 = vmatprep.subr.bf16.mxu0 0
        %5140 = vmatpush1.bf16.msra.mxu0 0
        %5141 = vmatprep.subr.bf16.mxu0 0
        %5142 = vmatpush1.bf16.msra.mxu0 0
        %5143 = vmatprep.subr.bf16.mxu0 0
        %5144 = vmatpush1.bf16.msra.mxu0 0
        %5145 = vmatprep.subr.bf16.mxu0 0
        %5146 = vmatpush1.bf16.msra.mxu0 0
        %5147 = vmatprep.subr.bf16.mxu0 0
        %5148 = vmatpush1.bf16.msra.mxu0 0
        %5149 = vmatprep.subr.bf16.mxu0 0
        %5150 = vmatpush1.bf16.msra.mxu0 0
        %5151 = vmatprep.subr.bf16.mxu0 0
        %5152 = vmatpush1.bf16.msra.mxu0 0
        %5153 = vmatprep.subr.bf16.mxu0 0
        %5154 = vmatpush1.bf16.msra.mxu0 0
        %5155 = vmatprep.subr.bf16.mxu0 0
        %5156 = vmatpush1.bf16.msra.mxu0 0
        %5157 = vmatprep.subr.bf16.mxu0 0
        %5158 = vmatpush1.bf16.msra.mxu0 0
        %5159 = vmatprep.mubr.bf16.mxu0 0
        %5160 = vmatmul.mubr.bf16.gmra.mrb[0].mxu0 %v5125
        %v5161 = vpop.f32.mrb[0].mxu0
        %v5162 = vadd.f32 %v5098, %v5161
        %v5163 = vpop.f32.mrb[0].mxu0
        %v5164 = vpop.f32.mrb[0].mxu0
        %v5165 = vpop.f32.mrb[0].mxu0
        %5166 = vdwg.mxu0
        %v5167 = vadd.f32 %v4519, %v5162
        %s5168 = scalar_lea.vmem %s45, 2
        %v5169 = vld [vmem:[%s5168] sm:$0x1]
        %s5170 = scalar_lea.vmem %s47, 2
        %v5171 = vld [vmem:[%s5170] sm:$0x1]
        %v5172 = vsel %vm1735, %v5167, 0.0
        %5173 = vadd.xlane.f32.xlu0 %v5172
        %v5174 = vpop.xlane.xlu0 %5173
        %v5175 = vmul.f32 %v5174, %v1670
        %v5176 = vsub.f32 %v5167, %v5175
        %v5177 = vmul.f32 %v5176, %v5176
        %v5178 = vsel %vm1735, %v5177, 0.0
        %5179 = vadd.xlane.f32.xlu0 %v5178
        %v5180 = vpop.xlane.xlu0 %5179
        %v5181 = vmul.f32 %v5180, %v1670
        %v5182 = vadd.f32 %v5181, 1e-05
        %v5183 = vrsqrt.pop %v5182
        %v5184 = vmul.f32 %v5176, %v5183
        %v5186 = vlaneseq
        %v5187 = vshrl.u32 %v5186, 7
        %v5188 = vsub.s32 0, %v5187
        %v5189 = vrot.slane %v5169, %v5188
        %v5191 = vmul.f32 %v5184, %v5189
        %v5193 = vlaneseq
        %v5194 = vshrl.u32 %v5193, 7
        %v5195 = vsub.s32 0, %v5194
        %v5196 = vrot.slane %v5171, %v5195
        %v5198 = vadd.f32 %v5191, %v5196
        %v5199 = vld [vmem:[%s65] sm:$0xf]
        %v5200 = vld [vmem:[%s65 + $0x4] sm:$0xf]
        %v5201 = vld [vmem:[%s65 + $0x8] sm:$0xf]
        %v5202 = vld [vmem:[%s65 + $0xc] sm:$0xf]
        %v5203 = vld [vmem:[%s65 + $0x10] sm:$0xf]
        %v5204 = vld [vmem:[%s65 + $0x14] sm:$0xf]
        %v5205 = vld [vmem:[%s65 + $0x18] sm:$0xf]
        %v5206 = vld [vmem:[%s65 + $0x1c] sm:$0xf]
        %v5207 = vpack.c.bf16 %v5198, %v5198
        %v5208 = vld [vmem:[%s67] sm:$0x1]
        %v5210 = vlaneseq
        %v5211 = vshrl.u32 %v5210, 7
        %v5212 = vsub.s32 0, %v5211
        %v5213 = vrot.slane %v5208, %v5212
        %v5223 = vunpack.c.l.b16 %v5199
        %v5224 = vunpack.c.l.b16 %v5200
        %v5225 = vunpack.c.l.b16 %v5201
        %v5226 = vunpack.c.l.b16 %v5202
        %v5227 = vunpack.c.l.b16 %v5203
        %v5228 = vunpack.c.l.b16 %v5204
        %v5229 = vunpack.c.l.b16 %v5205
        %v5230 = vunpack.c.l.b16 %v5206
        %v5231 = vpack.c.b16 %v5224, %v5223
        %v5232 = vpack.c.b16 %v5226, %v5225
        %v5233 = vpack.c.b16 %v5228, %v5227
        %v5234 = vpack.c.b16 %v5230, %v5229
        %v5240 = vsel %vm1735, %v5207, 0
        %5242 = vmatprep.subr.bf16.mxu0 0
        %5243 = vmatpush1.bf16.msra.mxu0 %v5231
        %5244 = vmatprep.subr.bf16.mxu0 0
        %5245 = vmatpush1.bf16.msra.mxu0 %v5232
        %5246 = vmatprep.subr.bf16.mxu0 0
        %5247 = vmatpush1.bf16.msra.mxu0 %v5233
        %5248 = vmatprep.subr.bf16.mxu0 0
        %5249 = vmatpush1.bf16.msra.mxu0 %v5234
        %5250 = vmatprep.subr.bf16.mxu0 0
        %5251 = vmatpush1.bf16.msra.mxu0 0
        %5252 = vmatprep.subr.bf16.mxu0 0
        %5253 = vmatpush1.bf16.msra.mxu0 0
        %5254 = vmatprep.subr.bf16.mxu0 0
        %5255 = vmatpush1.bf16.msra.mxu0 0
        %5256 = vmatprep.subr.bf16.mxu0 0
        %5257 = vmatpush1.bf16.msra.mxu0 0
        %5258 = vmatprep.subr.bf16.mxu0 0
        %5259 = vmatpush1.bf16.msra.mxu0 0
        %5260 = vmatprep.subr.bf16.mxu0 0
        %5261 = vmatpush1.bf16.msra.mxu0 0
        %5262 = vmatprep.subr.bf16.mxu0 0
        %5263 = vmatpush1.bf16.msra.mxu0 0
        %5264 = vmatprep.subr.bf16.mxu0 0
        %5265 = vmatpush1.bf16.msra.mxu0 0
        %5266 = vmatprep.subr.bf16.mxu0 0
        %5267 = vmatpush1.bf16.msra.mxu0 0
        %5268 = vmatprep.subr.bf16.mxu0 0
        %5269 = vmatpush1.bf16.msra.mxu0 0
        %5270 = vmatprep.subr.bf16.mxu0 0
        %5271 = vmatpush1.bf16.msra.mxu0 0
        %5272 = vmatprep.subr.bf16.mxu0 0
        %5273 = vmatpush1.bf16.msra.mxu0 0
        %5274 = vmatprep.mubr.bf16.mxu0 0
        %5275 = vmatmul.mubr.bf16.gmra.mrb[0].mxu0 %v5240
        %v5276 = vpop.f32.mrb[0].mxu0
        %v5277 = vadd.f32 %v5213, %v5276
        %v5278 = vpop.f32.mrb[0].mxu0
        %v5279 = vpop.f32.mrb[0].mxu0
        %v5280 = vpop.f32.mrb[0].mxu0
        %5281 = vdwg.mxu0
        %v5282 = vmax.f32 %v5277, 0.0
        %v5283 = vld [vmem:[%s69] sm:$0xf]
        %v5284 = vld [vmem:[%s69 + $0x4] sm:$0xf]
        %v5285 = vld [vmem:[%s69 + $0x8] sm:$0xf]
        %v5286 = vld [vmem:[%s69 + $0xc] sm:$0xf]
        %v5287 = vld [vmem:[%s69 + $0x10] sm:$0xf]
        %v5288 = vld [vmem:[%s69 + $0x14] sm:$0xf]
        %v5289 = vld [vmem:[%s69 + $0x18] sm:$0xf]
        %v5290 = vld [vmem:[%s69 + $0x1c] sm:$0xf]
        %v5291 = vld [vmem:[%s69 + $0x20] sm:$0xf]
        %v5292 = vld [vmem:[%s69 + $0x24] sm:$0xf]
        %v5293 = vld [vmem:[%s69 + $0x28] sm:$0xf]
        %v5294 = vld [vmem:[%s69 + $0x2c] sm:$0xf]
        %v5295 = vld [vmem:[%s69 + $0x30] sm:$0xf]
        %v5296 = vld [vmem:[%s69 + $0x34] sm:$0xf]
        %v5297 = vld [vmem:[%s69 + $0x38] sm:$0xf]
        %v5298 = vld [vmem:[%s69 + $0x3c] sm:$0xf]
        %v5299 = vpack.c.bf16 %v5282, %v5282
        %v5316 = vunpack.c.l.b16 %v5283
        %v5317 = vunpack.c.l.b16 %v5284
        %v5318 = vunpack.c.l.b16 %v5285
        %v5319 = vunpack.c.l.b16 %v5286
        %v5320 = vunpack.c.l.b16 %v5287
        %v5321 = vunpack.c.l.b16 %v5288
        %v5322 = vunpack.c.l.b16 %v5289
        %v5323 = vunpack.c.l.b16 %v5290
        %v5324 = vunpack.c.l.b16 %v5291
        %v5325 = vunpack.c.l.b16 %v5292
        %v5326 = vunpack.c.l.b16 %v5293
        %v5327 = vunpack.c.l.b16 %v5294
        %v5328 = vunpack.c.l.b16 %v5295
        %v5329 = vunpack.c.l.b16 %v5296
        %v5330 = vunpack.c.l.b16 %v5297
        %v5331 = vunpack.c.l.b16 %v5298
        %v5332 = vpack.c.b16 %v5317, %v5316
        %v5333 = vpack.c.b16 %v5319, %v5318
        %v5334 = vpack.c.b16 %v5321, %v5320
        %v5335 = vpack.c.b16 %v5323, %v5322
        %v5336 = vpack.c.b16 %v5325, %v5324
        %v5337 = vpack.c.b16 %v5327, %v5326
        %v5338 = vpack.c.b16 %v5329, %v5328
        %v5339 = vpack.c.b16 %v5331, %v5330
        %5348 = vmatprep.subr.bf16.mxu0 0
        %5349 = vmatpush1.bf16.msra.mxu0 %v5332
        %5350 = vmatprep.subr.bf16.mxu0 0
        %5351 = vmatpush1.bf16.msra.mxu0 %v5333
        %5352 = vmatprep.subr.bf16.mxu0 0
        %5353 = vmatpush1.bf16.msra.mxu0 %v5334
        %5354 = vmatprep.subr.bf16.mxu0 0
        %5355 = vmatpush1.bf16.msra.mxu0 %v5335
        %5356 = vmatprep.subr.bf16.mxu0 0
        %5357 = vmatpush1.bf16.msra.mxu0 %v5336
        %5358 = vmatprep.subr.bf16.mxu0 0
        %5359 = vmatpush1.bf16.msra.mxu0 %v5337
        %5360 = vmatprep.subr.bf16.mxu0 0
        %5361 = vmatpush1.bf16.msra.mxu0 %v5338
        %5362 = vmatprep.subr.bf16.mxu0 0
        %5363 = vmatpush1.bf16.msra.mxu0 %v5339
        %5364 = vmatprep.subr.bf16.mxu0 0
        %5365 = vmatpush1.bf16.msra.mxu0 0
        %5366 = vmatprep.subr.bf16.mxu0 0
        %5367 = vmatpush1.bf16.msra.mxu0 0
        %5368 = vmatprep.subr.bf16.mxu0 0
        %5369 = vmatpush1.bf16.msra.mxu0 0
        %5370 = vmatprep.subr.bf16.mxu0 0
        %5371 = vmatpush1.bf16.msra.mxu0 0
        %5372 = vmatprep.subr.bf16.mxu0 0
        %5373 = vmatpush1.bf16.msra.mxu0 0
        %5374 = vmatprep.subr.bf16.mxu0 0
        %5375 = vmatpush1.bf16.msra.mxu0 0
        %5376 = vmatprep.subr.bf16.mxu0 0
        %5377 = vmatpush1.bf16.msra.mxu0 0
        %5378 = vmatprep.subr.bf16.mxu0 0
        %5379 = vmatpush1.bf16.msra.mxu0 0
        %5380 = vmatprep.mubr.bf16.mxu0 0
        %5381 = vmatmul.mubr.bf16.gmra.mrb[0].mxu0 %v5299
        %v5382 = vpop.f32.mrb[0].mxu0
        %v5383 = vadd.f32 0.0, %v5382
        %v5384 = vpop.f32.mrb[0].mxu0
        %v5385 = vpop.f32.mrb[0].mxu0
        %v5386 = vpop.f32.mrb[0].mxu0
        %5387 = vdwg.mxu0
        %v5388 = vadd.f32 %v5167, %v5383
        %v5389 = vld [vmem:[%s71] sm:$0x1]
        %v5391 = vlaneseq
        %v5392 = vshrl.u32 %v5391, 7
        %v5393 = vsub.s32 0, %v5392
        %v5394 = vrot.slane %v5389, %v5393
        %v5396 = vadd.f32 %v5388, %v5394
        %s5397 = scalar_lea.vmem %s45, 3
        %v5398 = vld [vmem:[%s5397] sm:$0x1]
        %s5399 = scalar_lea.vmem %s47, 3
        %v5400 = vld [vmem:[%s5399] sm:$0x1]
        %v5401 = vsel %vm1735, %v5396, 0.0
        %5402 = vadd.xlane.f32.xlu0 %v5401
        %v5403 = vpop.xlane.xlu0 %5402
        %v5404 = vmul.f32 %v5403, %v1670
        %v5405 = vsub.f32 %v5396, %v5404
        %v5406 = vmul.f32 %v5405, %v5405
        %v5407 = vsel %vm1735, %v5406, 0.0
        %5408 = vadd.xlane.f32.xlu0 %v5407
        %v5409 = vpop.xlane.xlu0 %5408
        %v5410 = vmul.f32 %v5409, %v1670
        %v5411 = vadd.f32 %v5410, 1e-05
        %v5412 = vrsqrt.pop %v5411
        %v5413 = vmul.f32 %v5405, %v5412
        %v5415 = vlaneseq
        %v5416 = vshrl.u32 %v5415, 7
        %v5417 = vsub.s32 0, %v5416
        %v5418 = vrot.slane %v5398, %v5417
        %v5420 = vmul.f32 %v5413, %v5418
        %v5422 = vlaneseq
        %v5423 = vshrl.u32 %v5422, 7
        %v5424 = vsub.s32 0, %v5423
        %v5425 = vrot.slane %v5400, %v5424
        %v5427 = vadd.f32 %v5420, %v5425
        %s5428 = scalar_lea.vmem %s49, 96
        %v5429 = vld [vmem:[%s5428] sm:$0xf]
        %v5430 = vld [vmem:[%s5428 + $0x4] sm:$0xf]
        %v5431 = vld [vmem:[%s5428 + $0x8] sm:$0xf]
        %v5432 = vld [vmem:[%s5428 + $0xc] sm:$0xf]
        %v5433 = vld [vmem:[%s5428 + $0x10] sm:$0xf]
        %v5434 = vld [vmem:[%s5428 + $0x14] sm:$0xf]
        %v5435 = vld [vmem:[%s5428 + $0x18] sm:$0xf]
        %v5436 = vld [vmem:[%s5428 + $0x1c] sm:$0xf]
        %v5437 = vpack.c.bf16 %v5427, %v5427
        %s5438 = scalar_lea.vmem %s51, 3
        %v5439 = vld [vmem:[%s5438] sm:$0x1]
        %v5441 = vlaneseq
        %v5442 = vshrl.u32 %v5441, 7
        %v5443 = vsub.s32 0, %v5442
        %v5444 = vrot.slane %v5439, %v5443
        %v5454 = vunpack.c.l.b16 %v5429
        %v5455 = vunpack.c.l.b16 %v5430
        %v5456 = vunpack.c.l.b16 %v5431
        %v5457 = vunpack.c.l.b16 %v5432
        %v5458 = vunpack.c.l.b16 %v5433
        %v5459 = vunpack.c.l.b16 %v5434
        %v5460 = vunpack.c.l.b16 %v5435
        %v5461 = vunpack.c.l.b16 %v5436
        %v5462 = vpack.c.b16 %v5455, %v5454
        %v5463 = vpack.c.b16 %v5457, %v5456
        %v5464 = vpack.c.b16 %v5459, %v5458
        %v5465 = vpack.c.b16 %v5461, %v5460
        %v5471 = vsel %vm1735, %v5437, 0
        %5473 = vmatprep.subr.bf16.mxu0 0
        %5474 = vmatpush1.bf16.msra.mxu0 %v5462
        %5475 = vmatprep.subr.bf16.mxu0 0
        %5476 = vmatpush1.bf16.msra.mxu0 %v5463
        %5477 = vmatprep.subr.bf16.mxu0 0
        %5478 = vmatpush1.bf16.msra.mxu0 %v5464
        %5479 = vmatprep.subr.bf16.mxu0 0
        %5480 = vmatpush1.bf16.msra.mxu0 %v5465
        %5481 = vmatprep.subr.bf16.mxu0 0
        %5482 = vmatpush1.bf16.msra.mxu0 0
        %5483 = vmatprep.subr.bf16.mxu0 0
        %5484 = vmatpush1.bf16.msra.mxu0 0
        %5485 = vmatprep.subr.bf16.mxu0 0
        %5486 = vmatpush1.bf16.msra.mxu0 0
        %5487 = vmatprep.subr.bf16.mxu0 0
        %5488 = vmatpush1.bf16.msra.mxu0 0
        %5489 = vmatprep.subr.bf16.mxu0 0
        %5490 = vmatpush1.bf16.msra.mxu0 0
        %5491 = vmatprep.subr.bf16.mxu0 0
        %5492 = vmatpush1.bf16.msra.mxu0 0
        %5493 = vmatprep.subr.bf16.mxu0 0
        %5494 = vmatpush1.bf16.msra.mxu0 0
        %5495 = vmatprep.subr.bf16.mxu0 0
        %5496 = vmatpush1.bf16.msra.mxu0 0
        %5497 = vmatprep.subr.bf16.mxu0 0
        %5498 = vmatpush1.bf16.msra.mxu0 0
        %5499 = vmatprep.subr.bf16.mxu0 0
        %5500 = vmatpush1.bf16.msra.mxu0 0
        %5501 = vmatprep.subr.bf16.mxu0 0
        %5502 = vmatpush1.bf16.msra.mxu0 0
        %5503 = vmatprep.subr.bf16.mxu0 0
        %5504 = vmatpush1.bf16.msra.mxu0 0
        %5505 = vmatprep.mubr.bf16.mxu0 0
        %5506 = vmatmul.mubr.bf16.gmra.mrb[0].mxu0 %v5471
        %v5507 = vpop.f32.mrb[0].mxu0
        %v5508 = vadd.f32 %v5444, %v5507
        %v5509 = vpop.f32.mrb[0].mxu0
        %v5510 = vpop.f32.mrb[0].mxu0
        %v5511 = vpop.f32.mrb[0].mxu0
        %5512 = vdwg.mxu0
        %s5513 = scalar_lea.vmem %s49, 128
        %v5514 = vld [vmem:[%s5513] sm:$0xf]
        %v5515 = vld [vmem:[%s5513 + $0x4] sm:$0xf]
        %v5516 = vld [vmem:[%s5513 + $0x8] sm:$0xf]
        %v5517 = vld [vmem:[%s5513 + $0xc] sm:$0xf]
        %v5518 = vld [vmem:[%s5513 + $0x10] sm:$0xf]
        %v5519 = vld [vmem:[%s5513 + $0x14] sm:$0xf]
        %v5520 = vld [vmem:[%s5513 + $0x18] sm:$0xf]
        %v5521 = vld [vmem:[%s5513 + $0x1c] sm:$0xf]
        %s5522 = scalar_lea.vmem %s51, 4
        %v5523 = vld [vmem:[%s5522] sm:$0x1]
        %v5525 = vlaneseq
        %v5526 = vshrl.u32 %v5525, 7
        %v5527 = vsub.s32 0, %v5526
        %v5528 = vrot.slane %v5523, %v5527
        %v5538 = vunpack.c.l.b16 %v5514
        %v5539 = vunpack.c.l.b16 %v5515
        %v5540 = vunpack.c.l.b16 %v5516
        %v5541 = vunpack.c.l.b16 %v5517
        %v5542 = vunpack.c.l.b16 %v5518
        %v5543 = vunpack.c.l.b16 %v5519
        %v5544 = vunpack.c.l.b16 %v5520
        %v5545 = vunpack.c.l.b16 %v5521
        %v5546 = vpack.c.b16 %v5539, %v5538
        %v5547 = vpack.c.b16 %v5541, %v5540
        %v5548 = vpack.c.b16 %v5543, %v5542
        %v5549 = vpack.c.b16 %v5545, %v5544
        %5554 = vmatprep.subr.bf16.mxu0 0
        %5555 = vmatpush1.bf16.msra.mxu0 %v5546
        %5556 = vmatprep.subr.bf16.mxu0 0
        %5557 = vmatpush1.bf16.msra.mxu0 %v5547
        %5558 = vmatprep.subr.bf16.mxu0 0
        %5559 = vmatpush1.bf16.msra.mxu0 %v5548
        %5560 = vmatprep.subr.bf16.mxu0 0
        %5561 = vmatpush1.bf16.msra.mxu0 %v5549
        %5562 = vmatprep.subr.bf16.mxu0 0
        %5563 = vmatpush1.bf16.msra.mxu0 0
        %5564 = vmatprep.subr.bf16.mxu0 0
        %5565 = vmatpush1.bf16.msra.mxu0 0
        %5566 = vmatprep.subr.bf16.mxu0 0
        %5567 = vmatpush1.bf16.msra.mxu0 0
        %5568 = vmatprep.subr.bf16.mxu0 0
        %5569 = vmatpush1.bf16.msra.mxu0 0
        %5570 = vmatprep.subr.bf16.mxu0 0
        %5571 = vmatpush1.bf16.msra.mxu0 0
        %5572 = vmatprep.subr.bf16.mxu0 0
        %5573 = vmatpush1.bf16.msra.mxu0 0
        %5574 = vmatprep.subr.bf16.mxu0 0
        %5575 = vmatpush1.bf16.msra.mxu0 0
        %5576 = vmatprep.subr.bf16.mxu0 0
        %5577 = vmatpush1.bf16.msra.mxu0 0
        %5578 = vmatprep.subr.bf16.mxu0 0
        %5579 = vmatpush1.bf16.msra.mxu0 0
        %5580 = vmatprep.subr.bf16.mxu0 0
        %5581 = vmatpush1.bf16.msra.mxu0 0
        %5582 = vmatprep.subr.bf16.mxu0 0
        %5583 = vmatpush1.bf16.msra.mxu0 0
        %5584 = vmatprep.subr.bf16.mxu0 0
        %5585 = vmatpush1.bf16.msra.mxu0 0
        %5586 = vmatprep.mubr.bf16.mxu0 0
        %5587 = vmatmul.mubr.bf16.gmra.mrb[0].mxu0 %v5471
        %v5588 = vpop.f32.mrb[0].mxu0
        %v5589 = vadd.f32 %v5528, %v5588
        %v5590 = vpop.f32.mrb[0].mxu0
        %v5591 = vpop.f32.mrb[0].mxu0
        %v5592 = vpop.f32.mrb[0].mxu0
        %5593 = vdwg.mxu0
        %s5594 = scalar_lea.vmem %s49, 160
        %v5595 = vld [vmem:[%s5594] sm:$0xf]
        %v5596 = vld [vmem:[%s5594 + $0x4] sm:$0xf]
        %v5597 = vld [vmem:[%s5594 + $0x8] sm:$0xf]
        %v5598 = vld [vmem:[%s5594 + $0xc] sm:$0xf]
        %v5599 = vld [vmem:[%s5594 + $0x10] sm:$0xf]
        %v5600 = vld [vmem:[%s5594 + $0x14] sm:$0xf]
        %v5601 = vld [vmem:[%s5594 + $0x18] sm:$0xf]
        %v5602 = vld [vmem:[%s5594 + $0x1c] sm:$0xf]
        %s5603 = scalar_lea.vmem %s51, 5
        %v5604 = vld [vmem:[%s5603] sm:$0x1]
        %v5606 = vlaneseq
        %v5607 = vshrl.u32 %v5606, 7
        %v5608 = vsub.s32 0, %v5607
        %v5609 = vrot.slane %v5604, %v5608
        %v5619 = vunpack.c.l.b16 %v5595
        %v5620 = vunpack.c.l.b16 %v5596
        %v5621 = vunpack.c.l.b16 %v5597
        %v5622 = vunpack.c.l.b16 %v5598
        %v5623 = vunpack.c.l.b16 %v5599
        %v5624 = vunpack.c.l.b16 %v5600
        %v5625 = vunpack.c.l.b16 %v5601
        %v5626 = vunpack.c.l.b16 %v5602
        %v5627 = vpack.c.b16 %v5620, %v5619
        %v5628 = vpack.c.b16 %v5622, %v5621
        %v5629 = vpack.c.b16 %v5624, %v5623
        %v5630 = vpack.c.b16 %v5626, %v5625
        %5635 = vmatprep.subr.bf16.mxu0 0
        %5636 = vmatpush1.bf16.msra.mxu0 %v5627
        %5637 = vmatprep.subr.bf16.mxu0 0
        %5638 = vmatpush1.bf16.msra.mxu0 %v5628
        %5639 = vmatprep.subr.bf16.mxu0 0
        %5640 = vmatpush1.bf16.msra.mxu0 %v5629
        %5641 = vmatprep.subr.bf16.mxu0 0
        %5642 = vmatpush1.bf16.msra.mxu0 %v5630
        %5643 = vmatprep.subr.bf16.mxu0 0
        %5644 = vmatpush1.bf16.msra.mxu0 0
        %5645 = vmatprep.subr.bf16.mxu0 0
        %5646 = vmatpush1.bf16.msra.mxu0 0
        %5647 = vmatprep.subr.bf16.mxu0 0
        %5648 = vmatpush1.bf16.msra.mxu0 0
        %5649 = vmatprep.subr.bf16.mxu0 0
        %5650 = vmatpush1.bf16.msra.mxu0 0
        %5651 = vmatprep.subr.bf16.mxu0 0
        %5652 = vmatpush1.bf16.msra.mxu0 0
        %5653 = vmatprep.subr.bf16.mxu0 0
        %5654 = vmatpush1.bf16.msra.mxu0 0
        %5655 = vmatprep.subr.bf16.mxu0 0
        %5656 = vmatpush1.bf16.msra.mxu0 0
        %5657 = vmatprep.subr.bf16.mxu0 0
        %5658 = vmatpush1.bf16.msra.mxu0 0
        %5659 = vmatprep.subr.bf16.mxu0 0
        %5660 = vmatpush1.bf16.msra.mxu0 0
        %5661 = vmatprep.subr.bf16.mxu0 0
        %5662 = vmatpush1.bf16.msra.mxu0 0
        %5663 = vmatprep.subr.bf16.mxu0 0
        %5664 = vmatpush1.bf16.msra.mxu0 0
        %5665 = vmatprep.subr.bf16.mxu0 0
        %5666 = vmatpush1.bf16.msra.mxu0 0
        %5667 = vmatprep.mubr.bf16.mxu0 0
        %5668 = vmatmul.mubr.bf16.gmra.mrb[0].mxu0 %v5471
        %v5669 = vpop.f32.mrb[0].mxu0
        %v5670 = vadd.f32 %v5609, %v5669
        %v5671 = vpop.f32.mrb[0].mxu0
        %v5672 = vpop.f32.mrb[0].mxu0
        %v5673 = vpop.f32.mrb[0].mxu0
        %5674 = vdwg.mxu0
        %v5675 = vpack.c.bf16 %v5589, %v5589
        %v5677 = vsel %vm1538, %v5675, 0
        %5679 = vmatprep.subr.bf16.mxu0 0
        %5680 = vmatpush1.bf16.msra.mxu0 %v5677
        %5681 = vmatprep.subr.bf16.mxu0 0
        %5682 = vmatpush1.bf16.msra.mxu0 0
        %5683 = vmatprep.subr.bf16.mxu0 0
        %5684 = vmatpush1.bf16.msra.mxu0 0
        %5685 = vmatprep.subr.bf16.mxu0 0
        %5686 = vmatpush1.bf16.msra.mxu0 0
        %5687 = vmatprep.subr.bf16.mxu0 0
        %5688 = vmatpush1.bf16.msra.mxu0 0
        %5689 = vmatprep.subr.bf16.mxu0 0
        %5690 = vmatpush1.bf16.msra.mxu0 0
        %5691 = vmatprep.subr.bf16.mxu0 0
        %5692 = vmatpush1.bf16.msra.mxu0 0
        %5693 = vmatprep.subr.bf16.mxu0 0
        %5694 = vmatpush1.bf16.msra.mxu0 0
        %5695 = vmatprep.subr.bf16.mxu0 0
        %5696 = vmatpush1.bf16.msra.mxu0 0
        %5697 = vmatprep.subr.bf16.mxu0 0
        %5698 = vmatpush1.bf16.msra.mxu0 0
        %5699 = vmatprep.subr.bf16.mxu0 0
        %5700 = vmatpush1.bf16.msra.mxu0 0
        %5701 = vmatprep.subr.bf16.mxu0 0
        %5702 = vmatpush1.bf16.msra.mxu0 0
        %5703 = vmatprep.subr.bf16.mxu0 0
        %5704 = vmatpush1.bf16.msra.mxu0 0
        %5705 = vmatprep.subr.bf16.mxu0 0
        %5706 = vmatpush1.bf16.msra.mxu0 0
        %5707 = vmatprep.subr.bf16.mxu0 0
        %5708 = vmatpush1.bf16.msra.mxu0 0
        %5709 = vmatprep.subr.bf16.mxu0 0
        %5710 = vmatpush1.bf16.msra.mxu0 0
        %5711 = vmatprep.mubr.bf16.mxu0 0
        %5712 = vmatmul.mubr.bf16.gmra.mrb[0].mxu0 %v4110
        %v5713 = vpop.f32.mrb[0].mxu0
        %v5714 = vadd.f32 0.0, %v5713
        %v5715 = vpop.f32.mrb[0].mxu0
        %v5716 = vpop.f32.mrb[0].mxu0
        %v5717 = vadd.f32 0.0, %v5716
        %v5718 = vpop.f32.mrb[0].mxu0
        %5719 = vmatprep.mubr.bf16.mxu0 0
        %5720 = vmatmul.mubr.bf16.gmra.mrb[0].mxu0 %v4113
        %v5721 = vpop.f32.mrb[0].mxu0
        %v5722 = vadd.f32 0.0, %v5721
        %v5723 = vpop.f32.mrb[0].mxu0
        %v5724 = vpop.f32.mrb[0].mxu0
        %v5725 = vadd.f32 0.0, %v5724
        %v5726 = vpop.f32.mrb[0].mxu0
        %5727 = vmatprep.mubr.bf16.mxu0 0
        %5728 = vmatmul.mubr.bf16.gmra.mrb[0].mxu0 %v4116
        %v5729 = vpop.f32.mrb[0].mxu0
        %v5730 = vadd.f32 0.0, %v5729
        %v5731 = vpop.f32.mrb[0].mxu0
        %v5732 = vpop.f32.mrb[0].mxu0
        %v5733 = vadd.f32 0.0, %v5732
        %v5734 = vpop.f32.mrb[0].mxu0
        %5735 = vmatprep.mubr.bf16.mxu0 0
        %5736 = vmatmul.mubr.bf16.gmra.mrb[0].mxu0 %v4119
        %v5737 = vpop.f32.mrb[0].mxu0
        %v5738 = vadd.f32 0.0, %v5737
        %v5739 = vpop.f32.mrb[0].mxu0
        %v5740 = vpop.f32.mrb[0].mxu0
        %v5741 = vadd.f32 0.0, %v5740
        %v5742 = vpop.f32.mrb[0].mxu0
        %5743 = vdwg.mxu0
        %v5744 = vmul.f32 %v5714, %v4099
        %v5745 = vmul.f32 %v5717, %v4100
        %v5746 = vmul.f32 %v5722, %v4101
        %v5747 = vmul.f32 %v5725, %v4102
        %v5748 = vmul.f32 %v5730, %v4103
        %v5749 = vmul.f32 %v5733, %v4104
        %v5750 = vmul.f32 %v5738, %v4105
        %v5751 = vmul.f32 %v5741, %v4106
        %v5752 = vpack.c.bf16 %v5745, %v5744
        %v5753 = vpack.c.bf16 %v5747, %v5746
        %v5754 = vpack.c.bf16 %v5749, %v5748
        %v5755 = vpack.c.bf16 %v5751, %v5750
        %v5756 = vpack.c.bf16 %v5670, %v5670
        %v5758 = vsel %vm1538, %v5756, 0
        %5760 = vmatprep.subr.bf16.mxu0 0
        %5761 = vmatpush1.bf16.msra.mxu0 %v5758
        %5762 = vmatprep.subr.bf16.mxu0 0
        %5763 = vmatpush1.bf16.msra.mxu0 0
        %5764 = vmatprep.subr.bf16.mxu0 0
        %5765 = vmatpush1.bf16.msra.mxu0 0
        %5766 = vmatprep.subr.bf16.mxu0 0
        %5767 = vmatpush1.bf16.msra.mxu0 0
        %5768 = vmatprep.subr.bf16.mxu0 0
        %5769 = vmatpush1.bf16.msra.mxu0 0
        %5770 = vmatprep.subr.bf16.mxu0 0
        %5771 = vmatpush1.bf16.msra.mxu0 0
        %5772 = vmatprep.subr.bf16.mxu0 0
        %5773 = vmatpush1.bf16.msra.mxu0 0
        %5774 = vmatprep.subr.bf16.mxu0 0
        %5775 = vmatpush1.bf16.msra.mxu0 0
        %5776 = vmatprep.subr.bf16.mxu0 0
        %5777 = vmatpush1.bf16.msra.mxu0 0
        %5778 = vmatprep.subr.bf16.mxu0 0
        %5779 = vmatpush1.bf16.msra.mxu0 0
        %5780 = vmatprep.subr.bf16.mxu0 0
        %5781 = vmatpush1.bf16.msra.mxu0 0
        %5782 = vmatprep.subr.bf16.mxu0 0
        %5783 = vmatpush1.bf16.msra.mxu0 0
        %5784 = vmatprep.subr.bf16.mxu0 0
        %5785 = vmatpush1.bf16.msra.mxu0 0
        %5786 = vmatprep.subr.bf16.mxu0 0
        %5787 = vmatpush1.bf16.msra.mxu0 0
        %5788 = vmatprep.subr.bf16.mxu0 0
        %5789 = vmatpush1.bf16.msra.mxu0 0
        %5790 = vmatprep.subr.bf16.mxu0 0
        %5791 = vmatpush1.bf16.msra.mxu0 0
        %5792 = vmatprep.mubr.bf16.mxu0 0
        %5793 = vmatmul.mubr.bf16.gmra.mrb[0].mxu0 %v4110
        %v5794 = vpop.f32.mrb[0].mxu0
        %v5795 = vadd.f32 0.0, %v5794
        %v5796 = vpop.f32.mrb[0].mxu0
        %v5797 = vpop.f32.mrb[0].mxu0
        %v5798 = vadd.f32 0.0, %v5797
        %v5799 = vpop.f32.mrb[0].mxu0
        %5800 = vmatprep.mubr.bf16.mxu0 0
        %5801 = vmatmul.mubr.bf16.gmra.mrb[0].mxu0 %v4113
        %v5802 = vpop.f32.mrb[0].mxu0
        %v5803 = vadd.f32 0.0, %v5802
        %v5804 = vpop.f32.mrb[0].mxu0
        %v5805 = vpop.f32.mrb[0].mxu0
        %v5806 = vadd.f32 0.0, %v5805
        %v5807 = vpop.f32.mrb[0].mxu0
        %5808 = vmatprep.mubr.bf16.mxu0 0
        %5809 = vmatmul.mubr.bf16.gmra.mrb[0].mxu0 %v4116
        %v5810 = vpop.f32.mrb[0].mxu0
        %v5811 = vadd.f32 0.0, %v5810
        %v5812 = vpop.f32.mrb[0].mxu0
        %v5813 = vpop.f32.mrb[0].mxu0
        %v5814 = vadd.f32 0.0, %v5813
        %v5815 = vpop.f32.mrb[0].mxu0
        %5816 = vmatprep.mubr.bf16.mxu0 0
        %5817 = vmatmul.mubr.bf16.gmra.mrb[0].mxu0 %v4119
        %v5818 = vpop.f32.mrb[0].mxu0
        %v5819 = vadd.f32 0.0, %v5818
        %v5820 = vpop.f32.mrb[0].mxu0
        %v5821 = vpop.f32.mrb[0].mxu0
        %v5822 = vadd.f32 0.0, %v5821
        %v5823 = vpop.f32.mrb[0].mxu0
        %5824 = vdwg.mxu0
        %v5825 = vmul.f32 %v5795, %v4099
        %v5826 = vmul.f32 %v5798, %v4100
        %v5827 = vmul.f32 %v5803, %v4101
        %v5828 = vmul.f32 %v5806, %v4102
        %v5829 = vmul.f32 %v5811, %v4103
        %v5830 = vmul.f32 %v5814, %v4104
        %v5831 = vmul.f32 %v5819, %v4105
        %v5832 = vmul.f32 %v5822, %v4106
        %v5833 = vpack.c.bf16 %v5826, %v5825
        %v5834 = vpack.c.bf16 %v5828, %v5827
        %v5835 = vpack.c.bf16 %v5830, %v5829
        %v5836 = vpack.c.bf16 %v5832, %v5831
        %v5837 = vpack.c.bf16 %v5508, %v5508
        %v5839 = vsel %vm1735, %v5837, 0
        %v5842 = vsel %vm1735, %v5752, 0
        %v5845 = vsel %vm1735, %v5753, 0
        %v5848 = vsel %vm1735, %v5754, 0
        %v5851 = vsel %vm1735, %v5755, 0
        %5853 = vmatprep.subr.bf16.mxu0 0
        %5854 = vmatpush1.bf16.xpose.msra.mxu0 %v5842
        %5855 = vmatprep.subr.bf16.mxu0 0
        %5856 = vmatpush1.bf16.xpose.msra.mxu0 %v5845
        %5857 = vmatprep.subr.bf16.mxu0 0
        %5858 = vmatpush1.bf16.xpose.msra.mxu0 %v5848
        %5859 = vmatprep.subr.bf16.mxu0 0
        %5860 = vmatpush1.bf16.xpose.msra.mxu0 %v5851
        %5861 = vmatprep.subr.bf16.mxu0 0
        %5862 = vmatpush1.bf16.xpose.msra.mxu0 0
        %5863 = vmatprep.subr.bf16.mxu0 0
        %5864 = vmatpush1.bf16.xpose.msra.mxu0 0
        %5865 = vmatprep.subr.bf16.mxu0 0
        %5866 = vmatpush1.bf16.xpose.msra.mxu0 0
        %5867 = vmatprep.subr.bf16.mxu0 0
        %5868 = vmatpush1.bf16.xpose.msra.mxu0 0
        %5869 = vmatprep.subr.bf16.mxu0 0
        %5870 = vmatpush1.bf16.xpose.msra.mxu0 0
        %5871 = vmatprep.subr.bf16.mxu0 0
        %5872 = vmatpush1.bf16.xpose.msra.mxu0 0
        %5873 = vmatprep.subr.bf16.mxu0 0
        %5874 = vmatpush1.bf16.xpose.msra.mxu0 0
        %5875 = vmatprep.subr.bf16.mxu0 0
        %5876 = vmatpush1.bf16.xpose.msra.mxu0 0
        %5877 = vmatprep.subr.bf16.mxu0 0
        %5878 = vmatpush1.bf16.xpose.msra.mxu0 0
        %5879 = vmatprep.subr.bf16.mxu0 0
        %5880 = vmatpush1.bf16.xpose.msra.mxu0 0
        %5881 = vmatprep.subr.bf16.mxu0 0
        %5882 = vmatpush1.bf16.xpose.msra.mxu0 0
        %5883 = vmatprep.subr.bf16.mxu0 0
        %5884 = vmatpush1.bf16.xpose.msra.mxu0 0
        %5885 = vmatprep.mubr.bf16.mxu0 0
        %5886 = vmatmul.mubr.bf16.gmra.mrb[0].mxu0 %v5839
        %v5887 = vpop.f32.mrb[0].mxu0
        %v5888 = vadd.f32 0.0, %v5887
        %v5889 = vpop.f32.mrb[0].mxu0
        %v5890 = vpop.f32.mrb[0].mxu0
        %v5891 = vpop.f32.mrb[0].mxu0
        %5892 = vdwg.mxu0
        %v5893 = vmul.f32 %v5888, 0.35355338
        %v5894 = vadd.f32 %v5893, %v3773
        %v5895 = vsel %vm1735, %v5894, -inf
        %5896 = vmax.xlane.f32.xlu0 %v5895
        %v5897 = vpop.xlane.xlu0 %5896
        %v5898 = vsub.f32 %v5894, %v5897
        %v5899 = vmul.f32 %v5898, 1.442695
        %v5900 = vpow.pop %v5899
        %v5901 = vpack.c.bf16 %v5900, %v5900
        %v5903 = vsel %vm1735, %v5901, 0
        %5905 = vmatprep.subr.bf16.mxu0 0
        %5906 = vmatpush1.bf16.msra.mxu0 %v4347
        %5907 = vmatprep.subr.bf16.mxu0 0
        %5908 = vmatpush1.bf16.msra.mxu0 %v4348
        %5909 = vmatprep.subr.bf16.mxu0 0
        %5910 = vmatpush1.bf16.msra.mxu0 %v4349
        %5911 = vmatprep.subr.bf16.mxu0 0
        %5912 = vmatpush1.bf16.msra.mxu0 %v4350
        %5913 = vmatprep.subr.bf16.mxu0 0
        %5914 = vmatpush1.bf16.msra.mxu0 0
        %5915 = vmatprep.subr.bf16.mxu0 0
        %5916 = vmatpush1.bf16.msra.mxu0 0
        %5917 = vmatprep.subr.bf16.mxu0 0
        %5918 = vmatpush1.bf16.msra.mxu0 0
        %5919 = vmatprep.subr.bf16.mxu0 0
        %5920 = vmatpush1.bf16.msra.mxu0 0
        %5921 = vmatprep.subr.bf16.mxu0 0
        %5922 = vmatpush1.bf16.msra.mxu0 0
        %5923 = vmatprep.subr.bf16.mxu0 0
        %5924 = vmatpush1.bf16.msra.mxu0 0
        %5925 = vmatprep.subr.bf16.mxu0 0
        %5926 = vmatpush1.bf16.msra.mxu0 0
        %5927 = vmatprep.subr.bf16.mxu0 0
        %5928 = vmatpush1.bf16.msra.mxu0 0
        %5929 = vmatprep.subr.bf16.mxu0 0
        %5930 = vmatpush1.bf16.msra.mxu0 0
        %5931 = vmatprep.subr.bf16.mxu0 0
        %5932 = vmatpush1.bf16.msra.mxu0 0
        %5933 = vmatprep.subr.bf16.mxu0 0
        %5934 = vmatpush1.bf16.msra.mxu0 0
        %5935 = vmatprep.subr.bf16.mxu0 0
        %5936 = vmatpush1.bf16.msra.mxu0 0
        %5937 = vmatprep.mubr.bf16.mxu0 0
        %5938 = vmatmul.mubr.bf16.gmra.mrb[0].mxu0 %v5903
        %v5939 = vpop.f32.mrb[0].mxu0
        %v5940 = vadd.f32 0.0, %v5939
        %v5941 = vpop.f32.mrb[0].mxu0
        %v5942 = vpop.f32.mrb[0].mxu0
        %v5943 = vpop.f32.mrb[0].mxu0
        %5944 = vdwg.mxu0
        %5945 = vmatprep.subr.bf16.mxu0 0
        %5946 = vmatpush1.bf16.msra.mxu0 %v5833
        %5947 = vmatprep.subr.bf16.mxu0 0
        %5948 = vmatpush1.bf16.msra.mxu0 %v5834
        %5949 = vmatprep.subr.bf16.mxu0 0
        %5950 = vmatpush1.bf16.msra.mxu0 %v5835
        %5951 = vmatprep.subr.bf16.mxu0 0
        %5952 = vmatpush1.bf16.msra.mxu0 %v5836
        %5953 = vmatprep.subr.bf16.mxu0 0
        %5954 = vmatpush1.bf16.msra.mxu0 0
        %5955 = vmatprep.subr.bf16.mxu0 0
        %5956 = vmatpush1.bf16.msra.mxu0 0
        %5957 = vmatprep.subr.bf16.mxu0 0
        %5958 = vmatpush1.bf16.msra.mxu0 0
        %5959 = vmatprep.subr.bf16.mxu0 0
        %5960 = vmatpush1.bf16.msra.mxu0 0
        %5961 = vmatprep.subr.bf16.mxu0 0
        %5962 = vmatpush1.bf16.msra.mxu0 0
        %5963 = vmatprep.subr.bf16.mxu0 0
        %5964 = vmatpush1.bf16.msra.mxu0 0
        %5965 = vmatprep.subr.bf16.mxu0 0
        %5966 = vmatpush1.bf16.msra.mxu0 0
        %5967 = vmatprep.subr.bf16.mxu0 0
        %5968 = vmatpush1.bf16.msra.mxu0 0
        %5969 = vmatprep.subr.bf16.mxu0 0
        %5970 = vmatpush1.bf16.msra.mxu0 0
        %5971 = vmatprep.subr.bf16.mxu0 0
        %5972 = vmatpush1.bf16.msra.mxu0 0
        %5973 = vmatprep.subr.bf16.mxu0 0
        %5974 = vmatpush1.bf16.msra.mxu0 0
        %5975 = vmatprep.subr.bf16.mxu0 0
        %5976 = vmatpush1.bf16.msra.mxu0 0
        %5977 = vmatprep.mubr.bf16.mxu0 0
        %5978 = vmatmul.mubr.bf16.gmra.mrb[0].mxu0 %v5903
        %v5979 = vpop.f32.mrb[0].mxu0
        %v5980 = vadd.f32 0.0, %v5979
        %v5981 = vpop.f32.mrb[0].mxu0
        %v5982 = vpop.f32.mrb[0].mxu0
        %v5983 = vpop.f32.mrb[0].mxu0
        %5984 = vdwg.mxu0
        %v5985 = vrcp.pop %v5940
        %v5986 = vmul.f32 %v5980, %v5985
        %s5987 = scalar_lea.vmem %s53, 32
        %v5988 = vld [vmem:[%s5987] sm:$0xf]
        %v5989 = vld [vmem:[%s5987 + $0x4] sm:$0xf]
        %v5990 = vld [vmem:[%s5987 + $0x8] sm:$0xf]
        %v5991 = vld [vmem:[%s5987 + $0xc] sm:$0xf]
        %v5992 = vld [vmem:[%s5987 + $0x10] sm:$0xf]
        %v5993 = vld [vmem:[%s5987 + $0x14] sm:$0xf]
        %v5994 = vld [vmem:[%s5987 + $0x18] sm:$0xf]
        %v5995 = vld [vmem:[%s5987 + $0x1c] sm:$0xf]
        %v5996 = vpack.c.bf16 %v5986, %v5986
        %s5997 = scalar_lea.vmem %s55, 1
        %v5998 = vld [vmem:[%s5997] sm:$0x1]
        %v6000 = vlaneseq
        %v6001 = vshrl.u32 %v6000, 7
        %v6002 = vsub.s32 0, %v6001
        %v6003 = vrot.slane %v5998, %v6002
        %v6013 = vunpack.c.l.b16 %v5988
        %v6014 = vunpack.c.l.b16 %v5989
        %v6015 = vunpack.c.l.b16 %v5990
        %v6016 = vunpack.c.l.b16 %v5991
        %v6017 = vunpack.c.l.b16 %v5992
        %v6018 = vunpack.c.l.b16 %v5993
        %v6019 = vunpack.c.l.b16 %v5994
        %v6020 = vunpack.c.l.b16 %v5995
        %v6021 = vpack.c.b16 %v6014, %v6013
        %v6022 = vpack.c.b16 %v6016, %v6015
        %v6023 = vpack.c.b16 %v6018, %v6017
        %v6024 = vpack.c.b16 %v6020, %v6019
        %v6030 = vsel %vm1735, %v5996, 0
        %6032 = vmatprep.subr.bf16.mxu0 0
        %6033 = vmatpush1.bf16.msra.mxu0 %v6021
        %6034 = vmatprep.subr.bf16.mxu0 0
        %6035 = vmatpush1.bf16.msra.mxu0 %v6022
        %6036 = vmatprep.subr.bf16.mxu0 0
        %6037 = vmatpush1.bf16.msra.mxu0 %v6023
        %6038 = vmatprep.subr.bf16.mxu0 0
        %6039 = vmatpush1.bf16.msra.mxu0 %v6024
        %6040 = vmatprep.subr.bf16.mxu0 0
        %6041 = vmatpush1.bf16.msra.mxu0 0
        %6042 = vmatprep.subr.bf16.mxu0 0
        %6043 = vmatpush1.bf16.msra.mxu0 0
        %6044 = vmatprep.subr.bf16.mxu0 0
        %6045 = vmatpush1.bf16.msra.mxu0 0
        %6046 = vmatprep.subr.bf16.mxu0 0
        %6047 = vmatpush1.bf16.msra.mxu0 0
        %6048 = vmatprep.subr.bf16.mxu0 0
        %6049 = vmatpush1.bf16.msra.mxu0 0
        %6050 = vmatprep.subr.bf16.mxu0 0
        %6051 = vmatpush1.bf16.msra.mxu0 0
        %6052 = vmatprep.subr.bf16.mxu0 0
        %6053 = vmatpush1.bf16.msra.mxu0 0
        %6054 = vmatprep.subr.bf16.mxu0 0
        %6055 = vmatpush1.bf16.msra.mxu0 0
        %6056 = vmatprep.subr.bf16.mxu0 0
        %6057 = vmatpush1.bf16.msra.mxu0 0
        %6058 = vmatprep.subr.bf16.mxu0 0
        %6059 = vmatpush1.bf16.msra.mxu0 0
        %6060 = vmatprep.subr.bf16.mxu0 0
        %6061 = vmatpush1.bf16.msra.mxu0 0
        %6062 = vmatprep.subr.bf16.mxu0 0
        %6063 = vmatpush1.bf16.msra.mxu0 0
        %6064 = vmatprep.mubr.bf16.mxu0 0
        %6065 = vmatmul.mubr.bf16.gmra.mrb[0].mxu0 %v6030
        %v6066 = vpop.f32.mrb[0].mxu0
        %v6067 = vadd.f32 %v6003, %v6066
        %v6068 = vpop.f32.mrb[0].mxu0
        %v6069 = vpop.f32.mrb[0].mxu0
        %v6070 = vpop.f32.mrb[0].mxu0
        %6071 = vdwg.mxu0
        %v6072 = vadd.f32 %v5396, %v6067
        %s6073 = scalar_lea.vmem %s45, 4
        %v6074 = vld [vmem:[%s6073] sm:$0x1]
        %s6075 = scalar_lea.vmem %s47, 4
        %v6076 = vld [vmem:[%s6075] sm:$0x1]
        %v6077 = vsel %vm1735, %v6072, 0.0
        %6078 = vadd.xlane.f32.xlu0 %v6077
        %v6079 = vpop.xlane.xlu0 %6078
        %v6080 = vmul.f32 %v6079, %v1670
        %v6081 = vsub.f32 %v6072, %v6080
        %v6082 = vmul.f32 %v6081, %v6081
        %v6083 = vsel %vm1735, %v6082, 0.0
        %6084 = vadd.xlane.f32.xlu0 %v6083
        %v6085 = vpop.xlane.xlu0 %6084
        %v6086 = vmul.f32 %v6085, %v1670
        %v6087 = vadd.f32 %v6086, 1e-05
        %v6088 = vrsqrt.pop %v6087
        %v6089 = vmul.f32 %v6081, %v6088
        %v6091 = vlaneseq
        %v6092 = vshrl.u32 %v6091, 7
        %v6093 = vsub.s32 0, %v6092
        %v6094 = vrot.slane %v6074, %v6093
        %v6096 = vmul.f32 %v6089, %v6094
        %v6098 = vlaneseq
        %v6099 = vshrl.u32 %v6098, 7
        %v6100 = vsub.s32 0, %v6099
        %v6101 = vrot.slane %v6076, %v6100
        %v6103 = vadd.f32 %v6096, %v6101
        %s6104 = scalar_lea.vmem %s57, 96
        %v6105 = vld [vmem:[%s6104] sm:$0xf]
        %v6106 = vld [vmem:[%s6104 + $0x4] sm:$0xf]
        %v6107 = vld [vmem:[%s6104 + $0x8] sm:$0xf]
        %v6108 = vld [vmem:[%s6104 + $0xc] sm:$0xf]
        %v6109 = vld [vmem:[%s6104 + $0x10] sm:$0xf]
        %v6110 = vld [vmem:[%s6104 + $0x14] sm:$0xf]
        %v6111 = vld [vmem:[%s6104 + $0x18] sm:$0xf]
        %v6112 = vld [vmem:[%s6104 + $0x1c] sm:$0xf]
        %v6113 = vpack.c.bf16 %v6103, %v6103
        %s6114 = scalar_lea.vmem %s59, 3
        %v6115 = vld [vmem:[%s6114] sm:$0x1]
        %v6117 = vlaneseq
        %v6118 = vshrl.u32 %v6117, 7
        %v6119 = vsub.s32 0, %v6118
        %v6120 = vrot.slane %v6115, %v6119
        %v6130 = vunpack.c.l.b16 %v6105
        %v6131 = vunpack.c.l.b16 %v6106
        %v6132 = vunpack.c.l.b16 %v6107
        %v6133 = vunpack.c.l.b16 %v6108
        %v6134 = vunpack.c.l.b16 %v6109
        %v6135 = vunpack.c.l.b16 %v6110
        %v6136 = vunpack.c.l.b16 %v6111
        %v6137 = vunpack.c.l.b16 %v6112
        %v6138 = vpack.c.b16 %v6131, %v6130
        %v6139 = vpack.c.b16 %v6133, %v6132
        %v6140 = vpack.c.b16 %v6135, %v6134
        %v6141 = vpack.c.b16 %v6137, %v6136
        %v6147 = vsel %vm1735, %v6113, 0
        %6149 = vmatprep.subr.bf16.mxu0 0
        %6150 = vmatpush1.bf16.msra.mxu0 %v6138
        %6151 = vmatprep.subr.bf16.mxu0 0
        %6152 = vmatpush1.bf16.msra.mxu0 %v6139
        %6153 = vmatprep.subr.bf16.mxu0 0
        %6154 = vmatpush1.bf16.msra.mxu0 %v6140
        %6155 = vmatprep.subr.bf16.mxu0 0
        %6156 = vmatpush1.bf16.msra.mxu0 %v6141
        %6157 = vmatprep.subr.bf16.mxu0 0
        %6158 = vmatpush1.bf16.msra.mxu0 0
        %6159 = vmatprep.subr.bf16.mxu0 0
        %6160 = vmatpush1.bf16.msra.mxu0 0
        %6161 = vmatprep.subr.bf16.mxu0 0
        %6162 = vmatpush1.bf16.msra.mxu0 0
        %6163 = vmatprep.subr.bf16.mxu0 0
        %6164 = vmatpush1.bf16.msra.mxu0 0
        %6165 = vmatprep.subr.bf16.mxu0 0
        %6166 = vmatpush1.bf16.msra.mxu0 0
        %6167 = vmatprep.subr.bf16.mxu0 0
        %6168 = vmatpush1.bf16.msra.mxu0 0
        %6169 = vmatprep.subr.bf16.mxu0 0
        %6170 = vmatpush1.bf16.msra.mxu0 0
        %6171 = vmatprep.subr.bf16.mxu0 0
        %6172 = vmatpush1.bf16.msra.mxu0 0
        %6173 = vmatprep.subr.bf16.mxu0 0
        %6174 = vmatpush1.bf16.msra.mxu0 0
        %6175 = vmatprep.subr.bf16.mxu0 0
        %6176 = vmatpush1.bf16.msra.mxu0 0
        %6177 = vmatprep.subr.bf16.mxu0 0
        %6178 = vmatpush1.bf16.msra.mxu0 0
        %6179 = vmatprep.subr.bf16.mxu0 0
        %6180 = vmatpush1.bf16.msra.mxu0 0
        %6181 = vmatprep.mubr.bf16.mxu0 0
        %6182 = vmatmul.mubr.bf16.gmra.mrb[0].mxu0 %v6147
        %v6183 = vpop.f32.mrb[0].mxu0
        %v6184 = vadd.f32 %v6120, %v6183
        %v6185 = vpop.f32.mrb[0].mxu0
        %v6186 = vpop.f32.mrb[0].mxu0
        %v6187 = vpop.f32.mrb[0].mxu0
        %6188 = vdwg.mxu0
        %s6189 = scalar_lea.vmem %s57, 128
        %v6190 = vld [vmem:[%s6189] sm:$0xf]
        %v6191 = vld [vmem:[%s6189 + $0x4] sm:$0xf]
        %v6192 = vld [vmem:[%s6189 + $0x8] sm:$0xf]
        %v6193 = vld [vmem:[%s6189 + $0xc] sm:$0xf]
        %v6194 = vld [vmem:[%s6189 + $0x10] sm:$0xf]
        %v6195 = vld [vmem:[%s6189 + $0x14] sm:$0xf]
        %v6196 = vld [vmem:[%s6189 + $0x18] sm:$0xf]
        %v6197 = vld [vmem:[%s6189 + $0x1c] sm:$0xf]
        %s6198 = scalar_lea.vmem %s59, 4
        %v6199 = vld [vmem:[%s6198] sm:$0x1]
        %v6201 = vlaneseq
        %v6202 = vshrl.u32 %v6201, 7
        %v6203 = vsub.s32 0, %v6202
        %v6204 = vrot.slane %v6199, %v6203
        %v6214 = vunpack.c.l.b16 %v6190
        %v6215 = vunpack.c.l.b16 %v6191
        %v6216 = vunpack.c.l.b16 %v6192
        %v6217 = vunpack.c.l.b16 %v6193
        %v6218 = vunpack.c.l.b16 %v6194
        %v6219 = vunpack.c.l.b16 %v6195
        %v6220 = vunpack.c.l.b16 %v6196
        %v6221 = vunpack.c.l.b16 %v6197
        %v6222 = vpack.c.b16 %v6215, %v6214
        %v6223 = vpack.c.b16 %v6217, %v6216
        %v6224 = vpack.c.b16 %v6219, %v6218
        %v6225 = vpack.c.b16 %v6221, %v6220
        %6230 = vmatprep.subr.bf16.mxu0 0
        %6231 = vmatpush1.bf16.msra.mxu0 %v6222
        %6232 = vmatprep.subr.bf16.mxu0 0
        %6233 = vmatpush1.bf16.msra.mxu0 %v6223
        %6234 = vmatprep.subr.bf16.mxu0 0
        %6235 = vmatpush1.bf16.msra.mxu0 %v6224
        %6236 = vmatprep.subr.bf16.mxu0 0
        %6237 = vmatpush1.bf16.msra.mxu0 %v6225
        %6238 = vmatprep.subr.bf16.mxu0 0
        %6239 = vmatpush1.bf16.msra.mxu0 0
        %6240 = vmatprep.subr.bf16.mxu0 0
        %6241 = vmatpush1.bf16.msra.mxu0 0
        %6242 = vmatprep.subr.bf16.mxu0 0
        %6243 = vmatpush1.bf16.msra.mxu0 0
        %6244 = vmatprep.subr.bf16.mxu0 0
        %6245 = vmatpush1.bf16.msra.mxu0 0
        %6246 = vmatprep.subr.bf16.mxu0 0
        %6247 = vmatpush1.bf16.msra.mxu0 0
        %6248 = vmatprep.subr.bf16.mxu0 0
        %6249 = vmatpush1.bf16.msra.mxu0 0
        %6250 = vmatprep.subr.bf16.mxu0 0
        %6251 = vmatpush1.bf16.msra.mxu0 0
        %6252 = vmatprep.subr.bf16.mxu0 0
        %6253 = vmatpush1.bf16.msra.mxu0 0
        %6254 = vmatprep.subr.bf16.mxu0 0
        %6255 = vmatpush1.bf16.msra.mxu0 0
        %6256 = vmatprep.subr.bf16.mxu0 0
        %6257 = vmatpush1.bf16.msra.mxu0 0
        %6258 = vmatprep.subr.bf16.mxu0 0
        %6259 = vmatpush1.bf16.msra.mxu0 0
        %6260 = vmatprep.subr.bf16.mxu0 0
        %6261 = vmatpush1.bf16.msra.mxu0 0
        %6262 = vmatprep.mubr.bf16.mxu0 0
        %6263 = vmatmul.mubr.bf16.gmra.mrb[0].mxu0 %v4677
        %v6264 = vpop.f32.mrb[0].mxu0
        %v6265 = vadd.f32 %v6204, %v6264
        %v6266 = vpop.f32.mrb[0].mxu0
        %v6267 = vpop.f32.mrb[0].mxu0
        %v6268 = vpop.f32.mrb[0].mxu0
        %6269 = vdwg.mxu0
        %s6270 = scalar_lea.vmem %s57, 160
        %v6271 = vld [vmem:[%s6270] sm:$0xf]
        %v6272 = vld [vmem:[%s6270 + $0x4] sm:$0xf]
        %v6273 = vld [vmem:[%s6270 + $0x8] sm:$0xf]
        %v6274 = vld [vmem:[%s6270 + $0xc] sm:$0xf]
        %v6275 = vld [vmem:[%s6270 + $0x10] sm:$0xf]
        %v6276 = vld [vmem:[%s6270 + $0x14] sm:$0xf]
        %v6277 = vld [vmem:[%s6270 + $0x18] sm:$0xf]
        %v6278 = vld [vmem:[%s6270 + $0x1c] sm:$0xf]
        %s6279 = scalar_lea.vmem %s59, 5
        %v6280 = vld [vmem:[%s6279] sm:$0x1]
        %v6282 = vlaneseq
        %v6283 = vshrl.u32 %v6282, 7
        %v6284 = vsub.s32 0, %v6283
        %v6285 = vrot.slane %v6280, %v6284
        %v6295 = vunpack.c.l.b16 %v6271
        %v6296 = vunpack.c.l.b16 %v6272
        %v6297 = vunpack.c.l.b16 %v6273
        %v6298 = vunpack.c.l.b16 %v6274
        %v6299 = vunpack.c.l.b16 %v6275
        %v6300 = vunpack.c.l.b16 %v6276
        %v6301 = vunpack.c.l.b16 %v6277
        %v6302 = vunpack.c.l.b16 %v6278
        %v6303 = vpack.c.b16 %v6296, %v6295
        %v6304 = vpack.c.b16 %v6298, %v6297
        %v6305 = vpack.c.b16 %v6300, %v6299
        %v6306 = vpack.c.b16 %v6302, %v6301
        %6311 = vmatprep.subr.bf16.mxu0 0
        %6312 = vmatpush1.bf16.msra.mxu0 %v6303
        %6313 = vmatprep.subr.bf16.mxu0 0
        %6314 = vmatpush1.bf16.msra.mxu0 %v6304
        %6315 = vmatprep.subr.bf16.mxu0 0
        %6316 = vmatpush1.bf16.msra.mxu0 %v6305
        %6317 = vmatprep.subr.bf16.mxu0 0
        %6318 = vmatpush1.bf16.msra.mxu0 %v6306
        %6319 = vmatprep.subr.bf16.mxu0 0
        %6320 = vmatpush1.bf16.msra.mxu0 0
        %6321 = vmatprep.subr.bf16.mxu0 0
        %6322 = vmatpush1.bf16.msra.mxu0 0
        %6323 = vmatprep.subr.bf16.mxu0 0
        %6324 = vmatpush1.bf16.msra.mxu0 0
        %6325 = vmatprep.subr.bf16.mxu0 0
        %6326 = vmatpush1.bf16.msra.mxu0 0
        %6327 = vmatprep.subr.bf16.mxu0 0
        %6328 = vmatpush1.bf16.msra.mxu0 0
        %6329 = vmatprep.subr.bf16.mxu0 0
        %6330 = vmatpush1.bf16.msra.mxu0 0
        %6331 = vmatprep.subr.bf16.mxu0 0
        %6332 = vmatpush1.bf16.msra.mxu0 0
        %6333 = vmatprep.subr.bf16.mxu0 0
        %6334 = vmatpush1.bf16.msra.mxu0 0
        %6335 = vmatprep.subr.bf16.mxu0 0
        %6336 = vmatpush1.bf16.msra.mxu0 0
        %6337 = vmatprep.subr.bf16.mxu0 0
        %6338 = vmatpush1.bf16.msra.mxu0 0
        %6339 = vmatprep.subr.bf16.mxu0 0
        %6340 = vmatpush1.bf16.msra.mxu0 0
        %6341 = vmatprep.subr.bf16.mxu0 0
        %6342 = vmatpush1.bf16.msra.mxu0 0
        %6343 = vmatprep.mubr.bf16.mxu0 0
        %6344 = vmatmul.mubr.bf16.gmra.mrb[0].mxu0 %v4677
        %v6345 = vpop.f32.mrb[0].mxu0
        %v6346 = vadd.f32 %v6285, %v6345
        %v6347 = vpop.f32.mrb[0].mxu0
        %v6348 = vpop.f32.mrb[0].mxu0
        %v6349 = vpop.f32.mrb[0].mxu0
        %6350 = vdwg.mxu0
        %v6351 = vpack.c.bf16 %v6265, %v6265
        %v6353 = vsel %vm1965, %v6351, 0
        %6355 = vmatprep.subr.bf16.mxu0 0
        %6356 = vmatpush1.bf16.msra.mxu0 %v6353
        %6357 = vmatprep.subr.bf16.mxu0 0
        %6358 = vmatpush1.bf16.msra.mxu0 0
        %6359 = vmatprep.subr.bf16.mxu0 0
        %6360 = vmatpush1.bf16.msra.mxu0 0
        %6361 = vmatprep.subr.bf16.mxu0 0
        %6362 = vmatpush1.bf16.msra.mxu0 0
        %6363 = vmatprep.subr.bf16.mxu0 0
        %6364 = vmatpush1.bf16.msra.mxu0 0
        %6365 = vmatprep.subr.bf16.mxu0 0
        %6366 = vmatpush1.bf16.msra.mxu0 0
        %6367 = vmatprep.subr.bf16.mxu0 0
        %6368 = vmatpush1.bf16.msra.mxu0 0
        %6369 = vmatprep.subr.bf16.mxu0 0
        %6370 = vmatpush1.bf16.msra.mxu0 0
        %6371 = vmatprep.subr.bf16.mxu0 0
        %6372 = vmatpush1.bf16.msra.mxu0 0
        %6373 = vmatprep.subr.bf16.mxu0 0
        %6374 = vmatpush1.bf16.msra.mxu0 0
        %6375 = vmatprep.subr.bf16.mxu0 0
        %6376 = vmatpush1.bf16.msra.mxu0 0
        %6377 = vmatprep.subr.bf16.mxu0 0
        %6378 = vmatpush1.bf16.msra.mxu0 0
        %6379 = vmatprep.subr.bf16.mxu0 0
        %6380 = vmatpush1.bf16.msra.mxu0 0
        %6381 = vmatprep.subr.bf16.mxu0 0
        %6382 = vmatpush1.bf16.msra.mxu0 0
        %6383 = vmatprep.subr.bf16.mxu0 0
        %6384 = vmatpush1.bf16.msra.mxu0 0
        %6385 = vmatprep.subr.bf16.mxu0 0
        %6386 = vmatpush1.bf16.msra.mxu0 0
        %6387 = vmatprep.mubr.bf16.mxu0 0
        %6388 = vmatmul.mubr.bf16.gmra.mrb[0].mxu0 %v1963
        %v6389 = vpop.f32.mrb[0].mxu0
        %v6390 = vadd.f32 0.0, %v6389
        %v6391 = vpop.f32.mrb[0].mxu0
        %v6392 = vpop.f32.mrb[0].mxu0
        %v6393 = vadd.f32 0.0, %v6392
        %v6394 = vpop.f32.mrb[0].mxu0
        %6395 = vmatprep.mubr.bf16.mxu0 0
        %6396 = vmatmul.mubr.bf16.gmra.mrb[0].mxu0 %v4819
        %v6397 = vpop.f32.mrb[0].mxu0
        %v6398 = vadd.f32 0.0, %v6397
        %v6399 = vpop.f32.mrb[0].mxu0
        %v6400 = vpop.f32.mrb[0].mxu0
        %v6401 = vadd.f32 0.0, %v6400
        %v6402 = vpop.f32.mrb[0].mxu0
        %6403 = vdwg.mxu0
        %v6404 = vmul.f32 %v6390, %v4813
        %v6405 = vmul.f32 %v6393, %v4814
        %v6406 = vmul.f32 %v6398, %v4815
        %v6407 = vmul.f32 %v6401, %v4816
        %v6408 = vpack.c.bf16 %v6405, %v6404
        %v6409 = vpack.c.bf16 %v6407, %v6406
        %v6410 = vpack.c.bf16 %v6346, %v6346
        %v6412 = vsel %vm1965, %v6410, 0
        %6414 = vmatprep.subr.bf16.mxu0 0
        %6415 = vmatpush1.bf16.msra.mxu0 %v6412
        %6416 = vmatprep.subr.bf16.mxu0 0
        %6417 = vmatpush1.bf16.msra.mxu0 0
        %6418 = vmatprep.subr.bf16.mxu0 0
        %6419 = vmatpush1.bf16.msra.mxu0 0
        %6420 = vmatprep.subr.bf16.mxu0 0
        %6421 = vmatpush1.bf16.msra.mxu0 0
        %6422 = vmatprep.subr.bf16.mxu0 0
        %6423 = vmatpush1.bf16.msra.mxu0 0
        %6424 = vmatprep.subr.bf16.mxu0 0
        %6425 = vmatpush1.bf16.msra.mxu0 0
        %6426 = vmatprep.subr.bf16.mxu0 0
        %6427 = vmatpush1.bf16.msra.mxu0 0
        %6428 = vmatprep.subr.bf16.mxu0 0
        %6429 = vmatpush1.bf16.msra.mxu0 0
        %6430 = vmatprep.subr.bf16.mxu0 0
        %6431 = vmatpush1.bf16.msra.mxu0 0
        %6432 = vmatprep.subr.bf16.mxu0 0
        %6433 = vmatpush1.bf16.msra.mxu0 0
        %6434 = vmatprep.subr.bf16.mxu0 0
        %6435 = vmatpush1.bf16.msra.mxu0 0
        %6436 = vmatprep.subr.bf16.mxu0 0
        %6437 = vmatpush1.bf16.msra.mxu0 0
        %6438 = vmatprep.subr.bf16.mxu0 0
        %6439 = vmatpush1.bf16.msra.mxu0 0
        %6440 = vmatprep.subr.bf16.mxu0 0
        %6441 = vmatpush1.bf16.msra.mxu0 0
        %6442 = vmatprep.subr.bf16.mxu0 0
        %6443 = vmatpush1.bf16.msra.mxu0 0
        %6444 = vmatprep.subr.bf16.mxu0 0
        %6445 = vmatpush1.bf16.msra.mxu0 0
        %6446 = vmatprep.mubr.bf16.mxu0 0
        %6447 = vmatmul.mubr.bf16.gmra.mrb[0].mxu0 %v1963
        %v6448 = vpop.f32.mrb[0].mxu0
        %v6449 = vadd.f32 0.0, %v6448
        %v6450 = vpop.f32.mrb[0].mxu0
        %v6451 = vpop.f32.mrb[0].mxu0
        %v6452 = vadd.f32 0.0, %v6451
        %v6453 = vpop.f32.mrb[0].mxu0
        %6454 = vmatprep.mubr.bf16.mxu0 0
        %6455 = vmatmul.mubr.bf16.gmra.mrb[0].mxu0 %v4819
        %v6456 = vpop.f32.mrb[0].mxu0
        %v6457 = vadd.f32 0.0, %v6456
        %v6458 = vpop.f32.mrb[0].mxu0
        %v6459 = vpop.f32.mrb[0].mxu0
        %v6460 = vadd.f32 0.0, %v6459
        %v6461 = vpop.f32.mrb[0].mxu0
        %6462 = vdwg.mxu0
        %v6463 = vmul.f32 %v6449, %v4813
        %v6464 = vmul.f32 %v6452, %v4814
        %v6465 = vmul.f32 %v6457, %v4815
        %v6466 = vmul.f32 %v6460, %v4816
        %v6467 = vpack.c.bf16 %v6464, %v6463
        %v6468 = vpack.c.bf16 %v6466, %v6465
        %v6469 = vpack.c.bf16 %v6184, %v6184
        %v6471 = vsel %vm1735, %v6469, 0
        %v6474 = vsel %vm1735, %v6408, 0
        %v6477 = vsel %vm1735, %v6409, 0
        %6479 = vmatprep.subr.bf16.mxu0 0
        %6480 = vmatpush1.bf16.xpose.msra.mxu0 %v6474
        %6481 = vmatprep.subr.bf16.mxu0 0
        %6482 = vmatpush1.bf16.xpose.msra.mxu0 %v6477
        %6483 = vmatprep.subr.bf16.mxu0 0
        %6484 = vmatpush1.bf16.xpose.msra.mxu0 0
        %6485 = vmatprep.subr.bf16.mxu0 0
        %6486 = vmatpush1.bf16.xpose.msra.mxu0 0
        %6487 = vmatprep.subr.bf16.mxu0 0
        %6488 = vmatpush1.bf16.xpose.msra.mxu0 0
        %6489 = vmatprep.subr.bf16.mxu0 0
        %6490 = vmatpush1.bf16.xpose.msra.mxu0 0
        %6491 = vmatprep.subr.bf16.mxu0 0
        %6492 = vmatpush1.bf16.xpose.msra.mxu0 0
        %6493 = vmatprep.subr.bf16.mxu0 0
        %6494 = vmatpush1.bf16.xpose.msra.mxu0 0
        %6495 = vmatprep.subr.bf16.mxu0 0
        %6496 = vmatpush1.bf16.xpose.msra.mxu0 0
        %6497 = vmatprep.subr.bf16.mxu0 0
        %6498 = vmatpush1.bf16.xpose.msra.mxu0 0
        %6499 = vmatprep.subr.bf16.mxu0 0
        %6500 = vmatpush1.bf16.xpose.msra.mxu0 0
        %6501 = vmatprep.subr.bf16.mxu0 0
        %6502 = vmatpush1.bf16.xpose.msra.mxu0 0
        %6503 = vmatprep.subr.bf16.mxu0 0
        %6504 = vmatpush1.bf16.xpose.msra.mxu0 0
        %6505 = vmatprep.subr.bf16.mxu0 0
        %6506 = vmatpush1.bf16.xpose.msra.mxu0 0
        %6507 = vmatprep.subr.bf16.mxu0 0
        %6508 = vmatpush1.bf16.xpose.msra.mxu0 0
        %6509 = vmatprep.subr.bf16.mxu0 0
        %6510 = vmatpush1.bf16.xpose.msra.mxu0 0
        %6511 = vmatprep.mubr.bf16.mxu0 0
        %6512 = vmatmul.mubr.bf16.gmra.mrb[0].mxu0 %v6471
        %v6513 = vpop.f32.mrb[0].mxu0
        %v6514 = vadd.f32 0.0, %v6513
        %v6515 = vpop.f32.mrb[0].mxu0
        %v6516 = vpop.f32.mrb[0].mxu0
        %v6517 = vpop.f32.mrb[0].mxu0
        %6518 = vdwg.mxu0
        %v6519 = vmul.f32 %v6514, 0.35355338
        %v6520 = vsel %vm4989, %v6519, -inf
        %6521 = vmax.xlane.f32.xlu0 %v6520
        %v6522 = vpop.xlane.xlu0 %6521
        %v6523 = vsub.f32 %v6519, %v6522
        %v6524 = vmul.f32 %v6523, 1.442695
        %v6525 = vpow.pop %v6524
        %v6526 = vpack.c.bf16 %v6525, %v6525
        %v6528 = vsel %vm4989, %v6526, 0
        %6530 = vmatprep.subr.bf16.mxu0 0
        %6531 = vmatpush1.bf16.msra.mxu0 %v4997
        %6532 = vmatprep.subr.bf16.mxu0 0
        %6533 = vmatpush1.bf16.msra.mxu0 %v4998
        %6534 = vmatprep.subr.bf16.mxu0 0
        %6535 = vmatpush1.bf16.msra.mxu0 0
        %6536 = vmatprep.subr.bf16.mxu0 0
        %6537 = vmatpush1.bf16.msra.mxu0 0
        %6538 = vmatprep.subr.bf16.mxu0 0
        %6539 = vmatpush1.bf16.msra.mxu0 0
        %6540 = vmatprep.subr.bf16.mxu0 0
        %6541 = vmatpush1.bf16.msra.mxu0 0
        %6542 = vmatprep.subr.bf16.mxu0 0
        %6543 = vmatpush1.bf16.msra.mxu0 0
        %6544 = vmatprep.subr.bf16.mxu0 0
        %6545 = vmatpush1.bf16.msra.mxu0 0
        %6546 = vmatprep.subr.bf16.mxu0 0
        %6547 = vmatpush1.bf16.msra.mxu0 0
        %6548 = vmatprep.subr.bf16.mxu0 0
        %6549 = vmatpush1.bf16.msra.mxu0 0
        %6550 = vmatprep.subr.bf16.mxu0 0
        %6551 = vmatpush1.bf16.msra.mxu0 0
        %6552 = vmatprep.subr.bf16.mxu0 0
        %6553 = vmatpush1.bf16.msra.mxu0 0
        %6554 = vmatprep.subr.bf16.mxu0 0
        %6555 = vmatpush1.bf16.msra.mxu0 0
        %6556 = vmatprep.subr.bf16.mxu0 0
        %6557 = vmatpush1.bf16.msra.mxu0 0
        %6558 = vmatprep.subr.bf16.mxu0 0
        %6559 = vmatpush1.bf16.msra.mxu0 0
        %6560 = vmatprep.subr.bf16.mxu0 0
        %6561 = vmatpush1.bf16.msra.mxu0 0
        %6562 = vmatprep.mubr.bf16.mxu0 0
        %6563 = vmatmul.mubr.bf16.gmra.mrb[0].mxu0 %v6528
        %v6564 = vpop.f32.mrb[0].mxu0
        %v6565 = vadd.f32 0.0, %v6564
        %v6566 = vpop.f32.mrb[0].mxu0
        %v6567 = vpop.f32.mrb[0].mxu0
        %v6568 = vpop.f32.mrb[0].mxu0
        %6569 = vdwg.mxu0
        %6570 = vmatprep.subr.bf16.mxu0 0
        %6571 = vmatpush1.bf16.msra.mxu0 %v6467
        %6572 = vmatprep.subr.bf16.mxu0 0
        %6573 = vmatpush1.bf16.msra.mxu0 %v6468
        %6574 = vmatprep.subr.bf16.mxu0 0
        %6575 = vmatpush1.bf16.msra.mxu0 0
        %6576 = vmatprep.subr.bf16.mxu0 0
        %6577 = vmatpush1.bf16.msra.mxu0 0
        %6578 = vmatprep.subr.bf16.mxu0 0
        %6579 = vmatpush1.bf16.msra.mxu0 0
        %6580 = vmatprep.subr.bf16.mxu0 0
        %6581 = vmatpush1.bf16.msra.mxu0 0
        %6582 = vmatprep.subr.bf16.mxu0 0
        %6583 = vmatpush1.bf16.msra.mxu0 0
        %6584 = vmatprep.subr.bf16.mxu0 0
        %6585 = vmatpush1.bf16.msra.mxu0 0
        %6586 = vmatprep.subr.bf16.mxu0 0
        %6587 = vmatpush1.bf16.msra.mxu0 0
        %6588 = vmatprep.subr.bf16.mxu0 0
        %6589 = vmatpush1.bf16.msra.mxu0 0
        %6590 = vmatprep.subr.bf16.mxu0 0
        %6591 = vmatpush1.bf16.msra.mxu0 0
        %6592 = vmatprep.subr.bf16.mxu0 0
        %6593 = vmatpush1.bf16.msra.mxu0 0
        %6594 = vmatprep.subr.bf16.mxu0 0
        %6595 = vmatpush1.bf16.msra.mxu0 0
        %6596 = vmatprep.subr.bf16.mxu0 0
        %6597 = vmatpush1.bf16.msra.mxu0 0
        %6598 = vmatprep.subr.bf16.mxu0 0
        %6599 = vmatpush1.bf16.msra.mxu0 0
        %6600 = vmatprep.subr.bf16.mxu0 0
        %6601 = vmatpush1.bf16.msra.mxu0 0
        %6602 = vmatprep.mubr.bf16.mxu0 0
        %6603 = vmatmul.mubr.bf16.gmra.mrb[0].mxu0 %v6528
        %v6604 = vpop.f32.mrb[0].mxu0
        %v6605 = vadd.f32 0.0, %v6604
        %v6606 = vpop.f32.mrb[0].mxu0
        %v6607 = vpop.f32.mrb[0].mxu0
        %v6608 = vpop.f32.mrb[0].mxu0
        %6609 = vdwg.mxu0
        %v6610 = vrcp.pop %v6565
        %v6611 = vmul.f32 %v6605, %v6610
        %s6612 = scalar_lea.vmem %s61, 32
        %v6613 = vld [vmem:[%s6612] sm:$0xf]
        %v6614 = vld [vmem:[%s6612 + $0x4] sm:$0xf]
        %v6615 = vld [vmem:[%s6612 + $0x8] sm:$0xf]
        %v6616 = vld [vmem:[%s6612 + $0xc] sm:$0xf]
        %v6617 = vld [vmem:[%s6612 + $0x10] sm:$0xf]
        %v6618 = vld [vmem:[%s6612 + $0x14] sm:$0xf]
        %v6619 = vld [vmem:[%s6612 + $0x18] sm:$0xf]
        %v6620 = vld [vmem:[%s6612 + $0x1c] sm:$0xf]
        %v6621 = vpack.c.bf16 %v6611, %v6611
        %s6622 = scalar_lea.vmem %s63, 1
        %v6623 = vld [vmem:[%s6622] sm:$0x1]
        %v6625 = vlaneseq
        %v6626 = vshrl.u32 %v6625, 7
        %v6627 = vsub.s32 0, %v6626
        %v6628 = vrot.slane %v6623, %v6627
        %v6638 = vunpack.c.l.b16 %v6613
        %v6639 = vunpack.c.l.b16 %v6614
        %v6640 = vunpack.c.l.b16 %v6615
        %v6641 = vunpack.c.l.b16 %v6616
        %v6642 = vunpack.c.l.b16 %v6617
        %v6643 = vunpack.c.l.b16 %v6618
        %v6644 = vunpack.c.l.b16 %v6619
        %v6645 = vunpack.c.l.b16 %v6620
        %v6646 = vpack.c.b16 %v6639, %v6638
        %v6647 = vpack.c.b16 %v6641, %v6640
        %v6648 = vpack.c.b16 %v6643, %v6642
        %v6649 = vpack.c.b16 %v6645, %v6644
        %v6655 = vsel %vm1735, %v6621, 0
        %6657 = vmatprep.subr.bf16.mxu0 0
        %6658 = vmatpush1.bf16.msra.mxu0 %v6646
        %6659 = vmatprep.subr.bf16.mxu0 0
        %6660 = vmatpush1.bf16.msra.mxu0 %v6647
        %6661 = vmatprep.subr.bf16.mxu0 0
        %6662 = vmatpush1.bf16.msra.mxu0 %v6648
        %6663 = vmatprep.subr.bf16.mxu0 0
        %6664 = vmatpush1.bf16.msra.mxu0 %v6649
        %6665 = vmatprep.subr.bf16.mxu0 0
        %6666 = vmatpush1.bf16.msra.mxu0 0
        %6667 = vmatprep.subr.bf16.mxu0 0
        %6668 = vmatpush1.bf16.msra.mxu0 0
        %6669 = vmatprep.subr.bf16.mxu0 0
        %6670 = vmatpush1.bf16.msra.mxu0 0
        %6671 = vmatprep.subr.bf16.mxu0 0
        %6672 = vmatpush1.bf16.msra.mxu0 0
        %6673 = vmatprep.subr.bf16.mxu0 0
        %6674 = vmatpush1.bf16.msra.mxu0 0
        %6675 = vmatprep.subr.bf16.mxu0 0
        %6676 = vmatpush1.bf16.msra.mxu0 0
        %6677 = vmatprep.subr.bf16.mxu0 0
        %6678 = vmatpush1.bf16.msra.mxu0 0
        %6679 = vmatprep.subr.bf16.mxu0 0
        %6680 = vmatpush1.bf16.msra.mxu0 0
        %6681 = vmatprep.subr.bf16.mxu0 0
        %6682 = vmatpush1.bf16.msra.mxu0 0
        %6683 = vmatprep.subr.bf16.mxu0 0
        %6684 = vmatpush1.bf16.msra.mxu0 0
        %6685 = vmatprep.subr.bf16.mxu0 0
        %6686 = vmatpush1.bf16.msra.mxu0 0
        %6687 = vmatprep.subr.bf16.mxu0 0
        %6688 = vmatpush1.bf16.msra.mxu0 0
        %6689 = vmatprep.mubr.bf16.mxu0 0
        %6690 = vmatmul.mubr.bf16.gmra.mrb[0].mxu0 %v6655
        %v6691 = vpop.f32.mrb[0].mxu0
        %v6692 = vadd.f32 %v6628, %v6691
        %v6693 = vpop.f32.mrb[0].mxu0
        %v6694 = vpop.f32.mrb[0].mxu0
        %v6695 = vpop.f32.mrb[0].mxu0
        %6696 = vdwg.mxu0
        %v6697 = vadd.f32 %v6072, %v6692
        %s6698 = scalar_lea.vmem %s45, 5
        %v6699 = vld [vmem:[%s6698] sm:$0x1]
        %s6700 = scalar_lea.vmem %s47, 5
        %v6701 = vld [vmem:[%s6700] sm:$0x1]
        %v6702 = vsel %vm1735, %v6697, 0.0
        %6703 = vadd.xlane.f32.xlu0 %v6702
        %v6704 = vpop.xlane.xlu0 %6703
        %v6705 = vmul.f32 %v6704, %v1670
        %v6706 = vsub.f32 %v6697, %v6705
        %v6707 = vmul.f32 %v6706, %v6706
        %v6708 = vsel %vm1735, %v6707, 0.0
        %6709 = vadd.xlane.f32.xlu0 %v6708
        %v6710 = vpop.xlane.xlu0 %6709
        %v6711 = vmul.f32 %v6710, %v1670
        %v6712 = vadd.f32 %v6711, 1e-05
        %v6713 = vrsqrt.pop %v6712
        %v6714 = vmul.f32 %v6706, %v6713
        %v6716 = vlaneseq
        %v6717 = vshrl.u32 %v6716, 7
        %v6718 = vsub.s32 0, %v6717
        %v6719 = vrot.slane %v6699, %v6718
        %v6721 = vmul.f32 %v6714, %v6719
        %v6723 = vlaneseq
        %v6724 = vshrl.u32 %v6723, 7
        %v6725 = vsub.s32 0, %v6724
        %v6726 = vrot.slane %v6701, %v6725
        %v6728 = vadd.f32 %v6721, %v6726
        %s6729 = scalar_lea.vmem %s65, 32
        %v6730 = vld [vmem:[%s6729] sm:$0xf]
        %v6731 = vld [vmem:[%s6729 + $0x4] sm:$0xf]
        %v6732 = vld [vmem:[%s6729 + $0x8] sm:$0xf]
        %v6733 = vld [vmem:[%s6729 + $0xc] sm:$0xf]
        %v6734 = vld [vmem:[%s6729 + $0x10] sm:$0xf]
        %v6735 = vld [vmem:[%s6729 + $0x14] sm:$0xf]
        %v6736 = vld [vmem:[%s6729 + $0x18] sm:$0xf]
        %v6737 = vld [vmem:[%s6729 + $0x1c] sm:$0xf]
        %v6738 = vpack.c.bf16 %v6728, %v6728
        %s6739 = scalar_lea.vmem %s67, 1
        %v6740 = vld [vmem:[%s6739] sm:$0x1]
        %v6742 = vlaneseq
        %v6743 = vshrl.u32 %v6742, 7
        %v6744 = vsub.s32 0, %v6743
        %v6745 = vrot.slane %v6740, %v6744
        %v6755 = vunpack.c.l.b16 %v6730
        %v6756 = vunpack.c.l.b16 %v6731
        %v6757 = vunpack.c.l.b16 %v6732
        %v6758 = vunpack.c.l.b16 %v6733
        %v6759 = vunpack.c.l.b16 %v6734
        %v6760 = vunpack.c.l.b16 %v6735
        %v6761 = vunpack.c.l.b16 %v6736
        %v6762 = vunpack.c.l.b16 %v6737
        %v6763 = vpack.c.b16 %v6756, %v6755
        %v6764 = vpack.c.b16 %v6758, %v6757
        %v6765 = vpack.c.b16 %v6760, %v6759
        %v6766 = vpack.c.b16 %v6762, %v6761
        %v6772 = vsel %vm1735, %v6738, 0
        %6774 = vmatprep.subr.bf16.mxu0 0
        %6775 = vmatpush1.bf16.msra.mxu0 %v6763
        %6776 = vmatprep.subr.bf16.mxu0 0
        %6777 = vmatpush1.bf16.msra.mxu0 %v6764
        %6778 = vmatprep.subr.bf16.mxu0 0
        %6779 = vmatpush1.bf16.msra.mxu0 %v6765
        %6780 = vmatprep.subr.bf16.mxu0 0
        %6781 = vmatpush1.bf16.msra.mxu0 %v6766
        %6782 = vmatprep.subr.bf16.mxu0 0
        %6783 = vmatpush1.bf16.msra.mxu0 0
        %6784 = vmatprep.subr.bf16.mxu0 0
        %6785 = vmatpush1.bf16.msra.mxu0 0
        %6786 = vmatprep.subr.bf16.mxu0 0
        %6787 = vmatpush1.bf16.msra.mxu0 0
        %6788 = vmatprep.subr.bf16.mxu0 0
        %6789 = vmatpush1.bf16.msra.mxu0 0
        %6790 = vmatprep.subr.bf16.mxu0 0
        %6791 = vmatpush1.bf16.msra.mxu0 0
        %6792 = vmatprep.subr.bf16.mxu0 0
        %6793 = vmatpush1.bf16.msra.mxu0 0
        %6794 = vmatprep.subr.bf16.mxu0 0
        %6795 = vmatpush1.bf16.msra.mxu0 0
        %6796 = vmatprep.subr.bf16.mxu0 0
        %6797 = vmatpush1.bf16.msra.mxu0 0
        %6798 = vmatprep.subr.bf16.mxu0 0
        %6799 = vmatpush1.bf16.msra.mxu0 0
        %6800 = vmatprep.subr.bf16.mxu0 0
        %6801 = vmatpush1.bf16.msra.mxu0 0
        %6802 = vmatprep.subr.bf16.mxu0 0
        %6803 = vmatpush1.bf16.msra.mxu0 0
        %6804 = vmatprep.subr.bf16.mxu0 0
        %6805 = vmatpush1.bf16.msra.mxu0 0
        %6806 = vmatprep.mubr.bf16.mxu0 0
        %6807 = vmatmul.mubr.bf16.gmra.mrb[0].mxu0 %v6772
        %v6808 = vpop.f32.mrb[0].mxu0
        %v6809 = vadd.f32 %v6745, %v6808
        %v6810 = vpop.f32.mrb[0].mxu0
        %v6811 = vpop.f32.mrb[0].mxu0
        %v6812 = vpop.f32.mrb[0].mxu0
        %6813 = vdwg.mxu0
        %v6814 = vmax.f32 %v6809, 0.0
        %s6815 = scalar_lea.vmem %s69, 64
        %v6816 = vld [vmem:[%s6815] sm:$0xf]
        %v6817 = vld [vmem:[%s6815 + $0x4] sm:$0xf]
        %v6818 = vld [vmem:[%s6815 + $0x8] sm:$0xf]
        %v6819 = vld [vmem:[%s6815 + $0xc] sm:$0xf]
        %v6820 = vld [vmem:[%s6815 + $0x10] sm:$0xf]
        %v6821 = vld [vmem:[%s6815 + $0x14] sm:$0xf]
        %v6822 = vld [vmem:[%s6815 + $0x18] sm:$0xf]
        %v6823 = vld [vmem:[%s6815 + $0x1c] sm:$0xf]
        %v6824 = vld [vmem:[%s6815 + $0x20] sm:$0xf]
        %v6825 = vld [vmem:[%s6815 + $0x24] sm:$0xf]
        %v6826 = vld [vmem:[%s6815 + $0x28] sm:$0xf]
        %v6827 = vld [vmem:[%s6815 + $0x2c] sm:$0xf]
        %v6828 = vld [vmem:[%s6815 + $0x30] sm:$0xf]
        %v6829 = vld [vmem:[%s6815 + $0x34] sm:$0xf]
        %v6830 = vld [vmem:[%s6815 + $0x38] sm:$0xf]
        %v6831 = vld [vmem:[%s6815 + $0x3c] sm:$0xf]
        %v6832 = vpack.c.bf16 %v6814, %v6814
        %v6849 = vunpack.c.l.b16 %v6816
        %v6850 = vunpack.c.l.b16 %v6817
        %v6851 = vunpack.c.l.b16 %v6818
        %v6852 = vunpack.c.l.b16 %v6819
        %v6853 = vunpack.c.l.b16 %v6820
        %v6854 = vunpack.c.l.b16 %v6821
        %v6855 = vunpack.c.l.b16 %v6822
        %v6856 = vunpack.c.l.b16 %v6823
        %v6857 = vunpack.c.l.b16 %v6824
        %v6858 = vunpack.c.l.b16 %v6825
        %v6859 = vunpack.c.l.b16 %v6826
        %v6860 = vunpack.c.l.b16 %v6827
        %v6861 = vunpack.c.l.b16 %v6828
        %v6862 = vunpack.c.l.b16 %v6829
        %v6863 = vunpack.c.l.b16 %v6830
        %v6864 = vunpack.c.l.b16 %v6831
        %v6865 = vpack.c.b16 %v6850, %v6849
        %v6866 = vpack.c.b16 %v6852, %v6851
        %v6867 = vpack.c.b16 %v6854, %v6853
        %v6868 = vpack.c.b16 %v6856, %v6855
        %v6869 = vpack.c.b16 %v6858, %v6857
        %v6870 = vpack.c.b16 %v6860, %v6859
        %v6871 = vpack.c.b16 %v6862, %v6861
        %v6872 = vpack.c.b16 %v6864, %v6863
        %6881 = vmatprep.subr.bf16.mxu0 0
        %6882 = vmatpush1.bf16.msra.mxu0 %v6865
        %6883 = vmatprep.subr.bf16.mxu0 0
        %6884 = vmatpush1.bf16.msra.mxu0 %v6866
        %6885 = vmatprep.subr.bf16.mxu0 0
        %6886 = vmatpush1.bf16.msra.mxu0 %v6867
        %6887 = vmatprep.subr.bf16.mxu0 0
        %6888 = vmatpush1.bf16.msra.mxu0 %v6868
        %6889 = vmatprep.subr.bf16.mxu0 0
        %6890 = vmatpush1.bf16.msra.mxu0 %v6869
        %6891 = vmatprep.subr.bf16.mxu0 0
        %6892 = vmatpush1.bf16.msra.mxu0 %v6870
        %6893 = vmatprep.subr.bf16.mxu0 0
        %6894 = vmatpush1.bf16.msra.mxu0 %v6871
        %6895 = vmatprep.subr.bf16.mxu0 0
        %6896 = vmatpush1.bf16.msra.mxu0 %v6872
        %6897 = vmatprep.subr.bf16.mxu0 0
        %6898 = vmatpush1.bf16.msra.mxu0 0
        %6899 = vmatprep.subr.bf16.mxu0 0
        %6900 = vmatpush1.bf16.msra.mxu0 0
        %6901 = vmatprep.subr.bf16.mxu0 0
        %6902 = vmatpush1.bf16.msra.mxu0 0
        %6903 = vmatprep.subr.bf16.mxu0 0
        %6904 = vmatpush1.bf16.msra.mxu0 0
        %6905 = vmatprep.subr.bf16.mxu0 0
        %6906 = vmatpush1.bf16.msra.mxu0 0
        %6907 = vmatprep.subr.bf16.mxu0 0
        %6908 = vmatpush1.bf16.msra.mxu0 0
        %6909 = vmatprep.subr.bf16.mxu0 0
        %6910 = vmatpush1.bf16.msra.mxu0 0
        %6911 = vmatprep.subr.bf16.mxu0 0
        %6912 = vmatpush1.bf16.msra.mxu0 0
        %6913 = vmatprep.mubr.bf16.mxu0 0
        %6914 = vmatmul.mubr.bf16.gmra.mrb[0].mxu0 %v6832
        %v6915 = vpop.f32.mrb[0].mxu0
        %v6916 = vadd.f32 0.0, %v6915
        %v6917 = vpop.f32.mrb[0].mxu0
        %v6918 = vpop.f32.mrb[0].mxu0
        %v6919 = vpop.f32.mrb[0].mxu0
        %6920 = vdwg.mxu0
        %v6921 = vadd.f32 %v6697, %v6916
        %s6922 = scalar_lea.vmem %s71, 1
        %v6923 = vld [vmem:[%s6922] sm:$0x1]
        %v6925 = vlaneseq
        %v6926 = vshrl.u32 %v6925, 7
        %v6927 = vsub.s32 0, %v6926
        %v6928 = vrot.slane %v6923, %v6927
        %v6930 = vadd.f32 %v6921, %v6928
        %v6931 = vld [vmem:[%s73] sm:$0x1]
        %v6932 = vld [vmem:[%s75] sm:$0x1]
        %v6933 = vsel %vm1735, %v6930, 0.0
        %6934 = vadd.xlane.f32.xlu0 %v6933
        %v6935 = vpop.xlane.xlu0 %6934
        %v6936 = vmul.f32 %v6935, %v1670
        %v6937 = vsub.f32 %v6930, %v6936
        %v6938 = vmul.f32 %v6937, %v6937
        %v6939 = vsel %vm1735, %v6938, 0.0
        %6940 = vadd.xlane.f32.xlu0 %v6939
        %v6941 = vpop.xlane.xlu0 %6940
        %v6942 = vmul.f32 %v6941, %v1670
        %v6943 = vadd.f32 %v6942, 1e-05
        %v6944 = vrsqrt.pop %v6943
        %v6945 = vmul.f32 %v6937, %v6944
        %v6947 = vlaneseq
        %v6948 = vshrl.u32 %v6947, 7
        %v6949 = vsub.s32 0, %v6948
        %v6950 = vrot.slane %v6931, %v6949
        %v6952 = vmul.f32 %v6945, %v6950
        %v6954 = vlaneseq
        %v6955 = vshrl.u32 %v6954, 7
        %v6956 = vsub.s32 0, %v6955
        %v6957 = vrot.slane %v6932, %v6956
        %v6959 = vadd.f32 %v6952, %v6957
        %v6960 = vld [vmem:[%s77] sm:$0xf]
        %v6961 = vld [vmem:[%s77 + $0x4] sm:$0xf]
        %v6962 = vld [vmem:[%s77 + $0x8] sm:$0xf]
        %v6963 = vld [vmem:[%s77 + $0xc] sm:$0xf]
        %v6964 = vld [vmem:[%s77 + $0x10] sm:$0xf]
        %v6965 = vld [vmem:[%s77 + $0x14] sm:$0xf]
        %v6966 = vld [vmem:[%s77 + $0x18] sm:$0xf]
        %v6967 = vld [vmem:[%s77 + $0x1c] sm:$0xf]
        %v6968 = vpack.c.bf16 %v6959, %v6959
        %v6977 = vunpack.c.l.b16 %v6960
        %v6978 = vunpack.c.l.b16 %v6961
        %v6979 = vunpack.c.l.b16 %v6962
        %v6980 = vunpack.c.l.b16 %v6963
        %v6981 = vunpack.c.l.b16 %v6964
        %v6982 = vunpack.c.l.b16 %v6965
        %v6983 = vunpack.c.l.b16 %v6966
        %v6984 = vunpack.c.l.b16 %v6967
        %v6985 = vpack.c.b16 %v6978, %v6977
        %v6986 = vpack.c.b16 %v6980, %v6979
        %v6987 = vpack.c.b16 %v6982, %v6981
        %v6988 = vpack.c.b16 %v6984, %v6983
        %v6994 = vsel %vm1735, %v6968, 0
        %6996 = vmatprep.subr.bf16.mxu0 0
        %6997 = vmatpush1.bf16.msra.mxu0 %v6985
        %6998 = vmatprep.subr.bf16.mxu0 0
        %6999 = vmatpush1.bf16.msra.mxu0 %v6986
        %7000 = vmatprep.subr.bf16.mxu0 0
        %7001 = vmatpush1.bf16.msra.mxu0 %v6987
        %7002 = vmatprep.subr.bf16.mxu0 0
        %7003 = vmatpush1.bf16.msra.mxu0 %v6988
        %7004 = vmatprep.subr.bf16.mxu0 0
        %7005 = vmatpush1.bf16.msra.mxu0 0
        %7006 = vmatprep.subr.bf16.mxu0 0
        %7007 = vmatpush1.bf16.msra.mxu0 0
        %7008 = vmatprep.subr.bf16.mxu0 0
        %7009 = vmatpush1.bf16.msra.mxu0 0
        %7010 = vmatprep.subr.bf16.mxu0 0
        %7011 = vmatpush1.bf16.msra.mxu0 0
        %7012 = vmatprep.subr.bf16.mxu0 0
        %7013 = vmatpush1.bf16.msra.mxu0 0
        %7014 = vmatprep.subr.bf16.mxu0 0
        %7015 = vmatpush1.bf16.msra.mxu0 0
        %7016 = vmatprep.subr.bf16.mxu0 0
        %7017 = vmatpush1.bf16.msra.mxu0 0
        %7018 = vmatprep.subr.bf16.mxu0 0
        %7019 = vmatpush1.bf16.msra.mxu0 0
        %7020 = vmatprep.subr.bf16.mxu0 0
        %7021 = vmatpush1.bf16.msra.mxu0 0
        %7022 = vmatprep.subr.bf16.mxu0 0
        %7023 = vmatpush1.bf16.msra.mxu0 0
        %7024 = vmatprep.subr.bf16.mxu0 0
        %7025 = vmatpush1.bf16.msra.mxu0 0
        %7026 = vmatprep.subr.bf16.mxu0 0
        %7027 = vmatpush1.bf16.msra.mxu0 0
        %7028 = vmatprep.mubr.bf16.mxu0 0
        %7029 = vmatmul.mubr.bf16.gmra.mrb[0].mxu0 %v6994
        %v7030 = vpop.f32.mrb[0].mxu0
        %v7031 = vadd.f32 0.0, %v7030
        %v7032 = vpop.f32.mrb[0].mxu0
        %v7033 = vpop.f32.mrb[0].mxu0
        %v7034 = vpop.f32.mrb[0].mxu0
        %7035 = vdwg.mxu0
        %7036 = vst [vmem:[%s1199] sm:$0xff] %v7031
        %s7037 = sand.u32 %s935, 1
        %s7038 = scalar_lea.sflag [#allocation3], %s7037
        %s7039 = sand.u32 %s935, 1
        %s7040 = smul.addr %s7039, 8
        %s7041 = scalar_lea.vmem [#allocation2], %s7040
        // Predicated region
        $region177: #{generator_forward.1} parent=175 // pred_check
          %p7042 = pneg %p945
        $region178: #{generator_forward.1} parent=175 // pred_check_branch
          %7044 = sbr.rel (%p7042) target = $region180
        $region179: #{generator_forward.1} parent=175 // pred_region
          %s7046 = ssub.s32 128, 128
          %7047 = vsyncadd %s7038, %s7046
          %s7048 = smul.addr %s93, 128
          %s7049 = scalar_lea.hbm %s79, %s7048
          %s7051 = sshll.u32 %s7041, 4
          %s7052 = int_to_ptr.vmem [resolvable:$true] %s7051
          %7054 = dma.vmem_to_hbm [thread:$0]  %s7052, 128, %s7049, %s7038
        $region180: #{generator_forward.1} parent=175 // pred_fallthru
          _
      $region176: #{generator_forward.1} parent=5 // pred_fallthru
        _
      %p7055 = scmp.le.s32.totalorder 2, %s88
      // Predicated region
      $region181: #{generator_forward.1} parent=5 // pred_check
        %p7056 = pneg %p7055
      $region182: #{generator_forward.1} parent=5 // pred_check_branch
        %7058 = sbr.rel (%p7056) target = $region184
      $region183: #{generator_forward.1} parent=5 // pred_region
        %s7059 = ssub.s32 %s88, 2
        // Predicated region
        $region185: #{generator_forward.1} parent=183 // pred_check
          %p7060 = pneg %p951
        $region186: #{generator_forward.1} parent=183 // pred_check_branch
          %7062 = sbr.rel (%p7060) target = $region188
        $region187: #{generator_forward.1} parent=183 // pred_region
          %s7063 = sand.u32 %s936, 1
          %s7064 = scalar_lea.sflag [#allocation3], %s7063
          %s7065 = sand.u32 %s936, 1
          %s7066 = smul.addr %s7065, 8
          %s7067 = scalar_lea.vmem [#allocation2], %s7066
          %7068 = dma.done %s7064, 128
        $region188: #{generator_forward.1} parent=183 // pred_fallthru
          _
      $region184: #{generator_forward.1} parent=5 // pred_fallthru
        _
    $region6: #{generator_forward.1} parent=1 // loop_footer
      %s92 = sadd.s32 1, %s88
    $region7: #{generator_forward.1} parent=1 // loop_footer_branch
      %87 = sbr.rel target = $region3
    $region8: #{generator_forward.1} parent=1 // loop_exit
      _
    %7069 = vsyncpa [#allocation3], 1
    %s7070 = scalar_lea.sflag [#allocation3], 1
    %7071 = vsyncpa %s7070, 1

</llo_original>
